<compile_context>
chip_gen: v7x
topology: tpu7x:2x2x1
jax: 0.10.0
libtpu: 0.0.40
codegen_flags: <defaults>
</compile_context>

<pallas_src>
import functools

import jax
import jax.numpy as jnp
import numpy as np
from jax.experimental import pallas as pl
from jax.experimental.pallas import tpu as pltpu

IN_DIM = 3
MLP_CHANNELS = (IN_DIM, 64, 128, 256, 64)
FEA_COMPRE = 16          # compression output dim
BN_EPS = 1e-5


def _round_up(x, m):
    return ((x + m - 1) // m) * m


# --------------------------------------------------------------------------
# Kernel 1: fused  bn0 -> 4 x (Linear + BN(eval) + ReLU) -> compression MLP
#           (BN scales + biases folded into W/t on the host)
# --------------------------------------------------------------------------
def _mlp_kernel(x_ref,
                w1_ref, t1_ref,
                w2_ref, t2_ref,
                w3_ref, t3_ref,
                w4_ref, t4_ref,
                wc_ref, tc_ref,
                s14_ref, s2_ref, s3_ref, c_ref, *, chunk):
    d1 = w1_ref.shape[1]
    d4 = w4_ref.shape[1]
    n_chunks = x_ref.shape[0] // chunk

    # Chunked (trace-time unrolled) body: per-chunk intermediates stay near the
    # vreg file instead of round-tripping whole-tile f32 h2/h3 through VMEM
    # scratch, and each skip output is stored as soon as it is produced.
    for j in range(n_chunks):
        r0, r1 = j * chunk, (j + 1) * chunk
        x = x_ref[r0:r1, :]                                    # [chunk, 3] f32

        # layer 1 (3 -> 64): bn0 + Linear bias + bn1 folded into w1/t1; only 3
        # input channels, so 3 VPU broadcast FMAs beat a zero-padded MXU pass.
        h1 = jnp.maximum(
            x[:, 0:1] * w1_ref[0:1, :]
            + x[:, 1:2] * w1_ref[1:2, :]
            + x[:, 2:3] * w1_ref[2:3, :]
            + t1_ref[...], 0.0)                                # [chunk, 64] f32
        h1b = h1.astype(jnp.bfloat16)
        s14_ref[r0:r1, 0:d1] = h1b        # store skip1 now -> free its vregs

        # layer 2 (64 -> 128)
        h2b = jnp.maximum(
            jnp.dot(h1b, w2_ref[...], preferred_element_type=jnp.float32)
            + t2_ref[...], 0.0).astype(jnp.bfloat16)
        s2_ref[r0:r1, :] = h2b

        # layer 3 (128 -> 256)
        h3b = jnp.maximum(
            jnp.dot(h2b, w3_ref[...], preferred_element_type=jnp.float32)
            + t3_ref[...], 0.0).astype(jnp.bfloat16)
        s3_ref[r0:r1, :] = h3b

        # layer 4 (256 -> 64)
        h4b = jnp.maximum(
            jnp.dot(h3b, w4_ref[...], preferred_element_type=jnp.float32)
            + t4_ref[...], 0.0).astype(jnp.bfloat16)
        s14_ref[r0:r1, d1:d1 + d4] = h4b  # [skip1 | skip4] lane-dense slab

        # fea_compression: Linear + ReLU (64 -> 16)
        comp = jnp.maximum(
            jnp.dot(h4b, wc_ref[...], preferred_element_type=jnp.float32)
            + tc_ref[...], 0.0)
        c_ref[r0:r1, :] = comp.astype(jnp.bfloat16)


# --------------------------------------------------------------------------
# Kernel 2: segment-max over voxels (scatter_max(feats, idx, dim=0)[0])
#   Points are pre-sorted by voxel id in the wrapper.  Each grid step streams
#   n_sub * sub_pts sorted points and loops over sub_pts-point sub-windows;
#   each sub-window does a masked max (points on lanes) into an 8-aligned
#   [win, F] slice of the VMEM-resident accumulator.
# --------------------------------------------------------------------------
def _segmax_kernel(bases_ref, vid_ref, featT_ref, out_ref, *,
                   sub_pts, n_sub, win, n_feat):
    t = pl.program_id(0)

    @pl.when(t == 0)
    def _():
        out_ref[...] = jnp.full(out_ref.shape, -jnp.inf, jnp.float32)

    for j in range(n_sub):                                     # static unroll
        c0 = j * sub_pts
        base = bases_ref[t * n_sub + j]                        # 8-aligned base
        rel = vid_ref[:, c0:c0 + sub_pts] - base               # [1, T] in [0, win)
        wids = jax.lax.broadcasted_iota(jnp.int32, (win, sub_pts), 0)
        mask = wids == rel                                     # [win, T]

        cols = []
        for fi in range(n_feat):
            row = featT_ref[fi:fi + 1, c0:c0 + sub_pts]        # [1, T] cdtype
            neg = jnp.array(-jnp.inf, dtype=row.dtype)
            cols.append(jnp.max(jnp.where(mask, row, neg), axis=1, keepdims=True))
        local = jnp.concatenate(cols, axis=1).astype(jnp.float32)   # [win, F]

        b8 = pl.multiple_of(base, 8)                           # aligned RMW
        cur = out_ref[pl.ds(b8, win), :]
        out_ref[pl.ds(b8, win), :] = jnp.maximum(cur, local)


# --------------------------------------------------------------------------
# Parameter setup (deterministic, synthetic)
# --------------------------------------------------------------------------
def init_params(key):
    keys = iter(jax.random.split(key, 64))

    def bn(dim):
        gamma = 1.0 + 0.1 * jax.random.normal(next(keys), (dim,), jnp.float32)
        beta = 0.1 * jax.random.normal(next(keys), (dim,), jnp.float32)
        mean = 0.1 * jax.random.normal(next(keys), (dim,), jnp.float32)
        var = 0.5 + jnp.abs(jax.random.normal(next(keys), (dim,), jnp.float32))
        return gamma, beta, mean, var

    def linear(fi, fo):
        bound = 1.0 / np.sqrt(fi)
        w = jax.random.uniform(next(keys), (fi, fo), jnp.float32, -bound, bound)
        b = jax.random.uniform(next(keys), (fo,), jnp.float32, -bound, bound)
        return w, b

    params = {"bn0": bn(IN_DIM), "layers": [], "compress": None}
    for i in range(len(MLP_CHANNELS) - 1):
        params["layers"].append(
            (linear(MLP_CHANNELS[i], MLP_CHANNELS[i + 1]), bn(MLP_CHANNELS[i + 1])))
    params["compress"] = linear(MLP_CHANNELS[-1], FEA_COMPRE)
    return params


def _fold_bn(gamma, beta, mean, var):
    s = gamma / jnp.sqrt(var + BN_EPS)
    t = beta - mean * s
    return s, t


def _segmax_compute_dtype():
    """bf16 mask/max only where the VPU/XLU has bf16 (v6e / v7x)."""
    try:
        kind = jax.devices()[0].device_kind.lower()
    except Exception:
        return jnp.float32
    if "v6" in kind or "v7" in kind or "tpu7" in kind:
        return jnp.bfloat16
    return jnp.float32


# --------------------------------------------------------------------------
# Scatter-max wrapper: sort by voxel id + Pallas segment-max kernel
# --------------------------------------------------------------------------
def scatter_max_pallas(feats, idx, num_voxels, sub_pts=128, n_sub=8):
    n, f = feats.shape
    idx = idx.astype(jnp.int32)
    cdtype = _segmax_compute_dtype()

    # sort points by voxel id (XLA sort/gather; no Pallas sort primitive)
    order = jnp.argsort(idx)
    svid = jnp.take(idx, order)
    sfeat = jnp.take(feats.astype(cdtype), order, axis=0)

    outer_pts = sub_pts * n_sub
    n_outer = max(pl.cdiv(n, outer_pts), 1)
    n_pad = n_outer * outer_pts
    if n_pad != n:
        # pad with the max voxel id and -inf feats: contributes nothing.
        svid = jnp.concatenate(
            [svid, jnp.full((n_pad - n,), num_voxels - 1, jnp.int32)])
        sfeat = jnp.concatenate(
            [sfeat, jnp.full((n_pad - n, f), -jnp.inf, cdtype)], axis=0)

    # 8-aligned sub-window bases (flat 1-D -> cheap SMEM prefetch) and a
    # data-driven window size.  NOTE: the int() forces a host sync, so this
    # wrapper is eager-only; under jit use the static upper bound sub_pts + 8.
    n_win = n_outer * n_sub
    first = svid[jnp.arange(n_win) * sub_pts]
    last = svid[(jnp.arange(n_win) + 1) * sub_pts - 1]
    bases = (first // 8) * 8                                   # [n_win] i32
    span = int(jnp.max(last - bases)) + 1
    assert span <= sub_pts + 8, \
        "voxel ids must be a gap-free unique-inverse (every id appears >= once)"
    win = max(8, min(_round_up(span, 8), sub_pts + 8))

    vid_row = svid[None, :]                                    # [1, n_pad]
    featT = sfeat.T                                            # [F, n_pad]
    v_pad = _round_up(num_voxels + win, 8)                     # window head-room

    # TODO(synk): the accumulator is lane-padded [v_pad, 16->128] f32; tile it
    # over voxel blocks (data-dependent out index_map) for very large scans.
    assert num_voxels <= 96_000, \
        "VMEM-resident segmax accumulator too large; voxel-tile the output"

    out = pl.pallas_call(
        functools.partial(_segmax_kernel, sub_pts=sub_pts, n_sub=n_sub,
                          win=win, n_feat=f),
        grid_spec=pltpu.PrefetchScalarGridSpec(
            num_scalar_prefetch=1,
            grid=(n_outer,),
            in_specs=[pl.BlockSpec((1, outer_pts), lambda t, bases: (0, t)),
                      pl.BlockSpec((f, outer_pts), lambda t, bases: (0, t))],
            out_specs=pl.BlockSpec((v_pad, f), lambda t, bases: (0, 0)),
        ),
        out_shape=jax.ShapeDtypeStruct((v_pad, f), jnp.float32),
        compiler_params=pltpu.CompilerParams(
            dimension_semantics=("arbitrary",),   # sequential accumulator RMW
            vmem_limit_bytes=64 << 20),
    )(bases, vid_row, featT)
    # TODO(synk): v7x dual-core split (two point halves + trailing max merge).
    return out[:num_voxels]


# --------------------------------------------------------------------------
# Wrapper: parameter folding + pallas_call for the fused point MLP
# --------------------------------------------------------------------------
def cylinder_point_mlp_forward(point_feats, upsampling_index, params,
                               num_voxels, tile_n=2048, chunk_n=256,
                               scatter_sub=128, scatter_nsub=8):
    n, c_in = point_feats.shape
    assert c_in == IN_DIM
    assert tile_n % chunk_n == 0
    d1, d2, d3, d4 = MLP_CHANNELS[1:]

    # ---- fold bn0 / biases / per-layer BN into effective weights & shifts ----
    s0, t0 = _fold_bn(*params["bn0"])
    (w1, b1), bn1 = params["layers"][0]
    s1, sh1 = _fold_bn(*bn1)
    w1_eff = (s0[:, None] * w1) * s1[None, :]                  # [3, 64]  f32
    t1_eff = ((t0 @ w1) * s1 + b1 * s1 + sh1)[None, :]         # [1, 64]  f32

    ws, ts = [], []
    for (w, b), bn in params["layers"][1:]:
        s, sh = _fold_bn(*bn)
        ws.append((w * s[None, :]).astype(jnp.bfloat16))       # folded weight
        ts.append(((b * s) + sh)[None, :].astype(jnp.float32)) # folded shift
    wc, bc = params["compress"]
    wc = wc.astype(jnp.bfloat16)
    bc = bc[None, :].astype(jnp.float32)

    # ---- tile selection: big tiles, but keep >= 2 grid steps when n allows
    # (v7x shards a 'parallel' grid across its 2 TensorCores) ----
    tile_eff = tile_n
    while tile_eff >= 2 * chunk_n and pl.cdiv(n, tile_eff) < 2:
        tile_eff //= 2
    grid_n = max(pl.cdiv(n, tile_eff), 1)
    n_pad = grid_n * tile_eff

    x = point_feats.astype(jnp.float32)
    if n_pad != n:
        x = jnp.concatenate(
            [x, jnp.zeros((n_pad - n, IN_DIM), jnp.float32)], axis=0)

    def rep(a):                       # broadcast (grid-invariant) operand
        return pl.BlockSpec(a.shape, lambda i: (0, 0))

    def row(d):                       # per-point-tile operand / output
        return pl.BlockSpec((tile_eff, d), lambda i: (i, 0))

    flops = 2 * n_pad * (IN_DIM * d1 + d1 * d2 + d2 * d3 + d3 * d4
                         + d4 * FEA_COMPRE)
    bytes_accessed = n_pad * (IN_DIM * 4 + 2 * (d1 + d2 + d3 + d4 + FEA_COMPRE))
    cost = pl.CostEstimate(flops=flops, transcendentals=0,
                           bytes_accessed=bytes_accessed)

    s14, s2, s3, comp = pl.pallas_call(
        functools.partial(_mlp_kernel, chunk=chunk_n),
        grid=(grid_n,),
        in_specs=[row(IN_DIM),
                  rep(w1_eff), rep(t1_eff),
                  rep(ws[0]), rep(ts[0]),
                  rep(ws[1]), rep(ts[1]),
                  rep(ws[2]), rep(ts[2]),
                  rep(wc), rep(bc)],
        out_specs=(row(d1 + d4), row(d2), row(d3), row(FEA_COMPRE)),
        out_shape=(jax.ShapeDtypeStruct((n_pad, d1 + d4), jnp.bfloat16),
                   jax.ShapeDtypeStruct((n_pad, d2), jnp.bfloat16),
                   jax.ShapeDtypeStruct((n_pad, d3), jnp.bfloat16),
                   jax.ShapeDtypeStruct((n_pad, FEA_COMPRE), jnp.bfloat16)),
        compiler_params=pltpu.CompilerParams(
            dimension_semantics=("parallel",),
            vmem_limit_bytes=32 << 20),   # v5e default is 16 MiB; tile needs ~10
        cost_estimate=cost,
    )(x, w1_eff, t1_eff, ws[0], ts[0], ws[1], ts[1], ws[2], ts[2], wc, bc)

    skip1 = s14[:n, :d1]
    skip4 = s14[:n, d1:]
    skip2 = s2[:n]
    skip3 = s3[:n]
    comp = comp[:n]

    # voxel pooling: scatter_max(feats, upsampling_index, dim=0)[0]
    pool_feats = scatter_max_pallas(comp, upsampling_index, num_voxels,
                                    sub_pts=scatter_sub, n_sub=scatter_nsub)

    # (new point feats, pooled voxel feats, skip features)
    return comp, pool_feats, [skip1, skip2, skip3, skip4]


# --------------------------------------------------------------------------
# Pure-JAX reference for verification
# --------------------------------------------------------------------------
def reference_forward(point_feats, idx, params, num_voxels):
    s0, t0 = _fold_bn(*params["bn0"])
    h = point_feats * s0 + t0
    skips = []
    for (w, b), (gamma, beta, mean, var) in params["layers"]:
        s, t = _fold_bn(gamma, beta, mean, var)
        h = jnp.maximum((h @ w + b) * s + t, 0.0)
        skips.append(h)
    wc, bc = params["compress"]
    comp = jnp.maximum(h @ wc + bc, 0.0)
    pool = jax.ops.segment_max(comp, idx, num_segments=num_voxels)
    return comp, pool, skips


def _f32(x):
    return np.asarray(jnp.asarray(x, jnp.float32))


if __name__ == "__main__":
    key = jax.random.PRNGKey(0)
    k_feat, k_idx, k_param = jax.random.split(key, 3)

    N, V = 2048, 64
    point_feats = jax.random.normal(k_feat, (N, IN_DIM), jnp.float32)
    # unique-inverse style index: every voxel id in [0, V) appears at least once
    upsampling_index = jax.random.permutation(
        k_idx, jnp.arange(N, dtype=jnp.int32) % V)
    params = init_params(k_param)

    comp, pool, skips = cylinder_point_mlp_forward(
        point_feats, upsampling_index, params, num_voxels=V)
    jax.block_until_ready((comp, pool, skips))

    r_comp, r_pool, r_skips = reference_forward(
        point_feats, upsampling_index, params, V)

    # bf16 activations/outputs -> loosened tolerances vs. the f32 reference.
    TOL = dict(atol=5e-2, rtol=5e-2)
    assert np.allclose(_f32(comp), _f32(r_comp), **TOL)
    assert np.allclose(_f32(pool), _f32(r_pool), **TOL)
    for a, b in zip(skips, r_skips):
        assert np.allclose(_f32(a), _f32(b), **TOL)

    print("KERNEL_OK")
</pallas_src>

<mosaic_0001>
module attributes {stable_mosaic.version = 11 : i64} {
  func.func @_mlp_kernel(%arg0: i32, %arg1: memref<1024x3xf32, #tpu.memory_space<vmem>>, %arg2: memref<3x64xf32, #tpu.memory_space<vmem>>, %arg3: memref<1x64xf32, #tpu.memory_space<vmem>>, %arg4: memref<64x128xbf16, #tpu.memory_space<vmem>>, %arg5: memref<1x128xf32, #tpu.memory_space<vmem>>, %arg6: memref<128x256xbf16, #tpu.memory_space<vmem>>, %arg7: memref<1x256xf32, #tpu.memory_space<vmem>>, %arg8: memref<256x64xbf16, #tpu.memory_space<vmem>>, %arg9: memref<1x64xf32, #tpu.memory_space<vmem>>, %arg10: memref<64x16xbf16, #tpu.memory_space<vmem>>, %arg11: memref<1x16xf32, #tpu.memory_space<vmem>>, %arg12: memref<1024x128xbf16, #tpu.memory_space<vmem>>, %arg13: memref<1024x128xbf16, #tpu.memory_space<vmem>>, %arg14: memref<1024x256xbf16, #tpu.memory_space<vmem>>, %arg15: memref<1024x16xbf16, #tpu.memory_space<vmem>>) attributes {dimension_semantics = [#tpu.dimension_semantics<parallel>], iteration_bounds = array<i64: 2>, scalar_prefetch = 0 : i64, scratch_operands = 0 : i64, tpu.core_type = #tpu.core_type<tc>, window_params = [{transform_indices = @transform_0, window_bounds = array<i64: 1024, 3>}, {pipeline_mode = #tpu.pipeline_mode<synchronous>, transform_indices = @transform_1, window_bounds = array<i64: 3, 64>}, {pipeline_mode = #tpu.pipeline_mode<synchronous>, transform_indices = @transform_2, window_bounds = array<i64: 1, 64>}, {pipeline_mode = #tpu.pipeline_mode<synchronous>, transform_indices = @transform_3, window_bounds = array<i64: 64, 128>}, {pipeline_mode = #tpu.pipeline_mode<synchronous>, transform_indices = @transform_4, window_bounds = array<i64: 1, 128>}, {pipeline_mode = #tpu.pipeline_mode<synchronous>, transform_indices = @transform_5, window_bounds = array<i64: 128, 256>}, {pipeline_mode = #tpu.pipeline_mode<synchronous>, transform_indices = @transform_6, window_bounds = array<i64: 1, 256>}, {pipeline_mode = #tpu.pipeline_mode<synchronous>, transform_indices = @transform_7, window_bounds = array<i64: 256, 64>}, {pipeline_mode = #tpu.pipeline_mode<synchronous>, transform_indices = @transform_8, window_bounds = array<i64: 1, 64>}, {pipeline_mode = #tpu.pipeline_mode<synchronous>, transform_indices = @transform_9, window_bounds = array<i64: 64, 16>}, {pipeline_mode = #tpu.pipeline_mode<synchronous>, transform_indices = @transform_10, window_bounds = array<i64: 1, 16>}, {transform_indices = @transform_11, window_bounds = array<i64: 1024, 128>}, {transform_indices = @transform_12, window_bounds = array<i64: 1024, 128>}, {transform_indices = @transform_13, window_bounds = array<i64: 1024, 256>}, {transform_indices = @transform_14, window_bounds = array<i64: 1024, 16>}]} {
    %c0 = arith.constant 0 : index
    %c0_0 = arith.constant 0 : index
    %0 = vector.load %arg1[%c0, %c0_0] : memref<1024x3xf32, #tpu.memory_space<vmem>>, vector<256x3xf32>
    %1 = vector.extract_strided_slice %0 {offsets = [0, 0], sizes = [256, 1], strides = [1, 1]} : vector<256x3xf32> to vector<256x1xf32>
    %c0_1 = arith.constant 0 : index
    %c0_2 = arith.constant 0 : index
    %2 = vector.load %arg2[%c0_1, %c0_2] : memref<3x64xf32, #tpu.memory_space<vmem>>, vector<1x64xf32>
    %3 = vector.broadcast %1 : vector<256x1xf32> to vector<256x64xf32>
    %4 = vector.broadcast %2 : vector<1x64xf32> to vector<256x64xf32>
    %5 = arith.mulf %3, %4 : vector<256x64xf32>
    %6 = vector.extract_strided_slice %0 {offsets = [0, 1], sizes = [256, 1], strides = [1, 1]} : vector<256x3xf32> to vector<256x1xf32>
    %c1 = arith.constant 1 : index
    %c0_3 = arith.constant 0 : index
    %7 = vector.load %arg2[%c1, %c0_3] : memref<3x64xf32, #tpu.memory_space<vmem>>, vector<1x64xf32>
    %8 = vector.broadcast %6 : vector<256x1xf32> to vector<256x64xf32>
    %9 = vector.broadcast %7 : vector<1x64xf32> to vector<256x64xf32>
    %10 = arith.mulf %8, %9 : vector<256x64xf32>
    %11 = arith.addf %5, %10 : vector<256x64xf32>
    %12 = vector.extract_strided_slice %0 {offsets = [0, 2], sizes = [256, 1], strides = [1, 1]} : vector<256x3xf32> to vector<256x1xf32>
    %c2 = arith.constant 2 : index
    %c0_4 = arith.constant 0 : index
    %13 = vector.load %arg2[%c2, %c0_4] : memref<3x64xf32, #tpu.memory_space<vmem>>, vector<1x64xf32>
    %14 = vector.broadcast %12 : vector<256x1xf32> to vector<256x64xf32>
    %15 = vector.broadcast %13 : vector<1x64xf32> to vector<256x64xf32>
    %16 = arith.mulf %14, %15 : vector<256x64xf32>
    %17 = arith.addf %11, %16 : vector<256x64xf32>
    %c0_5 = arith.constant 0 : index
    %c0_6 = arith.constant 0 : index
    %18 = vector.load %arg3[%c0_5, %c0_6] : memref<1x64xf32, #tpu.memory_space<vmem>>, vector<1x64xf32>
    %19 = vector.broadcast %18 : vector<1x64xf32> to vector<256x64xf32>
    %20 = arith.addf %17, %19 : vector<256x64xf32>
    %cst = arith.constant 0.000000e+00 : f32
    %21 = vector.broadcast %cst : f32 to vector<256x64xf32>
    %22 = arith.maximumf %20, %21 : vector<256x64xf32>
    %23 = arith.truncf %22 : vector<256x64xf32> to vector<256x64xbf16>
    %c0_7 = arith.constant 0 : index
    %c0_8 = arith.constant 0 : index
    %24 = vector.load %arg12[%c0_7, %c0_8] : memref<1024x128xbf16, #tpu.memory_space<vmem>>, vector<256x64xbf16>
    tpu.vector_store %arg12[%c0_7, %c0_8], %23 {strides = array<i32>} : memref<1024x128xbf16, #tpu.memory_space<vmem>>, vector<256x64xbf16>,
    %c0_9 = arith.constant 0 : index
    %c0_10 = arith.constant 0 : index
    %25 = vector.load %arg4[%c0_9, %c0_10] : memref<64x128xbf16, #tpu.memory_space<vmem>>, vector<64x128xbf16>
    %cst_11 = arith.constant dense<0.000000e+00> : vector<256x128xf32>
    %26 = tpu.matmul %23, %25, %cst_11 {dimension_numbers = #tpu.dot_dimension_numbers<[1], [0], [0], [1], [0, 0, 1, 1], [], []>} : vector<256x64xbf16>, vector<64x128xbf16>, vector<256x128xf32> -> vector<256x128xf32>
    %c0_12 = arith.constant 0 : index
    %c0_13 = arith.constant 0 : index
    %27 = vector.load %arg5[%c0_12, %c0_13] : memref<1x128xf32, #tpu.memory_space<vmem>>, vector<1x128xf32>
    %28 = vector.broadcast %27 : vector<1x128xf32> to vector<256x128xf32>
    %29 = arith.addf %26, %28 : vector<256x128xf32>
    %cst_14 = arith.constant 0.000000e+00 : f32
    %30 = vector.broadcast %cst_14 : f32 to vector<256x128xf32>
    %31 = arith.maximumf %29, %30 : vector<256x128xf32>
    %32 = arith.truncf %31 : vector<256x128xf32> to vector<256x128xbf16>
    %c0_15 = arith.constant 0 : index
    %c0_16 = arith.constant 0 : index
    %33 = vector.load %arg13[%c0_15, %c0_16] : memref<1024x128xbf16, #tpu.memory_space<vmem>>, vector<256x128xbf16>
    tpu.vector_store %arg13[%c0_15, %c0_16], %32 {strides = array<i32>} : memref<1024x128xbf16, #tpu.memory_space<vmem>>, vector<256x128xbf16>,
    %c0_17 = arith.constant 0 : index
    %c0_18 = arith.constant 0 : index
    %34 = vector.load %arg6[%c0_17, %c0_18] : memref<128x256xbf16, #tpu.memory_space<vmem>>, vector<128x256xbf16>
    %cst_19 = arith.constant dense<0.000000e+00> : vector<256x256xf32>
    %35 = tpu.matmul %32, %34, %cst_19 {dimension_numbers = #tpu.dot_dimension_numbers<[1], [0], [0], [1], [0, 0, 1, 1], [], []>} : vector<256x128xbf16>, vector<128x256xbf16>, vector<256x256xf32> -> vector<256x256xf32>
    %c0_20 = arith.constant 0 : index
    %c0_21 = arith.constant 0 : index
    %36 = vector.load %arg7[%c0_20, %c0_21] : memref<1x256xf32, #tpu.memory_space<vmem>>, vector<1x256xf32>
    %37 = vector.broadcast %36 : vector<1x256xf32> to vector<256x256xf32>
    %38 = arith.addf %35, %37 : vector<256x256xf32>
    %cst_22 = arith.constant 0.000000e+00 : f32
    %39 = vector.broadcast %cst_22 : f32 to vector<256x256xf32>
    %40 = arith.maximumf %38, %39 : vector<256x256xf32>
    %41 = arith.truncf %40 : vector<256x256xf32> to vector<256x256xbf16>
    %c0_23 = arith.constant 0 : index
    %c0_24 = arith.constant 0 : index
    %42 = vector.load %arg14[%c0_23, %c0_24] : memref<1024x256xbf16, #tpu.memory_space<vmem>>, vector<256x256xbf16>
    tpu.vector_store %arg14[%c0_23, %c0_24], %41 {strides = array<i32>} : memref<1024x256xbf16, #tpu.memory_space<vmem>>, vector<256x256xbf16>,
    %c0_25 = arith.constant 0 : index
    %c0_26 = arith.constant 0 : index
    %43 = vector.load %arg8[%c0_25, %c0_26] : memref<256x64xbf16, #tpu.memory_space<vmem>>, vector<256x64xbf16>
    %cst_27 = arith.constant dense<0.000000e+00> : vector<256x64xf32>
    %44 = tpu.matmul %41, %43, %cst_27 {dimension_numbers = #tpu.dot_dimension_numbers<[1], [0], [0], [1], [0, 0, 1, 1], [], []>} : vector<256x256xbf16>, vector<256x64xbf16>, vector<256x64xf32> -> vector<256x64xf32>
    %c0_28 = arith.constant 0 : index
    %c0_29 = arith.constant 0 : index
    %45 = vector.load %arg9[%c0_28, %c0_29] : memref<1x64xf32, #tpu.memory_space<vmem>>, vector<1x64xf32>
    %46 = vector.broadcast %45 : vector<1x64xf32> to vector<256x64xf32>
    %47 = arith.addf %44, %46 : vector<256x64xf32>
    %cst_30 = arith.constant 0.000000e+00 : f32
    %48 = vector.broadcast %cst_30 : f32 to vector<256x64xf32>
    %49 = arith.maximumf %47, %48 : vector<256x64xf32>
    %50 = arith.truncf %49 : vector<256x64xf32> to vector<256x64xbf16>
    %c0_31 = arith.constant 0 : index
    %c64 = arith.constant 64 : index
    %51 = vector.load %arg12[%c0_31, %c64] : memref<1024x128xbf16, #tpu.memory_space<vmem>>, vector<256x64xbf16>
    tpu.vector_store %arg12[%c0_31, %c64], %50 {strides = array<i32>} : memref<1024x128xbf16, #tpu.memory_space<vmem>>, vector<256x64xbf16>,
    %c0_32 = arith.constant 0 : index
    %c0_33 = arith.constant 0 : index
    %52 = vector.load %arg10[%c0_32, %c0_33] : memref<64x16xbf16, #tpu.memory_space<vmem>>, vector<64x16xbf16>
    %cst_34 = arith.constant dense<0.000000e+00> : vector<256x16xf32>
    %53 = tpu.matmul %50, %52, %cst_34 {dimension_numbers = #tpu.dot_dimension_numbers<[1], [0], [0], [1], [0, 0, 1, 1], [], []>} : vector<256x64xbf16>, vector<64x16xbf16>, vector<256x16xf32> -> vector<256x16xf32>
    %c0_35 = arith.constant 0 : index
    %c0_36 = arith.constant 0 : index
    %54 = vector.load %arg11[%c0_35, %c0_36] : memref<1x16xf32, #tpu.memory_space<vmem>>, vector<1x16xf32>
    %55 = vector.broadcast %54 : vector<1x16xf32> to vector<256x16xf32>
    %56 = arith.addf %53, %55 : vector<256x16xf32>
    %cst_37 = arith.constant 0.000000e+00 : f32
    %57 = vector.broadcast %cst_37 : f32 to vector<256x16xf32>
    %58 = arith.maximumf %56, %57 : vector<256x16xf32>
    %59 = arith.truncf %58 : vector<256x16xf32> to vector<256x16xbf16>
    %c0_38 = arith.constant 0 : index
    %c0_39 = arith.constant 0 : index
    %60 = vector.load %arg15[%c0_38, %c0_39] : memref<1024x16xbf16, #tpu.memory_space<vmem>>, vector<256x16xbf16>
    tpu.vector_store %arg15[%c0_38, %c0_39], %59 {strides = array<i32>} : memref<1024x16xbf16, #tpu.memory_space<vmem>>, vector<256x16xbf16>,
    %c256 = arith.constant 256 : index
    %c0_40 = arith.constant 0 : index
    %61 = vector.load %arg1[%c256, %c0_40] : memref<1024x3xf32, #tpu.memory_space<vmem>>, vector<256x3xf32>
    %62 = vector.extract_strided_slice %61 {offsets = [0, 0], sizes = [256, 1], strides = [1, 1]} : vector<256x3xf32> to vector<256x1xf32>
    %c0_41 = arith.constant 0 : index
    %c0_42 = arith.constant 0 : index
    %63 = vector.load %arg2[%c0_41, %c0_42] : memref<3x64xf32, #tpu.memory_space<vmem>>, vector<1x64xf32>
    %64 = vector.broadcast %62 : vector<256x1xf32> to vector<256x64xf32>
    %65 = vector.broadcast %63 : vector<1x64xf32> to vector<256x64xf32>
    %66 = arith.mulf %64, %65 : vector<256x64xf32>
    %67 = vector.extract_strided_slice %61 {offsets = [0, 1], sizes = [256, 1], strides = [1, 1]} : vector<256x3xf32> to vector<256x1xf32>
    %c1_43 = arith.constant 1 : index
    %c0_44 = arith.constant 0 : index
    %68 = vector.load %arg2[%c1_43, %c0_44] : memref<3x64xf32, #tpu.memory_space<vmem>>, vector<1x64xf32>
    %69 = vector.broadcast %67 : vector<256x1xf32> to vector<256x64xf32>
    %70 = vector.broadcast %68 : vector<1x64xf32> to vector<256x64xf32>
    %71 = arith.mulf %69, %70 : vector<256x64xf32>
    %72 = arith.addf %66, %71 : vector<256x64xf32>
    %73 = vector.extract_strided_slice %61 {offsets = [0, 2], sizes = [256, 1], strides = [1, 1]} : vector<256x3xf32> to vector<256x1xf32>
    %c2_45 = arith.constant 2 : index
    %c0_46 = arith.constant 0 : index
    %74 = vector.load %arg2[%c2_45, %c0_46] : memref<3x64xf32, #tpu.memory_space<vmem>>, vector<1x64xf32>
    %75 = vector.broadcast %73 : vector<256x1xf32> to vector<256x64xf32>
    %76 = vector.broadcast %74 : vector<1x64xf32> to vector<256x64xf32>
    %77 = arith.mulf %75, %76 : vector<256x64xf32>
    %78 = arith.addf %72, %77 : vector<256x64xf32>
    %c0_47 = arith.constant 0 : index
    %c0_48 = arith.constant 0 : index
    %79 = vector.load %arg3[%c0_47, %c0_48] : memref<1x64xf32, #tpu.memory_space<vmem>>, vector<1x64xf32>
    %80 = vector.broadcast %79 : vector<1x64xf32> to vector<256x64xf32>
    %81 = arith.addf %78, %80 : vector<256x64xf32>
    %cst_49 = arith.constant 0.000000e+00 : f32
    %82 = vector.broadcast %cst_49 : f32 to vector<256x64xf32>
    %83 = arith.maximumf %81, %82 : vector<256x64xf32>
    %84 = arith.truncf %83 : vector<256x64xf32> to vector<256x64xbf16>
    %c256_50 = arith.constant 256 : index
    %c0_51 = arith.constant 0 : index
    %85 = vector.load %arg12[%c256_50, %c0_51] : memref<1024x128xbf16, #tpu.memory_space<vmem>>, vector<256x64xbf16>
    tpu.vector_store %arg12[%c256_50, %c0_51], %84 {strides = array<i32>} : memref<1024x128xbf16, #tpu.memory_space<vmem>>, vector<256x64xbf16>,
    %c0_52 = arith.constant 0 : index
    %c0_53 = arith.constant 0 : index
    %86 = vector.load %arg4[%c0_52, %c0_53] : memref<64x128xbf16, #tpu.memory_space<vmem>>, vector<64x128xbf16>
    %cst_54 = arith.constant dense<0.000000e+00> : vector<256x128xf32>
    %87 = tpu.matmul %84, %86, %cst_54 {dimension_numbers = #tpu.dot_dimension_numbers<[1], [0], [0], [1], [0, 0, 1, 1], [], []>} : vector<256x64xbf16>, vector<64x128xbf16>, vector<256x128xf32> -> vector<256x128xf32>
    %c0_55 = arith.constant 0 : index
    %c0_56 = arith.constant 0 : index
    %88 = vector.load %arg5[%c0_55, %c0_56] : memref<1x128xf32, #tpu.memory_space<vmem>>, vector<1x128xf32>
    %89 = vector.broadcast %88 : vector<1x128xf32> to vector<256x128xf32>
    %90 = arith.addf %87, %89 : vector<256x128xf32>
    %cst_57 = arith.constant 0.000000e+00 : f32
    %91 = vector.broadcast %cst_57 : f32 to vector<256x128xf32>
    %92 = arith.maximumf %90, %91 : vector<256x128xf32>
    %93 = arith.truncf %92 : vector<256x128xf32> to vector<256x128xbf16>
    %c256_58 = arith.constant 256 : index
    %c0_59 = arith.constant 0 : index
    %94 = vector.load %arg13[%c256_58, %c0_59] : memref<1024x128xbf16, #tpu.memory_space<vmem>>, vector<256x128xbf16>
    tpu.vector_store %arg13[%c256_58, %c0_59], %93 {strides = array<i32>} : memref<1024x128xbf16, #tpu.memory_space<vmem>>, vector<256x128xbf16>,
    %c0_60 = arith.constant 0 : index
    %c0_61 = arith.constant 0 : index
    %95 = vector.load %arg6[%c0_60, %c0_61] : memref<128x256xbf16, #tpu.memory_space<vmem>>, vector<128x256xbf16>
    %cst_62 = arith.constant dense<0.000000e+00> : vector<256x256xf32>
    %96 = tpu.matmul %93, %95, %cst_62 {dimension_numbers = #tpu.dot_dimension_numbers<[1], [0], [0], [1], [0, 0, 1, 1], [], []>} : vector<256x128xbf16>, vector<128x256xbf16>, vector<256x256xf32> -> vector<256x256xf32>
    %c0_63 = arith.constant 0 : index
    %c0_64 = arith.constant 0 : index
    %97 = vector.load %arg7[%c0_63, %c0_64] : memref<1x256xf32, #tpu.memory_space<vmem>>, vector<1x256xf32>
    %98 = vector.broadcast %97 : vector<1x256xf32> to vector<256x256xf32>
    %99 = arith.addf %96, %98 : vector<256x256xf32>
    %cst_65 = arith.constant 0.000000e+00 : f32
    %100 = vector.broadcast %cst_65 : f32 to vector<256x256xf32>
    %101 = arith.maximumf %99, %100 : vector<256x256xf32>
    %102 = arith.truncf %101 : vector<256x256xf32> to vector<256x256xbf16>
    %c256_66 = arith.constant 256 : index
    %c0_67 = arith.constant 0 : index
    %103 = vector.load %arg14[%c256_66, %c0_67] : memref<1024x256xbf16, #tpu.memory_space<vmem>>, vector<256x256xbf16>
    tpu.vector_store %arg14[%c256_66, %c0_67], %102 {strides = array<i32>} : memref<1024x256xbf16, #tpu.memory_space<vmem>>, vector<256x256xbf16>,
    %c0_68 = arith.constant 0 : index
    %c0_69 = arith.constant 0 : index
    %104 = vector.load %arg8[%c0_68, %c0_69] : memref<256x64xbf16, #tpu.memory_space<vmem>>, vector<256x64xbf16>
    %cst_70 = arith.constant dense<0.000000e+00> : vector<256x64xf32>
    %105 = tpu.matmul %102, %104, %cst_70 {dimension_numbers = #tpu.dot_dimension_numbers<[1], [0], [0], [1], [0, 0, 1, 1], [], []>} : vector<256x256xbf16>, vector<256x64xbf16>, vector<256x64xf32> -> vector<256x64xf32>
    %c0_71 = arith.constant 0 : index
    %c0_72 = arith.constant 0 : index
    %106 = vector.load %arg9[%c0_71, %c0_72] : memref<1x64xf32, #tpu.memory_space<vmem>>, vector<1x64xf32>
    %107 = vector.broadcast %106 : vector<1x64xf32> to vector<256x64xf32>
    %108 = arith.addf %105, %107 : vector<256x64xf32>
    %cst_73 = arith.constant 0.000000e+00 : f32
    %109 = vector.broadcast %cst_73 : f32 to vector<256x64xf32>
    %110 = arith.maximumf %108, %109 : vector<256x64xf32>
    %111 = arith.truncf %110 : vector<256x64xf32> to vector<256x64xbf16>
    %c256_74 = arith.constant 256 : index
    %c64_75 = arith.constant 64 : index
    %112 = vector.load %arg12[%c256_74, %c64_75] : memref<1024x128xbf16, #tpu.memory_space<vmem>>, vector<256x64xbf16>
    tpu.vector_store %arg12[%c256_74, %c64_75], %111 {strides = array<i32>} : memref<1024x128xbf16, #tpu.memory_space<vmem>>, vector<256x64xbf16>,
    %c0_76 = arith.constant 0 : index
    %c0_77 = arith.constant 0 : index
    %113 = vector.load %arg10[%c0_76, %c0_77] : memref<64x16xbf16, #tpu.memory_space<vmem>>, vector<64x16xbf16>
    %cst_78 = arith.constant dense<0.000000e+00> : vector<256x16xf32>
    %114 = tpu.matmul %111, %113, %cst_78 {dimension_numbers = #tpu.dot_dimension_numbers<[1], [0], [0], [1], [0, 0, 1, 1], [], []>} : vector<256x64xbf16>, vector<64x16xbf16>, vector<256x16xf32> -> vector<256x16xf32>
    %c0_79 = arith.constant 0 : index
    %c0_80 = arith.constant 0 : index
    %115 = vector.load %arg11[%c0_79, %c0_80] : memref<1x16xf32, #tpu.memory_space<vmem>>, vector<1x16xf32>
    %116 = vector.broadcast %115 : vector<1x16xf32> to vector<256x16xf32>
    %117 = arith.addf %114, %116 : vector<256x16xf32>
    %cst_81 = arith.constant 0.000000e+00 : f32
    %118 = vector.broadcast %cst_81 : f32 to vector<256x16xf32>
    %119 = arith.maximumf %117, %118 : vector<256x16xf32>
    %120 = arith.truncf %119 : vector<256x16xf32> to vector<256x16xbf16>
    %c256_82 = arith.constant 256 : index
    %c0_83 = arith.constant 0 : index
    %121 = vector.load %arg15[%c256_82, %c0_83] : memref<1024x16xbf16, #tpu.memory_space<vmem>>, vector<256x16xbf16>
    tpu.vector_store %arg15[%c256_82, %c0_83], %120 {strides = array<i32>} : memref<1024x16xbf16, #tpu.memory_space<vmem>>, vector<256x16xbf16>,
    %c512 = arith.constant 512 : index
    %c0_84 = arith.constant 0 : index
    %122 = vector.load %arg1[%c512, %c0_84] : memref<1024x3xf32, #tpu.memory_space<vmem>>, vector<256x3xf32>
    %123 = vector.extract_strided_slice %122 {offsets = [0, 0], sizes = [256, 1], strides = [1, 1]} : vector<256x3xf32> to vector<256x1xf32>
    %c0_85 = arith.constant 0 : index
    %c0_86 = arith.constant 0 : index
    %124 = vector.load %arg2[%c0_85, %c0_86] : memref<3x64xf32, #tpu.memory_space<vmem>>, vector<1x64xf32>
    %125 = vector.broadcast %123 : vector<256x1xf32> to vector<256x64xf32>
    %126 = vector.broadcast %124 : vector<1x64xf32> to vector<256x64xf32>
    %127 = arith.mulf %125, %126 : vector<256x64xf32>
    %128 = vector.extract_strided_slice %122 {offsets = [0, 1], sizes = [256, 1], strides = [1, 1]} : vector<256x3xf32> to vector<256x1xf32>
    %c1_87 = arith.constant 1 : index
    %c0_88 = arith.constant 0 : index
    %129 = vector.load %arg2[%c1_87, %c0_88] : memref<3x64xf32, #tpu.memory_space<vmem>>, vector<1x64xf32>
    %130 = vector.broadcast %128 : vector<256x1xf32> to vector<256x64xf32>
    %131 = vector.broadcast %129 : vector<1x64xf32> to vector<256x64xf32>
    %132 = arith.mulf %130, %131 : vector<256x64xf32>
    %133 = arith.addf %127, %132 : vector<256x64xf32>
    %134 = vector.extract_strided_slice %122 {offsets = [0, 2], sizes = [256, 1], strides = [1, 1]} : vector<256x3xf32> to vector<256x1xf32>
    %c2_89 = arith.constant 2 : index
    %c0_90 = arith.constant 0 : index
    %135 = vector.load %arg2[%c2_89, %c0_90] : memref<3x64xf32, #tpu.memory_space<vmem>>, vector<1x64xf32>
    %136 = vector.broadcast %134 : vector<256x1xf32> to vector<256x64xf32>
    %137 = vector.broadcast %135 : vector<1x64xf32> to vector<256x64xf32>
    %138 = arith.mulf %136, %137 : vector<256x64xf32>
    %139 = arith.addf %133, %138 : vector<256x64xf32>
    %c0_91 = arith.constant 0 : index
    %c0_92 = arith.constant 0 : index
    %140 = vector.load %arg3[%c0_91, %c0_92] : memref<1x64xf32, #tpu.memory_space<vmem>>, vector<1x64xf32>
    %141 = vector.broadcast %140 : vector<1x64xf32> to vector<256x64xf32>
    %142 = arith.addf %139, %141 : vector<256x64xf32>
    %cst_93 = arith.constant 0.000000e+00 : f32
    %143 = vector.broadcast %cst_93 : f32 to vector<256x64xf32>
    %144 = arith.maximumf %142, %143 : vector<256x64xf32>
    %145 = arith.truncf %144 : vector<256x64xf32> to vector<256x64xbf16>
    %c512_94 = arith.constant 512 : index
    %c0_95 = arith.constant 0 : index
    %146 = vector.load %arg12[%c512_94, %c0_95] : memref<1024x128xbf16, #tpu.memory_space<vmem>>, vector<256x64xbf16>
    tpu.vector_store %arg12[%c512_94, %c0_95], %145 {strides = array<i32>} : memref<1024x128xbf16, #tpu.memory_space<vmem>>, vector<256x64xbf16>,
    %c0_96 = arith.constant 0 : index
    %c0_97 = arith.constant 0 : index
    %147 = vector.load %arg4[%c0_96, %c0_97] : memref<64x128xbf16, #tpu.memory_space<vmem>>, vector<64x128xbf16>
    %cst_98 = arith.constant dense<0.000000e+00> : vector<256x128xf32>
    %148 = tpu.matmul %145, %147, %cst_98 {dimension_numbers = #tpu.dot_dimension_numbers<[1], [0], [0], [1], [0, 0, 1, 1], [], []>} : vector<256x64xbf16>, vector<64x128xbf16>, vector<256x128xf32> -> vector<256x128xf32>
    %c0_99 = arith.constant 0 : index
    %c0_100 = arith.constant 0 : index
    %149 = vector.load %arg5[%c0_99, %c0_100] : memref<1x128xf32, #tpu.memory_space<vmem>>, vector<1x128xf32>
    %150 = vector.broadcast %149 : vector<1x128xf32> to vector<256x128xf32>
    %151 = arith.addf %148, %150 : vector<256x128xf32>
    %cst_101 = arith.constant 0.000000e+00 : f32
    %152 = vector.broadcast %cst_101 : f32 to vector<256x128xf32>
    %153 = arith.maximumf %151, %152 : vector<256x128xf32>
    %154 = arith.truncf %153 : vector<256x128xf32> to vector<256x128xbf16>
    %c512_102 = arith.constant 512 : index
    %c0_103 = arith.constant 0 : index
    %155 = vector.load %arg13[%c512_102, %c0_103] : memref<1024x128xbf16, #tpu.memory_space<vmem>>, vector<256x128xbf16>
    tpu.vector_store %arg13[%c512_102, %c0_103], %154 {strides = array<i32>} : memref<1024x128xbf16, #tpu.memory_space<vmem>>, vector<256x128xbf16>,
    %c0_104 = arith.constant 0 : index
    %c0_105 = arith.constant 0 : index
    %156 = vector.load %arg6[%c0_104, %c0_105] : memref<128x256xbf16, #tpu.memory_space<vmem>>, vector<128x256xbf16>
    %cst_106 = arith.constant dense<0.000000e+00> : vector<256x256xf32>
    %157 = tpu.matmul %154, %156, %cst_106 {dimension_numbers = #tpu.dot_dimension_numbers<[1], [0], [0], [1], [0, 0, 1, 1], [], []>} : vector<256x128xbf16>, vector<128x256xbf16>, vector<256x256xf32> -> vector<256x256xf32>
    %c0_107 = arith.constant 0 : index
    %c0_108 = arith.constant 0 : index
    %158 = vector.load %arg7[%c0_107, %c0_108] : memref<1x256xf32, #tpu.memory_space<vmem>>, vector<1x256xf32>
    %159 = vector.broadcast %158 : vector<1x256xf32> to vector<256x256xf32>
    %160 = arith.addf %157, %159 : vector<256x256xf32>
    %cst_109 = arith.constant 0.000000e+00 : f32
    %161 = vector.broadcast %cst_109 : f32 to vector<256x256xf32>
    %162 = arith.maximumf %160, %161 : vector<256x256xf32>
    %163 = arith.truncf %162 : vector<256x256xf32> to vector<256x256xbf16>
    %c512_110 = arith.constant 512 : index
    %c0_111 = arith.constant 0 : index
    %164 = vector.load %arg14[%c512_110, %c0_111] : memref<1024x256xbf16, #tpu.memory_space<vmem>>, vector<256x256xbf16>
    tpu.vector_store %arg14[%c512_110, %c0_111], %163 {strides = array<i32>} : memref<1024x256xbf16, #tpu.memory_space<vmem>>, vector<256x256xbf16>,
    %c0_112 = arith.constant 0 : index
    %c0_113 = arith.constant 0 : index
    %165 = vector.load %arg8[%c0_112, %c0_113] : memref<256x64xbf16, #tpu.memory_space<vmem>>, vector<256x64xbf16>
    %cst_114 = arith.constant dense<0.000000e+00> : vector<256x64xf32>
    %166 = tpu.matmul %163, %165, %cst_114 {dimension_numbers = #tpu.dot_dimension_numbers<[1], [0], [0], [1], [0, 0, 1, 1], [], []>} : vector<256x256xbf16>, vector<256x64xbf16>, vector<256x64xf32> -> vector<256x64xf32>
    %c0_115 = arith.constant 0 : index
    %c0_116 = arith.constant 0 : index
    %167 = vector.load %arg9[%c0_115, %c0_116] : memref<1x64xf32, #tpu.memory_space<vmem>>, vector<1x64xf32>
    %168 = vector.broadcast %167 : vector<1x64xf32> to vector<256x64xf32>
    %169 = arith.addf %166, %168 : vector<256x64xf32>
    %cst_117 = arith.constant 0.000000e+00 : f32
    %170 = vector.broadcast %cst_117 : f32 to vector<256x64xf32>
    %171 = arith.maximumf %169, %170 : vector<256x64xf32>
    %172 = arith.truncf %171 : vector<256x64xf32> to vector<256x64xbf16>
    %c512_118 = arith.constant 512 : index
    %c64_119 = arith.constant 64 : index
    %173 = vector.load %arg12[%c512_118, %c64_119] : memref<1024x128xbf16, #tpu.memory_space<vmem>>, vector<256x64xbf16>
    tpu.vector_store %arg12[%c512_118, %c64_119], %172 {strides = array<i32>} : memref<1024x128xbf16, #tpu.memory_space<vmem>>, vector<256x64xbf16>,
    %c0_120 = arith.constant 0 : index
    %c0_121 = arith.constant 0 : index
    %174 = vector.load %arg10[%c0_120, %c0_121] : memref<64x16xbf16, #tpu.memory_space<vmem>>, vector<64x16xbf16>
    %cst_122 = arith.constant dense<0.000000e+00> : vector<256x16xf32>
    %175 = tpu.matmul %172, %174, %cst_122 {dimension_numbers = #tpu.dot_dimension_numbers<[1], [0], [0], [1], [0, 0, 1, 1], [], []>} : vector<256x64xbf16>, vector<64x16xbf16>, vector<256x16xf32> -> vector<256x16xf32>
    %c0_123 = arith.constant 0 : index
    %c0_124 = arith.constant 0 : index
    %176 = vector.load %arg11[%c0_123, %c0_124] : memref<1x16xf32, #tpu.memory_space<vmem>>, vector<1x16xf32>
    %177 = vector.broadcast %176 : vector<1x16xf32> to vector<256x16xf32>
    %178 = arith.addf %175, %177 : vector<256x16xf32>
    %cst_125 = arith.constant 0.000000e+00 : f32
    %179 = vector.broadcast %cst_125 : f32 to vector<256x16xf32>
    %180 = arith.maximumf %178, %179 : vector<256x16xf32>
    %181 = arith.truncf %180 : vector<256x16xf32> to vector<256x16xbf16>
    %c512_126 = arith.constant 512 : index
    %c0_127 = arith.constant 0 : index
    %182 = vector.load %arg15[%c512_126, %c0_127] : memref<1024x16xbf16, #tpu.memory_space<vmem>>, vector<256x16xbf16>
    tpu.vector_store %arg15[%c512_126, %c0_127], %181 {strides = array<i32>} : memref<1024x16xbf16, #tpu.memory_space<vmem>>, vector<256x16xbf16>,
    %c768 = arith.constant 768 : index
    %c0_128 = arith.constant 0 : index
    %183 = vector.load %arg1[%c768, %c0_128] : memref<1024x3xf32, #tpu.memory_space<vmem>>, vector<256x3xf32>
    %184 = vector.extract_strided_slice %183 {offsets = [0, 0], sizes = [256, 1], strides = [1, 1]} : vector<256x3xf32> to vector<256x1xf32>
    %c0_129 = arith.constant 0 : index
    %c0_130 = arith.constant 0 : index
    %185 = vector.load %arg2[%c0_129, %c0_130] : memref<3x64xf32, #tpu.memory_space<vmem>>, vector<1x64xf32>
    %186 = vector.broadcast %184 : vector<256x1xf32> to vector<256x64xf32>
    %187 = vector.broadcast %185 : vector<1x64xf32> to vector<256x64xf32>
    %188 = arith.mulf %186, %187 : vector<256x64xf32>
    %189 = vector.extract_strided_slice %183 {offsets = [0, 1], sizes = [256, 1], strides = [1, 1]} : vector<256x3xf32> to vector<256x1xf32>
    %c1_131 = arith.constant 1 : index
    %c0_132 = arith.constant 0 : index
    %190 = vector.load %arg2[%c1_131, %c0_132] : memref<3x64xf32, #tpu.memory_space<vmem>>, vector<1x64xf32>
    %191 = vector.broadcast %189 : vector<256x1xf32> to vector<256x64xf32>
    %192 = vector.broadcast %190 : vector<1x64xf32> to vector<256x64xf32>
    %193 = arith.mulf %191, %192 : vector<256x64xf32>
    %194 = arith.addf %188, %193 : vector<256x64xf32>
    %195 = vector.extract_strided_slice %183 {offsets = [0, 2], sizes = [256, 1], strides = [1, 1]} : vector<256x3xf32> to vector<256x1xf32>
    %c2_133 = arith.constant 2 : index
    %c0_134 = arith.constant 0 : index
    %196 = vector.load %arg2[%c2_133, %c0_134] : memref<3x64xf32, #tpu.memory_space<vmem>>, vector<1x64xf32>
    %197 = vector.broadcast %195 : vector<256x1xf32> to vector<256x64xf32>
    %198 = vector.broadcast %196 : vector<1x64xf32> to vector<256x64xf32>
    %199 = arith.mulf %197, %198 : vector<256x64xf32>
    %200 = arith.addf %194, %199 : vector<256x64xf32>
    %c0_135 = arith.constant 0 : index
    %c0_136 = arith.constant 0 : index
    %201 = vector.load %arg3[%c0_135, %c0_136] : memref<1x64xf32, #tpu.memory_space<vmem>>, vector<1x64xf32>
    %202 = vector.broadcast %201 : vector<1x64xf32> to vector<256x64xf32>
    %203 = arith.addf %200, %202 : vector<256x64xf32>
    %cst_137 = arith.constant 0.000000e+00 : f32
    %204 = vector.broadcast %cst_137 : f32 to vector<256x64xf32>
    %205 = arith.maximumf %203, %204 : vector<256x64xf32>
    %206 = arith.truncf %205 : vector<256x64xf32> to vector<256x64xbf16>
    %c768_138 = arith.constant 768 : index
    %c0_139 = arith.constant 0 : index
    %207 = vector.load %arg12[%c768_138, %c0_139] : memref<1024x128xbf16, #tpu.memory_space<vmem>>, vector<256x64xbf16>
    tpu.vector_store %arg12[%c768_138, %c0_139], %206 {strides = array<i32>} : memref<1024x128xbf16, #tpu.memory_space<vmem>>, vector<256x64xbf16>,
    %c0_140 = arith.constant 0 : index
    %c0_141 = arith.constant 0 : index
    %208 = vector.load %arg4[%c0_140, %c0_141] : memref<64x128xbf16, #tpu.memory_space<vmem>>, vector<64x128xbf16>
    %cst_142 = arith.constant dense<0.000000e+00> : vector<256x128xf32>
    %209 = tpu.matmul %206, %208, %cst_142 {dimension_numbers = #tpu.dot_dimension_numbers<[1], [0], [0], [1], [0, 0, 1, 1], [], []>} : vector<256x64xbf16>, vector<64x128xbf16>, vector<256x128xf32> -> vector<256x128xf32>
    %c0_143 = arith.constant 0 : index
    %c0_144 = arith.constant 0 : index
    %210 = vector.load %arg5[%c0_143, %c0_144] : memref<1x128xf32, #tpu.memory_space<vmem>>, vector<1x128xf32>
    %211 = vector.broadcast %210 : vector<1x128xf32> to vector<256x128xf32>
    %212 = arith.addf %209, %211 : vector<256x128xf32>
    %cst_145 = arith.constant 0.000000e+00 : f32
    %213 = vector.broadcast %cst_145 : f32 to vector<256x128xf32>
    %214 = arith.maximumf %212, %213 : vector<256x128xf32>
    %215 = arith.truncf %214 : vector<256x128xf32> to vector<256x128xbf16>
    %c768_146 = arith.constant 768 : index
    %c0_147 = arith.constant 0 : index
    %216 = vector.load %arg13[%c768_146, %c0_147] : memref<1024x128xbf16, #tpu.memory_space<vmem>>, vector<256x128xbf16>
    tpu.vector_store %arg13[%c768_146, %c0_147], %215 {strides = array<i32>} : memref<1024x128xbf16, #tpu.memory_space<vmem>>, vector<256x128xbf16>,
    %c0_148 = arith.constant 0 : index
    %c0_149 = arith.constant 0 : index
    %217 = vector.load %arg6[%c0_148, %c0_149] : memref<128x256xbf16, #tpu.memory_space<vmem>>, vector<128x256xbf16>
    %cst_150 = arith.constant dense<0.000000e+00> : vector<256x256xf32>
    %218 = tpu.matmul %215, %217, %cst_150 {dimension_numbers = #tpu.dot_dimension_numbers<[1], [0], [0], [1], [0, 0, 1, 1], [], []>} : vector<256x128xbf16>, vector<128x256xbf16>, vector<256x256xf32> -> vector<256x256xf32>
    %c0_151 = arith.constant 0 : index
    %c0_152 = arith.constant 0 : index
    %219 = vector.load %arg7[%c0_151, %c0_152] : memref<1x256xf32, #tpu.memory_space<vmem>>, vector<1x256xf32>
    %220 = vector.broadcast %219 : vector<1x256xf32> to vector<256x256xf32>
    %221 = arith.addf %218, %220 : vector<256x256xf32>
    %cst_153 = arith.constant 0.000000e+00 : f32
    %222 = vector.broadcast %cst_153 : f32 to vector<256x256xf32>
    %223 = arith.maximumf %221, %222 : vector<256x256xf32>
    %224 = arith.truncf %223 : vector<256x256xf32> to vector<256x256xbf16>
    %c768_154 = arith.constant 768 : index
    %c0_155 = arith.constant 0 : index
    %225 = vector.load %arg14[%c768_154, %c0_155] : memref<1024x256xbf16, #tpu.memory_space<vmem>>, vector<256x256xbf16>
    tpu.vector_store %arg14[%c768_154, %c0_155], %224 {strides = array<i32>} : memref<1024x256xbf16, #tpu.memory_space<vmem>>, vector<256x256xbf16>,
    %c0_156 = arith.constant 0 : index
    %c0_157 = arith.constant 0 : index
    %226 = vector.load %arg8[%c0_156, %c0_157] : memref<256x64xbf16, #tpu.memory_space<vmem>>, vector<256x64xbf16>
    %cst_158 = arith.constant dense<0.000000e+00> : vector<256x64xf32>
    %227 = tpu.matmul %224, %226, %cst_158 {dimension_numbers = #tpu.dot_dimension_numbers<[1], [0], [0], [1], [0, 0, 1, 1], [], []>} : vector<256x256xbf16>, vector<256x64xbf16>, vector<256x64xf32> -> vector<256x64xf32>
    %c0_159 = arith.constant 0 : index
    %c0_160 = arith.constant 0 : index
    %228 = vector.load %arg9[%c0_159, %c0_160] : memref<1x64xf32, #tpu.memory_space<vmem>>, vector<1x64xf32>
    %229 = vector.broadcast %228 : vector<1x64xf32> to vector<256x64xf32>
    %230 = arith.addf %227, %229 : vector<256x64xf32>
    %cst_161 = arith.constant 0.000000e+00 : f32
    %231 = vector.broadcast %cst_161 : f32 to vector<256x64xf32>
    %232 = arith.maximumf %230, %231 : vector<256x64xf32>
    %233 = arith.truncf %232 : vector<256x64xf32> to vector<256x64xbf16>
    %c768_162 = arith.constant 768 : index
    %c64_163 = arith.constant 64 : index
    %234 = vector.load %arg12[%c768_162, %c64_163] : memref<1024x128xbf16, #tpu.memory_space<vmem>>, vector<256x64xbf16>
    tpu.vector_store %arg12[%c768_162, %c64_163], %233 {strides = array<i32>} : memref<1024x128xbf16, #tpu.memory_space<vmem>>, vector<256x64xbf16>,
    %c0_164 = arith.constant 0 : index
    %c0_165 = arith.constant 0 : index
    %235 = vector.load %arg10[%c0_164, %c0_165] : memref<64x16xbf16, #tpu.memory_space<vmem>>, vector<64x16xbf16>
    %cst_166 = arith.constant dense<0.000000e+00> : vector<256x16xf32>
    %236 = tpu.matmul %233, %235, %cst_166 {dimension_numbers = #tpu.dot_dimension_numbers<[1], [0], [0], [1], [0, 0, 1, 1], [], []>} : vector<256x64xbf16>, vector<64x16xbf16>, vector<256x16xf32> -> vector<256x16xf32>
    %c0_167 = arith.constant 0 : index
    %c0_168 = arith.constant 0 : index
    %237 = vector.load %arg11[%c0_167, %c0_168] : memref<1x16xf32, #tpu.memory_space<vmem>>, vector<1x16xf32>
    %238 = vector.broadcast %237 : vector<1x16xf32> to vector<256x16xf32>
    %239 = arith.addf %236, %238 : vector<256x16xf32>
    %cst_169 = arith.constant 0.000000e+00 : f32
    %240 = vector.broadcast %cst_169 : f32 to vector<256x16xf32>
    %241 = arith.maximumf %239, %240 : vector<256x16xf32>
    %242 = arith.truncf %241 : vector<256x16xf32> to vector<256x16xbf16>
    %c768_170 = arith.constant 768 : index
    %c0_171 = arith.constant 0 : index
    %243 = vector.load %arg15[%c768_170, %c0_171] : memref<1024x16xbf16, #tpu.memory_space<vmem>>, vector<256x16xbf16>
    tpu.vector_store %arg15[%c768_170, %c0_171], %242 {strides = array<i32>} : memref<1024x16xbf16, #tpu.memory_space<vmem>>, vector<256x16xbf16>,
    return
  }
  func.func @transform_0(%arg0: i32) -> (i32, i32) {
    %c0_i32 = arith.constant 0 : i32
    %c0_i32_0 = arith.constant 0 : i32
    return %arg0, %c0_i32 : i32, i32
  }
  func.func @transform_1(%arg0: i32) -> (i32, i32) {
    %c0_i32 = arith.constant 0 : i32
    %c0_i32_0 = arith.constant 0 : i32
    %c0_i32_1 = arith.constant 0 : i32
    return %c0_i32, %c0_i32_0 : i32, i32
  }
  func.func @transform_2(%arg0: i32) -> (i32, i32) {
    %c0_i32 = arith.constant 0 : i32
    %c0_i32_0 = arith.constant 0 : i32
    %c0_i32_1 = arith.constant 0 : i32
    return %c0_i32, %c0_i32_0 : i32, i32
  }
  func.func @transform_3(%arg0: i32) -> (i32, i32) {
    %c0_i32 = arith.constant 0 : i32
    %c0_i32_0 = arith.constant 0 : i32
    %c0_i32_1 = arith.constant 0 : i32
    return %c0_i32, %c0_i32_0 : i32, i32
  }
  func.func @transform_4(%arg0: i32) -> (i32, i32) {
    %c0_i32 = arith.constant 0 : i32
    %c0_i32_0 = arith.constant 0 : i32
    %c0_i32_1 = arith.constant 0 : i32
    return %c0_i32, %c0_i32_0 : i32, i32
  }
  func.func @transform_5(%arg0: i32) -> (i32, i32) {
    %c0_i32 = arith.constant 0 : i32
    %c0_i32_0 = arith.constant 0 : i32
    %c0_i32_1 = arith.constant 0 : i32
    return %c0_i32, %c0_i32_0 : i32, i32
  }
  func.func @transform_6(%arg0: i32) -> (i32, i32) {
    %c0_i32 = arith.constant 0 : i32
    %c0_i32_0 = arith.constant 0 : i32
    %c0_i32_1 = arith.constant 0 : i32
    return %c0_i32, %c0_i32_0 : i32, i32
  }
  func.func @transform_7(%arg0: i32) -> (i32, i32) {
    %c0_i32 = arith.constant 0 : i32
    %c0_i32_0 = arith.constant 0 : i32
    %c0_i32_1 = arith.constant 0 : i32
    return %c0_i32, %c0_i32_0 : i32, i32
  }
  func.func @transform_8(%arg0: i32) -> (i32, i32) {
    %c0_i32 = arith.constant 0 : i32
    %c0_i32_0 = arith.constant 0 : i32
    %c0_i32_1 = arith.constant 0 : i32
    return %c0_i32, %c0_i32_0 : i32, i32
  }
  func.func @transform_9(%arg0: i32) -> (i32, i32) {
    %c0_i32 = arith.constant 0 : i32
    %c0_i32_0 = arith.constant 0 : i32
    %c0_i32_1 = arith.constant 0 : i32
    return %c0_i32, %c0_i32_0 : i32, i32
  }
  func.func @transform_10(%arg0: i32) -> (i32, i32) {
    %c0_i32 = arith.constant 0 : i32
    %c0_i32_0 = arith.constant 0 : i32
    %c0_i32_1 = arith.constant 0 : i32
    return %c0_i32, %c0_i32_0 : i32, i32
  }
  func.func @transform_11(%arg0: i32) -> (i32, i32) {
    %c0_i32 = arith.constant 0 : i32
    %c0_i32_0 = arith.constant 0 : i32
    return %arg0, %c0_i32 : i32, i32
  }
  func.func @transform_12(%arg0: i32) -> (i32, i32) {
    %c0_i32 = arith.constant 0 : i32
    %c0_i32_0 = arith.constant 0 : i32
    return %arg0, %c0_i32 : i32, i32
  }
  func.func @transform_13(%arg0: i32) -> (i32, i32) {
    %c0_i32 = arith.constant 0 : i32
    %c0_i32_0 = arith.constant 0 : i32
    return %arg0, %c0_i32 : i32, i32
  }
  func.func @transform_14(%arg0: i32) -> (i32, i32) {
    %c0_i32 = arith.constant 0 : i32
    %c0_i32_0 = arith.constant 0 : i32
    return %arg0, %c0_i32 : i32, i32
  }
}

</mosaic_0001>

<llo_original>
// kernel: tpu_custom_call.1
$region0: #{tpu_custom_call.1}
  #allocation0 [shape = 'u32[]', space=smem, size = 0x4, offset = 0x4, fixed_abs, tag = 'smem constant byte address 0x4 - core index']
  #allocation1 [shape = 'u32[144,128]{1,0:T(1,128)}', space=vmem, size = 0x12000, scoped, tag = 'internal scratch']
  %s0 = inlined_call_operand.vmem [shape: f32[2048,3], index: 0, kind: input, shape index: {}]
  %s1 = inlined_call_operand.vmem [shape: f32[3,64], index: 1, kind: input, shape index: {}]
  %s2 = inlined_call_operand.vmem [shape: f32[1,64], index: 2, kind: input, shape index: {}]
  %s3 = inlined_call_operand.vmem [shape: bf16[64,128], index: 3, kind: input, shape index: {}]
  %s4 = inlined_call_operand.vmem [shape: f32[1,128], index: 4, kind: input, shape index: {}]
  %s5 = inlined_call_operand.vmem [shape: bf16[128,256], index: 5, kind: input, shape index: {}]
  %s6 = inlined_call_operand.vmem [shape: f32[1,256], index: 6, kind: input, shape index: {}]
  %s7 = inlined_call_operand.vmem [shape: bf16[256,64], index: 7, kind: input, shape index: {}]
  %s8 = inlined_call_operand.vmem [shape: f32[1,64], index: 8, kind: input, shape index: {}]
  %s9 = inlined_call_operand.vmem [shape: bf16[64,16], index: 9, kind: input, shape index: {}]
  %s10 = inlined_call_operand.vmem [shape: f32[1,16], index: 10, kind: input, shape index: {}]
  %s11 = inlined_call_operand.hbm [shape: bf16[2048,128], index: 11, kind: output, shape index: {0}]
  %s12 = inlined_call_operand.hbm [shape: bf16[2048,128], index: 12, kind: output, shape index: {1}]
  %s13 = inlined_call_operand.hbm [shape: bf16[2048,256], index: 13, kind: output, shape index: {2}]
  %s14 = inlined_call_operand.vmem [shape: bf16[2048,16], index: 14, kind: output, shape index: {3}]
  %15 = xla_tuple %s11, %s12, %s13, %s14
  %s16 = sld [smem:[#allocation0]]
  $region101: #{tpu_custom_call.1} parent=0
    _
  %s18 = ssub.s32 1, %s16
  %s19 = scalar_select 0, %s18, %s16
  $region1: #{tpu_custom_call.1} parent=0
    #allocation2 [shape = 'u8[524288]{0}', space=vmem, size = 0x80000, scoped, tag = 'output window, operand 0']
    #allocation3 [shape = 's32[2]{0}', space=sflag, size = 0x8, scoped, tag = 'scoped memory for tpu_custom_call.1']
    #allocation4 [shape = 'u8[524288]{0}', space=vmem, size = 0x80000, scoped, tag = 'output window, operand 1']
    #allocation5 [shape = 's32[2]{0}', space=sflag, size = 0x8, scoped, tag = 'scoped memory for tpu_custom_call.1']
    #allocation6 [shape = 'u8[1048576]{0}', space=vmem, size = 0x100000, scoped, tag = 'output window, operand 2']
    %20 = vsyncpa [#allocation3], 0
    %s21 = scalar_lea.sflag [#allocation3], 1
    %22 = vsyncpa %s21, 0
    %23 = vsyncpa [#allocation5], 0
    %s24 = scalar_lea.sflag [#allocation5], 1
    %25 = vsyncpa %s24, 0
    loop: start=0, step=1, limit=4
    $region2: #{tpu_custom_call.1} parent=1 // loop_pre_header
      _
    $region3: #{tpu_custom_call.1} parent=1 // loop_header
      %s27 = sphi 0, %s31
      %p28 = scmp.ge.s32.totalorder %s27, 4
      %s37 = sphi 0, %s39
      %s40 = sphi 0, %s37
      %s41 = sphi 0, %s40
      %s57 = sphi 0, %s41
      %s61 = sphi 0, %s61
      %s63 = sphi 0, %s61
      %s64 = sphi 0, %s63
      %s78 = sphi 0, %s64
      %s82 = sphi 0, %s82
      %s84 = sphi 0, %s82
      %s85 = sphi 0, %s84
      %s99 = sphi 0, %s85
      %s103 = sphi 0, %s103
      %s105 = sphi 0, %s103
      %s106 = sphi 0, %s105
      %s120 = sphi 0, %s106
      %s124 = sphi 0, %s124
      %s126 = sphi 0, %s124
      %s127 = sphi 0, %s126
      %s141 = sphi 0, %s127
      %s145 = sphi 0, %s145
      %s147 = sphi 0, %s145
      %s148 = sphi 0, %s147
      %s162 = sphi 0, %s148
      %s166 = sphi 0, %s166
      %s168 = sphi 0, %s166
      %s169 = sphi 0, %s168
      %s183 = sphi 0, %s169
      %s187 = sphi 0, %s187
      %s189 = sphi 0, %s187
      %s190 = sphi 0, %s189
      %s204 = sphi 0, %s190
      %s208 = sphi 0, %s208
      %s210 = sphi 0, %s208
      %s211 = sphi 0, %s210
      %s225 = sphi 0, %s211
      %s229 = sphi 0, %s229
      %s231 = sphi 0, %s229
      %s232 = sphi 0, %s231
      %s246 = sphi 0, %s232
      %s250 = sphi 0, %s250
      %s252 = sphi 0, %s250
      %s253 = sphi 0, %s252
      %s267 = sphi 0, %s253
      %s273 = sphi 0, %s275
      %s276 = sphi 0, %s273
      %s277 = sphi 0, %s276
      %s293 = sphi 0, %s277
      %s299 = sphi 0, %s301
      %s302 = sphi 0, %s299
      %s303 = sphi 0, %s302
      %s319 = sphi 0, %s303
      %s325 = sphi 0, %s327
      %s328 = sphi 0, %s325
      %s329 = sphi 0, %s328
      %s345 = sphi 0, %s329
      %s351 = sphi 0, %s353
      %s354 = sphi 0, %s351
      %s355 = sphi 0, %s354
      %s371 = sphi 0, %s355
    $region4: #{tpu_custom_call.1} parent=1 // loop_header_branch
      %30 = sbr.rel (%p28) target = $region8
    $region5: #{tpu_custom_call.1} parent=1 // loop_body
      %s32 = ssub.s32 %s27, 1
      %s33 = ssub.s32 %s27, 2
      %s34 = sadd.s32 %s27, 1
      %s35 = ssub.s32 %s27, %s34
      %p36 = scmp.eq.s32.totalorder %s35, 0
      %s38 = sadd.s32 %s37, 1
      %s39 = scalar_select %p36, %s37, %s38
      %p42 = pneg %p36
      %p43 = scmp.eq.s32.totalorder %s27, 1
      %p44 = por %p42, %p43
      %p45 = scmp.ne.s32.totalorder %s37, %s40
      %p46 = scmp.eq.s32.totalorder %s27, 0
      %p47 = por %p45, %p46
      %p48 = scmp.ne.s32.totalorder %s37, %s40
      %p49 = scmp.eq.s32.totalorder %s32, 1
      %p50 = por %p48, %p49
      %p51 = scmp.ne.s32.totalorder %s40, %s41
      %p52 = scmp.eq.s32.totalorder %s32, 0
      %p53 = por %p51, %p52
      %p54 = scmp.ne.s32.totalorder %s40, %s41
      %p55 = scmp.eq.s32.totalorder %s33, 1
      %p56 = por %p54, %p55
      %p58 = scmp.ne.s32.totalorder %s41, %s57
      %p59 = scmp.eq.s32.totalorder %s33, 0
      %p60 = por %p58, %p59
      %s62 = sadd.s32 %s61, 1
      %p65 = scmp.eq.s32.totalorder %s27, 1
      %p66 = scmp.ne.s32.totalorder %s61, %s63
      %p67 = scmp.eq.s32.totalorder %s27, 0
      %p68 = por %p66, %p67
      %p69 = scmp.ne.s32.totalorder %s61, %s63
      %p70 = scmp.eq.s32.totalorder %s32, 1
      %p71 = por %p69, %p70
      %p72 = scmp.ne.s32.totalorder %s63, %s64
      %p73 = scmp.eq.s32.totalorder %s32, 0
      %p74 = por %p72, %p73
      %p75 = scmp.ne.s32.totalorder %s63, %s64
      %p76 = scmp.eq.s32.totalorder %s33, 1
      %p77 = por %p75, %p76
      %p79 = scmp.ne.s32.totalorder %s64, %s78
      %p80 = scmp.eq.s32.totalorder %s33, 0
      %p81 = por %p79, %p80
      %s83 = sadd.s32 %s82, 1
      %p86 = scmp.eq.s32.totalorder %s27, 1
      %p87 = scmp.ne.s32.totalorder %s82, %s84
      %p88 = scmp.eq.s32.totalorder %s27, 0
      %p89 = por %p87, %p88
      %p90 = scmp.ne.s32.totalorder %s82, %s84
      %p91 = scmp.eq.s32.totalorder %s32, 1
      %p92 = por %p90, %p91
      %p93 = scmp.ne.s32.totalorder %s84, %s85
      %p94 = scmp.eq.s32.totalorder %s32, 0
      %p95 = por %p93, %p94
      %p96 = scmp.ne.s32.totalorder %s84, %s85
      %p97 = scmp.eq.s32.totalorder %s33, 1
      %p98 = por %p96, %p97
      %p100 = scmp.ne.s32.totalorder %s85, %s99
      %p101 = scmp.eq.s32.totalorder %s33, 0
      %p102 = por %p100, %p101
      %s104 = sadd.s32 %s103, 1
      %p107 = scmp.eq.s32.totalorder %s27, 1
      %p108 = scmp.ne.s32.totalorder %s103, %s105
      %p109 = scmp.eq.s32.totalorder %s27, 0
      %p110 = por %p108, %p109
      %p111 = scmp.ne.s32.totalorder %s103, %s105
      %p112 = scmp.eq.s32.totalorder %s32, 1
      %p113 = por %p111, %p112
      %p114 = scmp.ne.s32.totalorder %s105, %s106
      %p115 = scmp.eq.s32.totalorder %s32, 0
      %p116 = por %p114, %p115
      %p117 = scmp.ne.s32.totalorder %s105, %s106
      %p118 = scmp.eq.s32.totalorder %s33, 1
      %p119 = por %p117, %p118
      %p121 = scmp.ne.s32.totalorder %s106, %s120
      %p122 = scmp.eq.s32.totalorder %s33, 0
      %p123 = por %p121, %p122
      %s125 = sadd.s32 %s124, 1
      %p128 = scmp.eq.s32.totalorder %s27, 1
      %p129 = scmp.ne.s32.totalorder %s124, %s126
      %p130 = scmp.eq.s32.totalorder %s27, 0
      %p131 = por %p129, %p130
      %p132 = scmp.ne.s32.totalorder %s124, %s126
      %p133 = scmp.eq.s32.totalorder %s32, 1
      %p134 = por %p132, %p133
      %p135 = scmp.ne.s32.totalorder %s126, %s127
      %p136 = scmp.eq.s32.totalorder %s32, 0
      %p137 = por %p135, %p136
      %p138 = scmp.ne.s32.totalorder %s126, %s127
      %p139 = scmp.eq.s32.totalorder %s33, 1
      %p140 = por %p138, %p139
      %p142 = scmp.ne.s32.totalorder %s127, %s141
      %p143 = scmp.eq.s32.totalorder %s33, 0
      %p144 = por %p142, %p143
      %s146 = sadd.s32 %s145, 1
      %p149 = scmp.eq.s32.totalorder %s27, 1
      %p150 = scmp.ne.s32.totalorder %s145, %s147
      %p151 = scmp.eq.s32.totalorder %s27, 0
      %p152 = por %p150, %p151
      %p153 = scmp.ne.s32.totalorder %s145, %s147
      %p154 = scmp.eq.s32.totalorder %s32, 1
      %p155 = por %p153, %p154
      %p156 = scmp.ne.s32.totalorder %s147, %s148
      %p157 = scmp.eq.s32.totalorder %s32, 0
      %p158 = por %p156, %p157
      %p159 = scmp.ne.s32.totalorder %s147, %s148
      %p160 = scmp.eq.s32.totalorder %s33, 1
      %p161 = por %p159, %p160
      %p163 = scmp.ne.s32.totalorder %s148, %s162
      %p164 = scmp.eq.s32.totalorder %s33, 0
      %p165 = por %p163, %p164
      %s167 = sadd.s32 %s166, 1
      %p170 = scmp.eq.s32.totalorder %s27, 1
      %p171 = scmp.ne.s32.totalorder %s166, %s168
      %p172 = scmp.eq.s32.totalorder %s27, 0
      %p173 = por %p171, %p172
      %p174 = scmp.ne.s32.totalorder %s166, %s168
      %p175 = scmp.eq.s32.totalorder %s32, 1
      %p176 = por %p174, %p175
      %p177 = scmp.ne.s32.totalorder %s168, %s169
      %p178 = scmp.eq.s32.totalorder %s32, 0
      %p179 = por %p177, %p178
      %p180 = scmp.ne.s32.totalorder %s168, %s169
      %p181 = scmp.eq.s32.totalorder %s33, 1
      %p182 = por %p180, %p181
      %p184 = scmp.ne.s32.totalorder %s169, %s183
      %p185 = scmp.eq.s32.totalorder %s33, 0
      %p186 = por %p184, %p185
      %s188 = sadd.s32 %s187, 1
      %p191 = scmp.eq.s32.totalorder %s27, 1
      %p192 = scmp.ne.s32.totalorder %s187, %s189
      %p193 = scmp.eq.s32.totalorder %s27, 0
      %p194 = por %p192, %p193
      %p195 = scmp.ne.s32.totalorder %s187, %s189
      %p196 = scmp.eq.s32.totalorder %s32, 1
      %p197 = por %p195, %p196
      %p198 = scmp.ne.s32.totalorder %s189, %s190
      %p199 = scmp.eq.s32.totalorder %s32, 0
      %p200 = por %p198, %p199
      %p201 = scmp.ne.s32.totalorder %s189, %s190
      %p202 = scmp.eq.s32.totalorder %s33, 1
      %p203 = por %p201, %p202
      %p205 = scmp.ne.s32.totalorder %s190, %s204
      %p206 = scmp.eq.s32.totalorder %s33, 0
      %p207 = por %p205, %p206
      %s209 = sadd.s32 %s208, 1
      %p212 = scmp.eq.s32.totalorder %s27, 1
      %p213 = scmp.ne.s32.totalorder %s208, %s210
      %p214 = scmp.eq.s32.totalorder %s27, 0
      %p215 = por %p213, %p214
      %p216 = scmp.ne.s32.totalorder %s208, %s210
      %p217 = scmp.eq.s32.totalorder %s32, 1
      %p218 = por %p216, %p217
      %p219 = scmp.ne.s32.totalorder %s210, %s211
      %p220 = scmp.eq.s32.totalorder %s32, 0
      %p221 = por %p219, %p220
      %p222 = scmp.ne.s32.totalorder %s210, %s211
      %p223 = scmp.eq.s32.totalorder %s33, 1
      %p224 = por %p222, %p223
      %p226 = scmp.ne.s32.totalorder %s211, %s225
      %p227 = scmp.eq.s32.totalorder %s33, 0
      %p228 = por %p226, %p227
      %s230 = sadd.s32 %s229, 1
      %p233 = scmp.eq.s32.totalorder %s27, 1
      %p234 = scmp.ne.s32.totalorder %s229, %s231
      %p235 = scmp.eq.s32.totalorder %s27, 0
      %p236 = por %p234, %p235
      %p237 = scmp.ne.s32.totalorder %s229, %s231
      %p238 = scmp.eq.s32.totalorder %s32, 1
      %p239 = por %p237, %p238
      %p240 = scmp.ne.s32.totalorder %s231, %s232
      %p241 = scmp.eq.s32.totalorder %s32, 0
      %p242 = por %p240, %p241
      %p243 = scmp.ne.s32.totalorder %s231, %s232
      %p244 = scmp.eq.s32.totalorder %s33, 1
      %p245 = por %p243, %p244
      %p247 = scmp.ne.s32.totalorder %s232, %s246
      %p248 = scmp.eq.s32.totalorder %s33, 0
      %p249 = por %p247, %p248
      %s251 = sadd.s32 %s250, 1
      %p254 = scmp.eq.s32.totalorder %s27, 1
      %p255 = scmp.ne.s32.totalorder %s250, %s252
      %p256 = scmp.eq.s32.totalorder %s27, 0
      %p257 = por %p255, %p256
      %p258 = scmp.ne.s32.totalorder %s250, %s252
      %p259 = scmp.eq.s32.totalorder %s32, 1
      %p260 = por %p258, %p259
      %p261 = scmp.ne.s32.totalorder %s252, %s253
      %p262 = scmp.eq.s32.totalorder %s32, 0
      %p263 = por %p261, %p262
      %p264 = scmp.ne.s32.totalorder %s252, %s253
      %p265 = scmp.eq.s32.totalorder %s33, 1
      %p266 = por %p264, %p265
      %p268 = scmp.ne.s32.totalorder %s253, %s267
      %p269 = scmp.eq.s32.totalorder %s33, 0
      %p270 = por %p268, %p269
      %s271 = ssub.s32 %s27, %s34
      %p272 = scmp.eq.s32.totalorder %s271, 0
      %s274 = sadd.s32 %s273, 1
      %s275 = scalar_select %p272, %s273, %s274
      %p278 = pneg %p272
      %p279 = scmp.eq.s32.totalorder %s27, 1
      %p280 = por %p278, %p279
      %p281 = scmp.ne.s32.totalorder %s273, %s276
      %p282 = scmp.eq.s32.totalorder %s27, 0
      %p283 = por %p281, %p282
      %p284 = scmp.ne.s32.totalorder %s273, %s276
      %p285 = scmp.eq.s32.totalorder %s32, 1
      %p286 = por %p284, %p285
      %p287 = scmp.ne.s32.totalorder %s276, %s277
      %p288 = scmp.eq.s32.totalorder %s32, 0
      %p289 = por %p287, %p288
      %p290 = scmp.ne.s32.totalorder %s276, %s277
      %p291 = scmp.eq.s32.totalorder %s33, 1
      %p292 = por %p290, %p291
      %p294 = scmp.ne.s32.totalorder %s277, %s293
      %p295 = scmp.eq.s32.totalorder %s33, 0
      %p296 = por %p294, %p295
      %s297 = ssub.s32 %s27, %s34
      %p298 = scmp.eq.s32.totalorder %s297, 0
      %s300 = sadd.s32 %s299, 1
      %s301 = scalar_select %p298, %s299, %s300
      %p304 = pneg %p298
      %p305 = scmp.eq.s32.totalorder %s27, 1
      %p306 = por %p304, %p305
      %p307 = scmp.ne.s32.totalorder %s299, %s302
      %p308 = scmp.eq.s32.totalorder %s27, 0
      %p309 = por %p307, %p308
      %p310 = scmp.ne.s32.totalorder %s299, %s302
      %p311 = scmp.eq.s32.totalorder %s32, 1
      %p312 = por %p310, %p311
      %p313 = scmp.ne.s32.totalorder %s302, %s303
      %p314 = scmp.eq.s32.totalorder %s32, 0
      %p315 = por %p313, %p314
      %p316 = scmp.ne.s32.totalorder %s302, %s303
      %p317 = scmp.eq.s32.totalorder %s33, 1
      %p318 = por %p316, %p317
      %p320 = scmp.ne.s32.totalorder %s303, %s319
      %p321 = scmp.eq.s32.totalorder %s33, 0
      %p322 = por %p320, %p321
      %s323 = ssub.s32 %s27, %s34
      %p324 = scmp.eq.s32.totalorder %s323, 0
      %s326 = sadd.s32 %s325, 1
      %s327 = scalar_select %p324, %s325, %s326
      %p330 = pneg %p324
      %p331 = scmp.eq.s32.totalorder %s27, 1
      %p332 = por %p330, %p331
      %p333 = scmp.ne.s32.totalorder %s325, %s328
      %p334 = scmp.eq.s32.totalorder %s27, 0
      %p335 = por %p333, %p334
      %p336 = scmp.ne.s32.totalorder %s325, %s328
      %p337 = scmp.eq.s32.totalorder %s32, 1
      %p338 = por %p336, %p337
      %p339 = scmp.ne.s32.totalorder %s328, %s329
      %p340 = scmp.eq.s32.totalorder %s32, 0
      %p341 = por %p339, %p340
      %p342 = scmp.ne.s32.totalorder %s328, %s329
      %p343 = scmp.eq.s32.totalorder %s33, 1
      %p344 = por %p342, %p343
      %p346 = scmp.ne.s32.totalorder %s329, %s345
      %p347 = scmp.eq.s32.totalorder %s33, 0
      %p348 = por %p346, %p347
      %s349 = ssub.s32 %s27, %s34
      %p350 = scmp.eq.s32.totalorder %s349, 0
      %s352 = sadd.s32 %s351, 1
      %s353 = scalar_select %p350, %s351, %s352
      %p356 = pneg %p350
      %p357 = scmp.eq.s32.totalorder %s27, 1
      %p358 = por %p356, %p357
      %p359 = scmp.ne.s32.totalorder %s351, %s354
      %p360 = scmp.eq.s32.totalorder %s27, 0
      %p361 = por %p359, %p360
      %p362 = scmp.ne.s32.totalorder %s351, %s354
      %p363 = scmp.eq.s32.totalorder %s32, 1
      %p364 = por %p362, %p363
      %p365 = scmp.ne.s32.totalorder %s354, %s355
      %p366 = scmp.eq.s32.totalorder %s32, 0
      %p367 = por %p365, %p366
      %p368 = scmp.ne.s32.totalorder %s354, %s355
      %p369 = scmp.eq.s32.totalorder %s33, 1
      %p370 = por %p368, %p369
      %p372 = scmp.ne.s32.totalorder %s355, %s371
      %p373 = scmp.eq.s32.totalorder %s33, 0
      %p374 = por %p372, %p373
      %p375 = scmp.le.s32.totalorder 1, %s27
      %p376 = scmp.lt.s32.totalorder %s27, 3
      %p377 = pnand %p375, %p376
      %p378 = pneg %p377
      // Predicated region
      $region9: #{tpu_custom_call.1} parent=5 // pred_check
        _
      $region10: #{tpu_custom_call.1} parent=5 // pred_check_branch
        %380 = sbr.rel (%p377) target = $region12
      $region11: #{tpu_custom_call.1} parent=5 // pred_region
        %s381 = ssub.s32 %s27, 1
        // Predicated region
        $region13: #{tpu_custom_call.1} parent=11 // pred_check
          %p382 = pneg %p74
        $region14: #{tpu_custom_call.1} parent=11 // pred_check_branch
          %384 = sbr.rel (%p382) target = $region16
        $region15: #{tpu_custom_call.1} parent=11 // pred_region
          _
        $region16: #{tpu_custom_call.1} parent=11 // pred_fallthru
          _
        // Predicated region
        $region17: #{tpu_custom_call.1} parent=11 // pred_check
          %p385 = pneg %p95
        $region18: #{tpu_custom_call.1} parent=11 // pred_check_branch
          %387 = sbr.rel (%p385) target = $region20
        $region19: #{tpu_custom_call.1} parent=11 // pred_region
          _
        $region20: #{tpu_custom_call.1} parent=11 // pred_fallthru
          _
        // Predicated region
        $region21: #{tpu_custom_call.1} parent=11 // pred_check
          %p388 = pneg %p116
        $region22: #{tpu_custom_call.1} parent=11 // pred_check_branch
          %390 = sbr.rel (%p388) target = $region24
        $region23: #{tpu_custom_call.1} parent=11 // pred_region
          _
        $region24: #{tpu_custom_call.1} parent=11 // pred_fallthru
          _
        // Predicated region
        $region25: #{tpu_custom_call.1} parent=11 // pred_check
          %p391 = pneg %p137
        $region26: #{tpu_custom_call.1} parent=11 // pred_check_branch
          %393 = sbr.rel (%p391) target = $region28
        $region27: #{tpu_custom_call.1} parent=11 // pred_region
          _
        $region28: #{tpu_custom_call.1} parent=11 // pred_fallthru
          _
        // Predicated region
        $region29: #{tpu_custom_call.1} parent=11 // pred_check
          %p394 = pneg %p158
        $region30: #{tpu_custom_call.1} parent=11 // pred_check_branch
          %396 = sbr.rel (%p394) target = $region32
        $region31: #{tpu_custom_call.1} parent=11 // pred_region
          _
        $region32: #{tpu_custom_call.1} parent=11 // pred_fallthru
          _
        // Predicated region
        $region33: #{tpu_custom_call.1} parent=11 // pred_check
          %p397 = pneg %p179
        $region34: #{tpu_custom_call.1} parent=11 // pred_check_branch
          %399 = sbr.rel (%p397) target = $region36
        $region35: #{tpu_custom_call.1} parent=11 // pred_region
          _
        $region36: #{tpu_custom_call.1} parent=11 // pred_fallthru
          _
        // Predicated region
        $region37: #{tpu_custom_call.1} parent=11 // pred_check
          %p400 = pneg %p200
        $region38: #{tpu_custom_call.1} parent=11 // pred_check_branch
          %402 = sbr.rel (%p400) target = $region40
        $region39: #{tpu_custom_call.1} parent=11 // pred_region
          _
        $region40: #{tpu_custom_call.1} parent=11 // pred_fallthru
          _
        // Predicated region
        $region41: #{tpu_custom_call.1} parent=11 // pred_check
          %p403 = pneg %p221
        $region42: #{tpu_custom_call.1} parent=11 // pred_check_branch
          %405 = sbr.rel (%p403) target = $region44
        $region43: #{tpu_custom_call.1} parent=11 // pred_region
          _
        $region44: #{tpu_custom_call.1} parent=11 // pred_fallthru
          _
        // Predicated region
        $region45: #{tpu_custom_call.1} parent=11 // pred_check
          %p406 = pneg %p242
        $region46: #{tpu_custom_call.1} parent=11 // pred_check_branch
          %408 = sbr.rel (%p406) target = $region48
        $region47: #{tpu_custom_call.1} parent=11 // pred_region
          _
        $region48: #{tpu_custom_call.1} parent=11 // pred_fallthru
          _
        // Predicated region
        $region49: #{tpu_custom_call.1} parent=11 // pred_check
          %p409 = pneg %p263
        $region50: #{tpu_custom_call.1} parent=11 // pred_check_branch
          %411 = sbr.rel (%p409) target = $region52
        $region51: #{tpu_custom_call.1} parent=11 // pred_region
          _
        $region52: #{tpu_custom_call.1} parent=11 // pred_fallthru
          _
      $region12: #{tpu_custom_call.1} parent=5 // pred_fallthru
        _
      %p412 = scmp.lt.s32.totalorder %s27, 2
      // Predicated region
      $region53: #{tpu_custom_call.1} parent=5 // pred_check
        %p413 = pneg %p412
      $region54: #{tpu_custom_call.1} parent=5 // pred_check_branch
        %415 = sbr.rel (%p413) target = $region56
      $region55: #{tpu_custom_call.1} parent=5 // pred_region
        // Predicated region
        $region57: #{tpu_custom_call.1} parent=55 // pred_check
          %p416 = pneg %p47
        $region58: #{tpu_custom_call.1} parent=55 // pred_check_branch
          %418 = sbr.rel (%p416) target = $region60
        $region59: #{tpu_custom_call.1} parent=55 // pred_region
          %s419 = smul.u32 128, %s27
          %p420 = scmp.lt.s32.totalorder %s419, 255
          %s421 = scalar_select %p420, %s419, 255
          %s422 = smul.addr %s421, 8
          %s423 = scalar_lea.vmem %s0, %s422
          %s424 = smul.u32 128, %s27
        $region60: #{tpu_custom_call.1} parent=55 // pred_fallthru
          _
      $region56: #{tpu_custom_call.1} parent=5 // pred_fallthru
        _
      %p425 = scmp.le.s32.totalorder 1, %s27
      %p426 = scmp.lt.s32.totalorder %s27, 3
      %p427 = pnand %p425, %p426
      %p428 = pneg %p427
      // Predicated region
      $region61: #{tpu_custom_call.1} parent=5 // pred_check
        _
      $region62: #{tpu_custom_call.1} parent=5 // pred_check_branch
        %430 = sbr.rel (%p427) target = $region64
      $region63: #{tpu_custom_call.1} parent=5 // pred_region
        %s431 = ssub.s32 %s27, 1
        %s432 = smul.u32 128, %s32
        %p433 = scmp.lt.s32.totalorder %s432, 255
        %s434 = scalar_select %p433, %s432, 255
        %s435 = smul.addr %s434, 8
        %s436 = scalar_lea.vmem %s0, %s435
        %p437 = pneg %p53
        %p438 = pneg %p50
        %p439 = pneg %p74
        %p440 = pneg %p71
        %p441 = pneg %p95
        %p442 = pneg %p92
        %p443 = pneg %p116
        %p444 = pneg %p113
        %p445 = pneg %p137
        %p446 = pneg %p134
        %p447 = pneg %p158
        %p448 = pneg %p155
        %p449 = pneg %p179
        %p450 = pneg %p176
        %p451 = pneg %p200
        %p452 = pneg %p197
        %p453 = pneg %p221
        %p454 = pneg %p218
        %p455 = pneg %p242
        %p456 = pneg %p239
        %p457 = pneg %p263
        %p458 = pneg %p260
        %p459 = pneg %p289
        %p460 = pneg %p286
        %s461 = sand.u32 %s276, 1
        %s462 = scalar_lea.sflag [#allocation3], %s461
        %s463 = sand.u32 %s276, 1
        %s464 = smul.addr %s463, 512
        %s465 = scalar_lea.vmem [#allocation2], %s464
        %p466 = pneg %p315
        %p467 = pneg %p312
        %s468 = sand.u32 %s32, 1
        %s469 = scalar_lea.sflag [#allocation5], %s468
        %s470 = sand.u32 %s302, 1
        %s471 = smul.addr %s470, 512
        %s472 = scalar_lea.vmem [#allocation4], %s471
        %p473 = pneg %p341
        %p474 = pneg %p338
        %s475 = sand.u32 %s32, 1
        %s476 = scalar_lea.sflag [#allocation5], %s475
        %s477 = sand.u32 %s328, 1
        %s478 = smul.addr %s477, 1024
        %s479 = scalar_lea.vmem [#allocation6], %s478
        %p480 = pneg %p367
        %p481 = pneg %p364
        %s482 = smul.u32 128, %s32
        %p483 = scmp.lt.s32.totalorder %s482, 255
        %s484 = scalar_select %p483, %s482, 255
        %s485 = smul.addr %s484, 4
        %s486 = scalar_lea.vmem %s14, %s485
        %s487 = smul.u32 128, %s32
        %p488 = scmp.lt.s32.totalorder %s487, 255
        %s489 = scalar_select %p488, %s487, 255
        %s490 = smul.addr %s489, 8
        %s491 = scalar_lea.vmem %s0, %s490
        %s492 = smul.u32 128, %s32
        %s493 = smul.u32 128, %s32
        %s494 = smul.u32 128, %s32
        %s495 = smul.u32 128, %s32
        %s496 = smul.u32 128, %s32
        %p497 = scmp.lt.s32.totalorder %s496, 255
        %s498 = scalar_select %p497, %s496, 255
        %s499 = smul.addr %s498, 4
        %s500 = scalar_lea.vmem %s14, %s499
        %s501 = smul.u32 128, %s32
        %v503 = vld [vmem:[%s491] sm:$0xff]
        %v504 = vld [vmem:[%s491 + $0x8] sm:$0xff]
        %v505 = vld [vmem:[%s491 + $0x10] sm:$0xff]
        %v506 = vld [vmem:[%s491 + $0x18] sm:$0xff]
        %v507 = vld [vmem:[%s491 + $0x20] sm:$0xff]
        %v508 = vld [vmem:[%s491 + $0x28] sm:$0xff]
        %v509 = vld [vmem:[%s491 + $0x30] sm:$0xff]
        %v510 = vld [vmem:[%s491 + $0x38] sm:$0xff]
        %v511 = vld [vmem:[%s491 + $0x40] sm:$0xff]
        %v512 = vld [vmem:[%s491 + $0x48] sm:$0xff]
        %v513 = vld [vmem:[%s491 + $0x50] sm:$0xff]
        %v514 = vld [vmem:[%s491 + $0x58] sm:$0xff]
        %v515 = vld [vmem:[%s491 + $0x60] sm:$0xff]
        %v516 = vld [vmem:[%s491 + $0x68] sm:$0xff]
        %v517 = vld [vmem:[%s491 + $0x70] sm:$0xff]
        %v518 = vld [vmem:[%s491 + $0x78] sm:$0xff]
        %v519 = vld [vmem:[%s491 + $0x80] sm:$0xff]
        %v520 = vld [vmem:[%s491 + $0x88] sm:$0xff]
        %v521 = vld [vmem:[%s491 + $0x90] sm:$0xff]
        %v522 = vld [vmem:[%s491 + $0x98] sm:$0xff]
        %v523 = vld [vmem:[%s491 + $0xa0] sm:$0xff]
        %v524 = vld [vmem:[%s491 + $0xa8] sm:$0xff]
        %v525 = vld [vmem:[%s491 + $0xb0] sm:$0xff]
        %v526 = vld [vmem:[%s491 + $0xb8] sm:$0xff]
        %v527 = vld [vmem:[%s491 + $0xc0] sm:$0xff]
        %v528 = vld [vmem:[%s491 + $0xc8] sm:$0xff]
        %v529 = vld [vmem:[%s491 + $0xd0] sm:$0xff]
        %v530 = vld [vmem:[%s491 + $0xd8] sm:$0xff]
        %v531 = vld [vmem:[%s491 + $0xe0] sm:$0xff]
        %v532 = vld [vmem:[%s491 + $0xe8] sm:$0xff]
        %v533 = vld [vmem:[%s491 + $0xf0] sm:$0xff]
        %v534 = vld [vmem:[%s491 + $0xf8] sm:$0xff]
        %v535 = vld [vmem:[%s1] sm:$0x1]
        %537 = vset.pattern.permute.xlu0 0
        %538 = vperm.xlu0 %537, %v503
        %v539 = vpop.permute.xlu0 %538
        %542 = vset.pattern.permute.xlu0 0
        %543 = vperm.xlu0 %542, %v504
        %v544 = vpop.permute.xlu0 %543
        %547 = vset.pattern.permute.xlu0 0
        %548 = vperm.xlu0 %547, %v505
        %v549 = vpop.permute.xlu0 %548
        %552 = vset.pattern.permute.xlu0 0
        %553 = vperm.xlu0 %552, %v506
        %v554 = vpop.permute.xlu0 %553
        %557 = vset.pattern.permute.xlu0 0
        %558 = vperm.xlu0 %557, %v507
        %v559 = vpop.permute.xlu0 %558
        %562 = vset.pattern.permute.xlu0 0
        %563 = vperm.xlu0 %562, %v508
        %v564 = vpop.permute.xlu0 %563
        %567 = vset.pattern.permute.xlu0 0
        %568 = vperm.xlu0 %567, %v509
        %v569 = vpop.permute.xlu0 %568
        %572 = vset.pattern.permute.xlu0 0
        %573 = vperm.xlu0 %572, %v510
        %v574 = vpop.permute.xlu0 %573
        %577 = vset.pattern.permute.xlu0 0
        %578 = vperm.xlu0 %577, %v511
        %v579 = vpop.permute.xlu0 %578
        %582 = vset.pattern.permute.xlu0 0
        %583 = vperm.xlu0 %582, %v512
        %v584 = vpop.permute.xlu0 %583
        %587 = vset.pattern.permute.xlu0 0
        %588 = vperm.xlu0 %587, %v513
        %v589 = vpop.permute.xlu0 %588
        %592 = vset.pattern.permute.xlu0 0
        %593 = vperm.xlu0 %592, %v514
        %v594 = vpop.permute.xlu0 %593
        %597 = vset.pattern.permute.xlu0 0
        %598 = vperm.xlu0 %597, %v515
        %v599 = vpop.permute.xlu0 %598
        %602 = vset.pattern.permute.xlu0 0
        %603 = vperm.xlu0 %602, %v516
        %v604 = vpop.permute.xlu0 %603
        %607 = vset.pattern.permute.xlu0 0
        %608 = vperm.xlu0 %607, %v517
        %v609 = vpop.permute.xlu0 %608
        %612 = vset.pattern.permute.xlu0 0
        %613 = vperm.xlu0 %612, %v518
        %v614 = vpop.permute.xlu0 %613
        %617 = vset.pattern.permute.xlu0 0
        %618 = vperm.xlu0 %617, %v519
        %v619 = vpop.permute.xlu0 %618
        %622 = vset.pattern.permute.xlu0 0
        %623 = vperm.xlu0 %622, %v520
        %v624 = vpop.permute.xlu0 %623
        %627 = vset.pattern.permute.xlu0 0
        %628 = vperm.xlu0 %627, %v521
        %v629 = vpop.permute.xlu0 %628
        %632 = vset.pattern.permute.xlu0 0
        %633 = vperm.xlu0 %632, %v522
        %v634 = vpop.permute.xlu0 %633
        %637 = vset.pattern.permute.xlu0 0
        %638 = vperm.xlu0 %637, %v523
        %v639 = vpop.permute.xlu0 %638
        %642 = vset.pattern.permute.xlu0 0
        %643 = vperm.xlu0 %642, %v524
        %v644 = vpop.permute.xlu0 %643
        %647 = vset.pattern.permute.xlu0 0
        %648 = vperm.xlu0 %647, %v525
        %v649 = vpop.permute.xlu0 %648
        %652 = vset.pattern.permute.xlu0 0
        %653 = vperm.xlu0 %652, %v526
        %v654 = vpop.permute.xlu0 %653
        %657 = vset.pattern.permute.xlu0 0
        %658 = vperm.xlu0 %657, %v527
        %v659 = vpop.permute.xlu0 %658
        %662 = vset.pattern.permute.xlu0 0
        %663 = vperm.xlu0 %662, %v528
        %v664 = vpop.permute.xlu0 %663
        %667 = vset.pattern.permute.xlu0 0
        %668 = vperm.xlu0 %667, %v529
        %v669 = vpop.permute.xlu0 %668
        %672 = vset.pattern.permute.xlu0 0
        %673 = vperm.xlu0 %672, %v530
        %v674 = vpop.permute.xlu0 %673
        %677 = vset.pattern.permute.xlu0 0
        %678 = vperm.xlu0 %677, %v531
        %v679 = vpop.permute.xlu0 %678
        %682 = vset.pattern.permute.xlu0 0
        %683 = vperm.xlu0 %682, %v532
        %v684 = vpop.permute.xlu0 %683
        %687 = vset.pattern.permute.xlu0 0
        %688 = vperm.xlu0 %687, %v533
        %v689 = vpop.permute.xlu0 %688
        %692 = vset.pattern.permute.xlu0 0
        %693 = vperm.xlu0 %692, %v534
        %v694 = vpop.permute.xlu0 %693
        %v696 = vlaneseq
        %v697 = vshrl.u32 %v696, 7
        %v698 = vsub.s32 0, %v697
        %v699 = vrot.slane %v535, %v698
        %v700 = vmul.f32 %v539, %v699
        %v701 = vmul.f32 %v544, %v699
        %v702 = vmul.f32 %v549, %v699
        %v703 = vmul.f32 %v554, %v699
        %v704 = vmul.f32 %v559, %v699
        %v705 = vmul.f32 %v564, %v699
        %v706 = vmul.f32 %v569, %v699
        %v707 = vmul.f32 %v574, %v699
        %v708 = vmul.f32 %v579, %v699
        %v709 = vmul.f32 %v584, %v699
        %v710 = vmul.f32 %v589, %v699
        %v711 = vmul.f32 %v594, %v699
        %v712 = vmul.f32 %v599, %v699
        %v713 = vmul.f32 %v604, %v699
        %v714 = vmul.f32 %v609, %v699
        %v715 = vmul.f32 %v614, %v699
        %v716 = vmul.f32 %v619, %v699
        %v717 = vmul.f32 %v624, %v699
        %v718 = vmul.f32 %v629, %v699
        %v719 = vmul.f32 %v634, %v699
        %v720 = vmul.f32 %v639, %v699
        %v721 = vmul.f32 %v644, %v699
        %v722 = vmul.f32 %v649, %v699
        %v723 = vmul.f32 %v654, %v699
        %v724 = vmul.f32 %v659, %v699
        %v725 = vmul.f32 %v664, %v699
        %v726 = vmul.f32 %v669, %v699
        %v727 = vmul.f32 %v674, %v699
        %v728 = vmul.f32 %v679, %v699
        %v729 = vmul.f32 %v684, %v699
        %v730 = vmul.f32 %v689, %v699
        %v731 = vmul.f32 %v694, %v699
        %v732 = vld [vmem:[%s1 + $0x1] sm:$0x1]
        %733 = vset.pattern.permute.xlu0 1
        %734 = vperm.xlu0 %733, %v503
        %v735 = vpop.permute.xlu0 %734
        %737 = vset.pattern.permute.xlu0 1
        %738 = vperm.xlu0 %737, %v504
        %v739 = vpop.permute.xlu0 %738
        %741 = vset.pattern.permute.xlu0 1
        %742 = vperm.xlu0 %741, %v505
        %v743 = vpop.permute.xlu0 %742
        %745 = vset.pattern.permute.xlu0 1
        %746 = vperm.xlu0 %745, %v506
        %v747 = vpop.permute.xlu0 %746
        %749 = vset.pattern.permute.xlu0 1
        %750 = vperm.xlu0 %749, %v507
        %v751 = vpop.permute.xlu0 %750
        %753 = vset.pattern.permute.xlu0 1
        %754 = vperm.xlu0 %753, %v508
        %v755 = vpop.permute.xlu0 %754
        %757 = vset.pattern.permute.xlu0 1
        %758 = vperm.xlu0 %757, %v509
        %v759 = vpop.permute.xlu0 %758
        %761 = vset.pattern.permute.xlu0 1
        %762 = vperm.xlu0 %761, %v510
        %v763 = vpop.permute.xlu0 %762
        %765 = vset.pattern.permute.xlu0 1
        %766 = vperm.xlu0 %765, %v511
        %v767 = vpop.permute.xlu0 %766
        %769 = vset.pattern.permute.xlu0 1
        %770 = vperm.xlu0 %769, %v512
        %v771 = vpop.permute.xlu0 %770
        %773 = vset.pattern.permute.xlu0 1
        %774 = vperm.xlu0 %773, %v513
        %v775 = vpop.permute.xlu0 %774
        %777 = vset.pattern.permute.xlu0 1
        %778 = vperm.xlu0 %777, %v514
        %v779 = vpop.permute.xlu0 %778
        %781 = vset.pattern.permute.xlu0 1
        %782 = vperm.xlu0 %781, %v515
        %v783 = vpop.permute.xlu0 %782
        %785 = vset.pattern.permute.xlu0 1
        %786 = vperm.xlu0 %785, %v516
        %v787 = vpop.permute.xlu0 %786
        %789 = vset.pattern.permute.xlu0 1
        %790 = vperm.xlu0 %789, %v517
        %v791 = vpop.permute.xlu0 %790
        %793 = vset.pattern.permute.xlu0 1
        %794 = vperm.xlu0 %793, %v518
        %v795 = vpop.permute.xlu0 %794
        %797 = vset.pattern.permute.xlu0 1
        %798 = vperm.xlu0 %797, %v519
        %v799 = vpop.permute.xlu0 %798
        %801 = vset.pattern.permute.xlu0 1
        %802 = vperm.xlu0 %801, %v520
        %v803 = vpop.permute.xlu0 %802
        %805 = vset.pattern.permute.xlu0 1
        %806 = vperm.xlu0 %805, %v521
        %v807 = vpop.permute.xlu0 %806
        %809 = vset.pattern.permute.xlu0 1
        %810 = vperm.xlu0 %809, %v522
        %v811 = vpop.permute.xlu0 %810
        %813 = vset.pattern.permute.xlu0 1
        %814 = vperm.xlu0 %813, %v523
        %v815 = vpop.permute.xlu0 %814
        %817 = vset.pattern.permute.xlu0 1
        %818 = vperm.xlu0 %817, %v524
        %v819 = vpop.permute.xlu0 %818
        %821 = vset.pattern.permute.xlu0 1
        %822 = vperm.xlu0 %821, %v525
        %v823 = vpop.permute.xlu0 %822
        %825 = vset.pattern.permute.xlu0 1
        %826 = vperm.xlu0 %825, %v526
        %v827 = vpop.permute.xlu0 %826
        %829 = vset.pattern.permute.xlu0 1
        %830 = vperm.xlu0 %829, %v527
        %v831 = vpop.permute.xlu0 %830
        %833 = vset.pattern.permute.xlu0 1
        %834 = vperm.xlu0 %833, %v528
        %v835 = vpop.permute.xlu0 %834
        %837 = vset.pattern.permute.xlu0 1
        %838 = vperm.xlu0 %837, %v529
        %v839 = vpop.permute.xlu0 %838
        %841 = vset.pattern.permute.xlu0 1
        %842 = vperm.xlu0 %841, %v530
        %v843 = vpop.permute.xlu0 %842
        %845 = vset.pattern.permute.xlu0 1
        %846 = vperm.xlu0 %845, %v531
        %v847 = vpop.permute.xlu0 %846
        %849 = vset.pattern.permute.xlu0 1
        %850 = vperm.xlu0 %849, %v532
        %v851 = vpop.permute.xlu0 %850
        %853 = vset.pattern.permute.xlu0 1
        %854 = vperm.xlu0 %853, %v533
        %v855 = vpop.permute.xlu0 %854
        %857 = vset.pattern.permute.xlu0 1
        %858 = vperm.xlu0 %857, %v534
        %v859 = vpop.permute.xlu0 %858
        %v861 = vlaneseq
        %v862 = vshrl.u32 %v861, 7
        %v863 = vsub.s32 0, %v862
        %v864 = vrot.slane %v732, %v863
        %v865 = vmul.f32 %v735, %v864
        %v866 = vmul.f32 %v739, %v864
        %v867 = vmul.f32 %v743, %v864
        %v868 = vmul.f32 %v747, %v864
        %v869 = vmul.f32 %v751, %v864
        %v870 = vmul.f32 %v755, %v864
        %v871 = vmul.f32 %v759, %v864
        %v872 = vmul.f32 %v763, %v864
        %v873 = vmul.f32 %v767, %v864
        %v874 = vmul.f32 %v771, %v864
        %v875 = vmul.f32 %v775, %v864
        %v876 = vmul.f32 %v779, %v864
        %v877 = vmul.f32 %v783, %v864
        %v878 = vmul.f32 %v787, %v864
        %v879 = vmul.f32 %v791, %v864
        %v880 = vmul.f32 %v795, %v864
        %v881 = vmul.f32 %v799, %v864
        %v882 = vmul.f32 %v803, %v864
        %v883 = vmul.f32 %v807, %v864
        %v884 = vmul.f32 %v811, %v864
        %v885 = vmul.f32 %v815, %v864
        %v886 = vmul.f32 %v819, %v864
        %v887 = vmul.f32 %v823, %v864
        %v888 = vmul.f32 %v827, %v864
        %v889 = vmul.f32 %v831, %v864
        %v890 = vmul.f32 %v835, %v864
        %v891 = vmul.f32 %v839, %v864
        %v892 = vmul.f32 %v843, %v864
        %v893 = vmul.f32 %v847, %v864
        %v894 = vmul.f32 %v851, %v864
        %v895 = vmul.f32 %v855, %v864
        %v896 = vmul.f32 %v859, %v864
        %v897 = vadd.f32 %v700, %v865
        %v898 = vadd.f32 %v701, %v866
        %v899 = vadd.f32 %v702, %v867
        %v900 = vadd.f32 %v703, %v868
        %v901 = vadd.f32 %v704, %v869
        %v902 = vadd.f32 %v705, %v870
        %v903 = vadd.f32 %v706, %v871
        %v904 = vadd.f32 %v707, %v872
        %v905 = vadd.f32 %v708, %v873
        %v906 = vadd.f32 %v709, %v874
        %v907 = vadd.f32 %v710, %v875
        %v908 = vadd.f32 %v711, %v876
        %v909 = vadd.f32 %v712, %v877
        %v910 = vadd.f32 %v713, %v878
        %v911 = vadd.f32 %v714, %v879
        %v912 = vadd.f32 %v715, %v880
        %v913 = vadd.f32 %v716, %v881
        %v914 = vadd.f32 %v717, %v882
        %v915 = vadd.f32 %v718, %v883
        %v916 = vadd.f32 %v719, %v884
        %v917 = vadd.f32 %v720, %v885
        %v918 = vadd.f32 %v721, %v886
        %v919 = vadd.f32 %v722, %v887
        %v920 = vadd.f32 %v723, %v888
        %v921 = vadd.f32 %v724, %v889
        %v922 = vadd.f32 %v725, %v890
        %v923 = vadd.f32 %v726, %v891
        %v924 = vadd.f32 %v727, %v892
        %v925 = vadd.f32 %v728, %v893
        %v926 = vadd.f32 %v729, %v894
        %v927 = vadd.f32 %v730, %v895
        %v928 = vadd.f32 %v731, %v896
        %v929 = vld [vmem:[%s1 + $0x2] sm:$0x1]
        %930 = vset.pattern.permute.xlu0 2
        %931 = vperm.xlu0 %930, %v503
        %v932 = vpop.permute.xlu0 %931
        %934 = vset.pattern.permute.xlu0 2
        %935 = vperm.xlu0 %934, %v504
        %v936 = vpop.permute.xlu0 %935
        %938 = vset.pattern.permute.xlu0 2
        %939 = vperm.xlu0 %938, %v505
        %v940 = vpop.permute.xlu0 %939
        %942 = vset.pattern.permute.xlu0 2
        %943 = vperm.xlu0 %942, %v506
        %v944 = vpop.permute.xlu0 %943
        %946 = vset.pattern.permute.xlu0 2
        %947 = vperm.xlu0 %946, %v507
        %v948 = vpop.permute.xlu0 %947
        %950 = vset.pattern.permute.xlu0 2
        %951 = vperm.xlu0 %950, %v508
        %v952 = vpop.permute.xlu0 %951
        %954 = vset.pattern.permute.xlu0 2
        %955 = vperm.xlu0 %954, %v509
        %v956 = vpop.permute.xlu0 %955
        %958 = vset.pattern.permute.xlu0 2
        %959 = vperm.xlu0 %958, %v510
        %v960 = vpop.permute.xlu0 %959
        %962 = vset.pattern.permute.xlu0 2
        %963 = vperm.xlu0 %962, %v511
        %v964 = vpop.permute.xlu0 %963
        %966 = vset.pattern.permute.xlu0 2
        %967 = vperm.xlu0 %966, %v512
        %v968 = vpop.permute.xlu0 %967
        %970 = vset.pattern.permute.xlu0 2
        %971 = vperm.xlu0 %970, %v513
        %v972 = vpop.permute.xlu0 %971
        %974 = vset.pattern.permute.xlu0 2
        %975 = vperm.xlu0 %974, %v514
        %v976 = vpop.permute.xlu0 %975
        %978 = vset.pattern.permute.xlu0 2
        %979 = vperm.xlu0 %978, %v515
        %v980 = vpop.permute.xlu0 %979
        %982 = vset.pattern.permute.xlu0 2
        %983 = vperm.xlu0 %982, %v516
        %v984 = vpop.permute.xlu0 %983
        %986 = vset.pattern.permute.xlu0 2
        %987 = vperm.xlu0 %986, %v517
        %v988 = vpop.permute.xlu0 %987
        %990 = vset.pattern.permute.xlu0 2
        %991 = vperm.xlu0 %990, %v518
        %v992 = vpop.permute.xlu0 %991
        %994 = vset.pattern.permute.xlu0 2
        %995 = vperm.xlu0 %994, %v519
        %v996 = vpop.permute.xlu0 %995
        %998 = vset.pattern.permute.xlu0 2
        %999 = vperm.xlu0 %998, %v520
        %v1000 = vpop.permute.xlu0 %999
        %1002 = vset.pattern.permute.xlu0 2
        %1003 = vperm.xlu0 %1002, %v521
        %v1004 = vpop.permute.xlu0 %1003
        %1006 = vset.pattern.permute.xlu0 2
        %1007 = vperm.xlu0 %1006, %v522
        %v1008 = vpop.permute.xlu0 %1007
        %1010 = vset.pattern.permute.xlu0 2
        %1011 = vperm.xlu0 %1010, %v523
        %v1012 = vpop.permute.xlu0 %1011
        %1014 = vset.pattern.permute.xlu0 2
        %1015 = vperm.xlu0 %1014, %v524
        %v1016 = vpop.permute.xlu0 %1015
        %1018 = vset.pattern.permute.xlu0 2
        %1019 = vperm.xlu0 %1018, %v525
        %v1020 = vpop.permute.xlu0 %1019
        %1022 = vset.pattern.permute.xlu0 2
        %1023 = vperm.xlu0 %1022, %v526
        %v1024 = vpop.permute.xlu0 %1023
        %1026 = vset.pattern.permute.xlu0 2
        %1027 = vperm.xlu0 %1026, %v527
        %v1028 = vpop.permute.xlu0 %1027
        %1030 = vset.pattern.permute.xlu0 2
        %1031 = vperm.xlu0 %1030, %v528
        %v1032 = vpop.permute.xlu0 %1031
        %1034 = vset.pattern.permute.xlu0 2
        %1035 = vperm.xlu0 %1034, %v529
        %v1036 = vpop.permute.xlu0 %1035
        %1038 = vset.pattern.permute.xlu0 2
        %1039 = vperm.xlu0 %1038, %v530
        %v1040 = vpop.permute.xlu0 %1039
        %1042 = vset.pattern.permute.xlu0 2
        %1043 = vperm.xlu0 %1042, %v531
        %v1044 = vpop.permute.xlu0 %1043
        %1046 = vset.pattern.permute.xlu0 2
        %1047 = vperm.xlu0 %1046, %v532
        %v1048 = vpop.permute.xlu0 %1047
        %1050 = vset.pattern.permute.xlu0 2
        %1051 = vperm.xlu0 %1050, %v533
        %v1052 = vpop.permute.xlu0 %1051
        %1054 = vset.pattern.permute.xlu0 2
        %1055 = vperm.xlu0 %1054, %v534
        %v1056 = vpop.permute.xlu0 %1055
        %v1058 = vlaneseq
        %v1059 = vshrl.u32 %v1058, 7
        %v1060 = vsub.s32 0, %v1059
        %v1061 = vrot.slane %v929, %v1060
        %v1062 = vmul.f32 %v932, %v1061
        %v1063 = vmul.f32 %v936, %v1061
        %v1064 = vmul.f32 %v940, %v1061
        %v1065 = vmul.f32 %v944, %v1061
        %v1066 = vmul.f32 %v948, %v1061
        %v1067 = vmul.f32 %v952, %v1061
        %v1068 = vmul.f32 %v956, %v1061
        %v1069 = vmul.f32 %v960, %v1061
        %v1070 = vmul.f32 %v964, %v1061
        %v1071 = vmul.f32 %v968, %v1061
        %v1072 = vmul.f32 %v972, %v1061
        %v1073 = vmul.f32 %v976, %v1061
        %v1074 = vmul.f32 %v980, %v1061
        %v1075 = vmul.f32 %v984, %v1061
        %v1076 = vmul.f32 %v988, %v1061
        %v1077 = vmul.f32 %v992, %v1061
        %v1078 = vmul.f32 %v996, %v1061
        %v1079 = vmul.f32 %v1000, %v1061
        %v1080 = vmul.f32 %v1004, %v1061
        %v1081 = vmul.f32 %v1008, %v1061
        %v1082 = vmul.f32 %v1012, %v1061
        %v1083 = vmul.f32 %v1016, %v1061
        %v1084 = vmul.f32 %v1020, %v1061
        %v1085 = vmul.f32 %v1024, %v1061
        %v1086 = vmul.f32 %v1028, %v1061
        %v1087 = vmul.f32 %v1032, %v1061
        %v1088 = vmul.f32 %v1036, %v1061
        %v1089 = vmul.f32 %v1040, %v1061
        %v1090 = vmul.f32 %v1044, %v1061
        %v1091 = vmul.f32 %v1048, %v1061
        %v1092 = vmul.f32 %v1052, %v1061
        %v1093 = vmul.f32 %v1056, %v1061
        %v1094 = vadd.f32 %v897, %v1062
        %v1095 = vadd.f32 %v898, %v1063
        %v1096 = vadd.f32 %v899, %v1064
        %v1097 = vadd.f32 %v900, %v1065
        %v1098 = vadd.f32 %v901, %v1066
        %v1099 = vadd.f32 %v902, %v1067
        %v1100 = vadd.f32 %v903, %v1068
        %v1101 = vadd.f32 %v904, %v1069
        %v1102 = vadd.f32 %v905, %v1070
        %v1103 = vadd.f32 %v906, %v1071
        %v1104 = vadd.f32 %v907, %v1072
        %v1105 = vadd.f32 %v908, %v1073
        %v1106 = vadd.f32 %v909, %v1074
        %v1107 = vadd.f32 %v910, %v1075
        %v1108 = vadd.f32 %v911, %v1076
        %v1109 = vadd.f32 %v912, %v1077
        %v1110 = vadd.f32 %v913, %v1078
        %v1111 = vadd.f32 %v914, %v1079
        %v1112 = vadd.f32 %v915, %v1080
        %v1113 = vadd.f32 %v916, %v1081
        %v1114 = vadd.f32 %v917, %v1082
        %v1115 = vadd.f32 %v918, %v1083
        %v1116 = vadd.f32 %v919, %v1084
        %v1117 = vadd.f32 %v920, %v1085
        %v1118 = vadd.f32 %v921, %v1086
        %v1119 = vadd.f32 %v922, %v1087
        %v1120 = vadd.f32 %v923, %v1088
        %v1121 = vadd.f32 %v924, %v1089
        %v1122 = vadd.f32 %v925, %v1090
        %v1123 = vadd.f32 %v926, %v1091
        %v1124 = vadd.f32 %v927, %v1092
        %v1125 = vadd.f32 %v928, %v1093
        %v1126 = vld [vmem:[%s2] sm:$0x1]
        %v1128 = vlaneseq
        %v1129 = vshrl.u32 %v1128, 7
        %v1130 = vsub.s32 0, %v1129
        %v1131 = vrot.slane %v1126, %v1130
        %v1133 = vadd.f32 %v1094, %v1131
        %v1134 = vadd.f32 %v1095, %v1131
        %v1135 = vadd.f32 %v1096, %v1131
        %v1136 = vadd.f32 %v1097, %v1131
        %v1137 = vadd.f32 %v1098, %v1131
        %v1138 = vadd.f32 %v1099, %v1131
        %v1139 = vadd.f32 %v1100, %v1131
        %v1140 = vadd.f32 %v1101, %v1131
        %v1141 = vadd.f32 %v1102, %v1131
        %v1142 = vadd.f32 %v1103, %v1131
        %v1143 = vadd.f32 %v1104, %v1131
        %v1144 = vadd.f32 %v1105, %v1131
        %v1145 = vadd.f32 %v1106, %v1131
        %v1146 = vadd.f32 %v1107, %v1131
        %v1147 = vadd.f32 %v1108, %v1131
        %v1148 = vadd.f32 %v1109, %v1131
        %v1149 = vadd.f32 %v1110, %v1131
        %v1150 = vadd.f32 %v1111, %v1131
        %v1151 = vadd.f32 %v1112, %v1131
        %v1152 = vadd.f32 %v1113, %v1131
        %v1153 = vadd.f32 %v1114, %v1131
        %v1154 = vadd.f32 %v1115, %v1131
        %v1155 = vadd.f32 %v1116, %v1131
        %v1156 = vadd.f32 %v1117, %v1131
        %v1157 = vadd.f32 %v1118, %v1131
        %v1158 = vadd.f32 %v1119, %v1131
        %v1159 = vadd.f32 %v1120, %v1131
        %v1160 = vadd.f32 %v1121, %v1131
        %v1161 = vadd.f32 %v1122, %v1131
        %v1162 = vadd.f32 %v1123, %v1131
        %v1163 = vadd.f32 %v1124, %v1131
        %v1164 = vadd.f32 %v1125, %v1131
        %v1165 = vmax.f32 %v1133, 0.0
        %v1166 = vmax.f32 %v1134, 0.0
        %v1167 = vmax.f32 %v1135, 0.0
        %v1168 = vmax.f32 %v1136, 0.0
        %v1169 = vmax.f32 %v1137, 0.0
        %v1170 = vmax.f32 %v1138, 0.0
        %v1171 = vmax.f32 %v1139, 0.0
        %v1172 = vmax.f32 %v1140, 0.0
        %v1173 = vmax.f32 %v1141, 0.0
        %v1174 = vmax.f32 %v1142, 0.0
        %v1175 = vmax.f32 %v1143, 0.0
        %v1176 = vmax.f32 %v1144, 0.0
        %v1177 = vmax.f32 %v1145, 0.0
        %v1178 = vmax.f32 %v1146, 0.0
        %v1179 = vmax.f32 %v1147, 0.0
        %v1180 = vmax.f32 %v1148, 0.0
        %v1181 = vmax.f32 %v1149, 0.0
        %v1182 = vmax.f32 %v1150, 0.0
        %v1183 = vmax.f32 %v1151, 0.0
        %v1184 = vmax.f32 %v1152, 0.0
        %v1185 = vmax.f32 %v1153, 0.0
        %v1186 = vmax.f32 %v1154, 0.0
        %v1187 = vmax.f32 %v1155, 0.0
        %v1188 = vmax.f32 %v1156, 0.0
        %v1189 = vmax.f32 %v1157, 0.0
        %v1190 = vmax.f32 %v1158, 0.0
        %v1191 = vmax.f32 %v1159, 0.0
        %v1192 = vmax.f32 %v1160, 0.0
        %v1193 = vmax.f32 %v1161, 0.0
        %v1194 = vmax.f32 %v1162, 0.0
        %v1195 = vmax.f32 %v1163, 0.0
        %v1196 = vmax.f32 %v1164, 0.0
        %v1197 = vpack.c.bf16 %v1166, %v1165
        %v1198 = vpack.c.bf16 %v1168, %v1167
        %v1199 = vpack.c.bf16 %v1170, %v1169
        %v1200 = vpack.c.bf16 %v1172, %v1171
        %v1201 = vpack.c.bf16 %v1174, %v1173
        %v1202 = vpack.c.bf16 %v1176, %v1175
        %v1203 = vpack.c.bf16 %v1178, %v1177
        %v1204 = vpack.c.bf16 %v1180, %v1179
        %v1205 = vpack.c.bf16 %v1182, %v1181
        %v1206 = vpack.c.bf16 %v1184, %v1183
        %v1207 = vpack.c.bf16 %v1186, %v1185
        %v1208 = vpack.c.bf16 %v1188, %v1187
        %v1209 = vpack.c.bf16 %v1190, %v1189
        %v1210 = vpack.c.bf16 %v1192, %v1191
        %v1211 = vpack.c.bf16 %v1194, %v1193
        %v1212 = vpack.c.bf16 %v1196, %v1195
        %v1229 = vunpack.c.l.b16 %v1197
        %v1230 = vunpack.c.h.b16 %v1197
        %v1231 = vunpack.c.l.b16 %v1198
        %v1232 = vunpack.c.h.b16 %v1198
        %v1233 = vunpack.c.l.b16 %v1199
        %v1234 = vunpack.c.h.b16 %v1199
        %v1235 = vunpack.c.l.b16 %v1200
        %v1236 = vunpack.c.h.b16 %v1200
        %v1237 = vunpack.c.l.b16 %v1201
        %v1238 = vunpack.c.h.b16 %v1201
        %v1239 = vunpack.c.l.b16 %v1202
        %v1240 = vunpack.c.h.b16 %v1202
        %v1241 = vunpack.c.l.b16 %v1203
        %v1242 = vunpack.c.h.b16 %v1203
        %v1243 = vunpack.c.l.b16 %v1204
        %v1244 = vunpack.c.h.b16 %v1204
        %v1245 = vunpack.c.l.b16 %v1205
        %v1246 = vunpack.c.h.b16 %v1205
        %v1247 = vunpack.c.l.b16 %v1206
        %v1248 = vunpack.c.h.b16 %v1206
        %v1249 = vunpack.c.l.b16 %v1207
        %v1250 = vunpack.c.h.b16 %v1207
        %v1251 = vunpack.c.l.b16 %v1208
        %v1252 = vunpack.c.h.b16 %v1208
        %v1253 = vunpack.c.l.b16 %v1209
        %v1254 = vunpack.c.h.b16 %v1209
        %v1255 = vunpack.c.l.b16 %v1210
        %v1256 = vunpack.c.h.b16 %v1210
        %v1257 = vunpack.c.l.b16 %v1211
        %v1258 = vunpack.c.h.b16 %v1211
        %v1259 = vunpack.c.l.b16 %v1212
        %v1260 = vunpack.c.h.b16 %v1212
        %v1261 = vpack.c.b16 %v1229, %v1229
        %v1262 = vpack.c.b16 %v1230, %v1230
        %v1263 = vpack.c.b16 %v1231, %v1231
        %v1264 = vpack.c.b16 %v1232, %v1232
        %v1265 = vpack.c.b16 %v1233, %v1233
        %v1266 = vpack.c.b16 %v1234, %v1234
        %v1267 = vpack.c.b16 %v1235, %v1235
        %v1268 = vpack.c.b16 %v1236, %v1236
        %v1269 = vpack.c.b16 %v1237, %v1237
        %v1270 = vpack.c.b16 %v1238, %v1238
        %v1271 = vpack.c.b16 %v1239, %v1239
        %v1272 = vpack.c.b16 %v1240, %v1240
        %v1273 = vpack.c.b16 %v1241, %v1241
        %v1274 = vpack.c.b16 %v1242, %v1242
        %v1275 = vpack.c.b16 %v1243, %v1243
        %v1276 = vpack.c.b16 %v1244, %v1244
        %v1277 = vpack.c.b16 %v1245, %v1245
        %v1278 = vpack.c.b16 %v1246, %v1246
        %v1279 = vpack.c.b16 %v1247, %v1247
        %v1280 = vpack.c.b16 %v1248, %v1248
        %v1281 = vpack.c.b16 %v1249, %v1249
        %v1282 = vpack.c.b16 %v1250, %v1250
        %v1283 = vpack.c.b16 %v1251, %v1251
        %v1284 = vpack.c.b16 %v1252, %v1252
        %v1285 = vpack.c.b16 %v1253, %v1253
        %v1286 = vpack.c.b16 %v1254, %v1254
        %v1287 = vpack.c.b16 %v1255, %v1255
        %v1288 = vpack.c.b16 %v1256, %v1256
        %v1289 = vpack.c.b16 %v1257, %v1257
        %v1290 = vpack.c.b16 %v1258, %v1258
        %v1291 = vpack.c.b16 %v1259, %v1259
        %v1292 = vpack.c.b16 %v1260, %v1260
        %vm1325 = vcmask 519168
        %1326 = vst.msk [vmem:[%s465] sm:$0xf] %vm1325, %v1261
        %1327 = vst.msk [vmem:[%s465 + $0x4] sm:$0xf] %vm1325, %v1262
        %1328 = vst.msk [vmem:[%s465 + $0x8] sm:$0xf] %vm1325, %v1263
        %1329 = vst.msk [vmem:[%s465 + $0xc] sm:$0xf] %vm1325, %v1264
        %1330 = vst.msk [vmem:[%s465 + $0x10] sm:$0xf] %vm1325, %v1265
        %1331 = vst.msk [vmem:[%s465 + $0x14] sm:$0xf] %vm1325, %v1266
        %1332 = vst.msk [vmem:[%s465 + $0x18] sm:$0xf] %vm1325, %v1267
        %1333 = vst.msk [vmem:[%s465 + $0x1c] sm:$0xf] %vm1325, %v1268
        %1334 = vst.msk [vmem:[%s465 + $0x20] sm:$0xf] %vm1325, %v1269
        %1335 = vst.msk [vmem:[%s465 + $0x24] sm:$0xf] %vm1325, %v1270
        %1336 = vst.msk [vmem:[%s465 + $0x28] sm:$0xf] %vm1325, %v1271
        %1337 = vst.msk [vmem:[%s465 + $0x2c] sm:$0xf] %vm1325, %v1272
        %1338 = vst.msk [vmem:[%s465 + $0x30] sm:$0xf] %vm1325, %v1273
        %1339 = vst.msk [vmem:[%s465 + $0x34] sm:$0xf] %vm1325, %v1274
        %1340 = vst.msk [vmem:[%s465 + $0x38] sm:$0xf] %vm1325, %v1275
        %1341 = vst.msk [vmem:[%s465 + $0x3c] sm:$0xf] %vm1325, %v1276
        %1342 = vst.msk [vmem:[%s465 + $0x40] sm:$0xf] %vm1325, %v1277
        %1343 = vst.msk [vmem:[%s465 + $0x44] sm:$0xf] %vm1325, %v1278
        %1344 = vst.msk [vmem:[%s465 + $0x48] sm:$0xf] %vm1325, %v1279
        %1345 = vst.msk [vmem:[%s465 + $0x4c] sm:$0xf] %vm1325, %v1280
        %1346 = vst.msk [vmem:[%s465 + $0x50] sm:$0xf] %vm1325, %v1281
        %1347 = vst.msk [vmem:[%s465 + $0x54] sm:$0xf] %vm1325, %v1282
        %1348 = vst.msk [vmem:[%s465 + $0x58] sm:$0xf] %vm1325, %v1283
        %1349 = vst.msk [vmem:[%s465 + $0x5c] sm:$0xf] %vm1325, %v1284
        %1350 = vst.msk [vmem:[%s465 + $0x60] sm:$0xf] %vm1325, %v1285
        %1351 = vst.msk [vmem:[%s465 + $0x64] sm:$0xf] %vm1325, %v1286
        %1352 = vst.msk [vmem:[%s465 + $0x68] sm:$0xf] %vm1325, %v1287
        %1353 = vst.msk [vmem:[%s465 + $0x6c] sm:$0xf] %vm1325, %v1288
        %1354 = vst.msk [vmem:[%s465 + $0x70] sm:$0xf] %vm1325, %v1289
        %1355 = vst.msk [vmem:[%s465 + $0x74] sm:$0xf] %vm1325, %v1290
        %1356 = vst.msk [vmem:[%s465 + $0x78] sm:$0xf] %vm1325, %v1291
        %1357 = vst.msk [vmem:[%s465 + $0x7c] sm:$0xf] %vm1325, %v1292
        %v1358 = vld [vmem:[%s3] sm:$0xf]
        %v1359 = vld [vmem:[%s3 + $0x4] sm:$0xf]
        %v1360 = vld [vmem:[%s3 + $0x8] sm:$0xf]
        %v1361 = vld [vmem:[%s3 + $0xc] sm:$0xf]
        %v1362 = vld [vmem:[%s3 + $0x10] sm:$0xf]
        %v1363 = vld [vmem:[%s3 + $0x14] sm:$0xf]
        %v1364 = vld [vmem:[%s3 + $0x18] sm:$0xf]
        %v1365 = vld [vmem:[%s3 + $0x1c] sm:$0xf]
        %v1366 = vld [vmem:[%s4] sm:$0x1]
        %v1368 = vlaneseq
        %v1369 = vshrl.u32 %v1368, 7
        %v1370 = vsub.s32 0, %v1369
        %v1371 = vrot.slane %v1366, %v1370
        %v1381 = vunpack.c.l.b16 %v1358
        %v1382 = vunpack.c.l.b16 %v1359
        %v1383 = vunpack.c.l.b16 %v1360
        %v1384 = vunpack.c.l.b16 %v1361
        %v1385 = vunpack.c.l.b16 %v1362
        %v1386 = vunpack.c.l.b16 %v1363
        %v1387 = vunpack.c.l.b16 %v1364
        %v1388 = vunpack.c.l.b16 %v1365
        %v1389 = vpack.c.b16 %v1382, %v1381
        %v1390 = vpack.c.b16 %v1384, %v1383
        %v1391 = vpack.c.b16 %v1386, %v1385
        %v1392 = vpack.c.b16 %v1388, %v1387
        %vm1397 = vcmask 523264
        %v1399 = vsel %vm1397, %v1197, 0
        %v1402 = vsel %vm1397, %v1198, 0
        %v1405 = vsel %vm1397, %v1199, 0
        %v1408 = vsel %vm1397, %v1200, 0
        %v1411 = vsel %vm1397, %v1201, 0
        %v1414 = vsel %vm1397, %v1202, 0
        %v1417 = vsel %vm1397, %v1203, 0
        %v1420 = vsel %vm1397, %v1204, 0
        %v1423 = vsel %vm1397, %v1205, 0
        %v1426 = vsel %vm1397, %v1206, 0
        %v1429 = vsel %vm1397, %v1207, 0
        %v1432 = vsel %vm1397, %v1208, 0
        %v1435 = vsel %vm1397, %v1209, 0
        %v1438 = vsel %vm1397, %v1210, 0
        %v1441 = vsel %vm1397, %v1211, 0
        %v1444 = vsel %vm1397, %v1212, 0
        %1446 = vmatprep.subr.bf16.mxu0 0
        %1447 = vmatpush1.bf16.msra.mxu0 %v1389
        %1448 = vmatprep.subr.bf16.mxu0 0
        %1449 = vmatpush1.bf16.msra.mxu0 %v1390
        %1450 = vmatprep.subr.bf16.mxu0 0
        %1451 = vmatpush1.bf16.msra.mxu0 %v1391
        %1452 = vmatprep.subr.bf16.mxu0 0
        %1453 = vmatpush1.bf16.msra.mxu0 %v1392
        %1454 = vmatprep.subr.bf16.mxu0 0
        %1455 = vmatpush1.bf16.msra.mxu0 0
        %1456 = vmatprep.subr.bf16.mxu0 0
        %1457 = vmatpush1.bf16.msra.mxu0 0
        %1458 = vmatprep.subr.bf16.mxu0 0
        %1459 = vmatpush1.bf16.msra.mxu0 0
        %1460 = vmatprep.subr.bf16.mxu0 0
        %1461 = vmatpush1.bf16.msra.mxu0 0
        %1462 = vmatprep.subr.bf16.mxu0 0
        %1463 = vmatpush1.bf16.msra.mxu0 0
        %1464 = vmatprep.subr.bf16.mxu0 0
        %1465 = vmatpush1.bf16.msra.mxu0 0
        %1466 = vmatprep.subr.bf16.mxu0 0
        %1467 = vmatpush1.bf16.msra.mxu0 0
        %1468 = vmatprep.subr.bf16.mxu0 0
        %1469 = vmatpush1.bf16.msra.mxu0 0
        %1470 = vmatprep.subr.bf16.mxu0 0
        %1471 = vmatpush1.bf16.msra.mxu0 0
        %1472 = vmatprep.subr.bf16.mxu0 0
        %1473 = vmatpush1.bf16.msra.mxu0 0
        %1474 = vmatprep.subr.bf16.mxu0 0
        %1475 = vmatpush1.bf16.msra.mxu0 0
        %1476 = vmatprep.subr.bf16.mxu0 0
        %1477 = vmatpush1.bf16.msra.mxu0 0
        %1478 = vmatprep.mubr.bf16.mxu0 0
        %1479 = vmatmul.mubr.bf16.gmra.mrb[0].mxu0 %v1399
        %v1480 = vpop.f32.mrb[0].mxu0
        %v1481 = vadd.f32 %v1371, %v1480
        %v1482 = vpop.f32.mrb[0].mxu0
        %v1483 = vpop.f32.mrb[0].mxu0
        %v1484 = vadd.f32 %v1371, %v1483
        %v1485 = vpop.f32.mrb[0].mxu0
        %1486 = vmatprep.mubr.bf16.mxu0 0
        %1487 = vmatmul.mubr.bf16.gmra.mrb[0].mxu0 %v1402
        %v1488 = vpop.f32.mrb[0].mxu0
        %v1489 = vadd.f32 %v1371, %v1488
        %v1490 = vpop.f32.mrb[0].mxu0
        %v1491 = vpop.f32.mrb[0].mxu0
        %v1492 = vadd.f32 %v1371, %v1491
        %v1493 = vpop.f32.mrb[0].mxu0
        %1494 = vmatprep.mubr.bf16.mxu0 0
        %1495 = vmatmul.mubr.bf16.gmra.mrb[0].mxu0 %v1405
        %v1496 = vpop.f32.mrb[0].mxu0
        %v1497 = vadd.f32 %v1371, %v1496
        %v1498 = vpop.f32.mrb[0].mxu0
        %v1499 = vpop.f32.mrb[0].mxu0
        %v1500 = vadd.f32 %v1371, %v1499
        %v1501 = vpop.f32.mrb[0].mxu0
        %1502 = vmatprep.mubr.bf16.mxu0 0
        %1503 = vmatmul.mubr.bf16.gmra.mrb[0].mxu0 %v1408
        %v1504 = vpop.f32.mrb[0].mxu0
        %v1505 = vadd.f32 %v1371, %v1504
        %v1506 = vpop.f32.mrb[0].mxu0
        %v1507 = vpop.f32.mrb[0].mxu0
        %v1508 = vadd.f32 %v1371, %v1507
        %v1509 = vpop.f32.mrb[0].mxu0
        %1510 = vmatprep.mubr.bf16.mxu0 0
        %1511 = vmatmul.mubr.bf16.gmra.mrb[0].mxu0 %v1411
        %v1512 = vpop.f32.mrb[0].mxu0
        %v1513 = vadd.f32 %v1371, %v1512
        %v1514 = vpop.f32.mrb[0].mxu0
        %v1515 = vpop.f32.mrb[0].mxu0
        %v1516 = vadd.f32 %v1371, %v1515
        %v1517 = vpop.f32.mrb[0].mxu0
        %1518 = vmatprep.mubr.bf16.mxu0 0
        %1519 = vmatmul.mubr.bf16.gmra.mrb[0].mxu0 %v1414
        %v1520 = vpop.f32.mrb[0].mxu0
        %v1521 = vadd.f32 %v1371, %v1520
        %v1522 = vpop.f32.mrb[0].mxu0
        %v1523 = vpop.f32.mrb[0].mxu0
        %v1524 = vadd.f32 %v1371, %v1523
        %v1525 = vpop.f32.mrb[0].mxu0
        %1526 = vmatprep.mubr.bf16.mxu0 0
        %1527 = vmatmul.mubr.bf16.gmra.mrb[0].mxu0 %v1417
        %v1528 = vpop.f32.mrb[0].mxu0
        %v1529 = vadd.f32 %v1371, %v1528
        %v1530 = vpop.f32.mrb[0].mxu0
        %v1531 = vpop.f32.mrb[0].mxu0
        %v1532 = vadd.f32 %v1371, %v1531
        %v1533 = vpop.f32.mrb[0].mxu0
        %1534 = vmatprep.mubr.bf16.mxu0 0
        %1535 = vmatmul.mubr.bf16.gmra.mrb[0].mxu0 %v1420
        %v1536 = vpop.f32.mrb[0].mxu0
        %v1537 = vadd.f32 %v1371, %v1536
        %v1538 = vpop.f32.mrb[0].mxu0
        %v1539 = vpop.f32.mrb[0].mxu0
        %v1540 = vadd.f32 %v1371, %v1539
        %v1541 = vpop.f32.mrb[0].mxu0
        %1542 = vmatprep.mubr.bf16.mxu0 0
        %1543 = vmatmul.mubr.bf16.gmra.mrb[0].mxu0 %v1423
        %v1544 = vpop.f32.mrb[0].mxu0
        %v1545 = vadd.f32 %v1371, %v1544
        %v1546 = vpop.f32.mrb[0].mxu0
        %v1547 = vpop.f32.mrb[0].mxu0
        %v1548 = vadd.f32 %v1371, %v1547
        %v1549 = vpop.f32.mrb[0].mxu0
        %1550 = vmatprep.mubr.bf16.mxu0 0
        %1551 = vmatmul.mubr.bf16.gmra.mrb[0].mxu0 %v1426
        %v1552 = vpop.f32.mrb[0].mxu0
        %v1553 = vadd.f32 %v1371, %v1552
        %v1554 = vpop.f32.mrb[0].mxu0
        %v1555 = vpop.f32.mrb[0].mxu0
        %v1556 = vadd.f32 %v1371, %v1555
        %v1557 = vpop.f32.mrb[0].mxu0
        %1558 = vmatprep.mubr.bf16.mxu0 0
        %1559 = vmatmul.mubr.bf16.gmra.mrb[0].mxu0 %v1429
        %v1560 = vpop.f32.mrb[0].mxu0
        %v1561 = vadd.f32 %v1371, %v1560
        %v1562 = vpop.f32.mrb[0].mxu0
        %v1563 = vpop.f32.mrb[0].mxu0
        %v1564 = vadd.f32 %v1371, %v1563
        %v1565 = vpop.f32.mrb[0].mxu0
        %1566 = vmatprep.mubr.bf16.mxu0 0
        %1567 = vmatmul.mubr.bf16.gmra.mrb[0].mxu0 %v1432
        %v1568 = vpop.f32.mrb[0].mxu0
        %v1569 = vadd.f32 %v1371, %v1568
        %v1570 = vpop.f32.mrb[0].mxu0
        %v1571 = vpop.f32.mrb[0].mxu0
        %v1572 = vadd.f32 %v1371, %v1571
        %v1573 = vpop.f32.mrb[0].mxu0
        %1574 = vmatprep.mubr.bf16.mxu0 0
        %1575 = vmatmul.mubr.bf16.gmra.mrb[0].mxu0 %v1435
        %v1576 = vpop.f32.mrb[0].mxu0
        %v1577 = vadd.f32 %v1371, %v1576
        %v1578 = vpop.f32.mrb[0].mxu0
        %v1579 = vpop.f32.mrb[0].mxu0
        %v1580 = vadd.f32 %v1371, %v1579
        %v1581 = vpop.f32.mrb[0].mxu0
        %1582 = vmatprep.mubr.bf16.mxu0 0
        %1583 = vmatmul.mubr.bf16.gmra.mrb[0].mxu0 %v1438
        %v1584 = vpop.f32.mrb[0].mxu0
        %v1585 = vadd.f32 %v1371, %v1584
        %v1586 = vpop.f32.mrb[0].mxu0
        %v1587 = vpop.f32.mrb[0].mxu0
        %v1588 = vadd.f32 %v1371, %v1587
        %v1589 = vpop.f32.mrb[0].mxu0
        %1590 = vmatprep.mubr.bf16.mxu0 0
        %1591 = vmatmul.mubr.bf16.gmra.mrb[0].mxu0 %v1441
        %v1592 = vpop.f32.mrb[0].mxu0
        %v1593 = vadd.f32 %v1371, %v1592
        %v1594 = vpop.f32.mrb[0].mxu0
        %v1595 = vpop.f32.mrb[0].mxu0
        %v1596 = vadd.f32 %v1371, %v1595
        %v1597 = vpop.f32.mrb[0].mxu0
        %1598 = vmatprep.mubr.bf16.mxu0 0
        %1599 = vmatmul.mubr.bf16.gmra.mrb[0].mxu0 %v1444
        %v1600 = vpop.f32.mrb[0].mxu0
        %v1601 = vadd.f32 %v1371, %v1600
        %v1602 = vpop.f32.mrb[0].mxu0
        %v1603 = vpop.f32.mrb[0].mxu0
        %v1604 = vadd.f32 %v1371, %v1603
        %v1605 = vpop.f32.mrb[0].mxu0
        %1606 = vdwg.mxu0
        %v1607 = vmax.f32 %v1481, 0.0
        %v1608 = vmax.f32 %v1484, 0.0
        %v1609 = vmax.f32 %v1489, 0.0
        %v1610 = vmax.f32 %v1492, 0.0
        %v1611 = vmax.f32 %v1497, 0.0
        %v1612 = vmax.f32 %v1500, 0.0
        %v1613 = vmax.f32 %v1505, 0.0
        %v1614 = vmax.f32 %v1508, 0.0
        %v1615 = vmax.f32 %v1513, 0.0
        %v1616 = vmax.f32 %v1516, 0.0
        %v1617 = vmax.f32 %v1521, 0.0
        %v1618 = vmax.f32 %v1524, 0.0
        %v1619 = vmax.f32 %v1529, 0.0
        %v1620 = vmax.f32 %v1532, 0.0
        %v1621 = vmax.f32 %v1537, 0.0
        %v1622 = vmax.f32 %v1540, 0.0
        %v1623 = vmax.f32 %v1545, 0.0
        %v1624 = vmax.f32 %v1548, 0.0
        %v1625 = vmax.f32 %v1553, 0.0
        %v1626 = vmax.f32 %v1556, 0.0
        %v1627 = vmax.f32 %v1561, 0.0
        %v1628 = vmax.f32 %v1564, 0.0
        %v1629 = vmax.f32 %v1569, 0.0
        %v1630 = vmax.f32 %v1572, 0.0
        %v1631 = vmax.f32 %v1577, 0.0
        %v1632 = vmax.f32 %v1580, 0.0
        %v1633 = vmax.f32 %v1585, 0.0
        %v1634 = vmax.f32 %v1588, 0.0
        %v1635 = vmax.f32 %v1593, 0.0
        %v1636 = vmax.f32 %v1596, 0.0
        %v1637 = vmax.f32 %v1601, 0.0
        %v1638 = vmax.f32 %v1604, 0.0
        %v1639 = vpack.c.bf16 %v1608, %v1607
        %v1640 = vpack.c.bf16 %v1610, %v1609
        %v1641 = vpack.c.bf16 %v1612, %v1611
        %v1642 = vpack.c.bf16 %v1614, %v1613
        %v1643 = vpack.c.bf16 %v1616, %v1615
        %v1644 = vpack.c.bf16 %v1618, %v1617
        %v1645 = vpack.c.bf16 %v1620, %v1619
        %v1646 = vpack.c.bf16 %v1622, %v1621
        %v1647 = vpack.c.bf16 %v1624, %v1623
        %v1648 = vpack.c.bf16 %v1626, %v1625
        %v1649 = vpack.c.bf16 %v1628, %v1627
        %v1650 = vpack.c.bf16 %v1630, %v1629
        %v1651 = vpack.c.bf16 %v1632, %v1631
        %v1652 = vpack.c.bf16 %v1634, %v1633
        %v1653 = vpack.c.bf16 %v1636, %v1635
        %v1654 = vpack.c.bf16 %v1638, %v1637
        %v1671 = vunpack.c.l.b16 %v1639
        %v1672 = vunpack.c.h.b16 %v1639
        %v1673 = vunpack.c.l.b16 %v1640
        %v1674 = vunpack.c.h.b16 %v1640
        %v1675 = vunpack.c.l.b16 %v1641
        %v1676 = vunpack.c.h.b16 %v1641
        %v1677 = vunpack.c.l.b16 %v1642
        %v1678 = vunpack.c.h.b16 %v1642
        %v1679 = vunpack.c.l.b16 %v1643
        %v1680 = vunpack.c.h.b16 %v1643
        %v1681 = vunpack.c.l.b16 %v1644
        %v1682 = vunpack.c.h.b16 %v1644
        %v1683 = vunpack.c.l.b16 %v1645
        %v1684 = vunpack.c.h.b16 %v1645
        %v1685 = vunpack.c.l.b16 %v1646
        %v1686 = vunpack.c.h.b16 %v1646
        %v1687 = vunpack.c.l.b16 %v1647
        %v1688 = vunpack.c.h.b16 %v1647
        %v1689 = vunpack.c.l.b16 %v1648
        %v1690 = vunpack.c.h.b16 %v1648
        %v1691 = vunpack.c.l.b16 %v1649
        %v1692 = vunpack.c.h.b16 %v1649
        %v1693 = vunpack.c.l.b16 %v1650
        %v1694 = vunpack.c.h.b16 %v1650
        %v1695 = vunpack.c.l.b16 %v1651
        %v1696 = vunpack.c.h.b16 %v1651
        %v1697 = vunpack.c.l.b16 %v1652
        %v1698 = vunpack.c.h.b16 %v1652
        %v1699 = vunpack.c.l.b16 %v1653
        %v1700 = vunpack.c.h.b16 %v1653
        %v1701 = vunpack.c.l.b16 %v1654
        %v1702 = vunpack.c.h.b16 %v1654
        %v1703 = vpack.c.b16 %v1671, %v1671
        %v1704 = vpack.c.b16 %v1672, %v1672
        %v1705 = vpack.c.b16 %v1673, %v1673
        %v1706 = vpack.c.b16 %v1674, %v1674
        %v1707 = vpack.c.b16 %v1675, %v1675
        %v1708 = vpack.c.b16 %v1676, %v1676
        %v1709 = vpack.c.b16 %v1677, %v1677
        %v1710 = vpack.c.b16 %v1678, %v1678
        %v1711 = vpack.c.b16 %v1679, %v1679
        %v1712 = vpack.c.b16 %v1680, %v1680
        %v1713 = vpack.c.b16 %v1681, %v1681
        %v1714 = vpack.c.b16 %v1682, %v1682
        %v1715 = vpack.c.b16 %v1683, %v1683
        %v1716 = vpack.c.b16 %v1684, %v1684
        %v1717 = vpack.c.b16 %v1685, %v1685
        %v1718 = vpack.c.b16 %v1686, %v1686
        %v1719 = vpack.c.b16 %v1687, %v1687
        %v1720 = vpack.c.b16 %v1688, %v1688
        %v1721 = vpack.c.b16 %v1689, %v1689
        %v1722 = vpack.c.b16 %v1690, %v1690
        %v1723 = vpack.c.b16 %v1691, %v1691
        %v1724 = vpack.c.b16 %v1692, %v1692
        %v1725 = vpack.c.b16 %v1693, %v1693
        %v1726 = vpack.c.b16 %v1694, %v1694
        %v1727 = vpack.c.b16 %v1695, %v1695
        %v1728 = vpack.c.b16 %v1696, %v1696
        %v1729 = vpack.c.b16 %v1697, %v1697
        %v1730 = vpack.c.b16 %v1698, %v1698
        %v1731 = vpack.c.b16 %v1699, %v1699
        %v1732 = vpack.c.b16 %v1700, %v1700
        %v1733 = vpack.c.b16 %v1701, %v1701
        %v1734 = vpack.c.b16 %v1702, %v1702
        %1767 = vst [vmem:[%s472] sm:$0xf] %v1703
        %1768 = vst [vmem:[%s472 + $0x4] sm:$0xf] %v1704
        %1769 = vst [vmem:[%s472 + $0x8] sm:$0xf] %v1705
        %1770 = vst [vmem:[%s472 + $0xc] sm:$0xf] %v1706
        %1771 = vst [vmem:[%s472 + $0x10] sm:$0xf] %v1707
        %1772 = vst [vmem:[%s472 + $0x14] sm:$0xf] %v1708
        %1773 = vst [vmem:[%s472 + $0x18] sm:$0xf] %v1709
        %1774 = vst [vmem:[%s472 + $0x1c] sm:$0xf] %v1710
        %1775 = vst [vmem:[%s472 + $0x20] sm:$0xf] %v1711
        %1776 = vst [vmem:[%s472 + $0x24] sm:$0xf] %v1712
        %1777 = vst [vmem:[%s472 + $0x28] sm:$0xf] %v1713
        %1778 = vst [vmem:[%s472 + $0x2c] sm:$0xf] %v1714
        %1779 = vst [vmem:[%s472 + $0x30] sm:$0xf] %v1715
        %1780 = vst [vmem:[%s472 + $0x34] sm:$0xf] %v1716
        %1781 = vst [vmem:[%s472 + $0x38] sm:$0xf] %v1717
        %1782 = vst [vmem:[%s472 + $0x3c] sm:$0xf] %v1718
        %1783 = vst [vmem:[%s472 + $0x40] sm:$0xf] %v1719
        %1784 = vst [vmem:[%s472 + $0x44] sm:$0xf] %v1720
        %1785 = vst [vmem:[%s472 + $0x48] sm:$0xf] %v1721
        %1786 = vst [vmem:[%s472 + $0x4c] sm:$0xf] %v1722
        %1787 = vst [vmem:[%s472 + $0x50] sm:$0xf] %v1723
        %1788 = vst [vmem:[%s472 + $0x54] sm:$0xf] %v1724
        %1789 = vst [vmem:[%s472 + $0x58] sm:$0xf] %v1725
        %1790 = vst [vmem:[%s472 + $0x5c] sm:$0xf] %v1726
        %1791 = vst [vmem:[%s472 + $0x60] sm:$0xf] %v1727
        %1792 = vst [vmem:[%s472 + $0x64] sm:$0xf] %v1728
        %1793 = vst [vmem:[%s472 + $0x68] sm:$0xf] %v1729
        %1794 = vst [vmem:[%s472 + $0x6c] sm:$0xf] %v1730
        %1795 = vst [vmem:[%s472 + $0x70] sm:$0xf] %v1731
        %1796 = vst [vmem:[%s472 + $0x74] sm:$0xf] %v1732
        %1797 = vst [vmem:[%s472 + $0x78] sm:$0xf] %v1733
        %1798 = vst [vmem:[%s472 + $0x7c] sm:$0xf] %v1734
        %v1799 = vld [vmem:[%s5] sm:$0xff]
        %v1800 = vld [vmem:[%s5 + $0x8] sm:$0xff]
        %v1801 = vld [vmem:[%s5 + $0x10] sm:$0xff]
        %v1802 = vld [vmem:[%s5 + $0x18] sm:$0xff]
        %v1803 = vld [vmem:[%s5 + $0x20] sm:$0xff]
        %v1804 = vld [vmem:[%s5 + $0x28] sm:$0xff]
        %v1805 = vld [vmem:[%s5 + $0x30] sm:$0xff]
        %v1806 = vld [vmem:[%s5 + $0x38] sm:$0xff]
        %v1807 = vld [vmem:[%s5 + $0x40] sm:$0xff]
        %v1808 = vld [vmem:[%s5 + $0x48] sm:$0xff]
        %v1809 = vld [vmem:[%s5 + $0x50] sm:$0xff]
        %v1810 = vld [vmem:[%s5 + $0x58] sm:$0xff]
        %v1811 = vld [vmem:[%s5 + $0x60] sm:$0xff]
        %v1812 = vld [vmem:[%s5 + $0x68] sm:$0xff]
        %v1813 = vld [vmem:[%s5 + $0x70] sm:$0xff]
        %v1814 = vld [vmem:[%s5 + $0x78] sm:$0xff]
        %v1815 = vld [vmem:[%s6] sm:$0x3]
        %v1817 = vlaneseq
        %v1818 = vshrl.u32 %v1817, 7
        %v1819 = vsub.s32 0, %v1818
        %v1820 = vrot.slane %v1815, %v1819
        %v1821 = vlaneseq
        %v1822 = vshrl.u32 %v1821, 7
        %v1823 = vsub.s32 1, %v1822
        %v1824 = vrot.slane %v1815, %v1823
        %v1843 = vunpack.c.l.b16 %v1799
        %v1844 = vunpack.c.h.b16 %v1799
        %v1845 = vunpack.c.l.b16 %v1800
        %v1846 = vunpack.c.h.b16 %v1800
        %v1847 = vunpack.c.l.b16 %v1801
        %v1848 = vunpack.c.h.b16 %v1801
        %v1849 = vunpack.c.l.b16 %v1802
        %v1850 = vunpack.c.h.b16 %v1802
        %v1851 = vunpack.c.l.b16 %v1803
        %v1852 = vunpack.c.h.b16 %v1803
        %v1853 = vunpack.c.l.b16 %v1804
        %v1854 = vunpack.c.h.b16 %v1804
        %v1855 = vunpack.c.l.b16 %v1805
        %v1856 = vunpack.c.h.b16 %v1805
        %v1857 = vunpack.c.l.b16 %v1806
        %v1858 = vunpack.c.h.b16 %v1806
        %v1859 = vunpack.c.l.b16 %v1807
        %v1860 = vunpack.c.h.b16 %v1807
        %v1861 = vunpack.c.l.b16 %v1808
        %v1862 = vunpack.c.h.b16 %v1808
        %v1863 = vunpack.c.l.b16 %v1809
        %v1864 = vunpack.c.h.b16 %v1809
        %v1865 = vunpack.c.l.b16 %v1810
        %v1866 = vunpack.c.h.b16 %v1810
        %v1867 = vunpack.c.l.b16 %v1811
        %v1868 = vunpack.c.h.b16 %v1811
        %v1869 = vunpack.c.l.b16 %v1812
        %v1870 = vunpack.c.h.b16 %v1812
        %v1871 = vunpack.c.l.b16 %v1813
        %v1872 = vunpack.c.h.b16 %v1813
        %v1873 = vunpack.c.l.b16 %v1814
        %v1874 = vunpack.c.h.b16 %v1814
        %v1875 = vpack.c.b16 %v1845, %v1843
        %v1876 = vpack.c.b16 %v1846, %v1844
        %v1877 = vpack.c.b16 %v1849, %v1847
        %v1878 = vpack.c.b16 %v1850, %v1848
        %v1879 = vpack.c.b16 %v1853, %v1851
        %v1880 = vpack.c.b16 %v1854, %v1852
        %v1881 = vpack.c.b16 %v1857, %v1855
        %v1882 = vpack.c.b16 %v1858, %v1856
        %v1883 = vpack.c.b16 %v1861, %v1859
        %v1884 = vpack.c.b16 %v1862, %v1860
        %v1885 = vpack.c.b16 %v1865, %v1863
        %v1886 = vpack.c.b16 %v1866, %v1864
        %v1887 = vpack.c.b16 %v1869, %v1867
        %v1888 = vpack.c.b16 %v1870, %v1868
        %v1889 = vpack.c.b16 %v1873, %v1871
        %v1890 = vpack.c.b16 %v1874, %v1872
        %1907 = vmatprep.subr.bf16.mxu0 %v1876
        %1908 = vmatpush1.bf16.msra.mxu0 %v1875
        %1909 = vmatprep.subr.bf16.mxu0 %v1878
        %1910 = vmatpush1.bf16.msra.mxu0 %v1877
        %1911 = vmatprep.subr.bf16.mxu0 %v1880
        %1912 = vmatpush1.bf16.msra.mxu0 %v1879
        %1913 = vmatprep.subr.bf16.mxu0 %v1882
        %1914 = vmatpush1.bf16.msra.mxu0 %v1881
        %1915 = vmatprep.subr.bf16.mxu0 %v1884
        %1916 = vmatpush1.bf16.msra.mxu0 %v1883
        %1917 = vmatprep.subr.bf16.mxu0 %v1886
        %1918 = vmatpush1.bf16.msra.mxu0 %v1885
        %1919 = vmatprep.subr.bf16.mxu0 %v1888
        %1920 = vmatpush1.bf16.msra.mxu0 %v1887
        %1921 = vmatprep.subr.bf16.mxu0 %v1890
        %1922 = vmatpush1.bf16.msra.mxu0 %v1889
        %1923 = vmatprep.subr.bf16.mxu0 0
        %1924 = vmatpush1.bf16.msra.mxu0 0
        %1925 = vmatprep.subr.bf16.mxu0 0
        %1926 = vmatpush1.bf16.msra.mxu0 0
        %1927 = vmatprep.subr.bf16.mxu0 0
        %1928 = vmatpush1.bf16.msra.mxu0 0
        %1929 = vmatprep.subr.bf16.mxu0 0
        %1930 = vmatpush1.bf16.msra.mxu0 0
        %1931 = vmatprep.subr.bf16.mxu0 0
        %1932 = vmatpush1.bf16.msra.mxu0 0
        %1933 = vmatprep.subr.bf16.mxu0 0
        %1934 = vmatpush1.bf16.msra.mxu0 0
        %1935 = vmatprep.subr.bf16.mxu0 0
        %1936 = vmatpush1.bf16.msra.mxu0 0
        %1937 = vmatprep.subr.bf16.mxu0 0
        %1938 = vmatpush1.bf16.msra.mxu0 0
        %1939 = vmatprep.mubr.bf16.mxu0 0
        %1940 = vmatmul.mubr.bf16.gmra.mrb[0].mxu0 %v1639
        %v1941 = vpop.f32.mrb[0].mxu0
        %v1942 = vadd.f32 %v1820, %v1941
        %v1943 = vpop.f32.mrb[0].mxu0
        %v1944 = vadd.f32 %v1824, %v1943
        %v1945 = vpop.f32.mrb[0].mxu0
        %v1946 = vadd.f32 %v1820, %v1945
        %v1947 = vpop.f32.mrb[0].mxu0
        %v1948 = vadd.f32 %v1824, %v1947
        %1949 = vmatprep.mubr.bf16.mxu0 0
        %1950 = vmatmul.mubr.bf16.gmra.mrb[0].mxu0 %v1640
        %v1951 = vpop.f32.mrb[0].mxu0
        %v1952 = vadd.f32 %v1820, %v1951
        %v1953 = vpop.f32.mrb[0].mxu0
        %v1954 = vadd.f32 %v1824, %v1953
        %v1955 = vpop.f32.mrb[0].mxu0
        %v1956 = vadd.f32 %v1820, %v1955
        %v1957 = vpop.f32.mrb[0].mxu0
        %v1958 = vadd.f32 %v1824, %v1957
        %1959 = vmatprep.mubr.bf16.mxu0 0
        %1960 = vmatmul.mubr.bf16.gmra.mrb[0].mxu0 %v1641
        %v1961 = vpop.f32.mrb[0].mxu0
        %v1962 = vadd.f32 %v1820, %v1961
        %v1963 = vpop.f32.mrb[0].mxu0
        %v1964 = vadd.f32 %v1824, %v1963
        %v1965 = vpop.f32.mrb[0].mxu0
        %v1966 = vadd.f32 %v1820, %v1965
        %v1967 = vpop.f32.mrb[0].mxu0
        %v1968 = vadd.f32 %v1824, %v1967
        %1969 = vmatprep.mubr.bf16.mxu0 0
        %1970 = vmatmul.mubr.bf16.gmra.mrb[0].mxu0 %v1642
        %v1971 = vpop.f32.mrb[0].mxu0
        %v1972 = vadd.f32 %v1820, %v1971
        %v1973 = vpop.f32.mrb[0].mxu0
        %v1974 = vadd.f32 %v1824, %v1973
        %v1975 = vpop.f32.mrb[0].mxu0
        %v1976 = vadd.f32 %v1820, %v1975
        %v1977 = vpop.f32.mrb[0].mxu0
        %v1978 = vadd.f32 %v1824, %v1977
        %1979 = vmatprep.mubr.bf16.mxu0 0
        %1980 = vmatmul.mubr.bf16.gmra.mrb[0].mxu0 %v1643
        %v1981 = vpop.f32.mrb[0].mxu0
        %v1982 = vadd.f32 %v1820, %v1981
        %v1983 = vpop.f32.mrb[0].mxu0
        %v1984 = vadd.f32 %v1824, %v1983
        %v1985 = vpop.f32.mrb[0].mxu0
        %v1986 = vadd.f32 %v1820, %v1985
        %v1987 = vpop.f32.mrb[0].mxu0
        %v1988 = vadd.f32 %v1824, %v1987
        %1989 = vmatprep.mubr.bf16.mxu0 0
        %1990 = vmatmul.mubr.bf16.gmra.mrb[0].mxu0 %v1644
        %v1991 = vpop.f32.mrb[0].mxu0
        %v1992 = vadd.f32 %v1820, %v1991
        %v1993 = vpop.f32.mrb[0].mxu0
        %v1994 = vadd.f32 %v1824, %v1993
        %v1995 = vpop.f32.mrb[0].mxu0
        %v1996 = vadd.f32 %v1820, %v1995
        %v1997 = vpop.f32.mrb[0].mxu0
        %v1998 = vadd.f32 %v1824, %v1997
        %1999 = vmatprep.mubr.bf16.mxu0 0
        %2000 = vmatmul.mubr.bf16.gmra.mrb[0].mxu0 %v1645
        %v2001 = vpop.f32.mrb[0].mxu0
        %v2002 = vadd.f32 %v1820, %v2001
        %v2003 = vpop.f32.mrb[0].mxu0
        %v2004 = vadd.f32 %v1824, %v2003
        %v2005 = vpop.f32.mrb[0].mxu0
        %v2006 = vadd.f32 %v1820, %v2005
        %v2007 = vpop.f32.mrb[0].mxu0
        %v2008 = vadd.f32 %v1824, %v2007
        %2009 = vmatprep.mubr.bf16.mxu0 0
        %2010 = vmatmul.mubr.bf16.gmra.mrb[0].mxu0 %v1646
        %v2011 = vpop.f32.mrb[0].mxu0
        %v2012 = vadd.f32 %v1820, %v2011
        %v2013 = vpop.f32.mrb[0].mxu0
        %v2014 = vadd.f32 %v1824, %v2013
        %v2015 = vpop.f32.mrb[0].mxu0
        %v2016 = vadd.f32 %v1820, %v2015
        %v2017 = vpop.f32.mrb[0].mxu0
        %v2018 = vadd.f32 %v1824, %v2017
        %2019 = vmatprep.mubr.bf16.mxu0 0
        %2020 = vmatmul.mubr.bf16.gmra.mrb[0].mxu0 %v1647
        %v2021 = vpop.f32.mrb[0].mxu0
        %v2022 = vadd.f32 %v1820, %v2021
        %v2023 = vpop.f32.mrb[0].mxu0
        %v2024 = vadd.f32 %v1824, %v2023
        %v2025 = vpop.f32.mrb[0].mxu0
        %v2026 = vadd.f32 %v1820, %v2025
        %v2027 = vpop.f32.mrb[0].mxu0
        %v2028 = vadd.f32 %v1824, %v2027
        %2029 = vmatprep.mubr.bf16.mxu0 0
        %2030 = vmatmul.mubr.bf16.gmra.mrb[0].mxu0 %v1648
        %v2031 = vpop.f32.mrb[0].mxu0
        %v2032 = vadd.f32 %v1820, %v2031
        %v2033 = vpop.f32.mrb[0].mxu0
        %v2034 = vadd.f32 %v1824, %v2033
        %v2035 = vpop.f32.mrb[0].mxu0
        %v2036 = vadd.f32 %v1820, %v2035
        %v2037 = vpop.f32.mrb[0].mxu0
        %v2038 = vadd.f32 %v1824, %v2037
        %2039 = vmatprep.mubr.bf16.mxu0 0
        %2040 = vmatmul.mubr.bf16.gmra.mrb[0].mxu0 %v1649
        %v2041 = vpop.f32.mrb[0].mxu0
        %v2042 = vadd.f32 %v1820, %v2041
        %v2043 = vpop.f32.mrb[0].mxu0
        %v2044 = vadd.f32 %v1824, %v2043
        %v2045 = vpop.f32.mrb[0].mxu0
        %v2046 = vadd.f32 %v1820, %v2045
        %v2047 = vpop.f32.mrb[0].mxu0
        %v2048 = vadd.f32 %v1824, %v2047
        %2049 = vmatprep.mubr.bf16.mxu0 0
        %2050 = vmatmul.mubr.bf16.gmra.mrb[0].mxu0 %v1650
        %v2051 = vpop.f32.mrb[0].mxu0
        %v2052 = vadd.f32 %v1820, %v2051
        %v2053 = vpop.f32.mrb[0].mxu0
        %v2054 = vadd.f32 %v1824, %v2053
        %v2055 = vpop.f32.mrb[0].mxu0
        %v2056 = vadd.f32 %v1820, %v2055
        %v2057 = vpop.f32.mrb[0].mxu0
        %v2058 = vadd.f32 %v1824, %v2057
        %2059 = vmatprep.mubr.bf16.mxu0 0
        %2060 = vmatmul.mubr.bf16.gmra.mrb[0].mxu0 %v1651
        %v2061 = vpop.f32.mrb[0].mxu0
        %v2062 = vadd.f32 %v1820, %v2061
        %v2063 = vpop.f32.mrb[0].mxu0
        %v2064 = vadd.f32 %v1824, %v2063
        %v2065 = vpop.f32.mrb[0].mxu0
        %v2066 = vadd.f32 %v1820, %v2065
        %v2067 = vpop.f32.mrb[0].mxu0
        %v2068 = vadd.f32 %v1824, %v2067
        %2069 = vmatprep.mubr.bf16.mxu0 0
        %2070 = vmatmul.mubr.bf16.gmra.mrb[0].mxu0 %v1652
        %v2071 = vpop.f32.mrb[0].mxu0
        %v2072 = vadd.f32 %v1820, %v2071
        %v2073 = vpop.f32.mrb[0].mxu0
        %v2074 = vadd.f32 %v1824, %v2073
        %v2075 = vpop.f32.mrb[0].mxu0
        %v2076 = vadd.f32 %v1820, %v2075
        %v2077 = vpop.f32.mrb[0].mxu0
        %v2078 = vadd.f32 %v1824, %v2077
        %2079 = vmatprep.mubr.bf16.mxu0 0
        %2080 = vmatmul.mubr.bf16.gmra.mrb[0].mxu0 %v1653
        %v2081 = vpop.f32.mrb[0].mxu0
        %v2082 = vadd.f32 %v1820, %v2081
        %v2083 = vpop.f32.mrb[0].mxu0
        %v2084 = vadd.f32 %v1824, %v2083
        %v2085 = vpop.f32.mrb[0].mxu0
        %v2086 = vadd.f32 %v1820, %v2085
        %v2087 = vpop.f32.mrb[0].mxu0
        %v2088 = vadd.f32 %v1824, %v2087
        %2089 = vmatprep.mubr.bf16.mxu0 0
        %2090 = vmatmul.mubr.bf16.gmra.mrb[0].mxu0 %v1654
        %v2091 = vpop.f32.mrb[0].mxu0
        %v2092 = vadd.f32 %v1820, %v2091
        %v2093 = vpop.f32.mrb[0].mxu0
        %v2094 = vadd.f32 %v1824, %v2093
        %v2095 = vpop.f32.mrb[0].mxu0
        %v2096 = vadd.f32 %v1820, %v2095
        %v2097 = vpop.f32.mrb[0].mxu0
        %v2098 = vadd.f32 %v1824, %v2097
        %2099 = vdwg.mxu0
        %v2100 = vmax.f32 %v1942, 0.0
        %v2101 = vmax.f32 %v1944, 0.0
        %v2102 = vmax.f32 %v1946, 0.0
        %v2103 = vmax.f32 %v1948, 0.0
        %v2104 = vmax.f32 %v1952, 0.0
        %v2105 = vmax.f32 %v1954, 0.0
        %v2106 = vmax.f32 %v1956, 0.0
        %v2107 = vmax.f32 %v1958, 0.0
        %v2108 = vmax.f32 %v1962, 0.0
        %v2109 = vmax.f32 %v1964, 0.0
        %v2110 = vmax.f32 %v1966, 0.0
        %v2111 = vmax.f32 %v1968, 0.0
        %v2112 = vmax.f32 %v1972, 0.0
        %v2113 = vmax.f32 %v1974, 0.0
        %v2114 = vmax.f32 %v1976, 0.0
        %v2115 = vmax.f32 %v1978, 0.0
        %v2116 = vmax.f32 %v1982, 0.0
        %v2117 = vmax.f32 %v1984, 0.0
        %v2118 = vmax.f32 %v1986, 0.0
        %v2119 = vmax.f32 %v1988, 0.0
        %v2120 = vmax.f32 %v1992, 0.0
        %v2121 = vmax.f32 %v1994, 0.0
        %v2122 = vmax.f32 %v1996, 0.0
        %v2123 = vmax.f32 %v1998, 0.0
        %v2124 = vmax.f32 %v2002, 0.0
        %v2125 = vmax.f32 %v2004, 0.0
        %v2126 = vmax.f32 %v2006, 0.0
        %v2127 = vmax.f32 %v2008, 0.0
        %v2128 = vmax.f32 %v2012, 0.0
        %v2129 = vmax.f32 %v2014, 0.0
        %v2130 = vmax.f32 %v2016, 0.0
        %v2131 = vmax.f32 %v2018, 0.0
        %v2132 = vmax.f32 %v2022, 0.0
        %v2133 = vmax.f32 %v2024, 0.0
        %v2134 = vmax.f32 %v2026, 0.0
        %v2135 = vmax.f32 %v2028, 0.0
        %v2136 = vmax.f32 %v2032, 0.0
        %v2137 = vmax.f32 %v2034, 0.0
        %v2138 = vmax.f32 %v2036, 0.0
        %v2139 = vmax.f32 %v2038, 0.0
        %v2140 = vmax.f32 %v2042, 0.0
        %v2141 = vmax.f32 %v2044, 0.0
        %v2142 = vmax.f32 %v2046, 0.0
        %v2143 = vmax.f32 %v2048, 0.0
        %v2144 = vmax.f32 %v2052, 0.0
        %v2145 = vmax.f32 %v2054, 0.0
        %v2146 = vmax.f32 %v2056, 0.0
        %v2147 = vmax.f32 %v2058, 0.0
        %v2148 = vmax.f32 %v2062, 0.0
        %v2149 = vmax.f32 %v2064, 0.0
        %v2150 = vmax.f32 %v2066, 0.0
        %v2151 = vmax.f32 %v2068, 0.0
        %v2152 = vmax.f32 %v2072, 0.0
        %v2153 = vmax.f32 %v2074, 0.0
        %v2154 = vmax.f32 %v2076, 0.0
        %v2155 = vmax.f32 %v2078, 0.0
        %v2156 = vmax.f32 %v2082, 0.0
        %v2157 = vmax.f32 %v2084, 0.0
        %v2158 = vmax.f32 %v2086, 0.0
        %v2159 = vmax.f32 %v2088, 0.0
        %v2160 = vmax.f32 %v2092, 0.0
        %v2161 = vmax.f32 %v2094, 0.0
        %v2162 = vmax.f32 %v2096, 0.0
        %v2163 = vmax.f32 %v2098, 0.0
        %v2164 = vpack.c.bf16 %v2102, %v2100
        %v2165 = vpack.c.bf16 %v2103, %v2101
        %v2166 = vpack.c.bf16 %v2106, %v2104
        %v2167 = vpack.c.bf16 %v2107, %v2105
        %v2168 = vpack.c.bf16 %v2110, %v2108
        %v2169 = vpack.c.bf16 %v2111, %v2109
        %v2170 = vpack.c.bf16 %v2114, %v2112
        %v2171 = vpack.c.bf16 %v2115, %v2113
        %v2172 = vpack.c.bf16 %v2118, %v2116
        %v2173 = vpack.c.bf16 %v2119, %v2117
        %v2174 = vpack.c.bf16 %v2122, %v2120
        %v2175 = vpack.c.bf16 %v2123, %v2121
        %v2176 = vpack.c.bf16 %v2126, %v2124
        %v2177 = vpack.c.bf16 %v2127, %v2125
        %v2178 = vpack.c.bf16 %v2130, %v2128
        %v2179 = vpack.c.bf16 %v2131, %v2129
        %v2180 = vpack.c.bf16 %v2134, %v2132
        %v2181 = vpack.c.bf16 %v2135, %v2133
        %v2182 = vpack.c.bf16 %v2138, %v2136
        %v2183 = vpack.c.bf16 %v2139, %v2137
        %v2184 = vpack.c.bf16 %v2142, %v2140
        %v2185 = vpack.c.bf16 %v2143, %v2141
        %v2186 = vpack.c.bf16 %v2146, %v2144
        %v2187 = vpack.c.bf16 %v2147, %v2145
        %v2188 = vpack.c.bf16 %v2150, %v2148
        %v2189 = vpack.c.bf16 %v2151, %v2149
        %v2190 = vpack.c.bf16 %v2154, %v2152
        %v2191 = vpack.c.bf16 %v2155, %v2153
        %v2192 = vpack.c.bf16 %v2158, %v2156
        %v2193 = vpack.c.bf16 %v2159, %v2157
        %v2194 = vpack.c.bf16 %v2162, %v2160
        %v2195 = vpack.c.bf16 %v2163, %v2161
        %v2228 = vunpack.c.l.b16 %v2164
        %v2229 = vunpack.c.l.b16 %v2165
        %v2230 = vunpack.c.h.b16 %v2164
        %v2231 = vunpack.c.h.b16 %v2165
        %v2232 = vunpack.c.l.b16 %v2166
        %v2233 = vunpack.c.l.b16 %v2167
        %v2234 = vunpack.c.h.b16 %v2166
        %v2235 = vunpack.c.h.b16 %v2167
        %v2236 = vunpack.c.l.b16 %v2168
        %v2237 = vunpack.c.l.b16 %v2169
        %v2238 = vunpack.c.h.b16 %v2168
        %v2239 = vunpack.c.h.b16 %v2169
        %v2240 = vunpack.c.l.b16 %v2170
        %v2241 = vunpack.c.l.b16 %v2171
        %v2242 = vunpack.c.h.b16 %v2170
        %v2243 = vunpack.c.h.b16 %v2171
        %v2244 = vunpack.c.l.b16 %v2172
        %v2245 = vunpack.c.l.b16 %v2173
        %v2246 = vunpack.c.h.b16 %v2172
        %v2247 = vunpack.c.h.b16 %v2173
        %v2248 = vunpack.c.l.b16 %v2174
        %v2249 = vunpack.c.l.b16 %v2175
        %v2250 = vunpack.c.h.b16 %v2174
        %v2251 = vunpack.c.h.b16 %v2175
        %v2252 = vunpack.c.l.b16 %v2176
        %v2253 = vunpack.c.l.b16 %v2177
        %v2254 = vunpack.c.h.b16 %v2176
        %v2255 = vunpack.c.h.b16 %v2177
        %v2256 = vunpack.c.l.b16 %v2178
        %v2257 = vunpack.c.l.b16 %v2179
        %v2258 = vunpack.c.h.b16 %v2178
        %v2259 = vunpack.c.h.b16 %v2179
        %v2260 = vunpack.c.l.b16 %v2180
        %v2261 = vunpack.c.l.b16 %v2181
        %v2262 = vunpack.c.h.b16 %v2180
        %v2263 = vunpack.c.h.b16 %v2181
        %v2264 = vunpack.c.l.b16 %v2182
        %v2265 = vunpack.c.l.b16 %v2183
        %v2266 = vunpack.c.h.b16 %v2182
        %v2267 = vunpack.c.h.b16 %v2183
        %v2268 = vunpack.c.l.b16 %v2184
        %v2269 = vunpack.c.l.b16 %v2185
        %v2270 = vunpack.c.h.b16 %v2184
        %v2271 = vunpack.c.h.b16 %v2185
        %v2272 = vunpack.c.l.b16 %v2186
        %v2273 = vunpack.c.l.b16 %v2187
        %v2274 = vunpack.c.h.b16 %v2186
        %v2275 = vunpack.c.h.b16 %v2187
        %v2276 = vunpack.c.l.b16 %v2188
        %v2277 = vunpack.c.l.b16 %v2189
        %v2278 = vunpack.c.h.b16 %v2188
        %v2279 = vunpack.c.h.b16 %v2189
        %v2280 = vunpack.c.l.b16 %v2190
        %v2281 = vunpack.c.l.b16 %v2191
        %v2282 = vunpack.c.h.b16 %v2190
        %v2283 = vunpack.c.h.b16 %v2191
        %v2284 = vunpack.c.l.b16 %v2192
        %v2285 = vunpack.c.l.b16 %v2193
        %v2286 = vunpack.c.h.b16 %v2192
        %v2287 = vunpack.c.h.b16 %v2193
        %v2288 = vunpack.c.l.b16 %v2194
        %v2289 = vunpack.c.l.b16 %v2195
        %v2290 = vunpack.c.h.b16 %v2194
        %v2291 = vunpack.c.h.b16 %v2195
        %v2292 = vpack.c.b16 %v2229, %v2228
        %v2293 = vpack.c.b16 %v2231, %v2230
        %v2294 = vpack.c.b16 %v2233, %v2232
        %v2295 = vpack.c.b16 %v2235, %v2234
        %v2296 = vpack.c.b16 %v2237, %v2236
        %v2297 = vpack.c.b16 %v2239, %v2238
        %v2298 = vpack.c.b16 %v2241, %v2240
        %v2299 = vpack.c.b16 %v2243, %v2242
        %v2300 = vpack.c.b16 %v2245, %v2244
        %v2301 = vpack.c.b16 %v2247, %v2246
        %v2302 = vpack.c.b16 %v2249, %v2248
        %v2303 = vpack.c.b16 %v2251, %v2250
        %v2304 = vpack.c.b16 %v2253, %v2252
        %v2305 = vpack.c.b16 %v2255, %v2254
        %v2306 = vpack.c.b16 %v2257, %v2256
        %v2307 = vpack.c.b16 %v2259, %v2258
        %v2308 = vpack.c.b16 %v2261, %v2260
        %v2309 = vpack.c.b16 %v2263, %v2262
        %v2310 = vpack.c.b16 %v2265, %v2264
        %v2311 = vpack.c.b16 %v2267, %v2266
        %v2312 = vpack.c.b16 %v2269, %v2268
        %v2313 = vpack.c.b16 %v2271, %v2270
        %v2314 = vpack.c.b16 %v2273, %v2272
        %v2315 = vpack.c.b16 %v2275, %v2274
        %v2316 = vpack.c.b16 %v2277, %v2276
        %v2317 = vpack.c.b16 %v2279, %v2278
        %v2318 = vpack.c.b16 %v2281, %v2280
        %v2319 = vpack.c.b16 %v2283, %v2282
        %v2320 = vpack.c.b16 %v2285, %v2284
        %v2321 = vpack.c.b16 %v2287, %v2286
        %v2322 = vpack.c.b16 %v2289, %v2288
        %v2323 = vpack.c.b16 %v2291, %v2290
        %2356 = vst [vmem:[%s479] sm:$0xff] %v2292
        %2357 = vst [vmem:[%s479 + $0x8] sm:$0xff] %v2293
        %2358 = vst [vmem:[%s479 + $0x10] sm:$0xff] %v2294
        %2359 = vst [vmem:[%s479 + $0x18] sm:$0xff] %v2295
        %2360 = vst [vmem:[%s479 + $0x20] sm:$0xff] %v2296
        %2361 = vst [vmem:[%s479 + $0x28] sm:$0xff] %v2297
        %2362 = vst [vmem:[%s479 + $0x30] sm:$0xff] %v2298
        %2363 = vst [vmem:[%s479 + $0x38] sm:$0xff] %v2299
        %2364 = vst [vmem:[%s479 + $0x40] sm:$0xff] %v2300
        %2365 = vst [vmem:[%s479 + $0x48] sm:$0xff] %v2301
        %2366 = vst [vmem:[%s479 + $0x50] sm:$0xff] %v2302
        %2367 = vst [vmem:[%s479 + $0x58] sm:$0xff] %v2303
        %2368 = vst [vmem:[%s479 + $0x60] sm:$0xff] %v2304
        %2369 = vst [vmem:[%s479 + $0x68] sm:$0xff] %v2305
        %2370 = vst [vmem:[%s479 + $0x70] sm:$0xff] %v2306
        %2371 = vst [vmem:[%s479 + $0x78] sm:$0xff] %v2307
        %2372 = vst [vmem:[%s479 + $0x80] sm:$0xff] %v2308
        %2373 = vst [vmem:[%s479 + $0x88] sm:$0xff] %v2309
        %2374 = vst [vmem:[%s479 + $0x90] sm:$0xff] %v2310
        %2375 = vst [vmem:[%s479 + $0x98] sm:$0xff] %v2311
        %2376 = vst [vmem:[%s479 + $0xa0] sm:$0xff] %v2312
        %2377 = vst [vmem:[%s479 + $0xa8] sm:$0xff] %v2313
        %2378 = vst [vmem:[%s479 + $0xb0] sm:$0xff] %v2314
        %2379 = vst [vmem:[%s479 + $0xb8] sm:$0xff] %v2315
        %2380 = vst [vmem:[%s479 + $0xc0] sm:$0xff] %v2316
        %2381 = vst [vmem:[%s479 + $0xc8] sm:$0xff] %v2317
        %2382 = vst [vmem:[%s479 + $0xd0] sm:$0xff] %v2318
        %2383 = vst [vmem:[%s479 + $0xd8] sm:$0xff] %v2319
        %2384 = vst [vmem:[%s479 + $0xe0] sm:$0xff] %v2320
        %2385 = vst [vmem:[%s479 + $0xe8] sm:$0xff] %v2321
        %2386 = vst [vmem:[%s479 + $0xf0] sm:$0xff] %v2322
        %2387 = vst [vmem:[%s479 + $0xf8] sm:$0xff] %v2323
        %v2388 = vld [vmem:[%s7] sm:$0xf]
        %v2389 = vld [vmem:[%s7 + $0x4] sm:$0xf]
        %v2390 = vld [vmem:[%s7 + $0x8] sm:$0xf]
        %v2391 = vld [vmem:[%s7 + $0xc] sm:$0xf]
        %v2392 = vld [vmem:[%s7 + $0x10] sm:$0xf]
        %v2393 = vld [vmem:[%s7 + $0x14] sm:$0xf]
        %v2394 = vld [vmem:[%s7 + $0x18] sm:$0xf]
        %v2395 = vld [vmem:[%s7 + $0x1c] sm:$0xf]
        %v2396 = vld [vmem:[%s7 + $0x20] sm:$0xf]
        %v2397 = vld [vmem:[%s7 + $0x24] sm:$0xf]
        %v2398 = vld [vmem:[%s7 + $0x28] sm:$0xf]
        %v2399 = vld [vmem:[%s7 + $0x2c] sm:$0xf]
        %v2400 = vld [vmem:[%s7 + $0x30] sm:$0xf]
        %v2401 = vld [vmem:[%s7 + $0x34] sm:$0xf]
        %v2402 = vld [vmem:[%s7 + $0x38] sm:$0xf]
        %v2403 = vld [vmem:[%s7 + $0x3c] sm:$0xf]
        %v2404 = vld [vmem:[%s7 + $0x40] sm:$0xf]
        %v2405 = vld [vmem:[%s7 + $0x44] sm:$0xf]
        %v2406 = vld [vmem:[%s7 + $0x48] sm:$0xf]
        %v2407 = vld [vmem:[%s7 + $0x4c] sm:$0xf]
        %v2408 = vld [vmem:[%s7 + $0x50] sm:$0xf]
        %v2409 = vld [vmem:[%s7 + $0x54] sm:$0xf]
        %v2410 = vld [vmem:[%s7 + $0x58] sm:$0xf]
        %v2411 = vld [vmem:[%s7 + $0x5c] sm:$0xf]
        %v2412 = vld [vmem:[%s7 + $0x60] sm:$0xf]
        %v2413 = vld [vmem:[%s7 + $0x64] sm:$0xf]
        %v2414 = vld [vmem:[%s7 + $0x68] sm:$0xf]
        %v2415 = vld [vmem:[%s7 + $0x6c] sm:$0xf]
        %v2416 = vld [vmem:[%s7 + $0x70] sm:$0xf]
        %v2417 = vld [vmem:[%s7 + $0x74] sm:$0xf]
        %v2418 = vld [vmem:[%s7 + $0x78] sm:$0xf]
        %v2419 = vld [vmem:[%s7 + $0x7c] sm:$0xf]
        %v2420 = vld [vmem:[%s8] sm:$0x1]
        %v2422 = vlaneseq
        %v2423 = vshrl.u32 %v2422, 7
        %v2424 = vsub.s32 0, %v2423
        %v2425 = vrot.slane %v2420, %v2424
        %v2459 = vunpack.c.l.b16 %v2388
        %v2460 = vunpack.c.l.b16 %v2389
        %v2461 = vunpack.c.l.b16 %v2390
        %v2462 = vunpack.c.l.b16 %v2391
        %v2463 = vunpack.c.l.b16 %v2392
        %v2464 = vunpack.c.l.b16 %v2393
        %v2465 = vunpack.c.l.b16 %v2394
        %v2466 = vunpack.c.l.b16 %v2395
        %v2467 = vunpack.c.l.b16 %v2396
        %v2468 = vunpack.c.l.b16 %v2397
        %v2469 = vunpack.c.l.b16 %v2398
        %v2470 = vunpack.c.l.b16 %v2399
        %v2471 = vunpack.c.l.b16 %v2400
        %v2472 = vunpack.c.l.b16 %v2401
        %v2473 = vunpack.c.l.b16 %v2402
        %v2474 = vunpack.c.l.b16 %v2403
        %v2475 = vunpack.c.l.b16 %v2404
        %v2476 = vunpack.c.l.b16 %v2405
        %v2477 = vunpack.c.l.b16 %v2406
        %v2478 = vunpack.c.l.b16 %v2407
        %v2479 = vunpack.c.l.b16 %v2408
        %v2480 = vunpack.c.l.b16 %v2409
        %v2481 = vunpack.c.l.b16 %v2410
        %v2482 = vunpack.c.l.b16 %v2411
        %v2483 = vunpack.c.l.b16 %v2412
        %v2484 = vunpack.c.l.b16 %v2413
        %v2485 = vunpack.c.l.b16 %v2414
        %v2486 = vunpack.c.l.b16 %v2415
        %v2487 = vunpack.c.l.b16 %v2416
        %v2488 = vunpack.c.l.b16 %v2417
        %v2489 = vunpack.c.l.b16 %v2418
        %v2490 = vunpack.c.l.b16 %v2419
        %v2491 = vpack.c.b16 %v2460, %v2459
        %v2492 = vpack.c.b16 %v2462, %v2461
        %v2493 = vpack.c.b16 %v2464, %v2463
        %v2494 = vpack.c.b16 %v2466, %v2465
        %v2495 = vpack.c.b16 %v2468, %v2467
        %v2496 = vpack.c.b16 %v2470, %v2469
        %v2497 = vpack.c.b16 %v2472, %v2471
        %v2498 = vpack.c.b16 %v2474, %v2473
        %v2499 = vpack.c.b16 %v2476, %v2475
        %v2500 = vpack.c.b16 %v2478, %v2477
        %v2501 = vpack.c.b16 %v2480, %v2479
        %v2502 = vpack.c.b16 %v2482, %v2481
        %v2503 = vpack.c.b16 %v2484, %v2483
        %v2504 = vpack.c.b16 %v2486, %v2485
        %v2505 = vpack.c.b16 %v2488, %v2487
        %v2506 = vpack.c.b16 %v2490, %v2489
        %2523 = vmatprep.subr.bf16.mxu0 0
        %2524 = vmatpush1.bf16.msra.mxu0 %v2491
        %2525 = vmatprep.subr.bf16.mxu0 0
        %2526 = vmatpush1.bf16.msra.mxu0 %v2492
        %2527 = vmatprep.subr.bf16.mxu0 0
        %2528 = vmatpush1.bf16.msra.mxu0 %v2493
        %2529 = vmatprep.subr.bf16.mxu0 0
        %2530 = vmatpush1.bf16.msra.mxu0 %v2494
        %2531 = vmatprep.subr.bf16.mxu0 0
        %2532 = vmatpush1.bf16.msra.mxu0 %v2495
        %2533 = vmatprep.subr.bf16.mxu0 0
        %2534 = vmatpush1.bf16.msra.mxu0 %v2496
        %2535 = vmatprep.subr.bf16.mxu0 0
        %2536 = vmatpush1.bf16.msra.mxu0 %v2497
        %2537 = vmatprep.subr.bf16.mxu0 0
        %2538 = vmatpush1.bf16.msra.mxu0 %v2498
        %2539 = vmatprep.subr.bf16.mxu0 0
        %2540 = vmatpush1.bf16.msra.mxu0 %v2499
        %2541 = vmatprep.subr.bf16.mxu0 0
        %2542 = vmatpush1.bf16.msra.mxu0 %v2500
        %2543 = vmatprep.subr.bf16.mxu0 0
        %2544 = vmatpush1.bf16.msra.mxu0 %v2501
        %2545 = vmatprep.subr.bf16.mxu0 0
        %2546 = vmatpush1.bf16.msra.mxu0 %v2502
        %2547 = vmatprep.subr.bf16.mxu0 0
        %2548 = vmatpush1.bf16.msra.mxu0 %v2503
        %2549 = vmatprep.subr.bf16.mxu0 0
        %2550 = vmatpush1.bf16.msra.mxu0 %v2504
        %2551 = vmatprep.subr.bf16.mxu0 0
        %2552 = vmatpush1.bf16.msra.mxu0 %v2505
        %2553 = vmatprep.subr.bf16.mxu0 0
        %2554 = vmatpush1.bf16.msra.mxu0 %v2506
        %2555 = vmatprep.mubr.bf16.mxu0 %v2165
        %2556 = vmatmul.mubr.bf16.gmra.mrb[0].mxu0 %v2164
        %v2557 = vpop.f32.mrb[0].mxu0
        %v2558 = vadd.f32 %v2425, %v2557
        %v2559 = vpop.f32.mrb[0].mxu0
        %v2560 = vpop.f32.mrb[0].mxu0
        %v2561 = vadd.f32 %v2425, %v2560
        %v2562 = vpop.f32.mrb[0].mxu0
        %2563 = vmatprep.mubr.bf16.mxu0 %v2167
        %2564 = vmatmul.mubr.bf16.gmra.mrb[0].mxu0 %v2166
        %v2565 = vpop.f32.mrb[0].mxu0
        %v2566 = vadd.f32 %v2425, %v2565
        %v2567 = vpop.f32.mrb[0].mxu0
        %v2568 = vpop.f32.mrb[0].mxu0
        %v2569 = vadd.f32 %v2425, %v2568
        %v2570 = vpop.f32.mrb[0].mxu0
        %2571 = vmatprep.mubr.bf16.mxu0 %v2169
        %2572 = vmatmul.mubr.bf16.gmra.mrb[0].mxu0 %v2168
        %v2573 = vpop.f32.mrb[0].mxu0
        %v2574 = vadd.f32 %v2425, %v2573
        %v2575 = vpop.f32.mrb[0].mxu0
        %v2576 = vpop.f32.mrb[0].mxu0
        %v2577 = vadd.f32 %v2425, %v2576
        %v2578 = vpop.f32.mrb[0].mxu0
        %2579 = vmatprep.mubr.bf16.mxu0 %v2171
        %2580 = vmatmul.mubr.bf16.gmra.mrb[0].mxu0 %v2170
        %v2581 = vpop.f32.mrb[0].mxu0
        %v2582 = vadd.f32 %v2425, %v2581
        %v2583 = vpop.f32.mrb[0].mxu0
        %v2584 = vpop.f32.mrb[0].mxu0
        %v2585 = vadd.f32 %v2425, %v2584
        %v2586 = vpop.f32.mrb[0].mxu0
        %2587 = vmatprep.mubr.bf16.mxu0 %v2173
        %2588 = vmatmul.mubr.bf16.gmra.mrb[0].mxu0 %v2172
        %v2589 = vpop.f32.mrb[0].mxu0
        %v2590 = vadd.f32 %v2425, %v2589
        %v2591 = vpop.f32.mrb[0].mxu0
        %v2592 = vpop.f32.mrb[0].mxu0
        %v2593 = vadd.f32 %v2425, %v2592
        %v2594 = vpop.f32.mrb[0].mxu0
        %2595 = vmatprep.mubr.bf16.mxu0 %v2175
        %2596 = vmatmul.mubr.bf16.gmra.mrb[0].mxu0 %v2174
        %v2597 = vpop.f32.mrb[0].mxu0
        %v2598 = vadd.f32 %v2425, %v2597
        %v2599 = vpop.f32.mrb[0].mxu0
        %v2600 = vpop.f32.mrb[0].mxu0
        %v2601 = vadd.f32 %v2425, %v2600
        %v2602 = vpop.f32.mrb[0].mxu0
        %2603 = vmatprep.mubr.bf16.mxu0 %v2177
        %2604 = vmatmul.mubr.bf16.gmra.mrb[0].mxu0 %v2176
        %v2605 = vpop.f32.mrb[0].mxu0
        %v2606 = vadd.f32 %v2425, %v2605
        %v2607 = vpop.f32.mrb[0].mxu0
        %v2608 = vpop.f32.mrb[0].mxu0
        %v2609 = vadd.f32 %v2425, %v2608
        %v2610 = vpop.f32.mrb[0].mxu0
        %2611 = vmatprep.mubr.bf16.mxu0 %v2179
        %2612 = vmatmul.mubr.bf16.gmra.mrb[0].mxu0 %v2178
        %v2613 = vpop.f32.mrb[0].mxu0
        %v2614 = vadd.f32 %v2425, %v2613
        %v2615 = vpop.f32.mrb[0].mxu0
        %v2616 = vpop.f32.mrb[0].mxu0
        %v2617 = vadd.f32 %v2425, %v2616
        %v2618 = vpop.f32.mrb[0].mxu0
        %2619 = vmatprep.mubr.bf16.mxu0 %v2181
        %2620 = vmatmul.mubr.bf16.gmra.mrb[0].mxu0 %v2180
        %v2621 = vpop.f32.mrb[0].mxu0
        %v2622 = vadd.f32 %v2425, %v2621
        %v2623 = vpop.f32.mrb[0].mxu0
        %v2624 = vpop.f32.mrb[0].mxu0
        %v2625 = vadd.f32 %v2425, %v2624
        %v2626 = vpop.f32.mrb[0].mxu0
        %2627 = vmatprep.mubr.bf16.mxu0 %v2183
        %2628 = vmatmul.mubr.bf16.gmra.mrb[0].mxu0 %v2182
        %v2629 = vpop.f32.mrb[0].mxu0
        %v2630 = vadd.f32 %v2425, %v2629
        %v2631 = vpop.f32.mrb[0].mxu0
        %v2632 = vpop.f32.mrb[0].mxu0
        %v2633 = vadd.f32 %v2425, %v2632
        %v2634 = vpop.f32.mrb[0].mxu0
        %2635 = vmatprep.mubr.bf16.mxu0 %v2185
        %2636 = vmatmul.mubr.bf16.gmra.mrb[0].mxu0 %v2184
        %v2637 = vpop.f32.mrb[0].mxu0
        %v2638 = vadd.f32 %v2425, %v2637
        %v2639 = vpop.f32.mrb[0].mxu0
        %v2640 = vpop.f32.mrb[0].mxu0
        %v2641 = vadd.f32 %v2425, %v2640
        %v2642 = vpop.f32.mrb[0].mxu0
        %2643 = vmatprep.mubr.bf16.mxu0 %v2187
        %2644 = vmatmul.mubr.bf16.gmra.mrb[0].mxu0 %v2186
        %v2645 = vpop.f32.mrb[0].mxu0
        %v2646 = vadd.f32 %v2425, %v2645
        %v2647 = vpop.f32.mrb[0].mxu0
        %v2648 = vpop.f32.mrb[0].mxu0
        %v2649 = vadd.f32 %v2425, %v2648
        %v2650 = vpop.f32.mrb[0].mxu0
        %2651 = vmatprep.mubr.bf16.mxu0 %v2189
        %2652 = vmatmul.mubr.bf16.gmra.mrb[0].mxu0 %v2188
        %v2653 = vpop.f32.mrb[0].mxu0
        %v2654 = vadd.f32 %v2425, %v2653
        %v2655 = vpop.f32.mrb[0].mxu0
        %v2656 = vpop.f32.mrb[0].mxu0
        %v2657 = vadd.f32 %v2425, %v2656
        %v2658 = vpop.f32.mrb[0].mxu0
        %2659 = vmatprep.mubr.bf16.mxu0 %v2191
        %2660 = vmatmul.mubr.bf16.gmra.mrb[0].mxu0 %v2190
        %v2661 = vpop.f32.mrb[0].mxu0
        %v2662 = vadd.f32 %v2425, %v2661
        %v2663 = vpop.f32.mrb[0].mxu0
        %v2664 = vpop.f32.mrb[0].mxu0
        %v2665 = vadd.f32 %v2425, %v2664
        %v2666 = vpop.f32.mrb[0].mxu0
        %2667 = vmatprep.mubr.bf16.mxu0 %v2193
        %2668 = vmatmul.mubr.bf16.gmra.mrb[0].mxu0 %v2192
        %v2669 = vpop.f32.mrb[0].mxu0
        %v2670 = vadd.f32 %v2425, %v2669
        %v2671 = vpop.f32.mrb[0].mxu0
        %v2672 = vpop.f32.mrb[0].mxu0
        %v2673 = vadd.f32 %v2425, %v2672
        %v2674 = vpop.f32.mrb[0].mxu0
        %2675 = vmatprep.mubr.bf16.mxu0 %v2195
        %2676 = vmatmul.mubr.bf16.gmra.mrb[0].mxu0 %v2194
        %v2677 = vpop.f32.mrb[0].mxu0
        %v2678 = vadd.f32 %v2425, %v2677
        %v2679 = vpop.f32.mrb[0].mxu0
        %v2680 = vpop.f32.mrb[0].mxu0
        %v2681 = vadd.f32 %v2425, %v2680
        %v2682 = vpop.f32.mrb[0].mxu0
        %2683 = vdwg.mxu0
        %v2684 = vmax.f32 %v2558, 0.0
        %v2685 = vmax.f32 %v2561, 0.0
        %v2686 = vmax.f32 %v2566, 0.0
        %v2687 = vmax.f32 %v2569, 0.0
        %v2688 = vmax.f32 %v2574, 0.0
        %v2689 = vmax.f32 %v2577, 0.0
        %v2690 = vmax.f32 %v2582, 0.0
        %v2691 = vmax.f32 %v2585, 0.0
        %v2692 = vmax.f32 %v2590, 0.0
        %v2693 = vmax.f32 %v2593, 0.0
        %v2694 = vmax.f32 %v2598, 0.0
        %v2695 = vmax.f32 %v2601, 0.0
        %v2696 = vmax.f32 %v2606, 0.0
        %v2697 = vmax.f32 %v2609, 0.0
        %v2698 = vmax.f32 %v2614, 0.0
        %v2699 = vmax.f32 %v2617, 0.0
        %v2700 = vmax.f32 %v2622, 0.0
        %v2701 = vmax.f32 %v2625, 0.0
        %v2702 = vmax.f32 %v2630, 0.0
        %v2703 = vmax.f32 %v2633, 0.0
        %v2704 = vmax.f32 %v2638, 0.0
        %v2705 = vmax.f32 %v2641, 0.0
        %v2706 = vmax.f32 %v2646, 0.0
        %v2707 = vmax.f32 %v2649, 0.0
        %v2708 = vmax.f32 %v2654, 0.0
        %v2709 = vmax.f32 %v2657, 0.0
        %v2710 = vmax.f32 %v2662, 0.0
        %v2711 = vmax.f32 %v2665, 0.0
        %v2712 = vmax.f32 %v2670, 0.0
        %v2713 = vmax.f32 %v2673, 0.0
        %v2714 = vmax.f32 %v2678, 0.0
        %v2715 = vmax.f32 %v2681, 0.0
        %v2716 = vpack.c.bf16 %v2685, %v2684
        %v2717 = vpack.c.bf16 %v2687, %v2686
        %v2718 = vpack.c.bf16 %v2689, %v2688
        %v2719 = vpack.c.bf16 %v2691, %v2690
        %v2720 = vpack.c.bf16 %v2693, %v2692
        %v2721 = vpack.c.bf16 %v2695, %v2694
        %v2722 = vpack.c.bf16 %v2697, %v2696
        %v2723 = vpack.c.bf16 %v2699, %v2698
        %v2724 = vpack.c.bf16 %v2701, %v2700
        %v2725 = vpack.c.bf16 %v2703, %v2702
        %v2726 = vpack.c.bf16 %v2705, %v2704
        %v2727 = vpack.c.bf16 %v2707, %v2706
        %v2728 = vpack.c.bf16 %v2709, %v2708
        %v2729 = vpack.c.bf16 %v2711, %v2710
        %v2730 = vpack.c.bf16 %v2713, %v2712
        %v2731 = vpack.c.bf16 %v2715, %v2714
        %v2748 = vunpack.c.l.b16 %v2716
        %v2749 = vunpack.c.h.b16 %v2716
        %v2750 = vunpack.c.l.b16 %v2717
        %v2751 = vunpack.c.h.b16 %v2717
        %v2752 = vunpack.c.l.b16 %v2718
        %v2753 = vunpack.c.h.b16 %v2718
        %v2754 = vunpack.c.l.b16 %v2719
        %v2755 = vunpack.c.h.b16 %v2719
        %v2756 = vunpack.c.l.b16 %v2720
        %v2757 = vunpack.c.h.b16 %v2720
        %v2758 = vunpack.c.l.b16 %v2721
        %v2759 = vunpack.c.h.b16 %v2721
        %v2760 = vunpack.c.l.b16 %v2722
        %v2761 = vunpack.c.h.b16 %v2722
        %v2762 = vunpack.c.l.b16 %v2723
        %v2763 = vunpack.c.h.b16 %v2723
        %v2764 = vunpack.c.l.b16 %v2724
        %v2765 = vunpack.c.h.b16 %v2724
        %v2766 = vunpack.c.l.b16 %v2725
        %v2767 = vunpack.c.h.b16 %v2725
        %v2768 = vunpack.c.l.b16 %v2726
        %v2769 = vunpack.c.h.b16 %v2726
        %v2770 = vunpack.c.l.b16 %v2727
        %v2771 = vunpack.c.h.b16 %v2727
        %v2772 = vunpack.c.l.b16 %v2728
        %v2773 = vunpack.c.h.b16 %v2728
        %v2774 = vunpack.c.l.b16 %v2729
        %v2775 = vunpack.c.h.b16 %v2729
        %v2776 = vunpack.c.l.b16 %v2730
        %v2777 = vunpack.c.h.b16 %v2730
        %v2778 = vunpack.c.l.b16 %v2731
        %v2779 = vunpack.c.h.b16 %v2731
        %v2780 = vpack.c.b16 %v2748, %v2748
        %v2781 = vpack.c.b16 %v2749, %v2749
        %v2782 = vpack.c.b16 %v2750, %v2750
        %v2783 = vpack.c.b16 %v2751, %v2751
        %v2784 = vpack.c.b16 %v2752, %v2752
        %v2785 = vpack.c.b16 %v2753, %v2753
        %v2786 = vpack.c.b16 %v2754, %v2754
        %v2787 = vpack.c.b16 %v2755, %v2755
        %v2788 = vpack.c.b16 %v2756, %v2756
        %v2789 = vpack.c.b16 %v2757, %v2757
        %v2790 = vpack.c.b16 %v2758, %v2758
        %v2791 = vpack.c.b16 %v2759, %v2759
        %v2792 = vpack.c.b16 %v2760, %v2760
        %v2793 = vpack.c.b16 %v2761, %v2761
        %v2794 = vpack.c.b16 %v2762, %v2762
        %v2795 = vpack.c.b16 %v2763, %v2763
        %v2796 = vpack.c.b16 %v2764, %v2764
        %v2797 = vpack.c.b16 %v2765, %v2765
        %v2798 = vpack.c.b16 %v2766, %v2766
        %v2799 = vpack.c.b16 %v2767, %v2767
        %v2800 = vpack.c.b16 %v2768, %v2768
        %v2801 = vpack.c.b16 %v2769, %v2769
        %v2802 = vpack.c.b16 %v2770, %v2770
        %v2803 = vpack.c.b16 %v2771, %v2771
        %v2804 = vpack.c.b16 %v2772, %v2772
        %v2805 = vpack.c.b16 %v2773, %v2773
        %v2806 = vpack.c.b16 %v2774, %v2774
        %v2807 = vpack.c.b16 %v2775, %v2775
        %v2808 = vpack.c.b16 %v2776, %v2776
        %v2809 = vpack.c.b16 %v2777, %v2777
        %v2810 = vpack.c.b16 %v2778, %v2778
        %v2811 = vpack.c.b16 %v2779, %v2779
        %2812 = vrot.lane.b32.xlu0 %v2780, 64
        %v2813 = vpop.permute.xlu0 %2812
        %2814 = vrot.lane.b32.xlu0 %v2781, 64
        %v2815 = vpop.permute.xlu0 %2814
        %2816 = vrot.lane.b32.xlu0 %v2782, 64
        %v2817 = vpop.permute.xlu0 %2816
        %2818 = vrot.lane.b32.xlu0 %v2783, 64
        %v2819 = vpop.permute.xlu0 %2818
        %2820 = vrot.lane.b32.xlu0 %v2784, 64
        %v2821 = vpop.permute.xlu0 %2820
        %2822 = vrot.lane.b32.xlu0 %v2785, 64
        %v2823 = vpop.permute.xlu0 %2822
        %2824 = vrot.lane.b32.xlu0 %v2786, 64
        %v2825 = vpop.permute.xlu0 %2824
        %2826 = vrot.lane.b32.xlu0 %v2787, 64
        %v2827 = vpop.permute.xlu0 %2826
        %2828 = vrot.lane.b32.xlu0 %v2788, 64
        %v2829 = vpop.permute.xlu0 %2828
        %2830 = vrot.lane.b32.xlu0 %v2789, 64
        %v2831 = vpop.permute.xlu0 %2830
        %2832 = vrot.lane.b32.xlu0 %v2790, 64
        %v2833 = vpop.permute.xlu0 %2832
        %2834 = vrot.lane.b32.xlu0 %v2791, 64
        %v2835 = vpop.permute.xlu0 %2834
        %2836 = vrot.lane.b32.xlu0 %v2792, 64
        %v2837 = vpop.permute.xlu0 %2836
        %2838 = vrot.lane.b32.xlu0 %v2793, 64
        %v2839 = vpop.permute.xlu0 %2838
        %2840 = vrot.lane.b32.xlu0 %v2794, 64
        %v2841 = vpop.permute.xlu0 %2840
        %2842 = vrot.lane.b32.xlu0 %v2795, 64
        %v2843 = vpop.permute.xlu0 %2842
        %2844 = vrot.lane.b32.xlu0 %v2796, 64
        %v2845 = vpop.permute.xlu0 %2844
        %2846 = vrot.lane.b32.xlu0 %v2797, 64
        %v2847 = vpop.permute.xlu0 %2846
        %2848 = vrot.lane.b32.xlu0 %v2798, 64
        %v2849 = vpop.permute.xlu0 %2848
        %2850 = vrot.lane.b32.xlu0 %v2799, 64
        %v2851 = vpop.permute.xlu0 %2850
        %2852 = vrot.lane.b32.xlu0 %v2800, 64
        %v2853 = vpop.permute.xlu0 %2852
        %2854 = vrot.lane.b32.xlu0 %v2801, 64
        %v2855 = vpop.permute.xlu0 %2854
        %2856 = vrot.lane.b32.xlu0 %v2802, 64
        %v2857 = vpop.permute.xlu0 %2856
        %2858 = vrot.lane.b32.xlu0 %v2803, 64
        %v2859 = vpop.permute.xlu0 %2858
        %2860 = vrot.lane.b32.xlu0 %v2804, 64
        %v2861 = vpop.permute.xlu0 %2860
        %2862 = vrot.lane.b32.xlu0 %v2805, 64
        %v2863 = vpop.permute.xlu0 %2862
        %2864 = vrot.lane.b32.xlu0 %v2806, 64
        %v2865 = vpop.permute.xlu0 %2864
        %2866 = vrot.lane.b32.xlu0 %v2807, 64
        %v2867 = vpop.permute.xlu0 %2866
        %2868 = vrot.lane.b32.xlu0 %v2808, 64
        %v2869 = vpop.permute.xlu0 %2868
        %2870 = vrot.lane.b32.xlu0 %v2809, 64
        %v2871 = vpop.permute.xlu0 %2870
        %2872 = vrot.lane.b32.xlu0 %v2810, 64
        %v2873 = vpop.permute.xlu0 %2872
        %2874 = vrot.lane.b32.xlu0 %v2811, 64
        %v2875 = vpop.permute.xlu0 %2874
        %vm2908 = vcmask 1043968
        %2909 = vst.msk [vmem:[%s465] sm:$0xf] %vm2908, %v2813
        %2910 = vst.msk [vmem:[%s465 + $0x4] sm:$0xf] %vm2908, %v2815
        %2911 = vst.msk [vmem:[%s465 + $0x8] sm:$0xf] %vm2908, %v2817
        %2912 = vst.msk [vmem:[%s465 + $0xc] sm:$0xf] %vm2908, %v2819
        %2913 = vst.msk [vmem:[%s465 + $0x10] sm:$0xf] %vm2908, %v2821
        %2914 = vst.msk [vmem:[%s465 + $0x14] sm:$0xf] %vm2908, %v2823
        %2915 = vst.msk [vmem:[%s465 + $0x18] sm:$0xf] %vm2908, %v2825
        %2916 = vst.msk [vmem:[%s465 + $0x1c] sm:$0xf] %vm2908, %v2827
        %2917 = vst.msk [vmem:[%s465 + $0x20] sm:$0xf] %vm2908, %v2829
        %2918 = vst.msk [vmem:[%s465 + $0x24] sm:$0xf] %vm2908, %v2831
        %2919 = vst.msk [vmem:[%s465 + $0x28] sm:$0xf] %vm2908, %v2833
        %2920 = vst.msk [vmem:[%s465 + $0x2c] sm:$0xf] %vm2908, %v2835
        %2921 = vst.msk [vmem:[%s465 + $0x30] sm:$0xf] %vm2908, %v2837
        %2922 = vst.msk [vmem:[%s465 + $0x34] sm:$0xf] %vm2908, %v2839
        %2923 = vst.msk [vmem:[%s465 + $0x38] sm:$0xf] %vm2908, %v2841
        %2924 = vst.msk [vmem:[%s465 + $0x3c] sm:$0xf] %vm2908, %v2843
        %2925 = vst.msk [vmem:[%s465 + $0x40] sm:$0xf] %vm2908, %v2845
        %2926 = vst.msk [vmem:[%s465 + $0x44] sm:$0xf] %vm2908, %v2847
        %2927 = vst.msk [vmem:[%s465 + $0x48] sm:$0xf] %vm2908, %v2849
        %2928 = vst.msk [vmem:[%s465 + $0x4c] sm:$0xf] %vm2908, %v2851
        %2929 = vst.msk [vmem:[%s465 + $0x50] sm:$0xf] %vm2908, %v2853
        %2930 = vst.msk [vmem:[%s465 + $0x54] sm:$0xf] %vm2908, %v2855
        %2931 = vst.msk [vmem:[%s465 + $0x58] sm:$0xf] %vm2908, %v2857
        %2932 = vst.msk [vmem:[%s465 + $0x5c] sm:$0xf] %vm2908, %v2859
        %2933 = vst.msk [vmem:[%s465 + $0x60] sm:$0xf] %vm2908, %v2861
        %2934 = vst.msk [vmem:[%s465 + $0x64] sm:$0xf] %vm2908, %v2863
        %2935 = vst.msk [vmem:[%s465 + $0x68] sm:$0xf] %vm2908, %v2865
        %2936 = vst.msk [vmem:[%s465 + $0x6c] sm:$0xf] %vm2908, %v2867
        %2937 = vst.msk [vmem:[%s465 + $0x70] sm:$0xf] %vm2908, %v2869
        %2938 = vst.msk [vmem:[%s465 + $0x74] sm:$0xf] %vm2908, %v2871
        %2939 = vst.msk [vmem:[%s465 + $0x78] sm:$0xf] %vm2908, %v2873
        %2940 = vst.msk [vmem:[%s465 + $0x7c] sm:$0xf] %vm2908, %v2875
        %v2941 = vld [vmem:[%s9] sm:$0xf]
        %v2942 = vld [vmem:[%s9 + $0x4] sm:$0xf]
        %v2943 = vld [vmem:[%s9 + $0x8] sm:$0xf]
        %v2944 = vld [vmem:[%s9 + $0xc] sm:$0xf]
        %v2945 = vld [vmem:[%s9 + $0x10] sm:$0xf]
        %v2946 = vld [vmem:[%s9 + $0x14] sm:$0xf]
        %v2947 = vld [vmem:[%s9 + $0x18] sm:$0xf]
        %v2948 = vld [vmem:[%s9 + $0x1c] sm:$0xf]
        %v2949 = vld [vmem:[%s10] sm:$0x1]
        %v2951 = vlaneseq
        %v2952 = vshrl.u32 %v2951, 7
        %v2953 = vsub.s32 0, %v2952
        %v2954 = vrot.slane %v2949, %v2953
        %v2964 = vunpack.c.l.b16 %v2941
        %v2965 = vunpack.c.l.b16 %v2942
        %v2966 = vunpack.c.l.b16 %v2943
        %v2967 = vunpack.c.l.b16 %v2944
        %v2968 = vunpack.c.l.b16 %v2945
        %v2969 = vunpack.c.l.b16 %v2946
        %v2970 = vunpack.c.l.b16 %v2947
        %v2971 = vunpack.c.l.b16 %v2948
        %v2972 = vpack.c.b16 %v2965, %v2964
        %v2973 = vpack.c.b16 %v2967, %v2966
        %v2974 = vpack.c.b16 %v2969, %v2968
        %v2975 = vpack.c.b16 %v2971, %v2970
        %v2981 = vsel %vm1397, %v2716, 0
        %v2984 = vsel %vm1397, %v2717, 0
        %v2987 = vsel %vm1397, %v2718, 0
        %v2990 = vsel %vm1397, %v2719, 0
        %v2993 = vsel %vm1397, %v2720, 0
        %v2996 = vsel %vm1397, %v2721, 0
        %v2999 = vsel %vm1397, %v2722, 0
        %v3002 = vsel %vm1397, %v2723, 0
        %v3005 = vsel %vm1397, %v2724, 0
        %v3008 = vsel %vm1397, %v2725, 0
        %v3011 = vsel %vm1397, %v2726, 0
        %v3014 = vsel %vm1397, %v2727, 0
        %v3017 = vsel %vm1397, %v2728, 0
        %v3020 = vsel %vm1397, %v2729, 0
        %v3023 = vsel %vm1397, %v2730, 0
        %v3026 = vsel %vm1397, %v2731, 0
        %3028 = vmatprep.subr.bf16.mxu0 0
        %3029 = vmatpush1.bf16.msra.mxu0 %v2972
        %3030 = vmatprep.subr.bf16.mxu0 0
        %3031 = vmatpush1.bf16.msra.mxu0 %v2973
        %3032 = vmatprep.subr.bf16.mxu0 0
        %3033 = vmatpush1.bf16.msra.mxu0 %v2974
        %3034 = vmatprep.subr.bf16.mxu0 0
        %3035 = vmatpush1.bf16.msra.mxu0 %v2975
        %3036 = vmatprep.subr.bf16.mxu0 0
        %3037 = vmatpush1.bf16.msra.mxu0 0
        %3038 = vmatprep.subr.bf16.mxu0 0
        %3039 = vmatpush1.bf16.msra.mxu0 0
        %3040 = vmatprep.subr.bf16.mxu0 0
        %3041 = vmatpush1.bf16.msra.mxu0 0
        %3042 = vmatprep.subr.bf16.mxu0 0
        %3043 = vmatpush1.bf16.msra.mxu0 0
        %3044 = vmatprep.subr.bf16.mxu0 0
        %3045 = vmatpush1.bf16.msra.mxu0 0
        %3046 = vmatprep.subr.bf16.mxu0 0
        %3047 = vmatpush1.bf16.msra.mxu0 0
        %3048 = vmatprep.subr.bf16.mxu0 0
        %3049 = vmatpush1.bf16.msra.mxu0 0
        %3050 = vmatprep.subr.bf16.mxu0 0
        %3051 = vmatpush1.bf16.msra.mxu0 0
        %3052 = vmatprep.subr.bf16.mxu0 0
        %3053 = vmatpush1.bf16.msra.mxu0 0
        %3054 = vmatprep.subr.bf16.mxu0 0
        %3055 = vmatpush1.bf16.msra.mxu0 0
        %3056 = vmatprep.subr.bf16.mxu0 0
        %3057 = vmatpush1.bf16.msra.mxu0 0
        %3058 = vmatprep.subr.bf16.mxu0 0
        %3059 = vmatpush1.bf16.msra.mxu0 0
        %3060 = vmatprep.mubr.bf16.mxu0 0
        %3061 = vmatmul.mubr.bf16.gmra.mrb[0].mxu0 %v2981
        %v3062 = vpop.f32.mrb[0].mxu0
        %v3063 = vadd.f32 %v2954, %v3062
        %v3064 = vpop.f32.mrb[0].mxu0
        %v3065 = vpop.f32.mrb[0].mxu0
        %v3066 = vadd.f32 %v2954, %v3065
        %v3067 = vpop.f32.mrb[0].mxu0
        %3068 = vmatprep.mubr.bf16.mxu0 0
        %3069 = vmatmul.mubr.bf16.gmra.mrb[0].mxu0 %v2984
        %v3070 = vpop.f32.mrb[0].mxu0
        %v3071 = vadd.f32 %v2954, %v3070
        %v3072 = vpop.f32.mrb[0].mxu0
        %v3073 = vpop.f32.mrb[0].mxu0
        %v3074 = vadd.f32 %v2954, %v3073
        %v3075 = vpop.f32.mrb[0].mxu0
        %3076 = vmatprep.mubr.bf16.mxu0 0
        %3077 = vmatmul.mubr.bf16.gmra.mrb[0].mxu0 %v2987
        %v3078 = vpop.f32.mrb[0].mxu0
        %v3079 = vadd.f32 %v2954, %v3078
        %v3080 = vpop.f32.mrb[0].mxu0
        %v3081 = vpop.f32.mrb[0].mxu0
        %v3082 = vadd.f32 %v2954, %v3081
        %v3083 = vpop.f32.mrb[0].mxu0
        %3084 = vmatprep.mubr.bf16.mxu0 0
        %3085 = vmatmul.mubr.bf16.gmra.mrb[0].mxu0 %v2990
        %v3086 = vpop.f32.mrb[0].mxu0
        %v3087 = vadd.f32 %v2954, %v3086
        %v3088 = vpop.f32.mrb[0].mxu0
        %v3089 = vpop.f32.mrb[0].mxu0
        %v3090 = vadd.f32 %v2954, %v3089
        %v3091 = vpop.f32.mrb[0].mxu0
        %3092 = vmatprep.mubr.bf16.mxu0 0
        %3093 = vmatmul.mubr.bf16.gmra.mrb[0].mxu0 %v2993
        %v3094 = vpop.f32.mrb[0].mxu0
        %v3095 = vadd.f32 %v2954, %v3094
        %v3096 = vpop.f32.mrb[0].mxu0
        %v3097 = vpop.f32.mrb[0].mxu0
        %v3098 = vadd.f32 %v2954, %v3097
        %v3099 = vpop.f32.mrb[0].mxu0
        %3100 = vmatprep.mubr.bf16.mxu0 0
        %3101 = vmatmul.mubr.bf16.gmra.mrb[0].mxu0 %v2996
        %v3102 = vpop.f32.mrb[0].mxu0
        %v3103 = vadd.f32 %v2954, %v3102
        %v3104 = vpop.f32.mrb[0].mxu0
        %v3105 = vpop.f32.mrb[0].mxu0
        %v3106 = vadd.f32 %v2954, %v3105
        %v3107 = vpop.f32.mrb[0].mxu0
        %3108 = vmatprep.mubr.bf16.mxu0 0
        %3109 = vmatmul.mubr.bf16.gmra.mrb[0].mxu0 %v2999
        %v3110 = vpop.f32.mrb[0].mxu0
        %v3111 = vadd.f32 %v2954, %v3110
        %v3112 = vpop.f32.mrb[0].mxu0
        %v3113 = vpop.f32.mrb[0].mxu0
        %v3114 = vadd.f32 %v2954, %v3113
        %v3115 = vpop.f32.mrb[0].mxu0
        %3116 = vmatprep.mubr.bf16.mxu0 0
        %3117 = vmatmul.mubr.bf16.gmra.mrb[0].mxu0 %v3002
        %v3118 = vpop.f32.mrb[0].mxu0
        %v3119 = vadd.f32 %v2954, %v3118
        %v3120 = vpop.f32.mrb[0].mxu0
        %v3121 = vpop.f32.mrb[0].mxu0
        %v3122 = vadd.f32 %v2954, %v3121
        %v3123 = vpop.f32.mrb[0].mxu0
        %3124 = vmatprep.mubr.bf16.mxu0 0
        %3125 = vmatmul.mubr.bf16.gmra.mrb[0].mxu0 %v3005
        %v3126 = vpop.f32.mrb[0].mxu0
        %v3127 = vadd.f32 %v2954, %v3126
        %v3128 = vpop.f32.mrb[0].mxu0
        %v3129 = vpop.f32.mrb[0].mxu0
        %v3130 = vadd.f32 %v2954, %v3129
        %v3131 = vpop.f32.mrb[0].mxu0
        %3132 = vmatprep.mubr.bf16.mxu0 0
        %3133 = vmatmul.mubr.bf16.gmra.mrb[0].mxu0 %v3008
        %v3134 = vpop.f32.mrb[0].mxu0
        %v3135 = vadd.f32 %v2954, %v3134
        %v3136 = vpop.f32.mrb[0].mxu0
        %v3137 = vpop.f32.mrb[0].mxu0
        %v3138 = vadd.f32 %v2954, %v3137
        %v3139 = vpop.f32.mrb[0].mxu0
        %3140 = vmatprep.mubr.bf16.mxu0 0
        %3141 = vmatmul.mubr.bf16.gmra.mrb[0].mxu0 %v3011
        %v3142 = vpop.f32.mrb[0].mxu0
        %v3143 = vadd.f32 %v2954, %v3142
        %v3144 = vpop.f32.mrb[0].mxu0
        %v3145 = vpop.f32.mrb[0].mxu0
        %v3146 = vadd.f32 %v2954, %v3145
        %v3147 = vpop.f32.mrb[0].mxu0
        %3148 = vmatprep.mubr.bf16.mxu0 0
        %3149 = vmatmul.mubr.bf16.gmra.mrb[0].mxu0 %v3014
        %v3150 = vpop.f32.mrb[0].mxu0
        %v3151 = vadd.f32 %v2954, %v3150
        %v3152 = vpop.f32.mrb[0].mxu0
        %v3153 = vpop.f32.mrb[0].mxu0
        %v3154 = vadd.f32 %v2954, %v3153
        %v3155 = vpop.f32.mrb[0].mxu0
        %3156 = vmatprep.mubr.bf16.mxu0 0
        %3157 = vmatmul.mubr.bf16.gmra.mrb[0].mxu0 %v3017
        %v3158 = vpop.f32.mrb[0].mxu0
        %v3159 = vadd.f32 %v2954, %v3158
        %v3160 = vpop.f32.mrb[0].mxu0
        %v3161 = vpop.f32.mrb[0].mxu0
        %v3162 = vadd.f32 %v2954, %v3161
        %v3163 = vpop.f32.mrb[0].mxu0
        %3164 = vmatprep.mubr.bf16.mxu0 0
        %3165 = vmatmul.mubr.bf16.gmra.mrb[0].mxu0 %v3020
        %v3166 = vpop.f32.mrb[0].mxu0
        %v3167 = vadd.f32 %v2954, %v3166
        %v3168 = vpop.f32.mrb[0].mxu0
        %v3169 = vpop.f32.mrb[0].mxu0
        %v3170 = vadd.f32 %v2954, %v3169
        %v3171 = vpop.f32.mrb[0].mxu0
        %3172 = vmatprep.mubr.bf16.mxu0 0
        %3173 = vmatmul.mubr.bf16.gmra.mrb[0].mxu0 %v3023
        %v3174 = vpop.f32.mrb[0].mxu0
        %v3175 = vadd.f32 %v2954, %v3174
        %v3176 = vpop.f32.mrb[0].mxu0
        %v3177 = vpop.f32.mrb[0].mxu0
        %v3178 = vadd.f32 %v2954, %v3177
        %v3179 = vpop.f32.mrb[0].mxu0
        %3180 = vmatprep.mubr.bf16.mxu0 0
        %3181 = vmatmul.mubr.bf16.gmra.mrb[0].mxu0 %v3026
        %v3182 = vpop.f32.mrb[0].mxu0
        %v3183 = vadd.f32 %v2954, %v3182
        %v3184 = vpop.f32.mrb[0].mxu0
        %v3185 = vpop.f32.mrb[0].mxu0
        %v3186 = vadd.f32 %v2954, %v3185
        %v3187 = vpop.f32.mrb[0].mxu0
        %3188 = vdwg.mxu0
        %v3189 = vmax.f32 %v3063, 0.0
        %v3190 = vmax.f32 %v3066, 0.0
        %v3191 = vmax.f32 %v3071, 0.0
        %v3192 = vmax.f32 %v3074, 0.0
        %v3193 = vmax.f32 %v3079, 0.0
        %v3194 = vmax.f32 %v3082, 0.0
        %v3195 = vmax.f32 %v3087, 0.0
        %v3196 = vmax.f32 %v3090, 0.0
        %v3197 = vmax.f32 %v3095, 0.0
        %v3198 = vmax.f32 %v3098, 0.0
        %v3199 = vmax.f32 %v3103, 0.0
        %v3200 = vmax.f32 %v3106, 0.0
        %v3201 = vmax.f32 %v3111, 0.0
        %v3202 = vmax.f32 %v3114, 0.0
        %v3203 = vmax.f32 %v3119, 0.0
        %v3204 = vmax.f32 %v3122, 0.0
        %v3205 = vmax.f32 %v3127, 0.0
        %v3206 = vmax.f32 %v3130, 0.0
        %v3207 = vmax.f32 %v3135, 0.0
        %v3208 = vmax.f32 %v3138, 0.0
        %v3209 = vmax.f32 %v3143, 0.0
        %v3210 = vmax.f32 %v3146, 0.0
        %v3211 = vmax.f32 %v3151, 0.0
        %v3212 = vmax.f32 %v3154, 0.0
        %v3213 = vmax.f32 %v3159, 0.0
        %v3214 = vmax.f32 %v3162, 0.0
        %v3215 = vmax.f32 %v3167, 0.0
        %v3216 = vmax.f32 %v3170, 0.0
        %v3217 = vmax.f32 %v3175, 0.0
        %v3218 = vmax.f32 %v3178, 0.0
        %v3219 = vmax.f32 %v3183, 0.0
        %v3220 = vmax.f32 %v3186, 0.0
        %v3221 = vpack.c.bf16 %v3190, %v3189
        %v3222 = vpack.c.bf16 %v3192, %v3191
        %v3223 = vpack.c.bf16 %v3194, %v3193
        %v3224 = vpack.c.bf16 %v3196, %v3195
        %v3225 = vpack.c.bf16 %v3198, %v3197
        %v3226 = vpack.c.bf16 %v3200, %v3199
        %v3227 = vpack.c.bf16 %v3202, %v3201
        %v3228 = vpack.c.bf16 %v3204, %v3203
        %v3229 = vpack.c.bf16 %v3206, %v3205
        %v3230 = vpack.c.bf16 %v3208, %v3207
        %v3231 = vpack.c.bf16 %v3210, %v3209
        %v3232 = vpack.c.bf16 %v3212, %v3211
        %v3233 = vpack.c.bf16 %v3214, %v3213
        %v3234 = vpack.c.bf16 %v3216, %v3215
        %v3235 = vpack.c.bf16 %v3218, %v3217
        %v3236 = vpack.c.bf16 %v3220, %v3219
        %v3253 = vunpack.c.l.b16 %v3221
        %v3254 = vunpack.c.h.b16 %v3221
        %v3255 = vunpack.c.l.b16 %v3222
        %v3256 = vunpack.c.h.b16 %v3222
        %v3257 = vunpack.c.l.b16 %v3223
        %v3258 = vunpack.c.h.b16 %v3223
        %v3259 = vunpack.c.l.b16 %v3224
        %v3260 = vunpack.c.h.b16 %v3224
        %v3261 = vunpack.c.l.b16 %v3225
        %v3262 = vunpack.c.h.b16 %v3225
        %v3263 = vunpack.c.l.b16 %v3226
        %v3264 = vunpack.c.h.b16 %v3226
        %v3265 = vunpack.c.l.b16 %v3227
        %v3266 = vunpack.c.h.b16 %v3227
        %v3267 = vunpack.c.l.b16 %v3228
        %v3268 = vunpack.c.h.b16 %v3228
        %v3269 = vunpack.c.l.b16 %v3229
        %v3270 = vunpack.c.h.b16 %v3229
        %v3271 = vunpack.c.l.b16 %v3230
        %v3272 = vunpack.c.h.b16 %v3230
        %v3273 = vunpack.c.l.b16 %v3231
        %v3274 = vunpack.c.h.b16 %v3231
        %v3275 = vunpack.c.l.b16 %v3232
        %v3276 = vunpack.c.h.b16 %v3232
        %v3277 = vunpack.c.l.b16 %v3233
        %v3278 = vunpack.c.h.b16 %v3233
        %v3279 = vunpack.c.l.b16 %v3234
        %v3280 = vunpack.c.h.b16 %v3234
        %v3281 = vunpack.c.l.b16 %v3235
        %v3282 = vunpack.c.h.b16 %v3235
        %v3283 = vunpack.c.l.b16 %v3236
        %v3284 = vunpack.c.h.b16 %v3236
        %v3285 = vpack.c.b16 %v3253, %v3253
        %v3286 = vpack.c.b16 %v3254, %v3254
        %v3287 = vpack.c.b16 %v3255, %v3255
        %v3288 = vpack.c.b16 %v3256, %v3256
        %v3289 = vpack.c.b16 %v3257, %v3257
        %v3290 = vpack.c.b16 %v3258, %v3258
        %v3291 = vpack.c.b16 %v3259, %v3259
        %v3292 = vpack.c.b16 %v3260, %v3260
        %v3293 = vpack.c.b16 %v3261, %v3261
        %v3294 = vpack.c.b16 %v3262, %v3262
        %v3295 = vpack.c.b16 %v3263, %v3263
        %v3296 = vpack.c.b16 %v3264, %v3264
        %v3297 = vpack.c.b16 %v3265, %v3265
        %v3298 = vpack.c.b16 %v3266, %v3266
        %v3299 = vpack.c.b16 %v3267, %v3267
        %v3300 = vpack.c.b16 %v3268, %v3268
        %v3301 = vpack.c.b16 %v3269, %v3269
        %v3302 = vpack.c.b16 %v3270, %v3270
        %v3303 = vpack.c.b16 %v3271, %v3271
        %v3304 = vpack.c.b16 %v3272, %v3272
        %v3305 = vpack.c.b16 %v3273, %v3273
        %v3306 = vpack.c.b16 %v3274, %v3274
        %v3307 = vpack.c.b16 %v3275, %v3275
        %v3308 = vpack.c.b16 %v3276, %v3276
        %v3309 = vpack.c.b16 %v3277, %v3277
        %v3310 = vpack.c.b16 %v3278, %v3278
        %v3311 = vpack.c.b16 %v3279, %v3279
        %v3312 = vpack.c.b16 %v3280, %v3280
        %v3313 = vpack.c.b16 %v3281, %v3281
        %v3314 = vpack.c.b16 %v3282, %v3282
        %v3315 = vpack.c.b16 %v3283, %v3283
        %v3316 = vpack.c.b16 %v3284, %v3284
        %vm3349 = vcmask 125952
        %3350 = vst.msk [vmem:[%s500] sm:$0xf] %vm3349, %v3285
        %3351 = vst.msk [vmem:[%s500 + $0x4] sm:$0xf] %vm3349, %v3286
        %3352 = vst.msk [vmem:[%s500 + $0x8] sm:$0xf] %vm3349, %v3287
        %3353 = vst.msk [vmem:[%s500 + $0xc] sm:$0xf] %vm3349, %v3288
        %3354 = vst.msk [vmem:[%s500 + $0x10] sm:$0xf] %vm3349, %v3289
        %3355 = vst.msk [vmem:[%s500 + $0x14] sm:$0xf] %vm3349, %v3290
        %3356 = vst.msk [vmem:[%s500 + $0x18] sm:$0xf] %vm3349, %v3291
        %3357 = vst.msk [vmem:[%s500 + $0x1c] sm:$0xf] %vm3349, %v3292
        %3358 = vst.msk [vmem:[%s500 + $0x20] sm:$0xf] %vm3349, %v3293
        %3359 = vst.msk [vmem:[%s500 + $0x24] sm:$0xf] %vm3349, %v3294
        %3360 = vst.msk [vmem:[%s500 + $0x28] sm:$0xf] %vm3349, %v3295
        %3361 = vst.msk [vmem:[%s500 + $0x2c] sm:$0xf] %vm3349, %v3296
        %3362 = vst.msk [vmem:[%s500 + $0x30] sm:$0xf] %vm3349, %v3297
        %3363 = vst.msk [vmem:[%s500 + $0x34] sm:$0xf] %vm3349, %v3298
        %3364 = vst.msk [vmem:[%s500 + $0x38] sm:$0xf] %vm3349, %v3299
        %3365 = vst.msk [vmem:[%s500 + $0x3c] sm:$0xf] %vm3349, %v3300
        %3366 = vst.msk [vmem:[%s500 + $0x40] sm:$0xf] %vm3349, %v3301
        %3367 = vst.msk [vmem:[%s500 + $0x44] sm:$0xf] %vm3349, %v3302
        %3368 = vst.msk [vmem:[%s500 + $0x48] sm:$0xf] %vm3349, %v3303
        %3369 = vst.msk [vmem:[%s500 + $0x4c] sm:$0xf] %vm3349, %v3304
        %3370 = vst.msk [vmem:[%s500 + $0x50] sm:$0xf] %vm3349, %v3305
        %3371 = vst.msk [vmem:[%s500 + $0x54] sm:$0xf] %vm3349, %v3306
        %3372 = vst.msk [vmem:[%s500 + $0x58] sm:$0xf] %vm3349, %v3307
        %3373 = vst.msk [vmem:[%s500 + $0x5c] sm:$0xf] %vm3349, %v3308
        %3374 = vst.msk [vmem:[%s500 + $0x60] sm:$0xf] %vm3349, %v3309
        %3375 = vst.msk [vmem:[%s500 + $0x64] sm:$0xf] %vm3349, %v3310
        %3376 = vst.msk [vmem:[%s500 + $0x68] sm:$0xf] %vm3349, %v3311
        %3377 = vst.msk [vmem:[%s500 + $0x6c] sm:$0xf] %vm3349, %v3312
        %3378 = vst.msk [vmem:[%s500 + $0x70] sm:$0xf] %vm3349, %v3313
        %3379 = vst.msk [vmem:[%s500 + $0x74] sm:$0xf] %vm3349, %v3314
        %3380 = vst.msk [vmem:[%s500 + $0x78] sm:$0xf] %vm3349, %v3315
        %3381 = vst.msk [vmem:[%s500 + $0x7c] sm:$0xf] %vm3349, %v3316
        %v3382 = vld [vmem:[%s491 + $0x100] sm:$0xff]
        %v3383 = vld [vmem:[%s491 + $0x108] sm:$0xff]
        %v3384 = vld [vmem:[%s491 + $0x110] sm:$0xff]
        %v3385 = vld [vmem:[%s491 + $0x118] sm:$0xff]
        %v3386 = vld [vmem:[%s491 + $0x120] sm:$0xff]
        %v3387 = vld [vmem:[%s491 + $0x128] sm:$0xff]
        %v3388 = vld [vmem:[%s491 + $0x130] sm:$0xff]
        %v3389 = vld [vmem:[%s491 + $0x138] sm:$0xff]
        %v3390 = vld [vmem:[%s491 + $0x140] sm:$0xff]
        %v3391 = vld [vmem:[%s491 + $0x148] sm:$0xff]
        %v3392 = vld [vmem:[%s491 + $0x150] sm:$0xff]
        %v3393 = vld [vmem:[%s491 + $0x158] sm:$0xff]
        %v3394 = vld [vmem:[%s491 + $0x160] sm:$0xff]
        %v3395 = vld [vmem:[%s491 + $0x168] sm:$0xff]
        %v3396 = vld [vmem:[%s491 + $0x170] sm:$0xff]
        %v3397 = vld [vmem:[%s491 + $0x178] sm:$0xff]
        %v3398 = vld [vmem:[%s491 + $0x180] sm:$0xff]
        %v3399 = vld [vmem:[%s491 + $0x188] sm:$0xff]
        %v3400 = vld [vmem:[%s491 + $0x190] sm:$0xff]
        %v3401 = vld [vmem:[%s491 + $0x198] sm:$0xff]
        %v3402 = vld [vmem:[%s491 + $0x1a0] sm:$0xff]
        %v3403 = vld [vmem:[%s491 + $0x1a8] sm:$0xff]
        %v3404 = vld [vmem:[%s491 + $0x1b0] sm:$0xff]
        %v3405 = vld [vmem:[%s491 + $0x1b8] sm:$0xff]
        %v3406 = vld [vmem:[%s491 + $0x1c0] sm:$0xff]
        %v3407 = vld [vmem:[%s491 + $0x1c8] sm:$0xff]
        %v3408 = vld [vmem:[%s491 + $0x1d0] sm:$0xff]
        %v3409 = vld [vmem:[%s491 + $0x1d8] sm:$0xff]
        %v3410 = vld [vmem:[%s491 + $0x1e0] sm:$0xff]
        %v3411 = vld [vmem:[%s491 + $0x1e8] sm:$0xff]
        %v3412 = vld [vmem:[%s491 + $0x1f0] sm:$0xff]
        %v3413 = vld [vmem:[%s491 + $0x1f8] sm:$0xff]
        %v3414 = vld [vmem:[%s1] sm:$0x1]
        %3416 = vset.pattern.permute.xlu0 0
        %3417 = vperm.xlu0 %3416, %v3382
        %v3418 = vpop.permute.xlu0 %3417
        %3421 = vset.pattern.permute.xlu0 0
        %3422 = vperm.xlu0 %3421, %v3383
        %v3423 = vpop.permute.xlu0 %3422
        %3426 = vset.pattern.permute.xlu0 0
        %3427 = vperm.xlu0 %3426, %v3384
        %v3428 = vpop.permute.xlu0 %3427
        %3431 = vset.pattern.permute.xlu0 0
        %3432 = vperm.xlu0 %3431, %v3385
        %v3433 = vpop.permute.xlu0 %3432
        %3436 = vset.pattern.permute.xlu0 0
        %3437 = vperm.xlu0 %3436, %v3386
        %v3438 = vpop.permute.xlu0 %3437
        %3441 = vset.pattern.permute.xlu0 0
        %3442 = vperm.xlu0 %3441, %v3387
        %v3443 = vpop.permute.xlu0 %3442
        %3446 = vset.pattern.permute.xlu0 0
        %3447 = vperm.xlu0 %3446, %v3388
        %v3448 = vpop.permute.xlu0 %3447
        %3451 = vset.pattern.permute.xlu0 0
        %3452 = vperm.xlu0 %3451, %v3389
        %v3453 = vpop.permute.xlu0 %3452
        %3456 = vset.pattern.permute.xlu0 0
        %3457 = vperm.xlu0 %3456, %v3390
        %v3458 = vpop.permute.xlu0 %3457
        %3461 = vset.pattern.permute.xlu0 0
        %3462 = vperm.xlu0 %3461, %v3391
        %v3463 = vpop.permute.xlu0 %3462
        %3466 = vset.pattern.permute.xlu0 0
        %3467 = vperm.xlu0 %3466, %v3392
        %v3468 = vpop.permute.xlu0 %3467
        %3471 = vset.pattern.permute.xlu0 0
        %3472 = vperm.xlu0 %3471, %v3393
        %v3473 = vpop.permute.xlu0 %3472
        %3476 = vset.pattern.permute.xlu0 0
        %3477 = vperm.xlu0 %3476, %v3394
        %v3478 = vpop.permute.xlu0 %3477
        %3481 = vset.pattern.permute.xlu0 0
        %3482 = vperm.xlu0 %3481, %v3395
        %v3483 = vpop.permute.xlu0 %3482
        %3486 = vset.pattern.permute.xlu0 0
        %3487 = vperm.xlu0 %3486, %v3396
        %v3488 = vpop.permute.xlu0 %3487
        %3491 = vset.pattern.permute.xlu0 0
        %3492 = vperm.xlu0 %3491, %v3397
        %v3493 = vpop.permute.xlu0 %3492
        %3496 = vset.pattern.permute.xlu0 0
        %3497 = vperm.xlu0 %3496, %v3398
        %v3498 = vpop.permute.xlu0 %3497
        %3501 = vset.pattern.permute.xlu0 0
        %3502 = vperm.xlu0 %3501, %v3399
        %v3503 = vpop.permute.xlu0 %3502
        %3506 = vset.pattern.permute.xlu0 0
        %3507 = vperm.xlu0 %3506, %v3400
        %v3508 = vpop.permute.xlu0 %3507
        %3511 = vset.pattern.permute.xlu0 0
        %3512 = vperm.xlu0 %3511, %v3401
        %v3513 = vpop.permute.xlu0 %3512
        %3516 = vset.pattern.permute.xlu0 0
        %3517 = vperm.xlu0 %3516, %v3402
        %v3518 = vpop.permute.xlu0 %3517
        %3521 = vset.pattern.permute.xlu0 0
        %3522 = vperm.xlu0 %3521, %v3403
        %v3523 = vpop.permute.xlu0 %3522
        %3526 = vset.pattern.permute.xlu0 0
        %3527 = vperm.xlu0 %3526, %v3404
        %v3528 = vpop.permute.xlu0 %3527
        %3531 = vset.pattern.permute.xlu0 0
        %3532 = vperm.xlu0 %3531, %v3405
        %v3533 = vpop.permute.xlu0 %3532
        %3536 = vset.pattern.permute.xlu0 0
        %3537 = vperm.xlu0 %3536, %v3406
        %v3538 = vpop.permute.xlu0 %3537
        %3541 = vset.pattern.permute.xlu0 0
        %3542 = vperm.xlu0 %3541, %v3407
        %v3543 = vpop.permute.xlu0 %3542
        %3546 = vset.pattern.permute.xlu0 0
        %3547 = vperm.xlu0 %3546, %v3408
        %v3548 = vpop.permute.xlu0 %3547
        %3551 = vset.pattern.permute.xlu0 0
        %3552 = vperm.xlu0 %3551, %v3409
        %v3553 = vpop.permute.xlu0 %3552
        %3556 = vset.pattern.permute.xlu0 0
        %3557 = vperm.xlu0 %3556, %v3410
        %v3558 = vpop.permute.xlu0 %3557
        %3561 = vset.pattern.permute.xlu0 0
        %3562 = vperm.xlu0 %3561, %v3411
        %v3563 = vpop.permute.xlu0 %3562
        %3566 = vset.pattern.permute.xlu0 0
        %3567 = vperm.xlu0 %3566, %v3412
        %v3568 = vpop.permute.xlu0 %3567
        %3571 = vset.pattern.permute.xlu0 0
        %3572 = vperm.xlu0 %3571, %v3413
        %v3573 = vpop.permute.xlu0 %3572
        %v3575 = vlaneseq
        %v3576 = vshrl.u32 %v3575, 7
        %v3577 = vsub.s32 0, %v3576
        %v3578 = vrot.slane %v3414, %v3577
        %v3579 = vmul.f32 %v3418, %v3578
        %v3580 = vmul.f32 %v3423, %v3578
        %v3581 = vmul.f32 %v3428, %v3578
        %v3582 = vmul.f32 %v3433, %v3578
        %v3583 = vmul.f32 %v3438, %v3578
        %v3584 = vmul.f32 %v3443, %v3578
        %v3585 = vmul.f32 %v3448, %v3578
        %v3586 = vmul.f32 %v3453, %v3578
        %v3587 = vmul.f32 %v3458, %v3578
        %v3588 = vmul.f32 %v3463, %v3578
        %v3589 = vmul.f32 %v3468, %v3578
        %v3590 = vmul.f32 %v3473, %v3578
        %v3591 = vmul.f32 %v3478, %v3578
        %v3592 = vmul.f32 %v3483, %v3578
        %v3593 = vmul.f32 %v3488, %v3578
        %v3594 = vmul.f32 %v3493, %v3578
        %v3595 = vmul.f32 %v3498, %v3578
        %v3596 = vmul.f32 %v3503, %v3578
        %v3597 = vmul.f32 %v3508, %v3578
        %v3598 = vmul.f32 %v3513, %v3578
        %v3599 = vmul.f32 %v3518, %v3578
        %v3600 = vmul.f32 %v3523, %v3578
        %v3601 = vmul.f32 %v3528, %v3578
        %v3602 = vmul.f32 %v3533, %v3578
        %v3603 = vmul.f32 %v3538, %v3578
        %v3604 = vmul.f32 %v3543, %v3578
        %v3605 = vmul.f32 %v3548, %v3578
        %v3606 = vmul.f32 %v3553, %v3578
        %v3607 = vmul.f32 %v3558, %v3578
        %v3608 = vmul.f32 %v3563, %v3578
        %v3609 = vmul.f32 %v3568, %v3578
        %v3610 = vmul.f32 %v3573, %v3578
        %v3611 = vld [vmem:[%s1 + $0x1] sm:$0x1]
        %3612 = vset.pattern.permute.xlu0 1
        %3613 = vperm.xlu0 %3612, %v3382
        %v3614 = vpop.permute.xlu0 %3613
        %3616 = vset.pattern.permute.xlu0 1
        %3617 = vperm.xlu0 %3616, %v3383
        %v3618 = vpop.permute.xlu0 %3617
        %3620 = vset.pattern.permute.xlu0 1
        %3621 = vperm.xlu0 %3620, %v3384
        %v3622 = vpop.permute.xlu0 %3621
        %3624 = vset.pattern.permute.xlu0 1
        %3625 = vperm.xlu0 %3624, %v3385
        %v3626 = vpop.permute.xlu0 %3625
        %3628 = vset.pattern.permute.xlu0 1
        %3629 = vperm.xlu0 %3628, %v3386
        %v3630 = vpop.permute.xlu0 %3629
        %3632 = vset.pattern.permute.xlu0 1
        %3633 = vperm.xlu0 %3632, %v3387
        %v3634 = vpop.permute.xlu0 %3633
        %3636 = vset.pattern.permute.xlu0 1
        %3637 = vperm.xlu0 %3636, %v3388
        %v3638 = vpop.permute.xlu0 %3637
        %3640 = vset.pattern.permute.xlu0 1
        %3641 = vperm.xlu0 %3640, %v3389
        %v3642 = vpop.permute.xlu0 %3641
        %3644 = vset.pattern.permute.xlu0 1
        %3645 = vperm.xlu0 %3644, %v3390
        %v3646 = vpop.permute.xlu0 %3645
        %3648 = vset.pattern.permute.xlu0 1
        %3649 = vperm.xlu0 %3648, %v3391
        %v3650 = vpop.permute.xlu0 %3649
        %3652 = vset.pattern.permute.xlu0 1
        %3653 = vperm.xlu0 %3652, %v3392
        %v3654 = vpop.permute.xlu0 %3653
        %3656 = vset.pattern.permute.xlu0 1
        %3657 = vperm.xlu0 %3656, %v3393
        %v3658 = vpop.permute.xlu0 %3657
        %3660 = vset.pattern.permute.xlu0 1
        %3661 = vperm.xlu0 %3660, %v3394
        %v3662 = vpop.permute.xlu0 %3661
        %3664 = vset.pattern.permute.xlu0 1
        %3665 = vperm.xlu0 %3664, %v3395
        %v3666 = vpop.permute.xlu0 %3665
        %3668 = vset.pattern.permute.xlu0 1
        %3669 = vperm.xlu0 %3668, %v3396
        %v3670 = vpop.permute.xlu0 %3669
        %3672 = vset.pattern.permute.xlu0 1
        %3673 = vperm.xlu0 %3672, %v3397
        %v3674 = vpop.permute.xlu0 %3673
        %3676 = vset.pattern.permute.xlu0 1
        %3677 = vperm.xlu0 %3676, %v3398
        %v3678 = vpop.permute.xlu0 %3677
        %3680 = vset.pattern.permute.xlu0 1
        %3681 = vperm.xlu0 %3680, %v3399
        %v3682 = vpop.permute.xlu0 %3681
        %3684 = vset.pattern.permute.xlu0 1
        %3685 = vperm.xlu0 %3684, %v3400
        %v3686 = vpop.permute.xlu0 %3685
        %3688 = vset.pattern.permute.xlu0 1
        %3689 = vperm.xlu0 %3688, %v3401
        %v3690 = vpop.permute.xlu0 %3689
        %3692 = vset.pattern.permute.xlu0 1
        %3693 = vperm.xlu0 %3692, %v3402
        %v3694 = vpop.permute.xlu0 %3693
        %3696 = vset.pattern.permute.xlu0 1
        %3697 = vperm.xlu0 %3696, %v3403
        %v3698 = vpop.permute.xlu0 %3697
        %3700 = vset.pattern.permute.xlu0 1
        %3701 = vperm.xlu0 %3700, %v3404
        %v3702 = vpop.permute.xlu0 %3701
        %3704 = vset.pattern.permute.xlu0 1
        %3705 = vperm.xlu0 %3704, %v3405
        %v3706 = vpop.permute.xlu0 %3705
        %3708 = vset.pattern.permute.xlu0 1
        %3709 = vperm.xlu0 %3708, %v3406
        %v3710 = vpop.permute.xlu0 %3709
        %3712 = vset.pattern.permute.xlu0 1
        %3713 = vperm.xlu0 %3712, %v3407
        %v3714 = vpop.permute.xlu0 %3713
        %3716 = vset.pattern.permute.xlu0 1
        %3717 = vperm.xlu0 %3716, %v3408
        %v3718 = vpop.permute.xlu0 %3717
        %3720 = vset.pattern.permute.xlu0 1
        %3721 = vperm.xlu0 %3720, %v3409
        %v3722 = vpop.permute.xlu0 %3721
        %3724 = vset.pattern.permute.xlu0 1
        %3725 = vperm.xlu0 %3724, %v3410
        %v3726 = vpop.permute.xlu0 %3725
        %3728 = vset.pattern.permute.xlu0 1
        %3729 = vperm.xlu0 %3728, %v3411
        %v3730 = vpop.permute.xlu0 %3729
        %3732 = vset.pattern.permute.xlu0 1
        %3733 = vperm.xlu0 %3732, %v3412
        %v3734 = vpop.permute.xlu0 %3733
        %3736 = vset.pattern.permute.xlu0 1
        %3737 = vperm.xlu0 %3736, %v3413
        %v3738 = vpop.permute.xlu0 %3737
        %v3740 = vlaneseq
        %v3741 = vshrl.u32 %v3740, 7
        %v3742 = vsub.s32 0, %v3741
        %v3743 = vrot.slane %v3611, %v3742
        %v3744 = vmul.f32 %v3614, %v3743
        %v3745 = vmul.f32 %v3618, %v3743
        %v3746 = vmul.f32 %v3622, %v3743
        %v3747 = vmul.f32 %v3626, %v3743
        %v3748 = vmul.f32 %v3630, %v3743
        %v3749 = vmul.f32 %v3634, %v3743
        %v3750 = vmul.f32 %v3638, %v3743
        %v3751 = vmul.f32 %v3642, %v3743
        %v3752 = vmul.f32 %v3646, %v3743
        %v3753 = vmul.f32 %v3650, %v3743
        %v3754 = vmul.f32 %v3654, %v3743
        %v3755 = vmul.f32 %v3658, %v3743
        %v3756 = vmul.f32 %v3662, %v3743
        %v3757 = vmul.f32 %v3666, %v3743
        %v3758 = vmul.f32 %v3670, %v3743
        %v3759 = vmul.f32 %v3674, %v3743
        %v3760 = vmul.f32 %v3678, %v3743
        %v3761 = vmul.f32 %v3682, %v3743
        %v3762 = vmul.f32 %v3686, %v3743
        %v3763 = vmul.f32 %v3690, %v3743
        %v3764 = vmul.f32 %v3694, %v3743
        %v3765 = vmul.f32 %v3698, %v3743
        %v3766 = vmul.f32 %v3702, %v3743
        %v3767 = vmul.f32 %v3706, %v3743
        %v3768 = vmul.f32 %v3710, %v3743
        %v3769 = vmul.f32 %v3714, %v3743
        %v3770 = vmul.f32 %v3718, %v3743
        %v3771 = vmul.f32 %v3722, %v3743
        %v3772 = vmul.f32 %v3726, %v3743
        %v3773 = vmul.f32 %v3730, %v3743
        %v3774 = vmul.f32 %v3734, %v3743
        %v3775 = vmul.f32 %v3738, %v3743
        %v3776 = vadd.f32 %v3579, %v3744
        %v3777 = vadd.f32 %v3580, %v3745
        %v3778 = vadd.f32 %v3581, %v3746
        %v3779 = vadd.f32 %v3582, %v3747
        %v3780 = vadd.f32 %v3583, %v3748
        %v3781 = vadd.f32 %v3584, %v3749
        %v3782 = vadd.f32 %v3585, %v3750
        %v3783 = vadd.f32 %v3586, %v3751
        %v3784 = vadd.f32 %v3587, %v3752
        %v3785 = vadd.f32 %v3588, %v3753
        %v3786 = vadd.f32 %v3589, %v3754
        %v3787 = vadd.f32 %v3590, %v3755
        %v3788 = vadd.f32 %v3591, %v3756
        %v3789 = vadd.f32 %v3592, %v3757
        %v3790 = vadd.f32 %v3593, %v3758
        %v3791 = vadd.f32 %v3594, %v3759
        %v3792 = vadd.f32 %v3595, %v3760
        %v3793 = vadd.f32 %v3596, %v3761
        %v3794 = vadd.f32 %v3597, %v3762
        %v3795 = vadd.f32 %v3598, %v3763
        %v3796 = vadd.f32 %v3599, %v3764
        %v3797 = vadd.f32 %v3600, %v3765
        %v3798 = vadd.f32 %v3601, %v3766
        %v3799 = vadd.f32 %v3602, %v3767
        %v3800 = vadd.f32 %v3603, %v3768
        %v3801 = vadd.f32 %v3604, %v3769
        %v3802 = vadd.f32 %v3605, %v3770
        %v3803 = vadd.f32 %v3606, %v3771
        %v3804 = vadd.f32 %v3607, %v3772
        %v3805 = vadd.f32 %v3608, %v3773
        %v3806 = vadd.f32 %v3609, %v3774
        %v3807 = vadd.f32 %v3610, %v3775
        %v3808 = vld [vmem:[%s1 + $0x2] sm:$0x1]
        %3809 = vset.pattern.permute.xlu0 2
        %3810 = vperm.xlu0 %3809, %v3382
        %v3811 = vpop.permute.xlu0 %3810
        %3813 = vset.pattern.permute.xlu0 2
        %3814 = vperm.xlu0 %3813, %v3383
        %v3815 = vpop.permute.xlu0 %3814
        %3817 = vset.pattern.permute.xlu0 2
        %3818 = vperm.xlu0 %3817, %v3384
        %v3819 = vpop.permute.xlu0 %3818
        %3821 = vset.pattern.permute.xlu0 2
        %3822 = vperm.xlu0 %3821, %v3385
        %v3823 = vpop.permute.xlu0 %3822
        %3825 = vset.pattern.permute.xlu0 2
        %3826 = vperm.xlu0 %3825, %v3386
        %v3827 = vpop.permute.xlu0 %3826
        %3829 = vset.pattern.permute.xlu0 2
        %3830 = vperm.xlu0 %3829, %v3387
        %v3831 = vpop.permute.xlu0 %3830
        %3833 = vset.pattern.permute.xlu0 2
        %3834 = vperm.xlu0 %3833, %v3388
        %v3835 = vpop.permute.xlu0 %3834
        %3837 = vset.pattern.permute.xlu0 2
        %3838 = vperm.xlu0 %3837, %v3389
        %v3839 = vpop.permute.xlu0 %3838
        %3841 = vset.pattern.permute.xlu0 2
        %3842 = vperm.xlu0 %3841, %v3390
        %v3843 = vpop.permute.xlu0 %3842
        %3845 = vset.pattern.permute.xlu0 2
        %3846 = vperm.xlu0 %3845, %v3391
        %v3847 = vpop.permute.xlu0 %3846
        %3849 = vset.pattern.permute.xlu0 2
        %3850 = vperm.xlu0 %3849, %v3392
        %v3851 = vpop.permute.xlu0 %3850
        %3853 = vset.pattern.permute.xlu0 2
        %3854 = vperm.xlu0 %3853, %v3393
        %v3855 = vpop.permute.xlu0 %3854
        %3857 = vset.pattern.permute.xlu0 2
        %3858 = vperm.xlu0 %3857, %v3394
        %v3859 = vpop.permute.xlu0 %3858
        %3861 = vset.pattern.permute.xlu0 2
        %3862 = vperm.xlu0 %3861, %v3395
        %v3863 = vpop.permute.xlu0 %3862
        %3865 = vset.pattern.permute.xlu0 2
        %3866 = vperm.xlu0 %3865, %v3396
        %v3867 = vpop.permute.xlu0 %3866
        %3869 = vset.pattern.permute.xlu0 2
        %3870 = vperm.xlu0 %3869, %v3397
        %v3871 = vpop.permute.xlu0 %3870
        %3873 = vset.pattern.permute.xlu0 2
        %3874 = vperm.xlu0 %3873, %v3398
        %v3875 = vpop.permute.xlu0 %3874
        %3877 = vset.pattern.permute.xlu0 2
        %3878 = vperm.xlu0 %3877, %v3399
        %v3879 = vpop.permute.xlu0 %3878
        %3881 = vset.pattern.permute.xlu0 2
        %3882 = vperm.xlu0 %3881, %v3400
        %v3883 = vpop.permute.xlu0 %3882
        %3885 = vset.pattern.permute.xlu0 2
        %3886 = vperm.xlu0 %3885, %v3401
        %v3887 = vpop.permute.xlu0 %3886
        %3889 = vset.pattern.permute.xlu0 2
        %3890 = vperm.xlu0 %3889, %v3402
        %v3891 = vpop.permute.xlu0 %3890
        %3893 = vset.pattern.permute.xlu0 2
        %3894 = vperm.xlu0 %3893, %v3403
        %v3895 = vpop.permute.xlu0 %3894
        %3897 = vset.pattern.permute.xlu0 2
        %3898 = vperm.xlu0 %3897, %v3404
        %v3899 = vpop.permute.xlu0 %3898
        %3901 = vset.pattern.permute.xlu0 2
        %3902 = vperm.xlu0 %3901, %v3405
        %v3903 = vpop.permute.xlu0 %3902
        %3905 = vset.pattern.permute.xlu0 2
        %3906 = vperm.xlu0 %3905, %v3406
        %v3907 = vpop.permute.xlu0 %3906
        %3909 = vset.pattern.permute.xlu0 2
        %3910 = vperm.xlu0 %3909, %v3407
        %v3911 = vpop.permute.xlu0 %3910
        %3913 = vset.pattern.permute.xlu0 2
        %3914 = vperm.xlu0 %3913, %v3408
        %v3915 = vpop.permute.xlu0 %3914
        %3917 = vset.pattern.permute.xlu0 2
        %3918 = vperm.xlu0 %3917, %v3409
        %v3919 = vpop.permute.xlu0 %3918
        %3921 = vset.pattern.permute.xlu0 2
        %3922 = vperm.xlu0 %3921, %v3410
        %v3923 = vpop.permute.xlu0 %3922
        %3925 = vset.pattern.permute.xlu0 2
        %3926 = vperm.xlu0 %3925, %v3411
        %v3927 = vpop.permute.xlu0 %3926
        %3929 = vset.pattern.permute.xlu0 2
        %3930 = vperm.xlu0 %3929, %v3412
        %v3931 = vpop.permute.xlu0 %3930
        %3933 = vset.pattern.permute.xlu0 2
        %3934 = vperm.xlu0 %3933, %v3413
        %v3935 = vpop.permute.xlu0 %3934
        %v3937 = vlaneseq
        %v3938 = vshrl.u32 %v3937, 7
        %v3939 = vsub.s32 0, %v3938
        %v3940 = vrot.slane %v3808, %v3939
        %v3941 = vmul.f32 %v3811, %v3940
        %v3942 = vmul.f32 %v3815, %v3940
        %v3943 = vmul.f32 %v3819, %v3940
        %v3944 = vmul.f32 %v3823, %v3940
        %v3945 = vmul.f32 %v3827, %v3940
        %v3946 = vmul.f32 %v3831, %v3940
        %v3947 = vmul.f32 %v3835, %v3940
        %v3948 = vmul.f32 %v3839, %v3940
        %v3949 = vmul.f32 %v3843, %v3940
        %v3950 = vmul.f32 %v3847, %v3940
        %v3951 = vmul.f32 %v3851, %v3940
        %v3952 = vmul.f32 %v3855, %v3940
        %v3953 = vmul.f32 %v3859, %v3940
        %v3954 = vmul.f32 %v3863, %v3940
        %v3955 = vmul.f32 %v3867, %v3940
        %v3956 = vmul.f32 %v3871, %v3940
        %v3957 = vmul.f32 %v3875, %v3940
        %v3958 = vmul.f32 %v3879, %v3940
        %v3959 = vmul.f32 %v3883, %v3940
        %v3960 = vmul.f32 %v3887, %v3940
        %v3961 = vmul.f32 %v3891, %v3940
        %v3962 = vmul.f32 %v3895, %v3940
        %v3963 = vmul.f32 %v3899, %v3940
        %v3964 = vmul.f32 %v3903, %v3940
        %v3965 = vmul.f32 %v3907, %v3940
        %v3966 = vmul.f32 %v3911, %v3940
        %v3967 = vmul.f32 %v3915, %v3940
        %v3968 = vmul.f32 %v3919, %v3940
        %v3969 = vmul.f32 %v3923, %v3940
        %v3970 = vmul.f32 %v3927, %v3940
        %v3971 = vmul.f32 %v3931, %v3940
        %v3972 = vmul.f32 %v3935, %v3940
        %v3973 = vadd.f32 %v3776, %v3941
        %v3974 = vadd.f32 %v3777, %v3942
        %v3975 = vadd.f32 %v3778, %v3943
        %v3976 = vadd.f32 %v3779, %v3944
        %v3977 = vadd.f32 %v3780, %v3945
        %v3978 = vadd.f32 %v3781, %v3946
        %v3979 = vadd.f32 %v3782, %v3947
        %v3980 = vadd.f32 %v3783, %v3948
        %v3981 = vadd.f32 %v3784, %v3949
        %v3982 = vadd.f32 %v3785, %v3950
        %v3983 = vadd.f32 %v3786, %v3951
        %v3984 = vadd.f32 %v3787, %v3952
        %v3985 = vadd.f32 %v3788, %v3953
        %v3986 = vadd.f32 %v3789, %v3954
        %v3987 = vadd.f32 %v3790, %v3955
        %v3988 = vadd.f32 %v3791, %v3956
        %v3989 = vadd.f32 %v3792, %v3957
        %v3990 = vadd.f32 %v3793, %v3958
        %v3991 = vadd.f32 %v3794, %v3959
        %v3992 = vadd.f32 %v3795, %v3960
        %v3993 = vadd.f32 %v3796, %v3961
        %v3994 = vadd.f32 %v3797, %v3962
        %v3995 = vadd.f32 %v3798, %v3963
        %v3996 = vadd.f32 %v3799, %v3964
        %v3997 = vadd.f32 %v3800, %v3965
        %v3998 = vadd.f32 %v3801, %v3966
        %v3999 = vadd.f32 %v3802, %v3967
        %v4000 = vadd.f32 %v3803, %v3968
        %v4001 = vadd.f32 %v3804, %v3969
        %v4002 = vadd.f32 %v3805, %v3970
        %v4003 = vadd.f32 %v3806, %v3971
        %v4004 = vadd.f32 %v3807, %v3972
        %v4005 = vld [vmem:[%s2] sm:$0x1]
        %v4007 = vlaneseq
        %v4008 = vshrl.u32 %v4007, 7
        %v4009 = vsub.s32 0, %v4008
        %v4010 = vrot.slane %v4005, %v4009
        %v4012 = vadd.f32 %v3973, %v4010
        %v4013 = vadd.f32 %v3974, %v4010
        %v4014 = vadd.f32 %v3975, %v4010
        %v4015 = vadd.f32 %v3976, %v4010
        %v4016 = vadd.f32 %v3977, %v4010
        %v4017 = vadd.f32 %v3978, %v4010
        %v4018 = vadd.f32 %v3979, %v4010
        %v4019 = vadd.f32 %v3980, %v4010
        %v4020 = vadd.f32 %v3981, %v4010
        %v4021 = vadd.f32 %v3982, %v4010
        %v4022 = vadd.f32 %v3983, %v4010
        %v4023 = vadd.f32 %v3984, %v4010
        %v4024 = vadd.f32 %v3985, %v4010
        %v4025 = vadd.f32 %v3986, %v4010
        %v4026 = vadd.f32 %v3987, %v4010
        %v4027 = vadd.f32 %v3988, %v4010
        %v4028 = vadd.f32 %v3989, %v4010
        %v4029 = vadd.f32 %v3990, %v4010
        %v4030 = vadd.f32 %v3991, %v4010
        %v4031 = vadd.f32 %v3992, %v4010
        %v4032 = vadd.f32 %v3993, %v4010
        %v4033 = vadd.f32 %v3994, %v4010
        %v4034 = vadd.f32 %v3995, %v4010
        %v4035 = vadd.f32 %v3996, %v4010
        %v4036 = vadd.f32 %v3997, %v4010
        %v4037 = vadd.f32 %v3998, %v4010
        %v4038 = vadd.f32 %v3999, %v4010
        %v4039 = vadd.f32 %v4000, %v4010
        %v4040 = vadd.f32 %v4001, %v4010
        %v4041 = vadd.f32 %v4002, %v4010
        %v4042 = vadd.f32 %v4003, %v4010
        %v4043 = vadd.f32 %v4004, %v4010
        %v4044 = vmax.f32 %v4012, 0.0
        %v4045 = vmax.f32 %v4013, 0.0
        %v4046 = vmax.f32 %v4014, 0.0
        %v4047 = vmax.f32 %v4015, 0.0
        %v4048 = vmax.f32 %v4016, 0.0
        %v4049 = vmax.f32 %v4017, 0.0
        %v4050 = vmax.f32 %v4018, 0.0
        %v4051 = vmax.f32 %v4019, 0.0
        %v4052 = vmax.f32 %v4020, 0.0
        %v4053 = vmax.f32 %v4021, 0.0
        %v4054 = vmax.f32 %v4022, 0.0
        %v4055 = vmax.f32 %v4023, 0.0
        %v4056 = vmax.f32 %v4024, 0.0
        %v4057 = vmax.f32 %v4025, 0.0
        %v4058 = vmax.f32 %v4026, 0.0
        %v4059 = vmax.f32 %v4027, 0.0
        %v4060 = vmax.f32 %v4028, 0.0
        %v4061 = vmax.f32 %v4029, 0.0
        %v4062 = vmax.f32 %v4030, 0.0
        %v4063 = vmax.f32 %v4031, 0.0
        %v4064 = vmax.f32 %v4032, 0.0
        %v4065 = vmax.f32 %v4033, 0.0
        %v4066 = vmax.f32 %v4034, 0.0
        %v4067 = vmax.f32 %v4035, 0.0
        %v4068 = vmax.f32 %v4036, 0.0
        %v4069 = vmax.f32 %v4037, 0.0
        %v4070 = vmax.f32 %v4038, 0.0
        %v4071 = vmax.f32 %v4039, 0.0
        %v4072 = vmax.f32 %v4040, 0.0
        %v4073 = vmax.f32 %v4041, 0.0
        %v4074 = vmax.f32 %v4042, 0.0
        %v4075 = vmax.f32 %v4043, 0.0
        %v4076 = vpack.c.bf16 %v4045, %v4044
        %v4077 = vpack.c.bf16 %v4047, %v4046
        %v4078 = vpack.c.bf16 %v4049, %v4048
        %v4079 = vpack.c.bf16 %v4051, %v4050
        %v4080 = vpack.c.bf16 %v4053, %v4052
        %v4081 = vpack.c.bf16 %v4055, %v4054
        %v4082 = vpack.c.bf16 %v4057, %v4056
        %v4083 = vpack.c.bf16 %v4059, %v4058
        %v4084 = vpack.c.bf16 %v4061, %v4060
        %v4085 = vpack.c.bf16 %v4063, %v4062
        %v4086 = vpack.c.bf16 %v4065, %v4064
        %v4087 = vpack.c.bf16 %v4067, %v4066
        %v4088 = vpack.c.bf16 %v4069, %v4068
        %v4089 = vpack.c.bf16 %v4071, %v4070
        %v4090 = vpack.c.bf16 %v4073, %v4072
        %v4091 = vpack.c.bf16 %v4075, %v4074
        %v4108 = vunpack.c.l.b16 %v4076
        %v4109 = vunpack.c.h.b16 %v4076
        %v4110 = vunpack.c.l.b16 %v4077
        %v4111 = vunpack.c.h.b16 %v4077
        %v4112 = vunpack.c.l.b16 %v4078
        %v4113 = vunpack.c.h.b16 %v4078
        %v4114 = vunpack.c.l.b16 %v4079
        %v4115 = vunpack.c.h.b16 %v4079
        %v4116 = vunpack.c.l.b16 %v4080
        %v4117 = vunpack.c.h.b16 %v4080
        %v4118 = vunpack.c.l.b16 %v4081
        %v4119 = vunpack.c.h.b16 %v4081
        %v4120 = vunpack.c.l.b16 %v4082
        %v4121 = vunpack.c.h.b16 %v4082
        %v4122 = vunpack.c.l.b16 %v4083
        %v4123 = vunpack.c.h.b16 %v4083
        %v4124 = vunpack.c.l.b16 %v4084
        %v4125 = vunpack.c.h.b16 %v4084
        %v4126 = vunpack.c.l.b16 %v4085
        %v4127 = vunpack.c.h.b16 %v4085
        %v4128 = vunpack.c.l.b16 %v4086
        %v4129 = vunpack.c.h.b16 %v4086
        %v4130 = vunpack.c.l.b16 %v4087
        %v4131 = vunpack.c.h.b16 %v4087
        %v4132 = vunpack.c.l.b16 %v4088
        %v4133 = vunpack.c.h.b16 %v4088
        %v4134 = vunpack.c.l.b16 %v4089
        %v4135 = vunpack.c.h.b16 %v4089
        %v4136 = vunpack.c.l.b16 %v4090
        %v4137 = vunpack.c.h.b16 %v4090
        %v4138 = vunpack.c.l.b16 %v4091
        %v4139 = vunpack.c.h.b16 %v4091
        %v4140 = vpack.c.b16 %v4108, %v4108
        %v4141 = vpack.c.b16 %v4109, %v4109
        %v4142 = vpack.c.b16 %v4110, %v4110
        %v4143 = vpack.c.b16 %v4111, %v4111
        %v4144 = vpack.c.b16 %v4112, %v4112
        %v4145 = vpack.c.b16 %v4113, %v4113
        %v4146 = vpack.c.b16 %v4114, %v4114
        %v4147 = vpack.c.b16 %v4115, %v4115
        %v4148 = vpack.c.b16 %v4116, %v4116
        %v4149 = vpack.c.b16 %v4117, %v4117
        %v4150 = vpack.c.b16 %v4118, %v4118
        %v4151 = vpack.c.b16 %v4119, %v4119
        %v4152 = vpack.c.b16 %v4120, %v4120
        %v4153 = vpack.c.b16 %v4121, %v4121
        %v4154 = vpack.c.b16 %v4122, %v4122
        %v4155 = vpack.c.b16 %v4123, %v4123
        %v4156 = vpack.c.b16 %v4124, %v4124
        %v4157 = vpack.c.b16 %v4125, %v4125
        %v4158 = vpack.c.b16 %v4126, %v4126
        %v4159 = vpack.c.b16 %v4127, %v4127
        %v4160 = vpack.c.b16 %v4128, %v4128
        %v4161 = vpack.c.b16 %v4129, %v4129
        %v4162 = vpack.c.b16 %v4130, %v4130
        %v4163 = vpack.c.b16 %v4131, %v4131
        %v4164 = vpack.c.b16 %v4132, %v4132
        %v4165 = vpack.c.b16 %v4133, %v4133
        %v4166 = vpack.c.b16 %v4134, %v4134
        %v4167 = vpack.c.b16 %v4135, %v4135
        %v4168 = vpack.c.b16 %v4136, %v4136
        %v4169 = vpack.c.b16 %v4137, %v4137
        %v4170 = vpack.c.b16 %v4138, %v4138
        %v4171 = vpack.c.b16 %v4139, %v4139
        %4204 = vst.msk [vmem:[%s465 + $0x80] sm:$0xf] %vm1325, %v4140
        %4205 = vst.msk [vmem:[%s465 + $0x84] sm:$0xf] %vm1325, %v4141
        %4206 = vst.msk [vmem:[%s465 + $0x88] sm:$0xf] %vm1325, %v4142
        %4207 = vst.msk [vmem:[%s465 + $0x8c] sm:$0xf] %vm1325, %v4143
        %4208 = vst.msk [vmem:[%s465 + $0x90] sm:$0xf] %vm1325, %v4144
        %4209 = vst.msk [vmem:[%s465 + $0x94] sm:$0xf] %vm1325, %v4145
        %4210 = vst.msk [vmem:[%s465 + $0x98] sm:$0xf] %vm1325, %v4146
        %4211 = vst.msk [vmem:[%s465 + $0x9c] sm:$0xf] %vm1325, %v4147
        %4212 = vst.msk [vmem:[%s465 + $0xa0] sm:$0xf] %vm1325, %v4148
        %4213 = vst.msk [vmem:[%s465 + $0xa4] sm:$0xf] %vm1325, %v4149
        %4214 = vst.msk [vmem:[%s465 + $0xa8] sm:$0xf] %vm1325, %v4150
        %4215 = vst.msk [vmem:[%s465 + $0xac] sm:$0xf] %vm1325, %v4151
        %4216 = vst.msk [vmem:[%s465 + $0xb0] sm:$0xf] %vm1325, %v4152
        %4217 = vst.msk [vmem:[%s465 + $0xb4] sm:$0xf] %vm1325, %v4153
        %4218 = vst.msk [vmem:[%s465 + $0xb8] sm:$0xf] %vm1325, %v4154
        %4219 = vst.msk [vmem:[%s465 + $0xbc] sm:$0xf] %vm1325, %v4155
        %4220 = vst.msk [vmem:[%s465 + $0xc0] sm:$0xf] %vm1325, %v4156
        %4221 = vst.msk [vmem:[%s465 + $0xc4] sm:$0xf] %vm1325, %v4157
        %4222 = vst.msk [vmem:[%s465 + $0xc8] sm:$0xf] %vm1325, %v4158
        %4223 = vst.msk [vmem:[%s465 + $0xcc] sm:$0xf] %vm1325, %v4159
        %4224 = vst.msk [vmem:[%s465 + $0xd0] sm:$0xf] %vm1325, %v4160
        %4225 = vst.msk [vmem:[%s465 + $0xd4] sm:$0xf] %vm1325, %v4161
        %4226 = vst.msk [vmem:[%s465 + $0xd8] sm:$0xf] %vm1325, %v4162
        %4227 = vst.msk [vmem:[%s465 + $0xdc] sm:$0xf] %vm1325, %v4163
        %4228 = vst.msk [vmem:[%s465 + $0xe0] sm:$0xf] %vm1325, %v4164
        %4229 = vst.msk [vmem:[%s465 + $0xe4] sm:$0xf] %vm1325, %v4165
        %4230 = vst.msk [vmem:[%s465 + $0xe8] sm:$0xf] %vm1325, %v4166
        %4231 = vst.msk [vmem:[%s465 + $0xec] sm:$0xf] %vm1325, %v4167
        %4232 = vst.msk [vmem:[%s465 + $0xf0] sm:$0xf] %vm1325, %v4168
        %4233 = vst.msk [vmem:[%s465 + $0xf4] sm:$0xf] %vm1325, %v4169
        %4234 = vst.msk [vmem:[%s465 + $0xf8] sm:$0xf] %vm1325, %v4170
        %4235 = vst.msk [vmem:[%s465 + $0xfc] sm:$0xf] %vm1325, %v4171
        %v4236 = vld [vmem:[%s3] sm:$0xf]
        %v4237 = vld [vmem:[%s3 + $0x4] sm:$0xf]
        %v4238 = vld [vmem:[%s3 + $0x8] sm:$0xf]
        %v4239 = vld [vmem:[%s3 + $0xc] sm:$0xf]
        %v4240 = vld [vmem:[%s3 + $0x10] sm:$0xf]
        %v4241 = vld [vmem:[%s3 + $0x14] sm:$0xf]
        %v4242 = vld [vmem:[%s3 + $0x18] sm:$0xf]
        %v4243 = vld [vmem:[%s3 + $0x1c] sm:$0xf]
        %v4244 = vld [vmem:[%s4] sm:$0x1]
        %v4246 = vlaneseq
        %v4247 = vshrl.u32 %v4246, 7
        %v4248 = vsub.s32 0, %v4247
        %v4249 = vrot.slane %v4244, %v4248
        %v4259 = vunpack.c.l.b16 %v4236
        %v4260 = vunpack.c.l.b16 %v4237
        %v4261 = vunpack.c.l.b16 %v4238
        %v4262 = vunpack.c.l.b16 %v4239
        %v4263 = vunpack.c.l.b16 %v4240
        %v4264 = vunpack.c.l.b16 %v4241
        %v4265 = vunpack.c.l.b16 %v4242
        %v4266 = vunpack.c.l.b16 %v4243
        %v4267 = vpack.c.b16 %v4260, %v4259
        %v4268 = vpack.c.b16 %v4262, %v4261
        %v4269 = vpack.c.b16 %v4264, %v4263
        %v4270 = vpack.c.b16 %v4266, %v4265
        %v4276 = vsel %vm1397, %v4076, 0
        %v4279 = vsel %vm1397, %v4077, 0
        %v4282 = vsel %vm1397, %v4078, 0
        %v4285 = vsel %vm1397, %v4079, 0
        %v4288 = vsel %vm1397, %v4080, 0
        %v4291 = vsel %vm1397, %v4081, 0
        %v4294 = vsel %vm1397, %v4082, 0
        %v4297 = vsel %vm1397, %v4083, 0
        %v4300 = vsel %vm1397, %v4084, 0
        %v4303 = vsel %vm1397, %v4085, 0
        %v4306 = vsel %vm1397, %v4086, 0
        %v4309 = vsel %vm1397, %v4087, 0
        %v4312 = vsel %vm1397, %v4088, 0
        %v4315 = vsel %vm1397, %v4089, 0
        %v4318 = vsel %vm1397, %v4090, 0
        %v4321 = vsel %vm1397, %v4091, 0
        %4323 = vmatprep.subr.bf16.mxu0 0
        %4324 = vmatpush1.bf16.msra.mxu0 %v4267
        %4325 = vmatprep.subr.bf16.mxu0 0
        %4326 = vmatpush1.bf16.msra.mxu0 %v4268
        %4327 = vmatprep.subr.bf16.mxu0 0
        %4328 = vmatpush1.bf16.msra.mxu0 %v4269
        %4329 = vmatprep.subr.bf16.mxu0 0
        %4330 = vmatpush1.bf16.msra.mxu0 %v4270
        %4331 = vmatprep.subr.bf16.mxu0 0
        %4332 = vmatpush1.bf16.msra.mxu0 0
        %4333 = vmatprep.subr.bf16.mxu0 0
        %4334 = vmatpush1.bf16.msra.mxu0 0
        %4335 = vmatprep.subr.bf16.mxu0 0
        %4336 = vmatpush1.bf16.msra.mxu0 0
        %4337 = vmatprep.subr.bf16.mxu0 0
        %4338 = vmatpush1.bf16.msra.mxu0 0
        %4339 = vmatprep.subr.bf16.mxu0 0
        %4340 = vmatpush1.bf16.msra.mxu0 0
        %4341 = vmatprep.subr.bf16.mxu0 0
        %4342 = vmatpush1.bf16.msra.mxu0 0
        %4343 = vmatprep.subr.bf16.mxu0 0
        %4344 = vmatpush1.bf16.msra.mxu0 0
        %4345 = vmatprep.subr.bf16.mxu0 0
        %4346 = vmatpush1.bf16.msra.mxu0 0
        %4347 = vmatprep.subr.bf16.mxu0 0
        %4348 = vmatpush1.bf16.msra.mxu0 0
        %4349 = vmatprep.subr.bf16.mxu0 0
        %4350 = vmatpush1.bf16.msra.mxu0 0
        %4351 = vmatprep.subr.bf16.mxu0 0
        %4352 = vmatpush1.bf16.msra.mxu0 0
        %4353 = vmatprep.subr.bf16.mxu0 0
        %4354 = vmatpush1.bf16.msra.mxu0 0
        %4355 = vmatprep.mubr.bf16.mxu0 0
        %4356 = vmatmul.mubr.bf16.gmra.mrb[0].mxu0 %v4276
        %v4357 = vpop.f32.mrb[0].mxu0
        %v4358 = vadd.f32 %v4249, %v4357
        %v4359 = vpop.f32.mrb[0].mxu0
        %v4360 = vpop.f32.mrb[0].mxu0
        %v4361 = vadd.f32 %v4249, %v4360
        %v4362 = vpop.f32.mrb[0].mxu0
        %4363 = vmatprep.mubr.bf16.mxu0 0
        %4364 = vmatmul.mubr.bf16.gmra.mrb[0].mxu0 %v4279
        %v4365 = vpop.f32.mrb[0].mxu0
        %v4366 = vadd.f32 %v4249, %v4365
        %v4367 = vpop.f32.mrb[0].mxu0
        %v4368 = vpop.f32.mrb[0].mxu0
        %v4369 = vadd.f32 %v4249, %v4368
        %v4370 = vpop.f32.mrb[0].mxu0
        %4371 = vmatprep.mubr.bf16.mxu0 0
        %4372 = vmatmul.mubr.bf16.gmra.mrb[0].mxu0 %v4282
        %v4373 = vpop.f32.mrb[0].mxu0
        %v4374 = vadd.f32 %v4249, %v4373
        %v4375 = vpop.f32.mrb[0].mxu0
        %v4376 = vpop.f32.mrb[0].mxu0
        %v4377 = vadd.f32 %v4249, %v4376
        %v4378 = vpop.f32.mrb[0].mxu0
        %4379 = vmatprep.mubr.bf16.mxu0 0
        %4380 = vmatmul.mubr.bf16.gmra.mrb[0].mxu0 %v4285
        %v4381 = vpop.f32.mrb[0].mxu0
        %v4382 = vadd.f32 %v4249, %v4381
        %v4383 = vpop.f32.mrb[0].mxu0
        %v4384 = vpop.f32.mrb[0].mxu0
        %v4385 = vadd.f32 %v4249, %v4384
        %v4386 = vpop.f32.mrb[0].mxu0
        %4387 = vmatprep.mubr.bf16.mxu0 0
        %4388 = vmatmul.mubr.bf16.gmra.mrb[0].mxu0 %v4288
        %v4389 = vpop.f32.mrb[0].mxu0
        %v4390 = vadd.f32 %v4249, %v4389
        %v4391 = vpop.f32.mrb[0].mxu0
        %v4392 = vpop.f32.mrb[0].mxu0
        %v4393 = vadd.f32 %v4249, %v4392
        %v4394 = vpop.f32.mrb[0].mxu0
        %4395 = vmatprep.mubr.bf16.mxu0 0
        %4396 = vmatmul.mubr.bf16.gmra.mrb[0].mxu0 %v4291
        %v4397 = vpop.f32.mrb[0].mxu0
        %v4398 = vadd.f32 %v4249, %v4397
        %v4399 = vpop.f32.mrb[0].mxu0
        %v4400 = vpop.f32.mrb[0].mxu0
        %v4401 = vadd.f32 %v4249, %v4400
        %v4402 = vpop.f32.mrb[0].mxu0
        %4403 = vmatprep.mubr.bf16.mxu0 0
        %4404 = vmatmul.mubr.bf16.gmra.mrb[0].mxu0 %v4294
        %v4405 = vpop.f32.mrb[0].mxu0
        %v4406 = vadd.f32 %v4249, %v4405
        %v4407 = vpop.f32.mrb[0].mxu0
        %v4408 = vpop.f32.mrb[0].mxu0
        %v4409 = vadd.f32 %v4249, %v4408
        %v4410 = vpop.f32.mrb[0].mxu0
        %4411 = vmatprep.mubr.bf16.mxu0 0
        %4412 = vmatmul.mubr.bf16.gmra.mrb[0].mxu0 %v4297
        %v4413 = vpop.f32.mrb[0].mxu0
        %v4414 = vadd.f32 %v4249, %v4413
        %v4415 = vpop.f32.mrb[0].mxu0
        %v4416 = vpop.f32.mrb[0].mxu0
        %v4417 = vadd.f32 %v4249, %v4416
        %v4418 = vpop.f32.mrb[0].mxu0
        %4419 = vmatprep.mubr.bf16.mxu0 0
        %4420 = vmatmul.mubr.bf16.gmra.mrb[0].mxu0 %v4300
        %v4421 = vpop.f32.mrb[0].mxu0
        %v4422 = vadd.f32 %v4249, %v4421
        %v4423 = vpop.f32.mrb[0].mxu0
        %v4424 = vpop.f32.mrb[0].mxu0
        %v4425 = vadd.f32 %v4249, %v4424
        %v4426 = vpop.f32.mrb[0].mxu0
        %4427 = vmatprep.mubr.bf16.mxu0 0
        %4428 = vmatmul.mubr.bf16.gmra.mrb[0].mxu0 %v4303
        %v4429 = vpop.f32.mrb[0].mxu0
        %v4430 = vadd.f32 %v4249, %v4429
        %v4431 = vpop.f32.mrb[0].mxu0
        %v4432 = vpop.f32.mrb[0].mxu0
        %v4433 = vadd.f32 %v4249, %v4432
        %v4434 = vpop.f32.mrb[0].mxu0
        %4435 = vmatprep.mubr.bf16.mxu0 0
        %4436 = vmatmul.mubr.bf16.gmra.mrb[0].mxu0 %v4306
        %v4437 = vpop.f32.mrb[0].mxu0
        %v4438 = vadd.f32 %v4249, %v4437
        %v4439 = vpop.f32.mrb[0].mxu0
        %v4440 = vpop.f32.mrb[0].mxu0
        %v4441 = vadd.f32 %v4249, %v4440
        %v4442 = vpop.f32.mrb[0].mxu0
        %4443 = vmatprep.mubr.bf16.mxu0 0
        %4444 = vmatmul.mubr.bf16.gmra.mrb[0].mxu0 %v4309
        %v4445 = vpop.f32.mrb[0].mxu0
        %v4446 = vadd.f32 %v4249, %v4445
        %v4447 = vpop.f32.mrb[0].mxu0
        %v4448 = vpop.f32.mrb[0].mxu0
        %v4449 = vadd.f32 %v4249, %v4448
        %v4450 = vpop.f32.mrb[0].mxu0
        %4451 = vmatprep.mubr.bf16.mxu0 0
        %4452 = vmatmul.mubr.bf16.gmra.mrb[0].mxu0 %v4312
        %v4453 = vpop.f32.mrb[0].mxu0
        %v4454 = vadd.f32 %v4249, %v4453
        %v4455 = vpop.f32.mrb[0].mxu0
        %v4456 = vpop.f32.mrb[0].mxu0
        %v4457 = vadd.f32 %v4249, %v4456
        %v4458 = vpop.f32.mrb[0].mxu0
        %4459 = vmatprep.mubr.bf16.mxu0 0
        %4460 = vmatmul.mubr.bf16.gmra.mrb[0].mxu0 %v4315
        %v4461 = vpop.f32.mrb[0].mxu0
        %v4462 = vadd.f32 %v4249, %v4461
        %v4463 = vpop.f32.mrb[0].mxu0
        %v4464 = vpop.f32.mrb[0].mxu0
        %v4465 = vadd.f32 %v4249, %v4464
        %v4466 = vpop.f32.mrb[0].mxu0
        %4467 = vmatprep.mubr.bf16.mxu0 0
        %4468 = vmatmul.mubr.bf16.gmra.mrb[0].mxu0 %v4318
        %v4469 = vpop.f32.mrb[0].mxu0
        %v4470 = vadd.f32 %v4249, %v4469
        %v4471 = vpop.f32.mrb[0].mxu0
        %v4472 = vpop.f32.mrb[0].mxu0
        %v4473 = vadd.f32 %v4249, %v4472
        %v4474 = vpop.f32.mrb[0].mxu0
        %4475 = vmatprep.mubr.bf16.mxu0 0
        %4476 = vmatmul.mubr.bf16.gmra.mrb[0].mxu0 %v4321
        %v4477 = vpop.f32.mrb[0].mxu0
        %v4478 = vadd.f32 %v4249, %v4477
        %v4479 = vpop.f32.mrb[0].mxu0
        %v4480 = vpop.f32.mrb[0].mxu0
        %v4481 = vadd.f32 %v4249, %v4480
        %v4482 = vpop.f32.mrb[0].mxu0
        %4483 = vdwg.mxu0
        %v4484 = vmax.f32 %v4358, 0.0
        %v4485 = vmax.f32 %v4361, 0.0
        %v4486 = vmax.f32 %v4366, 0.0
        %v4487 = vmax.f32 %v4369, 0.0
        %v4488 = vmax.f32 %v4374, 0.0
        %v4489 = vmax.f32 %v4377, 0.0
        %v4490 = vmax.f32 %v4382, 0.0
        %v4491 = vmax.f32 %v4385, 0.0
        %v4492 = vmax.f32 %v4390, 0.0
        %v4493 = vmax.f32 %v4393, 0.0
        %v4494 = vmax.f32 %v4398, 0.0
        %v4495 = vmax.f32 %v4401, 0.0
        %v4496 = vmax.f32 %v4406, 0.0
        %v4497 = vmax.f32 %v4409, 0.0
        %v4498 = vmax.f32 %v4414, 0.0
        %v4499 = vmax.f32 %v4417, 0.0
        %v4500 = vmax.f32 %v4422, 0.0
        %v4501 = vmax.f32 %v4425, 0.0
        %v4502 = vmax.f32 %v4430, 0.0
        %v4503 = vmax.f32 %v4433, 0.0
        %v4504 = vmax.f32 %v4438, 0.0
        %v4505 = vmax.f32 %v4441, 0.0
        %v4506 = vmax.f32 %v4446, 0.0
        %v4507 = vmax.f32 %v4449, 0.0
        %v4508 = vmax.f32 %v4454, 0.0
        %v4509 = vmax.f32 %v4457, 0.0
        %v4510 = vmax.f32 %v4462, 0.0
        %v4511 = vmax.f32 %v4465, 0.0
        %v4512 = vmax.f32 %v4470, 0.0
        %v4513 = vmax.f32 %v4473, 0.0
        %v4514 = vmax.f32 %v4478, 0.0
        %v4515 = vmax.f32 %v4481, 0.0
        %v4516 = vpack.c.bf16 %v4485, %v4484
        %v4517 = vpack.c.bf16 %v4487, %v4486
        %v4518 = vpack.c.bf16 %v4489, %v4488
        %v4519 = vpack.c.bf16 %v4491, %v4490
        %v4520 = vpack.c.bf16 %v4493, %v4492
        %v4521 = vpack.c.bf16 %v4495, %v4494
        %v4522 = vpack.c.bf16 %v4497, %v4496
        %v4523 = vpack.c.bf16 %v4499, %v4498
        %v4524 = vpack.c.bf16 %v4501, %v4500
        %v4525 = vpack.c.bf16 %v4503, %v4502
        %v4526 = vpack.c.bf16 %v4505, %v4504
        %v4527 = vpack.c.bf16 %v4507, %v4506
        %v4528 = vpack.c.bf16 %v4509, %v4508
        %v4529 = vpack.c.bf16 %v4511, %v4510
        %v4530 = vpack.c.bf16 %v4513, %v4512
        %v4531 = vpack.c.bf16 %v4515, %v4514
        %v4548 = vunpack.c.l.b16 %v4516
        %v4549 = vunpack.c.h.b16 %v4516
        %v4550 = vunpack.c.l.b16 %v4517
        %v4551 = vunpack.c.h.b16 %v4517
        %v4552 = vunpack.c.l.b16 %v4518
        %v4553 = vunpack.c.h.b16 %v4518
        %v4554 = vunpack.c.l.b16 %v4519
        %v4555 = vunpack.c.h.b16 %v4519
        %v4556 = vunpack.c.l.b16 %v4520
        %v4557 = vunpack.c.h.b16 %v4520
        %v4558 = vunpack.c.l.b16 %v4521
        %v4559 = vunpack.c.h.b16 %v4521
        %v4560 = vunpack.c.l.b16 %v4522
        %v4561 = vunpack.c.h.b16 %v4522
        %v4562 = vunpack.c.l.b16 %v4523
        %v4563 = vunpack.c.h.b16 %v4523
        %v4564 = vunpack.c.l.b16 %v4524
        %v4565 = vunpack.c.h.b16 %v4524
        %v4566 = vunpack.c.l.b16 %v4525
        %v4567 = vunpack.c.h.b16 %v4525
        %v4568 = vunpack.c.l.b16 %v4526
        %v4569 = vunpack.c.h.b16 %v4526
        %v4570 = vunpack.c.l.b16 %v4527
        %v4571 = vunpack.c.h.b16 %v4527
        %v4572 = vunpack.c.l.b16 %v4528
        %v4573 = vunpack.c.h.b16 %v4528
        %v4574 = vunpack.c.l.b16 %v4529
        %v4575 = vunpack.c.h.b16 %v4529
        %v4576 = vunpack.c.l.b16 %v4530
        %v4577 = vunpack.c.h.b16 %v4530
        %v4578 = vunpack.c.l.b16 %v4531
        %v4579 = vunpack.c.h.b16 %v4531
        %v4580 = vpack.c.b16 %v4548, %v4548
        %v4581 = vpack.c.b16 %v4549, %v4549
        %v4582 = vpack.c.b16 %v4550, %v4550
        %v4583 = vpack.c.b16 %v4551, %v4551
        %v4584 = vpack.c.b16 %v4552, %v4552
        %v4585 = vpack.c.b16 %v4553, %v4553
        %v4586 = vpack.c.b16 %v4554, %v4554
        %v4587 = vpack.c.b16 %v4555, %v4555
        %v4588 = vpack.c.b16 %v4556, %v4556
        %v4589 = vpack.c.b16 %v4557, %v4557
        %v4590 = vpack.c.b16 %v4558, %v4558
        %v4591 = vpack.c.b16 %v4559, %v4559
        %v4592 = vpack.c.b16 %v4560, %v4560
        %v4593 = vpack.c.b16 %v4561, %v4561
        %v4594 = vpack.c.b16 %v4562, %v4562
        %v4595 = vpack.c.b16 %v4563, %v4563
        %v4596 = vpack.c.b16 %v4564, %v4564
        %v4597 = vpack.c.b16 %v4565, %v4565
        %v4598 = vpack.c.b16 %v4566, %v4566
        %v4599 = vpack.c.b16 %v4567, %v4567
        %v4600 = vpack.c.b16 %v4568, %v4568
        %v4601 = vpack.c.b16 %v4569, %v4569
        %v4602 = vpack.c.b16 %v4570, %v4570
        %v4603 = vpack.c.b16 %v4571, %v4571
        %v4604 = vpack.c.b16 %v4572, %v4572
        %v4605 = vpack.c.b16 %v4573, %v4573
        %v4606 = vpack.c.b16 %v4574, %v4574
        %v4607 = vpack.c.b16 %v4575, %v4575
        %v4608 = vpack.c.b16 %v4576, %v4576
        %v4609 = vpack.c.b16 %v4577, %v4577
        %v4610 = vpack.c.b16 %v4578, %v4578
        %v4611 = vpack.c.b16 %v4579, %v4579
        %4644 = vst [vmem:[%s472 + $0x80] sm:$0xf] %v4580
        %4645 = vst [vmem:[%s472 + $0x84] sm:$0xf] %v4581
        %4646 = vst [vmem:[%s472 + $0x88] sm:$0xf] %v4582
        %4647 = vst [vmem:[%s472 + $0x8c] sm:$0xf] %v4583
        %4648 = vst [vmem:[%s472 + $0x90] sm:$0xf] %v4584
        %4649 = vst [vmem:[%s472 + $0x94] sm:$0xf] %v4585
        %4650 = vst [vmem:[%s472 + $0x98] sm:$0xf] %v4586
        %4651 = vst [vmem:[%s472 + $0x9c] sm:$0xf] %v4587
        %4652 = vst [vmem:[%s472 + $0xa0] sm:$0xf] %v4588
        %4653 = vst [vmem:[%s472 + $0xa4] sm:$0xf] %v4589
        %4654 = vst [vmem:[%s472 + $0xa8] sm:$0xf] %v4590
        %4655 = vst [vmem:[%s472 + $0xac] sm:$0xf] %v4591
        %4656 = vst [vmem:[%s472 + $0xb0] sm:$0xf] %v4592
        %4657 = vst [vmem:[%s472 + $0xb4] sm:$0xf] %v4593
        %4658 = vst [vmem:[%s472 + $0xb8] sm:$0xf] %v4594
        %4659 = vst [vmem:[%s472 + $0xbc] sm:$0xf] %v4595
        %4660 = vst [vmem:[%s472 + $0xc0] sm:$0xf] %v4596
        %4661 = vst [vmem:[%s472 + $0xc4] sm:$0xf] %v4597
        %4662 = vst [vmem:[%s472 + $0xc8] sm:$0xf] %v4598
        %4663 = vst [vmem:[%s472 + $0xcc] sm:$0xf] %v4599
        %4664 = vst [vmem:[%s472 + $0xd0] sm:$0xf] %v4600
        %4665 = vst [vmem:[%s472 + $0xd4] sm:$0xf] %v4601
        %4666 = vst [vmem:[%s472 + $0xd8] sm:$0xf] %v4602
        %4667 = vst [vmem:[%s472 + $0xdc] sm:$0xf] %v4603
        %4668 = vst [vmem:[%s472 + $0xe0] sm:$0xf] %v4604
        %4669 = vst [vmem:[%s472 + $0xe4] sm:$0xf] %v4605
        %4670 = vst [vmem:[%s472 + $0xe8] sm:$0xf] %v4606
        %4671 = vst [vmem:[%s472 + $0xec] sm:$0xf] %v4607
        %4672 = vst [vmem:[%s472 + $0xf0] sm:$0xf] %v4608
        %4673 = vst [vmem:[%s472 + $0xf4] sm:$0xf] %v4609
        %4674 = vst [vmem:[%s472 + $0xf8] sm:$0xf] %v4610
        %4675 = vst [vmem:[%s472 + $0xfc] sm:$0xf] %v4611
        %v4676 = vld [vmem:[%s5] sm:$0xff]
        %v4677 = vld [vmem:[%s5 + $0x8] sm:$0xff]
        %v4678 = vld [vmem:[%s5 + $0x10] sm:$0xff]
        %v4679 = vld [vmem:[%s5 + $0x18] sm:$0xff]
        %v4680 = vld [vmem:[%s5 + $0x20] sm:$0xff]
        %v4681 = vld [vmem:[%s5 + $0x28] sm:$0xff]
        %v4682 = vld [vmem:[%s5 + $0x30] sm:$0xff]
        %v4683 = vld [vmem:[%s5 + $0x38] sm:$0xff]
        %v4684 = vld [vmem:[%s5 + $0x40] sm:$0xff]
        %v4685 = vld [vmem:[%s5 + $0x48] sm:$0xff]
        %v4686 = vld [vmem:[%s5 + $0x50] sm:$0xff]
        %v4687 = vld [vmem:[%s5 + $0x58] sm:$0xff]
        %v4688 = vld [vmem:[%s5 + $0x60] sm:$0xff]
        %v4689 = vld [vmem:[%s5 + $0x68] sm:$0xff]
        %v4690 = vld [vmem:[%s5 + $0x70] sm:$0xff]
        %v4691 = vld [vmem:[%s5 + $0x78] sm:$0xff]
        %v4692 = vld [vmem:[%s6] sm:$0x3]
        %v4694 = vlaneseq
        %v4695 = vshrl.u32 %v4694, 7
        %v4696 = vsub.s32 0, %v4695
        %v4697 = vrot.slane %v4692, %v4696
        %v4698 = vlaneseq
        %v4699 = vshrl.u32 %v4698, 7
        %v4700 = vsub.s32 1, %v4699
        %v4701 = vrot.slane %v4692, %v4700
        %v4720 = vunpack.c.l.b16 %v4676
        %v4721 = vunpack.c.h.b16 %v4676
        %v4722 = vunpack.c.l.b16 %v4677
        %v4723 = vunpack.c.h.b16 %v4677
        %v4724 = vunpack.c.l.b16 %v4678
        %v4725 = vunpack.c.h.b16 %v4678
        %v4726 = vunpack.c.l.b16 %v4679
        %v4727 = vunpack.c.h.b16 %v4679
        %v4728 = vunpack.c.l.b16 %v4680
        %v4729 = vunpack.c.h.b16 %v4680
        %v4730 = vunpack.c.l.b16 %v4681
        %v4731 = vunpack.c.h.b16 %v4681
        %v4732 = vunpack.c.l.b16 %v4682
        %v4733 = vunpack.c.h.b16 %v4682
        %v4734 = vunpack.c.l.b16 %v4683
        %v4735 = vunpack.c.h.b16 %v4683
        %v4736 = vunpack.c.l.b16 %v4684
        %v4737 = vunpack.c.h.b16 %v4684
        %v4738 = vunpack.c.l.b16 %v4685
        %v4739 = vunpack.c.h.b16 %v4685
        %v4740 = vunpack.c.l.b16 %v4686
        %v4741 = vunpack.c.h.b16 %v4686
        %v4742 = vunpack.c.l.b16 %v4687
        %v4743 = vunpack.c.h.b16 %v4687
        %v4744 = vunpack.c.l.b16 %v4688
        %v4745 = vunpack.c.h.b16 %v4688
        %v4746 = vunpack.c.l.b16 %v4689
        %v4747 = vunpack.c.h.b16 %v4689
        %v4748 = vunpack.c.l.b16 %v4690
        %v4749 = vunpack.c.h.b16 %v4690
        %v4750 = vunpack.c.l.b16 %v4691
        %v4751 = vunpack.c.h.b16 %v4691
        %v4752 = vpack.c.b16 %v4722, %v4720
        %v4753 = vpack.c.b16 %v4723, %v4721
        %v4754 = vpack.c.b16 %v4726, %v4724
        %v4755 = vpack.c.b16 %v4727, %v4725
        %v4756 = vpack.c.b16 %v4730, %v4728
        %v4757 = vpack.c.b16 %v4731, %v4729
        %v4758 = vpack.c.b16 %v4734, %v4732
        %v4759 = vpack.c.b16 %v4735, %v4733
        %v4760 = vpack.c.b16 %v4738, %v4736
        %v4761 = vpack.c.b16 %v4739, %v4737
        %v4762 = vpack.c.b16 %v4742, %v4740
        %v4763 = vpack.c.b16 %v4743, %v4741
        %v4764 = vpack.c.b16 %v4746, %v4744
        %v4765 = vpack.c.b16 %v4747, %v4745
        %v4766 = vpack.c.b16 %v4750, %v4748
        %v4767 = vpack.c.b16 %v4751, %v4749
        %4784 = vmatprep.subr.bf16.mxu0 %v4753
        %4785 = vmatpush1.bf16.msra.mxu0 %v4752
        %4786 = vmatprep.subr.bf16.mxu0 %v4755
        %4787 = vmatpush1.bf16.msra.mxu0 %v4754
        %4788 = vmatprep.subr.bf16.mxu0 %v4757
        %4789 = vmatpush1.bf16.msra.mxu0 %v4756
        %4790 = vmatprep.subr.bf16.mxu0 %v4759
        %4791 = vmatpush1.bf16.msra.mxu0 %v4758
        %4792 = vmatprep.subr.bf16.mxu0 %v4761
        %4793 = vmatpush1.bf16.msra.mxu0 %v4760
        %4794 = vmatprep.subr.bf16.mxu0 %v4763
        %4795 = vmatpush1.bf16.msra.mxu0 %v4762
        %4796 = vmatprep.subr.bf16.mxu0 %v4765
        %4797 = vmatpush1.bf16.msra.mxu0 %v4764
        %4798 = vmatprep.subr.bf16.mxu0 %v4767
        %4799 = vmatpush1.bf16.msra.mxu0 %v4766
        %4800 = vmatprep.subr.bf16.mxu0 0
        %4801 = vmatpush1.bf16.msra.mxu0 0
        %4802 = vmatprep.subr.bf16.mxu0 0
        %4803 = vmatpush1.bf16.msra.mxu0 0
        %4804 = vmatprep.subr.bf16.mxu0 0
        %4805 = vmatpush1.bf16.msra.mxu0 0
        %4806 = vmatprep.subr.bf16.mxu0 0
        %4807 = vmatpush1.bf16.msra.mxu0 0
        %4808 = vmatprep.subr.bf16.mxu0 0
        %4809 = vmatpush1.bf16.msra.mxu0 0
        %4810 = vmatprep.subr.bf16.mxu0 0
        %4811 = vmatpush1.bf16.msra.mxu0 0
        %4812 = vmatprep.subr.bf16.mxu0 0
        %4813 = vmatpush1.bf16.msra.mxu0 0
        %4814 = vmatprep.subr.bf16.mxu0 0
        %4815 = vmatpush1.bf16.msra.mxu0 0
        %4816 = vmatprep.mubr.bf16.mxu0 0
        %4817 = vmatmul.mubr.bf16.gmra.mrb[0].mxu0 %v4516
        %v4818 = vpop.f32.mrb[0].mxu0
        %v4819 = vadd.f32 %v4697, %v4818
        %v4820 = vpop.f32.mrb[0].mxu0
        %v4821 = vadd.f32 %v4701, %v4820
        %v4822 = vpop.f32.mrb[0].mxu0
        %v4823 = vadd.f32 %v4697, %v4822
        %v4824 = vpop.f32.mrb[0].mxu0
        %v4825 = vadd.f32 %v4701, %v4824
        %4826 = vmatprep.mubr.bf16.mxu0 0
        %4827 = vmatmul.mubr.bf16.gmra.mrb[0].mxu0 %v4517
        %v4828 = vpop.f32.mrb[0].mxu0
        %v4829 = vadd.f32 %v4697, %v4828
        %v4830 = vpop.f32.mrb[0].mxu0
        %v4831 = vadd.f32 %v4701, %v4830
        %v4832 = vpop.f32.mrb[0].mxu0
        %v4833 = vadd.f32 %v4697, %v4832
        %v4834 = vpop.f32.mrb[0].mxu0
        %v4835 = vadd.f32 %v4701, %v4834
        %4836 = vmatprep.mubr.bf16.mxu0 0
        %4837 = vmatmul.mubr.bf16.gmra.mrb[0].mxu0 %v4518
        %v4838 = vpop.f32.mrb[0].mxu0
        %v4839 = vadd.f32 %v4697, %v4838
        %v4840 = vpop.f32.mrb[0].mxu0
        %v4841 = vadd.f32 %v4701, %v4840
        %v4842 = vpop.f32.mrb[0].mxu0
        %v4843 = vadd.f32 %v4697, %v4842
        %v4844 = vpop.f32.mrb[0].mxu0
        %v4845 = vadd.f32 %v4701, %v4844
        %4846 = vmatprep.mubr.bf16.mxu0 0
        %4847 = vmatmul.mubr.bf16.gmra.mrb[0].mxu0 %v4519
        %v4848 = vpop.f32.mrb[0].mxu0
        %v4849 = vadd.f32 %v4697, %v4848
        %v4850 = vpop.f32.mrb[0].mxu0
        %v4851 = vadd.f32 %v4701, %v4850
        %v4852 = vpop.f32.mrb[0].mxu0
        %v4853 = vadd.f32 %v4697, %v4852
        %v4854 = vpop.f32.mrb[0].mxu0
        %v4855 = vadd.f32 %v4701, %v4854
        %4856 = vmatprep.mubr.bf16.mxu0 0
        %4857 = vmatmul.mubr.bf16.gmra.mrb[0].mxu0 %v4520
        %v4858 = vpop.f32.mrb[0].mxu0
        %v4859 = vadd.f32 %v4697, %v4858
        %v4860 = vpop.f32.mrb[0].mxu0
        %v4861 = vadd.f32 %v4701, %v4860
        %v4862 = vpop.f32.mrb[0].mxu0
        %v4863 = vadd.f32 %v4697, %v4862
        %v4864 = vpop.f32.mrb[0].mxu0
        %v4865 = vadd.f32 %v4701, %v4864
        %4866 = vmatprep.mubr.bf16.mxu0 0
        %4867 = vmatmul.mubr.bf16.gmra.mrb[0].mxu0 %v4521
        %v4868 = vpop.f32.mrb[0].mxu0
        %v4869 = vadd.f32 %v4697, %v4868
        %v4870 = vpop.f32.mrb[0].mxu0
        %v4871 = vadd.f32 %v4701, %v4870
        %v4872 = vpop.f32.mrb[0].mxu0
        %v4873 = vadd.f32 %v4697, %v4872
        %v4874 = vpop.f32.mrb[0].mxu0
        %v4875 = vadd.f32 %v4701, %v4874
        %4876 = vmatprep.mubr.bf16.mxu0 0
        %4877 = vmatmul.mubr.bf16.gmra.mrb[0].mxu0 %v4522
        %v4878 = vpop.f32.mrb[0].mxu0
        %v4879 = vadd.f32 %v4697, %v4878
        %v4880 = vpop.f32.mrb[0].mxu0
        %v4881 = vadd.f32 %v4701, %v4880
        %v4882 = vpop.f32.mrb[0].mxu0
        %v4883 = vadd.f32 %v4697, %v4882
        %v4884 = vpop.f32.mrb[0].mxu0
        %v4885 = vadd.f32 %v4701, %v4884
        %4886 = vmatprep.mubr.bf16.mxu0 0
        %4887 = vmatmul.mubr.bf16.gmra.mrb[0].mxu0 %v4523
        %v4888 = vpop.f32.mrb[0].mxu0
        %v4889 = vadd.f32 %v4697, %v4888
        %v4890 = vpop.f32.mrb[0].mxu0
        %v4891 = vadd.f32 %v4701, %v4890
        %v4892 = vpop.f32.mrb[0].mxu0
        %v4893 = vadd.f32 %v4697, %v4892
        %v4894 = vpop.f32.mrb[0].mxu0
        %v4895 = vadd.f32 %v4701, %v4894
        %4896 = vmatprep.mubr.bf16.mxu0 0
        %4897 = vmatmul.mubr.bf16.gmra.mrb[0].mxu0 %v4524
        %v4898 = vpop.f32.mrb[0].mxu0
        %v4899 = vadd.f32 %v4697, %v4898
        %v4900 = vpop.f32.mrb[0].mxu0
        %v4901 = vadd.f32 %v4701, %v4900
        %v4902 = vpop.f32.mrb[0].mxu0
        %v4903 = vadd.f32 %v4697, %v4902
        %v4904 = vpop.f32.mrb[0].mxu0
        %v4905 = vadd.f32 %v4701, %v4904
        %4906 = vmatprep.mubr.bf16.mxu0 0
        %4907 = vmatmul.mubr.bf16.gmra.mrb[0].mxu0 %v4525
        %v4908 = vpop.f32.mrb[0].mxu0
        %v4909 = vadd.f32 %v4697, %v4908
        %v4910 = vpop.f32.mrb[0].mxu0
        %v4911 = vadd.f32 %v4701, %v4910
        %v4912 = vpop.f32.mrb[0].mxu0
        %v4913 = vadd.f32 %v4697, %v4912
        %v4914 = vpop.f32.mrb[0].mxu0
        %v4915 = vadd.f32 %v4701, %v4914
        %4916 = vmatprep.mubr.bf16.mxu0 0
        %4917 = vmatmul.mubr.bf16.gmra.mrb[0].mxu0 %v4526
        %v4918 = vpop.f32.mrb[0].mxu0
        %v4919 = vadd.f32 %v4697, %v4918
        %v4920 = vpop.f32.mrb[0].mxu0
        %v4921 = vadd.f32 %v4701, %v4920
        %v4922 = vpop.f32.mrb[0].mxu0
        %v4923 = vadd.f32 %v4697, %v4922
        %v4924 = vpop.f32.mrb[0].mxu0
        %v4925 = vadd.f32 %v4701, %v4924
        %4926 = vmatprep.mubr.bf16.mxu0 0
        %4927 = vmatmul.mubr.bf16.gmra.mrb[0].mxu0 %v4527
        %v4928 = vpop.f32.mrb[0].mxu0
        %v4929 = vadd.f32 %v4697, %v4928
        %v4930 = vpop.f32.mrb[0].mxu0
        %v4931 = vadd.f32 %v4701, %v4930
        %v4932 = vpop.f32.mrb[0].mxu0
        %v4933 = vadd.f32 %v4697, %v4932
        %v4934 = vpop.f32.mrb[0].mxu0
        %v4935 = vadd.f32 %v4701, %v4934
        %4936 = vmatprep.mubr.bf16.mxu0 0
        %4937 = vmatmul.mubr.bf16.gmra.mrb[0].mxu0 %v4528
        %v4938 = vpop.f32.mrb[0].mxu0
        %v4939 = vadd.f32 %v4697, %v4938
        %v4940 = vpop.f32.mrb[0].mxu0
        %v4941 = vadd.f32 %v4701, %v4940
        %v4942 = vpop.f32.mrb[0].mxu0
        %v4943 = vadd.f32 %v4697, %v4942
        %v4944 = vpop.f32.mrb[0].mxu0
        %v4945 = vadd.f32 %v4701, %v4944
        %4946 = vmatprep.mubr.bf16.mxu0 0
        %4947 = vmatmul.mubr.bf16.gmra.mrb[0].mxu0 %v4529
        %v4948 = vpop.f32.mrb[0].mxu0
        %v4949 = vadd.f32 %v4697, %v4948
        %v4950 = vpop.f32.mrb[0].mxu0
        %v4951 = vadd.f32 %v4701, %v4950
        %v4952 = vpop.f32.mrb[0].mxu0
        %v4953 = vadd.f32 %v4697, %v4952
        %v4954 = vpop.f32.mrb[0].mxu0
        %v4955 = vadd.f32 %v4701, %v4954
        %4956 = vmatprep.mubr.bf16.mxu0 0
        %4957 = vmatmul.mubr.bf16.gmra.mrb[0].mxu0 %v4530
        %v4958 = vpop.f32.mrb[0].mxu0
        %v4959 = vadd.f32 %v4697, %v4958
        %v4960 = vpop.f32.mrb[0].mxu0
        %v4961 = vadd.f32 %v4701, %v4960
        %v4962 = vpop.f32.mrb[0].mxu0
        %v4963 = vadd.f32 %v4697, %v4962
        %v4964 = vpop.f32.mrb[0].mxu0
        %v4965 = vadd.f32 %v4701, %v4964
        %4966 = vmatprep.mubr.bf16.mxu0 0
        %4967 = vmatmul.mubr.bf16.gmra.mrb[0].mxu0 %v4531
        %v4968 = vpop.f32.mrb[0].mxu0
        %v4969 = vadd.f32 %v4697, %v4968
        %v4970 = vpop.f32.mrb[0].mxu0
        %v4971 = vadd.f32 %v4701, %v4970
        %v4972 = vpop.f32.mrb[0].mxu0
        %v4973 = vadd.f32 %v4697, %v4972
        %v4974 = vpop.f32.mrb[0].mxu0
        %v4975 = vadd.f32 %v4701, %v4974
        %4976 = vdwg.mxu0
        %v4977 = vmax.f32 %v4819, 0.0
        %v4978 = vmax.f32 %v4821, 0.0
        %v4979 = vmax.f32 %v4823, 0.0
        %v4980 = vmax.f32 %v4825, 0.0
        %v4981 = vmax.f32 %v4829, 0.0
        %v4982 = vmax.f32 %v4831, 0.0
        %v4983 = vmax.f32 %v4833, 0.0
        %v4984 = vmax.f32 %v4835, 0.0
        %v4985 = vmax.f32 %v4839, 0.0
        %v4986 = vmax.f32 %v4841, 0.0
        %v4987 = vmax.f32 %v4843, 0.0
        %v4988 = vmax.f32 %v4845, 0.0
        %v4989 = vmax.f32 %v4849, 0.0
        %v4990 = vmax.f32 %v4851, 0.0
        %v4991 = vmax.f32 %v4853, 0.0
        %v4992 = vmax.f32 %v4855, 0.0
        %v4993 = vmax.f32 %v4859, 0.0
        %v4994 = vmax.f32 %v4861, 0.0
        %v4995 = vmax.f32 %v4863, 0.0
        %v4996 = vmax.f32 %v4865, 0.0
        %v4997 = vmax.f32 %v4869, 0.0
        %v4998 = vmax.f32 %v4871, 0.0
        %v4999 = vmax.f32 %v4873, 0.0
        %v5000 = vmax.f32 %v4875, 0.0
        %v5001 = vmax.f32 %v4879, 0.0
        %v5002 = vmax.f32 %v4881, 0.0
        %v5003 = vmax.f32 %v4883, 0.0
        %v5004 = vmax.f32 %v4885, 0.0
        %v5005 = vmax.f32 %v4889, 0.0
        %v5006 = vmax.f32 %v4891, 0.0
        %v5007 = vmax.f32 %v4893, 0.0
        %v5008 = vmax.f32 %v4895, 0.0
        %v5009 = vmax.f32 %v4899, 0.0
        %v5010 = vmax.f32 %v4901, 0.0
        %v5011 = vmax.f32 %v4903, 0.0
        %v5012 = vmax.f32 %v4905, 0.0
        %v5013 = vmax.f32 %v4909, 0.0
        %v5014 = vmax.f32 %v4911, 0.0
        %v5015 = vmax.f32 %v4913, 0.0
        %v5016 = vmax.f32 %v4915, 0.0
        %v5017 = vmax.f32 %v4919, 0.0
        %v5018 = vmax.f32 %v4921, 0.0
        %v5019 = vmax.f32 %v4923, 0.0
        %v5020 = vmax.f32 %v4925, 0.0
        %v5021 = vmax.f32 %v4929, 0.0
        %v5022 = vmax.f32 %v4931, 0.0
        %v5023 = vmax.f32 %v4933, 0.0
        %v5024 = vmax.f32 %v4935, 0.0
        %v5025 = vmax.f32 %v4939, 0.0
        %v5026 = vmax.f32 %v4941, 0.0
        %v5027 = vmax.f32 %v4943, 0.0
        %v5028 = vmax.f32 %v4945, 0.0
        %v5029 = vmax.f32 %v4949, 0.0
        %v5030 = vmax.f32 %v4951, 0.0
        %v5031 = vmax.f32 %v4953, 0.0
        %v5032 = vmax.f32 %v4955, 0.0
        %v5033 = vmax.f32 %v4959, 0.0
        %v5034 = vmax.f32 %v4961, 0.0
        %v5035 = vmax.f32 %v4963, 0.0
        %v5036 = vmax.f32 %v4965, 0.0
        %v5037 = vmax.f32 %v4969, 0.0
        %v5038 = vmax.f32 %v4971, 0.0
        %v5039 = vmax.f32 %v4973, 0.0
        %v5040 = vmax.f32 %v4975, 0.0
        %v5041 = vpack.c.bf16 %v4979, %v4977
        %v5042 = vpack.c.bf16 %v4980, %v4978
        %v5043 = vpack.c.bf16 %v4983, %v4981
        %v5044 = vpack.c.bf16 %v4984, %v4982
        %v5045 = vpack.c.bf16 %v4987, %v4985
        %v5046 = vpack.c.bf16 %v4988, %v4986
        %v5047 = vpack.c.bf16 %v4991, %v4989
        %v5048 = vpack.c.bf16 %v4992, %v4990
        %v5049 = vpack.c.bf16 %v4995, %v4993
        %v5050 = vpack.c.bf16 %v4996, %v4994
        %v5051 = vpack.c.bf16 %v4999, %v4997
        %v5052 = vpack.c.bf16 %v5000, %v4998
        %v5053 = vpack.c.bf16 %v5003, %v5001
        %v5054 = vpack.c.bf16 %v5004, %v5002
        %v5055 = vpack.c.bf16 %v5007, %v5005
        %v5056 = vpack.c.bf16 %v5008, %v5006
        %v5057 = vpack.c.bf16 %v5011, %v5009
        %v5058 = vpack.c.bf16 %v5012, %v5010
        %v5059 = vpack.c.bf16 %v5015, %v5013
        %v5060 = vpack.c.bf16 %v5016, %v5014
        %v5061 = vpack.c.bf16 %v5019, %v5017
        %v5062 = vpack.c.bf16 %v5020, %v5018
        %v5063 = vpack.c.bf16 %v5023, %v5021
        %v5064 = vpack.c.bf16 %v5024, %v5022
        %v5065 = vpack.c.bf16 %v5027, %v5025
        %v5066 = vpack.c.bf16 %v5028, %v5026
        %v5067 = vpack.c.bf16 %v5031, %v5029
        %v5068 = vpack.c.bf16 %v5032, %v5030
        %v5069 = vpack.c.bf16 %v5035, %v5033
        %v5070 = vpack.c.bf16 %v5036, %v5034
        %v5071 = vpack.c.bf16 %v5039, %v5037
        %v5072 = vpack.c.bf16 %v5040, %v5038
        %v5105 = vunpack.c.l.b16 %v5041
        %v5106 = vunpack.c.l.b16 %v5042
        %v5107 = vunpack.c.h.b16 %v5041
        %v5108 = vunpack.c.h.b16 %v5042
        %v5109 = vunpack.c.l.b16 %v5043
        %v5110 = vunpack.c.l.b16 %v5044
        %v5111 = vunpack.c.h.b16 %v5043
        %v5112 = vunpack.c.h.b16 %v5044
        %v5113 = vunpack.c.l.b16 %v5045
        %v5114 = vunpack.c.l.b16 %v5046
        %v5115 = vunpack.c.h.b16 %v5045
        %v5116 = vunpack.c.h.b16 %v5046
        %v5117 = vunpack.c.l.b16 %v5047
        %v5118 = vunpack.c.l.b16 %v5048
        %v5119 = vunpack.c.h.b16 %v5047
        %v5120 = vunpack.c.h.b16 %v5048
        %v5121 = vunpack.c.l.b16 %v5049
        %v5122 = vunpack.c.l.b16 %v5050
        %v5123 = vunpack.c.h.b16 %v5049
        %v5124 = vunpack.c.h.b16 %v5050
        %v5125 = vunpack.c.l.b16 %v5051
        %v5126 = vunpack.c.l.b16 %v5052
        %v5127 = vunpack.c.h.b16 %v5051
        %v5128 = vunpack.c.h.b16 %v5052
        %v5129 = vunpack.c.l.b16 %v5053
        %v5130 = vunpack.c.l.b16 %v5054
        %v5131 = vunpack.c.h.b16 %v5053
        %v5132 = vunpack.c.h.b16 %v5054
        %v5133 = vunpack.c.l.b16 %v5055
        %v5134 = vunpack.c.l.b16 %v5056
        %v5135 = vunpack.c.h.b16 %v5055
        %v5136 = vunpack.c.h.b16 %v5056
        %v5137 = vunpack.c.l.b16 %v5057
        %v5138 = vunpack.c.l.b16 %v5058
        %v5139 = vunpack.c.h.b16 %v5057
        %v5140 = vunpack.c.h.b16 %v5058
        %v5141 = vunpack.c.l.b16 %v5059
        %v5142 = vunpack.c.l.b16 %v5060
        %v5143 = vunpack.c.h.b16 %v5059
        %v5144 = vunpack.c.h.b16 %v5060
        %v5145 = vunpack.c.l.b16 %v5061
        %v5146 = vunpack.c.l.b16 %v5062
        %v5147 = vunpack.c.h.b16 %v5061
        %v5148 = vunpack.c.h.b16 %v5062
        %v5149 = vunpack.c.l.b16 %v5063
        %v5150 = vunpack.c.l.b16 %v5064
        %v5151 = vunpack.c.h.b16 %v5063
        %v5152 = vunpack.c.h.b16 %v5064
        %v5153 = vunpack.c.l.b16 %v5065
        %v5154 = vunpack.c.l.b16 %v5066
        %v5155 = vunpack.c.h.b16 %v5065
        %v5156 = vunpack.c.h.b16 %v5066
        %v5157 = vunpack.c.l.b16 %v5067
        %v5158 = vunpack.c.l.b16 %v5068
        %v5159 = vunpack.c.h.b16 %v5067
        %v5160 = vunpack.c.h.b16 %v5068
        %v5161 = vunpack.c.l.b16 %v5069
        %v5162 = vunpack.c.l.b16 %v5070
        %v5163 = vunpack.c.h.b16 %v5069
        %v5164 = vunpack.c.h.b16 %v5070
        %v5165 = vunpack.c.l.b16 %v5071
        %v5166 = vunpack.c.l.b16 %v5072
        %v5167 = vunpack.c.h.b16 %v5071
        %v5168 = vunpack.c.h.b16 %v5072
        %v5169 = vpack.c.b16 %v5106, %v5105
        %v5170 = vpack.c.b16 %v5108, %v5107
        %v5171 = vpack.c.b16 %v5110, %v5109
        %v5172 = vpack.c.b16 %v5112, %v5111
        %v5173 = vpack.c.b16 %v5114, %v5113
        %v5174 = vpack.c.b16 %v5116, %v5115
        %v5175 = vpack.c.b16 %v5118, %v5117
        %v5176 = vpack.c.b16 %v5120, %v5119
        %v5177 = vpack.c.b16 %v5122, %v5121
        %v5178 = vpack.c.b16 %v5124, %v5123
        %v5179 = vpack.c.b16 %v5126, %v5125
        %v5180 = vpack.c.b16 %v5128, %v5127
        %v5181 = vpack.c.b16 %v5130, %v5129
        %v5182 = vpack.c.b16 %v5132, %v5131
        %v5183 = vpack.c.b16 %v5134, %v5133
        %v5184 = vpack.c.b16 %v5136, %v5135
        %v5185 = vpack.c.b16 %v5138, %v5137
        %v5186 = vpack.c.b16 %v5140, %v5139
        %v5187 = vpack.c.b16 %v5142, %v5141
        %v5188 = vpack.c.b16 %v5144, %v5143
        %v5189 = vpack.c.b16 %v5146, %v5145
        %v5190 = vpack.c.b16 %v5148, %v5147
        %v5191 = vpack.c.b16 %v5150, %v5149
        %v5192 = vpack.c.b16 %v5152, %v5151
        %v5193 = vpack.c.b16 %v5154, %v5153
        %v5194 = vpack.c.b16 %v5156, %v5155
        %v5195 = vpack.c.b16 %v5158, %v5157
        %v5196 = vpack.c.b16 %v5160, %v5159
        %v5197 = vpack.c.b16 %v5162, %v5161
        %v5198 = vpack.c.b16 %v5164, %v5163
        %v5199 = vpack.c.b16 %v5166, %v5165
        %v5200 = vpack.c.b16 %v5168, %v5167
        %5233 = vst [vmem:[%s479 + $0x100] sm:$0xff] %v5169
        %5234 = vst [vmem:[%s479 + $0x108] sm:$0xff] %v5170
        %5235 = vst [vmem:[%s479 + $0x110] sm:$0xff] %v5171
        %5236 = vst [vmem:[%s479 + $0x118] sm:$0xff] %v5172
        %5237 = vst [vmem:[%s479 + $0x120] sm:$0xff] %v5173
        %5238 = vst [vmem:[%s479 + $0x128] sm:$0xff] %v5174
        %5239 = vst [vmem:[%s479 + $0x130] sm:$0xff] %v5175
        %5240 = vst [vmem:[%s479 + $0x138] sm:$0xff] %v5176
        %5241 = vst [vmem:[%s479 + $0x140] sm:$0xff] %v5177
        %5242 = vst [vmem:[%s479 + $0x148] sm:$0xff] %v5178
        %5243 = vst [vmem:[%s479 + $0x150] sm:$0xff] %v5179
        %5244 = vst [vmem:[%s479 + $0x158] sm:$0xff] %v5180
        %5245 = vst [vmem:[%s479 + $0x160] sm:$0xff] %v5181
        %5246 = vst [vmem:[%s479 + $0x168] sm:$0xff] %v5182
        %5247 = vst [vmem:[%s479 + $0x170] sm:$0xff] %v5183
        %5248 = vst [vmem:[%s479 + $0x178] sm:$0xff] %v5184
        %5249 = vst [vmem:[%s479 + $0x180] sm:$0xff] %v5185
        %5250 = vst [vmem:[%s479 + $0x188] sm:$0xff] %v5186
        %5251 = vst [vmem:[%s479 + $0x190] sm:$0xff] %v5187
        %5252 = vst [vmem:[%s479 + $0x198] sm:$0xff] %v5188
        %5253 = vst [vmem:[%s479 + $0x1a0] sm:$0xff] %v5189
        %5254 = vst [vmem:[%s479 + $0x1a8] sm:$0xff] %v5190
        %5255 = vst [vmem:[%s479 + $0x1b0] sm:$0xff] %v5191
        %5256 = vst [vmem:[%s479 + $0x1b8] sm:$0xff] %v5192
        %5257 = vst [vmem:[%s479 + $0x1c0] sm:$0xff] %v5193
        %5258 = vst [vmem:[%s479 + $0x1c8] sm:$0xff] %v5194
        %5259 = vst [vmem:[%s479 + $0x1d0] sm:$0xff] %v5195
        %5260 = vst [vmem:[%s479 + $0x1d8] sm:$0xff] %v5196
        %5261 = vst [vmem:[%s479 + $0x1e0] sm:$0xff] %v5197
        %5262 = vst [vmem:[%s479 + $0x1e8] sm:$0xff] %v5198
        %5263 = vst [vmem:[%s479 + $0x1f0] sm:$0xff] %v5199
        %5264 = vst [vmem:[%s479 + $0x1f8] sm:$0xff] %v5200
        %v5265 = vld [vmem:[%s7] sm:$0xf]
        %v5266 = vld [vmem:[%s7 + $0x4] sm:$0xf]
        %v5267 = vld [vmem:[%s7 + $0x8] sm:$0xf]
        %v5268 = vld [vmem:[%s7 + $0xc] sm:$0xf]
        %v5269 = vld [vmem:[%s7 + $0x10] sm:$0xf]
        %v5270 = vld [vmem:[%s7 + $0x14] sm:$0xf]
        %v5271 = vld [vmem:[%s7 + $0x18] sm:$0xf]
        %v5272 = vld [vmem:[%s7 + $0x1c] sm:$0xf]
        %v5273 = vld [vmem:[%s7 + $0x20] sm:$0xf]
        %v5274 = vld [vmem:[%s7 + $0x24] sm:$0xf]
        %v5275 = vld [vmem:[%s7 + $0x28] sm:$0xf]
        %v5276 = vld [vmem:[%s7 + $0x2c] sm:$0xf]
        %v5277 = vld [vmem:[%s7 + $0x30] sm:$0xf]
        %v5278 = vld [vmem:[%s7 + $0x34] sm:$0xf]
        %v5279 = vld [vmem:[%s7 + $0x38] sm:$0xf]
        %v5280 = vld [vmem:[%s7 + $0x3c] sm:$0xf]
        %v5281 = vld [vmem:[%s7 + $0x40] sm:$0xf]
        %v5282 = vld [vmem:[%s7 + $0x44] sm:$0xf]
        %v5283 = vld [vmem:[%s7 + $0x48] sm:$0xf]
        %v5284 = vld [vmem:[%s7 + $0x4c] sm:$0xf]
        %v5285 = vld [vmem:[%s7 + $0x50] sm:$0xf]
        %v5286 = vld [vmem:[%s7 + $0x54] sm:$0xf]
        %v5287 = vld [vmem:[%s7 + $0x58] sm:$0xf]
        %v5288 = vld [vmem:[%s7 + $0x5c] sm:$0xf]
        %v5289 = vld [vmem:[%s7 + $0x60] sm:$0xf]
        %v5290 = vld [vmem:[%s7 + $0x64] sm:$0xf]
        %v5291 = vld [vmem:[%s7 + $0x68] sm:$0xf]
        %v5292 = vld [vmem:[%s7 + $0x6c] sm:$0xf]
        %v5293 = vld [vmem:[%s7 + $0x70] sm:$0xf]
        %v5294 = vld [vmem:[%s7 + $0x74] sm:$0xf]
        %v5295 = vld [vmem:[%s7 + $0x78] sm:$0xf]
        %v5296 = vld [vmem:[%s7 + $0x7c] sm:$0xf]
        %v5297 = vld [vmem:[%s8] sm:$0x1]
        %v5299 = vlaneseq
        %v5300 = vshrl.u32 %v5299, 7
        %v5301 = vsub.s32 0, %v5300
        %v5302 = vrot.slane %v5297, %v5301
        %v5336 = vunpack.c.l.b16 %v5265
        %v5337 = vunpack.c.l.b16 %v5266
        %v5338 = vunpack.c.l.b16 %v5267
        %v5339 = vunpack.c.l.b16 %v5268
        %v5340 = vunpack.c.l.b16 %v5269
        %v5341 = vunpack.c.l.b16 %v5270
        %v5342 = vunpack.c.l.b16 %v5271
        %v5343 = vunpack.c.l.b16 %v5272
        %v5344 = vunpack.c.l.b16 %v5273
        %v5345 = vunpack.c.l.b16 %v5274
        %v5346 = vunpack.c.l.b16 %v5275
        %v5347 = vunpack.c.l.b16 %v5276
        %v5348 = vunpack.c.l.b16 %v5277
        %v5349 = vunpack.c.l.b16 %v5278
        %v5350 = vunpack.c.l.b16 %v5279
        %v5351 = vunpack.c.l.b16 %v5280
        %v5352 = vunpack.c.l.b16 %v5281
        %v5353 = vunpack.c.l.b16 %v5282
        %v5354 = vunpack.c.l.b16 %v5283
        %v5355 = vunpack.c.l.b16 %v5284
        %v5356 = vunpack.c.l.b16 %v5285
        %v5357 = vunpack.c.l.b16 %v5286
        %v5358 = vunpack.c.l.b16 %v5287
        %v5359 = vunpack.c.l.b16 %v5288
        %v5360 = vunpack.c.l.b16 %v5289
        %v5361 = vunpack.c.l.b16 %v5290
        %v5362 = vunpack.c.l.b16 %v5291
        %v5363 = vunpack.c.l.b16 %v5292
        %v5364 = vunpack.c.l.b16 %v5293
        %v5365 = vunpack.c.l.b16 %v5294
        %v5366 = vunpack.c.l.b16 %v5295
        %v5367 = vunpack.c.l.b16 %v5296
        %v5368 = vpack.c.b16 %v5337, %v5336
        %v5369 = vpack.c.b16 %v5339, %v5338
        %v5370 = vpack.c.b16 %v5341, %v5340
        %v5371 = vpack.c.b16 %v5343, %v5342
        %v5372 = vpack.c.b16 %v5345, %v5344
        %v5373 = vpack.c.b16 %v5347, %v5346
        %v5374 = vpack.c.b16 %v5349, %v5348
        %v5375 = vpack.c.b16 %v5351, %v5350
        %v5376 = vpack.c.b16 %v5353, %v5352
        %v5377 = vpack.c.b16 %v5355, %v5354
        %v5378 = vpack.c.b16 %v5357, %v5356
        %v5379 = vpack.c.b16 %v5359, %v5358
        %v5380 = vpack.c.b16 %v5361, %v5360
        %v5381 = vpack.c.b16 %v5363, %v5362
        %v5382 = vpack.c.b16 %v5365, %v5364
        %v5383 = vpack.c.b16 %v5367, %v5366
        %5400 = vmatprep.subr.bf16.mxu0 0
        %5401 = vmatpush1.bf16.msra.mxu0 %v5368
        %5402 = vmatprep.subr.bf16.mxu0 0
        %5403 = vmatpush1.bf16.msra.mxu0 %v5369
        %5404 = vmatprep.subr.bf16.mxu0 0
        %5405 = vmatpush1.bf16.msra.mxu0 %v5370
        %5406 = vmatprep.subr.bf16.mxu0 0
        %5407 = vmatpush1.bf16.msra.mxu0 %v5371
        %5408 = vmatprep.subr.bf16.mxu0 0
        %5409 = vmatpush1.bf16.msra.mxu0 %v5372
        %5410 = vmatprep.subr.bf16.mxu0 0
        %5411 = vmatpush1.bf16.msra.mxu0 %v5373
        %5412 = vmatprep.subr.bf16.mxu0 0
        %5413 = vmatpush1.bf16.msra.mxu0 %v5374
        %5414 = vmatprep.subr.bf16.mxu0 0
        %5415 = vmatpush1.bf16.msra.mxu0 %v5375
        %5416 = vmatprep.subr.bf16.mxu0 0
        %5417 = vmatpush1.bf16.msra.mxu0 %v5376
        %5418 = vmatprep.subr.bf16.mxu0 0
        %5419 = vmatpush1.bf16.msra.mxu0 %v5377
        %5420 = vmatprep.subr.bf16.mxu0 0
        %5421 = vmatpush1.bf16.msra.mxu0 %v5378
        %5422 = vmatprep.subr.bf16.mxu0 0
        %5423 = vmatpush1.bf16.msra.mxu0 %v5379
        %5424 = vmatprep.subr.bf16.mxu0 0
        %5425 = vmatpush1.bf16.msra.mxu0 %v5380
        %5426 = vmatprep.subr.bf16.mxu0 0
        %5427 = vmatpush1.bf16.msra.mxu0 %v5381
        %5428 = vmatprep.subr.bf16.mxu0 0
        %5429 = vmatpush1.bf16.msra.mxu0 %v5382
        %5430 = vmatprep.subr.bf16.mxu0 0
        %5431 = vmatpush1.bf16.msra.mxu0 %v5383
        %5432 = vmatprep.mubr.bf16.mxu0 %v5042
        %5433 = vmatmul.mubr.bf16.gmra.mrb[0].mxu0 %v5041
        %v5434 = vpop.f32.mrb[0].mxu0
        %v5435 = vadd.f32 %v5302, %v5434
        %v5436 = vpop.f32.mrb[0].mxu0
        %v5437 = vpop.f32.mrb[0].mxu0
        %v5438 = vadd.f32 %v5302, %v5437
        %v5439 = vpop.f32.mrb[0].mxu0
        %5440 = vmatprep.mubr.bf16.mxu0 %v5044
        %5441 = vmatmul.mubr.bf16.gmra.mrb[0].mxu0 %v5043
        %v5442 = vpop.f32.mrb[0].mxu0
        %v5443 = vadd.f32 %v5302, %v5442
        %v5444 = vpop.f32.mrb[0].mxu0
        %v5445 = vpop.f32.mrb[0].mxu0
        %v5446 = vadd.f32 %v5302, %v5445
        %v5447 = vpop.f32.mrb[0].mxu0
        %5448 = vmatprep.mubr.bf16.mxu0 %v5046
        %5449 = vmatmul.mubr.bf16.gmra.mrb[0].mxu0 %v5045
        %v5450 = vpop.f32.mrb[0].mxu0
        %v5451 = vadd.f32 %v5302, %v5450
        %v5452 = vpop.f32.mrb[0].mxu0
        %v5453 = vpop.f32.mrb[0].mxu0
        %v5454 = vadd.f32 %v5302, %v5453
        %v5455 = vpop.f32.mrb[0].mxu0
        %5456 = vmatprep.mubr.bf16.mxu0 %v5048
        %5457 = vmatmul.mubr.bf16.gmra.mrb[0].mxu0 %v5047
        %v5458 = vpop.f32.mrb[0].mxu0
        %v5459 = vadd.f32 %v5302, %v5458
        %v5460 = vpop.f32.mrb[0].mxu0
        %v5461 = vpop.f32.mrb[0].mxu0
        %v5462 = vadd.f32 %v5302, %v5461
        %v5463 = vpop.f32.mrb[0].mxu0
        %5464 = vmatprep.mubr.bf16.mxu0 %v5050
        %5465 = vmatmul.mubr.bf16.gmra.mrb[0].mxu0 %v5049
        %v5466 = vpop.f32.mrb[0].mxu0
        %v5467 = vadd.f32 %v5302, %v5466
        %v5468 = vpop.f32.mrb[0].mxu0
        %v5469 = vpop.f32.mrb[0].mxu0
        %v5470 = vadd.f32 %v5302, %v5469
        %v5471 = vpop.f32.mrb[0].mxu0
        %5472 = vmatprep.mubr.bf16.mxu0 %v5052
        %5473 = vmatmul.mubr.bf16.gmra.mrb[0].mxu0 %v5051
        %v5474 = vpop.f32.mrb[0].mxu0
        %v5475 = vadd.f32 %v5302, %v5474
        %v5476 = vpop.f32.mrb[0].mxu0
        %v5477 = vpop.f32.mrb[0].mxu0
        %v5478 = vadd.f32 %v5302, %v5477
        %v5479 = vpop.f32.mrb[0].mxu0
        %5480 = vmatprep.mubr.bf16.mxu0 %v5054
        %5481 = vmatmul.mubr.bf16.gmra.mrb[0].mxu0 %v5053
        %v5482 = vpop.f32.mrb[0].mxu0
        %v5483 = vadd.f32 %v5302, %v5482
        %v5484 = vpop.f32.mrb[0].mxu0
        %v5485 = vpop.f32.mrb[0].mxu0
        %v5486 = vadd.f32 %v5302, %v5485
        %v5487 = vpop.f32.mrb[0].mxu0
        %5488 = vmatprep.mubr.bf16.mxu0 %v5056
        %5489 = vmatmul.mubr.bf16.gmra.mrb[0].mxu0 %v5055
        %v5490 = vpop.f32.mrb[0].mxu0
        %v5491 = vadd.f32 %v5302, %v5490
        %v5492 = vpop.f32.mrb[0].mxu0
        %v5493 = vpop.f32.mrb[0].mxu0
        %v5494 = vadd.f32 %v5302, %v5493
        %v5495 = vpop.f32.mrb[0].mxu0
        %5496 = vmatprep.mubr.bf16.mxu0 %v5058
        %5497 = vmatmul.mubr.bf16.gmra.mrb[0].mxu0 %v5057
        %v5498 = vpop.f32.mrb[0].mxu0
        %v5499 = vadd.f32 %v5302, %v5498
        %v5500 = vpop.f32.mrb[0].mxu0
        %v5501 = vpop.f32.mrb[0].mxu0
        %v5502 = vadd.f32 %v5302, %v5501
        %v5503 = vpop.f32.mrb[0].mxu0
        %5504 = vmatprep.mubr.bf16.mxu0 %v5060
        %5505 = vmatmul.mubr.bf16.gmra.mrb[0].mxu0 %v5059
        %v5506 = vpop.f32.mrb[0].mxu0
        %v5507 = vadd.f32 %v5302, %v5506
        %v5508 = vpop.f32.mrb[0].mxu0
        %v5509 = vpop.f32.mrb[0].mxu0
        %v5510 = vadd.f32 %v5302, %v5509
        %v5511 = vpop.f32.mrb[0].mxu0
        %5512 = vmatprep.mubr.bf16.mxu0 %v5062
        %5513 = vmatmul.mubr.bf16.gmra.mrb[0].mxu0 %v5061
        %v5514 = vpop.f32.mrb[0].mxu0
        %v5515 = vadd.f32 %v5302, %v5514
        %v5516 = vpop.f32.mrb[0].mxu0
        %v5517 = vpop.f32.mrb[0].mxu0
        %v5518 = vadd.f32 %v5302, %v5517
        %v5519 = vpop.f32.mrb[0].mxu0
        %5520 = vmatprep.mubr.bf16.mxu0 %v5064
        %5521 = vmatmul.mubr.bf16.gmra.mrb[0].mxu0 %v5063
        %v5522 = vpop.f32.mrb[0].mxu0
        %v5523 = vadd.f32 %v5302, %v5522
        %v5524 = vpop.f32.mrb[0].mxu0
        %v5525 = vpop.f32.mrb[0].mxu0
        %v5526 = vadd.f32 %v5302, %v5525
        %v5527 = vpop.f32.mrb[0].mxu0
        %5528 = vmatprep.mubr.bf16.mxu0 %v5066
        %5529 = vmatmul.mubr.bf16.gmra.mrb[0].mxu0 %v5065
        %v5530 = vpop.f32.mrb[0].mxu0
        %v5531 = vadd.f32 %v5302, %v5530
        %v5532 = vpop.f32.mrb[0].mxu0
        %v5533 = vpop.f32.mrb[0].mxu0
        %v5534 = vadd.f32 %v5302, %v5533
        %v5535 = vpop.f32.mrb[0].mxu0
        %5536 = vmatprep.mubr.bf16.mxu0 %v5068
        %5537 = vmatmul.mubr.bf16.gmra.mrb[0].mxu0 %v5067
        %v5538 = vpop.f32.mrb[0].mxu0
        %v5539 = vadd.f32 %v5302, %v5538
        %v5540 = vpop.f32.mrb[0].mxu0
        %v5541 = vpop.f32.mrb[0].mxu0
        %v5542 = vadd.f32 %v5302, %v5541
        %v5543 = vpop.f32.mrb[0].mxu0
        %5544 = vmatprep.mubr.bf16.mxu0 %v5070
        %5545 = vmatmul.mubr.bf16.gmra.mrb[0].mxu0 %v5069
        %v5546 = vpop.f32.mrb[0].mxu0
        %v5547 = vadd.f32 %v5302, %v5546
        %v5548 = vpop.f32.mrb[0].mxu0
        %v5549 = vpop.f32.mrb[0].mxu0
        %v5550 = vadd.f32 %v5302, %v5549
        %v5551 = vpop.f32.mrb[0].mxu0
        %5552 = vmatprep.mubr.bf16.mxu0 %v5072
        %5553 = vmatmul.mubr.bf16.gmra.mrb[0].mxu0 %v5071
        %v5554 = vpop.f32.mrb[0].mxu0
        %v5555 = vadd.f32 %v5302, %v5554
        %v5556 = vpop.f32.mrb[0].mxu0
        %v5557 = vpop.f32.mrb[0].mxu0
        %v5558 = vadd.f32 %v5302, %v5557
        %v5559 = vpop.f32.mrb[0].mxu0
        %5560 = vdwg.mxu0
        %v5561 = vmax.f32 %v5435, 0.0
        %v5562 = vmax.f32 %v5438, 0.0
        %v5563 = vmax.f32 %v5443, 0.0
        %v5564 = vmax.f32 %v5446, 0.0
        %v5565 = vmax.f32 %v5451, 0.0
        %v5566 = vmax.f32 %v5454, 0.0
        %v5567 = vmax.f32 %v5459, 0.0
        %v5568 = vmax.f32 %v5462, 0.0
        %v5569 = vmax.f32 %v5467, 0.0
        %v5570 = vmax.f32 %v5470, 0.0
        %v5571 = vmax.f32 %v5475, 0.0
        %v5572 = vmax.f32 %v5478, 0.0
        %v5573 = vmax.f32 %v5483, 0.0
        %v5574 = vmax.f32 %v5486, 0.0
        %v5575 = vmax.f32 %v5491, 0.0
        %v5576 = vmax.f32 %v5494, 0.0
        %v5577 = vmax.f32 %v5499, 0.0
        %v5578 = vmax.f32 %v5502, 0.0
        %v5579 = vmax.f32 %v5507, 0.0
        %v5580 = vmax.f32 %v5510, 0.0
        %v5581 = vmax.f32 %v5515, 0.0
        %v5582 = vmax.f32 %v5518, 0.0
        %v5583 = vmax.f32 %v5523, 0.0
        %v5584 = vmax.f32 %v5526, 0.0
        %v5585 = vmax.f32 %v5531, 0.0
        %v5586 = vmax.f32 %v5534, 0.0
        %v5587 = vmax.f32 %v5539, 0.0
        %v5588 = vmax.f32 %v5542, 0.0
        %v5589 = vmax.f32 %v5547, 0.0
        %v5590 = vmax.f32 %v5550, 0.0
        %v5591 = vmax.f32 %v5555, 0.0
        %v5592 = vmax.f32 %v5558, 0.0
        %v5593 = vpack.c.bf16 %v5562, %v5561
        %v5594 = vpack.c.bf16 %v5564, %v5563
        %v5595 = vpack.c.bf16 %v5566, %v5565
        %v5596 = vpack.c.bf16 %v5568, %v5567
        %v5597 = vpack.c.bf16 %v5570, %v5569
        %v5598 = vpack.c.bf16 %v5572, %v5571
        %v5599 = vpack.c.bf16 %v5574, %v5573
        %v5600 = vpack.c.bf16 %v5576, %v5575
        %v5601 = vpack.c.bf16 %v5578, %v5577
        %v5602 = vpack.c.bf16 %v5580, %v5579
        %v5603 = vpack.c.bf16 %v5582, %v5581
        %v5604 = vpack.c.bf16 %v5584, %v5583
        %v5605 = vpack.c.bf16 %v5586, %v5585
        %v5606 = vpack.c.bf16 %v5588, %v5587
        %v5607 = vpack.c.bf16 %v5590, %v5589
        %v5608 = vpack.c.bf16 %v5592, %v5591
        %v5625 = vunpack.c.l.b16 %v5593
        %v5626 = vunpack.c.h.b16 %v5593
        %v5627 = vunpack.c.l.b16 %v5594
        %v5628 = vunpack.c.h.b16 %v5594
        %v5629 = vunpack.c.l.b16 %v5595
        %v5630 = vunpack.c.h.b16 %v5595
        %v5631 = vunpack.c.l.b16 %v5596
        %v5632 = vunpack.c.h.b16 %v5596
        %v5633 = vunpack.c.l.b16 %v5597
        %v5634 = vunpack.c.h.b16 %v5597
        %v5635 = vunpack.c.l.b16 %v5598
        %v5636 = vunpack.c.h.b16 %v5598
        %v5637 = vunpack.c.l.b16 %v5599
        %v5638 = vunpack.c.h.b16 %v5599
        %v5639 = vunpack.c.l.b16 %v5600
        %v5640 = vunpack.c.h.b16 %v5600
        %v5641 = vunpack.c.l.b16 %v5601
        %v5642 = vunpack.c.h.b16 %v5601
        %v5643 = vunpack.c.l.b16 %v5602
        %v5644 = vunpack.c.h.b16 %v5602
        %v5645 = vunpack.c.l.b16 %v5603
        %v5646 = vunpack.c.h.b16 %v5603
        %v5647 = vunpack.c.l.b16 %v5604
        %v5648 = vunpack.c.h.b16 %v5604
        %v5649 = vunpack.c.l.b16 %v5605
        %v5650 = vunpack.c.h.b16 %v5605
        %v5651 = vunpack.c.l.b16 %v5606
        %v5652 = vunpack.c.h.b16 %v5606
        %v5653 = vunpack.c.l.b16 %v5607
        %v5654 = vunpack.c.h.b16 %v5607
        %v5655 = vunpack.c.l.b16 %v5608
        %v5656 = vunpack.c.h.b16 %v5608
        %v5657 = vpack.c.b16 %v5625, %v5625
        %v5658 = vpack.c.b16 %v5626, %v5626
        %v5659 = vpack.c.b16 %v5627, %v5627
        %v5660 = vpack.c.b16 %v5628, %v5628
        %v5661 = vpack.c.b16 %v5629, %v5629
        %v5662 = vpack.c.b16 %v5630, %v5630
        %v5663 = vpack.c.b16 %v5631, %v5631
        %v5664 = vpack.c.b16 %v5632, %v5632
        %v5665 = vpack.c.b16 %v5633, %v5633
        %v5666 = vpack.c.b16 %v5634, %v5634
        %v5667 = vpack.c.b16 %v5635, %v5635
        %v5668 = vpack.c.b16 %v5636, %v5636
        %v5669 = vpack.c.b16 %v5637, %v5637
        %v5670 = vpack.c.b16 %v5638, %v5638
        %v5671 = vpack.c.b16 %v5639, %v5639
        %v5672 = vpack.c.b16 %v5640, %v5640
        %v5673 = vpack.c.b16 %v5641, %v5641
        %v5674 = vpack.c.b16 %v5642, %v5642
        %v5675 = vpack.c.b16 %v5643, %v5643
        %v5676 = vpack.c.b16 %v5644, %v5644
        %v5677 = vpack.c.b16 %v5645, %v5645
        %v5678 = vpack.c.b16 %v5646, %v5646
        %v5679 = vpack.c.b16 %v5647, %v5647
        %v5680 = vpack.c.b16 %v5648, %v5648
        %v5681 = vpack.c.b16 %v5649, %v5649
        %v5682 = vpack.c.b16 %v5650, %v5650
        %v5683 = vpack.c.b16 %v5651, %v5651
        %v5684 = vpack.c.b16 %v5652, %v5652
        %v5685 = vpack.c.b16 %v5653, %v5653
        %v5686 = vpack.c.b16 %v5654, %v5654
        %v5687 = vpack.c.b16 %v5655, %v5655
        %v5688 = vpack.c.b16 %v5656, %v5656
        %5689 = vrot.lane.b32.xlu0 %v5657, 64
        %v5690 = vpop.permute.xlu0 %5689
        %5691 = vrot.lane.b32.xlu0 %v5658, 64
        %v5692 = vpop.permute.xlu0 %5691
        %5693 = vrot.lane.b32.xlu0 %v5659, 64
        %v5694 = vpop.permute.xlu0 %5693
        %5695 = vrot.lane.b32.xlu0 %v5660, 64
        %v5696 = vpop.permute.xlu0 %5695
        %5697 = vrot.lane.b32.xlu0 %v5661, 64
        %v5698 = vpop.permute.xlu0 %5697
        %5699 = vrot.lane.b32.xlu0 %v5662, 64
        %v5700 = vpop.permute.xlu0 %5699
        %5701 = vrot.lane.b32.xlu0 %v5663, 64
        %v5702 = vpop.permute.xlu0 %5701
        %5703 = vrot.lane.b32.xlu0 %v5664, 64
        %v5704 = vpop.permute.xlu0 %5703
        %5705 = vrot.lane.b32.xlu0 %v5665, 64
        %v5706 = vpop.permute.xlu0 %5705
        %5707 = vrot.lane.b32.xlu0 %v5666, 64
        %v5708 = vpop.permute.xlu0 %5707
        %5709 = vrot.lane.b32.xlu0 %v5667, 64
        %v5710 = vpop.permute.xlu0 %5709
        %5711 = vrot.lane.b32.xlu0 %v5668, 64
        %v5712 = vpop.permute.xlu0 %5711
        %5713 = vrot.lane.b32.xlu0 %v5669, 64
        %v5714 = vpop.permute.xlu0 %5713
        %5715 = vrot.lane.b32.xlu0 %v5670, 64
        %v5716 = vpop.permute.xlu0 %5715
        %5717 = vrot.lane.b32.xlu0 %v5671, 64
        %v5718 = vpop.permute.xlu0 %5717
        %5719 = vrot.lane.b32.xlu0 %v5672, 64
        %v5720 = vpop.permute.xlu0 %5719
        %5721 = vrot.lane.b32.xlu0 %v5673, 64
        %v5722 = vpop.permute.xlu0 %5721
        %5723 = vrot.lane.b32.xlu0 %v5674, 64
        %v5724 = vpop.permute.xlu0 %5723
        %5725 = vrot.lane.b32.xlu0 %v5675, 64
        %v5726 = vpop.permute.xlu0 %5725
        %5727 = vrot.lane.b32.xlu0 %v5676, 64
        %v5728 = vpop.permute.xlu0 %5727
        %5729 = vrot.lane.b32.xlu0 %v5677, 64
        %v5730 = vpop.permute.xlu0 %5729
        %5731 = vrot.lane.b32.xlu0 %v5678, 64
        %v5732 = vpop.permute.xlu0 %5731
        %5733 = vrot.lane.b32.xlu0 %v5679, 64
        %v5734 = vpop.permute.xlu0 %5733
        %5735 = vrot.lane.b32.xlu0 %v5680, 64
        %v5736 = vpop.permute.xlu0 %5735
        %5737 = vrot.lane.b32.xlu0 %v5681, 64
        %v5738 = vpop.permute.xlu0 %5737
        %5739 = vrot.lane.b32.xlu0 %v5682, 64
        %v5740 = vpop.permute.xlu0 %5739
        %5741 = vrot.lane.b32.xlu0 %v5683, 64
        %v5742 = vpop.permute.xlu0 %5741
        %5743 = vrot.lane.b32.xlu0 %v5684, 64
        %v5744 = vpop.permute.xlu0 %5743
        %5745 = vrot.lane.b32.xlu0 %v5685, 64
        %v5746 = vpop.permute.xlu0 %5745
        %5747 = vrot.lane.b32.xlu0 %v5686, 64
        %v5748 = vpop.permute.xlu0 %5747
        %5749 = vrot.lane.b32.xlu0 %v5687, 64
        %v5750 = vpop.permute.xlu0 %5749
        %5751 = vrot.lane.b32.xlu0 %v5688, 64
        %v5752 = vpop.permute.xlu0 %5751
        %5785 = vst.msk [vmem:[%s465 + $0x80] sm:$0xf] %vm2908, %v5690
        %5786 = vst.msk [vmem:[%s465 + $0x84] sm:$0xf] %vm2908, %v5692
        %5787 = vst.msk [vmem:[%s465 + $0x88] sm:$0xf] %vm2908, %v5694
        %5788 = vst.msk [vmem:[%s465 + $0x8c] sm:$0xf] %vm2908, %v5696
        %5789 = vst.msk [vmem:[%s465 + $0x90] sm:$0xf] %vm2908, %v5698
        %5790 = vst.msk [vmem:[%s465 + $0x94] sm:$0xf] %vm2908, %v5700
        %5791 = vst.msk [vmem:[%s465 + $0x98] sm:$0xf] %vm2908, %v5702
        %5792 = vst.msk [vmem:[%s465 + $0x9c] sm:$0xf] %vm2908, %v5704
        %5793 = vst.msk [vmem:[%s465 + $0xa0] sm:$0xf] %vm2908, %v5706
        %5794 = vst.msk [vmem:[%s465 + $0xa4] sm:$0xf] %vm2908, %v5708
        %5795 = vst.msk [vmem:[%s465 + $0xa8] sm:$0xf] %vm2908, %v5710
        %5796 = vst.msk [vmem:[%s465 + $0xac] sm:$0xf] %vm2908, %v5712
        %5797 = vst.msk [vmem:[%s465 + $0xb0] sm:$0xf] %vm2908, %v5714
        %5798 = vst.msk [vmem:[%s465 + $0xb4] sm:$0xf] %vm2908, %v5716
        %5799 = vst.msk [vmem:[%s465 + $0xb8] sm:$0xf] %vm2908, %v5718
        %5800 = vst.msk [vmem:[%s465 + $0xbc] sm:$0xf] %vm2908, %v5720
        %5801 = vst.msk [vmem:[%s465 + $0xc0] sm:$0xf] %vm2908, %v5722
        %5802 = vst.msk [vmem:[%s465 + $0xc4] sm:$0xf] %vm2908, %v5724
        %5803 = vst.msk [vmem:[%s465 + $0xc8] sm:$0xf] %vm2908, %v5726
        %5804 = vst.msk [vmem:[%s465 + $0xcc] sm:$0xf] %vm2908, %v5728
        %5805 = vst.msk [vmem:[%s465 + $0xd0] sm:$0xf] %vm2908, %v5730
        %5806 = vst.msk [vmem:[%s465 + $0xd4] sm:$0xf] %vm2908, %v5732
        %5807 = vst.msk [vmem:[%s465 + $0xd8] sm:$0xf] %vm2908, %v5734
        %5808 = vst.msk [vmem:[%s465 + $0xdc] sm:$0xf] %vm2908, %v5736
        %5809 = vst.msk [vmem:[%s465 + $0xe0] sm:$0xf] %vm2908, %v5738
        %5810 = vst.msk [vmem:[%s465 + $0xe4] sm:$0xf] %vm2908, %v5740
        %5811 = vst.msk [vmem:[%s465 + $0xe8] sm:$0xf] %vm2908, %v5742
        %5812 = vst.msk [vmem:[%s465 + $0xec] sm:$0xf] %vm2908, %v5744
        %5813 = vst.msk [vmem:[%s465 + $0xf0] sm:$0xf] %vm2908, %v5746
        %5814 = vst.msk [vmem:[%s465 + $0xf4] sm:$0xf] %vm2908, %v5748
        %5815 = vst.msk [vmem:[%s465 + $0xf8] sm:$0xf] %vm2908, %v5750
        %5816 = vst.msk [vmem:[%s465 + $0xfc] sm:$0xf] %vm2908, %v5752
        %v5817 = vld [vmem:[%s9] sm:$0xf]
        %v5818 = vld [vmem:[%s9 + $0x4] sm:$0xf]
        %v5819 = vld [vmem:[%s9 + $0x8] sm:$0xf]
        %v5820 = vld [vmem:[%s9 + $0xc] sm:$0xf]
        %v5821 = vld [vmem:[%s9 + $0x10] sm:$0xf]
        %v5822 = vld [vmem:[%s9 + $0x14] sm:$0xf]
        %v5823 = vld [vmem:[%s9 + $0x18] sm:$0xf]
        %v5824 = vld [vmem:[%s9 + $0x1c] sm:$0xf]
        %v5825 = vld [vmem:[%s10] sm:$0x1]
        %v5827 = vlaneseq
        %v5828 = vshrl.u32 %v5827, 7
        %v5829 = vsub.s32 0, %v5828
        %v5830 = vrot.slane %v5825, %v5829
        %v5840 = vunpack.c.l.b16 %v5817
        %v5841 = vunpack.c.l.b16 %v5818
        %v5842 = vunpack.c.l.b16 %v5819
        %v5843 = vunpack.c.l.b16 %v5820
        %v5844 = vunpack.c.l.b16 %v5821
        %v5845 = vunpack.c.l.b16 %v5822
        %v5846 = vunpack.c.l.b16 %v5823
        %v5847 = vunpack.c.l.b16 %v5824
        %v5848 = vpack.c.b16 %v5841, %v5840
        %v5849 = vpack.c.b16 %v5843, %v5842
        %v5850 = vpack.c.b16 %v5845, %v5844
        %v5851 = vpack.c.b16 %v5847, %v5846
        %v5857 = vsel %vm1397, %v5593, 0
        %v5860 = vsel %vm1397, %v5594, 0
        %v5863 = vsel %vm1397, %v5595, 0
        %v5866 = vsel %vm1397, %v5596, 0
        %v5869 = vsel %vm1397, %v5597, 0
        %v5872 = vsel %vm1397, %v5598, 0
        %v5875 = vsel %vm1397, %v5599, 0
        %v5878 = vsel %vm1397, %v5600, 0
        %v5881 = vsel %vm1397, %v5601, 0
        %v5884 = vsel %vm1397, %v5602, 0
        %v5887 = vsel %vm1397, %v5603, 0
        %v5890 = vsel %vm1397, %v5604, 0
        %v5893 = vsel %vm1397, %v5605, 0
        %v5896 = vsel %vm1397, %v5606, 0
        %v5899 = vsel %vm1397, %v5607, 0
        %v5902 = vsel %vm1397, %v5608, 0
        %5904 = vmatprep.subr.bf16.mxu0 0
        %5905 = vmatpush1.bf16.msra.mxu0 %v5848
        %5906 = vmatprep.subr.bf16.mxu0 0
        %5907 = vmatpush1.bf16.msra.mxu0 %v5849
        %5908 = vmatprep.subr.bf16.mxu0 0
        %5909 = vmatpush1.bf16.msra.mxu0 %v5850
        %5910 = vmatprep.subr.bf16.mxu0 0
        %5911 = vmatpush1.bf16.msra.mxu0 %v5851
        %5912 = vmatprep.subr.bf16.mxu0 0
        %5913 = vmatpush1.bf16.msra.mxu0 0
        %5914 = vmatprep.subr.bf16.mxu0 0
        %5915 = vmatpush1.bf16.msra.mxu0 0
        %5916 = vmatprep.subr.bf16.mxu0 0
        %5917 = vmatpush1.bf16.msra.mxu0 0
        %5918 = vmatprep.subr.bf16.mxu0 0
        %5919 = vmatpush1.bf16.msra.mxu0 0
        %5920 = vmatprep.subr.bf16.mxu0 0
        %5921 = vmatpush1.bf16.msra.mxu0 0
        %5922 = vmatprep.subr.bf16.mxu0 0
        %5923 = vmatpush1.bf16.msra.mxu0 0
        %5924 = vmatprep.subr.bf16.mxu0 0
        %5925 = vmatpush1.bf16.msra.mxu0 0
        %5926 = vmatprep.subr.bf16.mxu0 0
        %5927 = vmatpush1.bf16.msra.mxu0 0
        %5928 = vmatprep.subr.bf16.mxu0 0
        %5929 = vmatpush1.bf16.msra.mxu0 0
        %5930 = vmatprep.subr.bf16.mxu0 0
        %5931 = vmatpush1.bf16.msra.mxu0 0
        %5932 = vmatprep.subr.bf16.mxu0 0
        %5933 = vmatpush1.bf16.msra.mxu0 0
        %5934 = vmatprep.subr.bf16.mxu0 0
        %5935 = vmatpush1.bf16.msra.mxu0 0
        %5936 = vmatprep.mubr.bf16.mxu0 0
        %5937 = vmatmul.mubr.bf16.gmra.mrb[0].mxu0 %v5857
        %v5938 = vpop.f32.mrb[0].mxu0
        %v5939 = vadd.f32 %v5830, %v5938
        %v5940 = vpop.f32.mrb[0].mxu0
        %v5941 = vpop.f32.mrb[0].mxu0
        %v5942 = vadd.f32 %v5830, %v5941
        %v5943 = vpop.f32.mrb[0].mxu0
        %5944 = vmatprep.mubr.bf16.mxu0 0
        %5945 = vmatmul.mubr.bf16.gmra.mrb[0].mxu0 %v5860
        %v5946 = vpop.f32.mrb[0].mxu0
        %v5947 = vadd.f32 %v5830, %v5946
        %v5948 = vpop.f32.mrb[0].mxu0
        %v5949 = vpop.f32.mrb[0].mxu0
        %v5950 = vadd.f32 %v5830, %v5949
        %v5951 = vpop.f32.mrb[0].mxu0
        %5952 = vmatprep.mubr.bf16.mxu0 0
        %5953 = vmatmul.mubr.bf16.gmra.mrb[0].mxu0 %v5863
        %v5954 = vpop.f32.mrb[0].mxu0
        %v5955 = vadd.f32 %v5830, %v5954
        %v5956 = vpop.f32.mrb[0].mxu0
        %v5957 = vpop.f32.mrb[0].mxu0
        %v5958 = vadd.f32 %v5830, %v5957
        %v5959 = vpop.f32.mrb[0].mxu0
        %5960 = vmatprep.mubr.bf16.mxu0 0
        %5961 = vmatmul.mubr.bf16.gmra.mrb[0].mxu0 %v5866
        %v5962 = vpop.f32.mrb[0].mxu0
        %v5963 = vadd.f32 %v5830, %v5962
        %v5964 = vpop.f32.mrb[0].mxu0
        %v5965 = vpop.f32.mrb[0].mxu0
        %v5966 = vadd.f32 %v5830, %v5965
        %v5967 = vpop.f32.mrb[0].mxu0
        %5968 = vmatprep.mubr.bf16.mxu0 0
        %5969 = vmatmul.mubr.bf16.gmra.mrb[0].mxu0 %v5869
        %v5970 = vpop.f32.mrb[0].mxu0
        %v5971 = vadd.f32 %v5830, %v5970
        %v5972 = vpop.f32.mrb[0].mxu0
        %v5973 = vpop.f32.mrb[0].mxu0
        %v5974 = vadd.f32 %v5830, %v5973
        %v5975 = vpop.f32.mrb[0].mxu0
        %5976 = vmatprep.mubr.bf16.mxu0 0
        %5977 = vmatmul.mubr.bf16.gmra.mrb[0].mxu0 %v5872
        %v5978 = vpop.f32.mrb[0].mxu0
        %v5979 = vadd.f32 %v5830, %v5978
        %v5980 = vpop.f32.mrb[0].mxu0
        %v5981 = vpop.f32.mrb[0].mxu0
        %v5982 = vadd.f32 %v5830, %v5981
        %v5983 = vpop.f32.mrb[0].mxu0
        %5984 = vmatprep.mubr.bf16.mxu0 0
        %5985 = vmatmul.mubr.bf16.gmra.mrb[0].mxu0 %v5875
        %v5986 = vpop.f32.mrb[0].mxu0
        %v5987 = vadd.f32 %v5830, %v5986
        %v5988 = vpop.f32.mrb[0].mxu0
        %v5989 = vpop.f32.mrb[0].mxu0
        %v5990 = vadd.f32 %v5830, %v5989
        %v5991 = vpop.f32.mrb[0].mxu0
        %5992 = vmatprep.mubr.bf16.mxu0 0
        %5993 = vmatmul.mubr.bf16.gmra.mrb[0].mxu0 %v5878
        %v5994 = vpop.f32.mrb[0].mxu0
        %v5995 = vadd.f32 %v5830, %v5994
        %v5996 = vpop.f32.mrb[0].mxu0
        %v5997 = vpop.f32.mrb[0].mxu0
        %v5998 = vadd.f32 %v5830, %v5997
        %v5999 = vpop.f32.mrb[0].mxu0
        %6000 = vmatprep.mubr.bf16.mxu0 0
        %6001 = vmatmul.mubr.bf16.gmra.mrb[0].mxu0 %v5881
        %v6002 = vpop.f32.mrb[0].mxu0
        %v6003 = vadd.f32 %v5830, %v6002
        %v6004 = vpop.f32.mrb[0].mxu0
        %v6005 = vpop.f32.mrb[0].mxu0
        %v6006 = vadd.f32 %v5830, %v6005
        %v6007 = vpop.f32.mrb[0].mxu0
        %6008 = vmatprep.mubr.bf16.mxu0 0
        %6009 = vmatmul.mubr.bf16.gmra.mrb[0].mxu0 %v5884
        %v6010 = vpop.f32.mrb[0].mxu0
        %v6011 = vadd.f32 %v5830, %v6010
        %v6012 = vpop.f32.mrb[0].mxu0
        %v6013 = vpop.f32.mrb[0].mxu0
        %v6014 = vadd.f32 %v5830, %v6013
        %v6015 = vpop.f32.mrb[0].mxu0
        %6016 = vmatprep.mubr.bf16.mxu0 0
        %6017 = vmatmul.mubr.bf16.gmra.mrb[0].mxu0 %v5887
        %v6018 = vpop.f32.mrb[0].mxu0
        %v6019 = vadd.f32 %v5830, %v6018
        %v6020 = vpop.f32.mrb[0].mxu0
        %v6021 = vpop.f32.mrb[0].mxu0
        %v6022 = vadd.f32 %v5830, %v6021
        %v6023 = vpop.f32.mrb[0].mxu0
        %6024 = vmatprep.mubr.bf16.mxu0 0
        %6025 = vmatmul.mubr.bf16.gmra.mrb[0].mxu0 %v5890
        %v6026 = vpop.f32.mrb[0].mxu0
        %v6027 = vadd.f32 %v5830, %v6026
        %v6028 = vpop.f32.mrb[0].mxu0
        %v6029 = vpop.f32.mrb[0].mxu0
        %v6030 = vadd.f32 %v5830, %v6029
        %v6031 = vpop.f32.mrb[0].mxu0
        %6032 = vmatprep.mubr.bf16.mxu0 0
        %6033 = vmatmul.mubr.bf16.gmra.mrb[0].mxu0 %v5893
        %v6034 = vpop.f32.mrb[0].mxu0
        %v6035 = vadd.f32 %v5830, %v6034
        %v6036 = vpop.f32.mrb[0].mxu0
        %v6037 = vpop.f32.mrb[0].mxu0
        %v6038 = vadd.f32 %v5830, %v6037
        %v6039 = vpop.f32.mrb[0].mxu0
        %6040 = vmatprep.mubr.bf16.mxu0 0
        %6041 = vmatmul.mubr.bf16.gmra.mrb[0].mxu0 %v5896
        %v6042 = vpop.f32.mrb[0].mxu0
        %v6043 = vadd.f32 %v5830, %v6042
        %v6044 = vpop.f32.mrb[0].mxu0
        %v6045 = vpop.f32.mrb[0].mxu0
        %v6046 = vadd.f32 %v5830, %v6045
        %v6047 = vpop.f32.mrb[0].mxu0
        %6048 = vmatprep.mubr.bf16.mxu0 0
        %6049 = vmatmul.mubr.bf16.gmra.mrb[0].mxu0 %v5899
        %v6050 = vpop.f32.mrb[0].mxu0
        %v6051 = vadd.f32 %v5830, %v6050
        %v6052 = vpop.f32.mrb[0].mxu0
        %v6053 = vpop.f32.mrb[0].mxu0
        %v6054 = vadd.f32 %v5830, %v6053
        %v6055 = vpop.f32.mrb[0].mxu0
        %6056 = vmatprep.mubr.bf16.mxu0 0
        %6057 = vmatmul.mubr.bf16.gmra.mrb[0].mxu0 %v5902
        %v6058 = vpop.f32.mrb[0].mxu0
        %v6059 = vadd.f32 %v5830, %v6058
        %v6060 = vpop.f32.mrb[0].mxu0
        %v6061 = vpop.f32.mrb[0].mxu0
        %v6062 = vadd.f32 %v5830, %v6061
        %v6063 = vpop.f32.mrb[0].mxu0
        %6064 = vdwg.mxu0
        %v6065 = vmax.f32 %v5939, 0.0
        %v6066 = vmax.f32 %v5942, 0.0
        %v6067 = vmax.f32 %v5947, 0.0
        %v6068 = vmax.f32 %v5950, 0.0
        %v6069 = vmax.f32 %v5955, 0.0
        %v6070 = vmax.f32 %v5958, 0.0
        %v6071 = vmax.f32 %v5963, 0.0
        %v6072 = vmax.f32 %v5966, 0.0
        %v6073 = vmax.f32 %v5971, 0.0
        %v6074 = vmax.f32 %v5974, 0.0
        %v6075 = vmax.f32 %v5979, 0.0
        %v6076 = vmax.f32 %v5982, 0.0
        %v6077 = vmax.f32 %v5987, 0.0
        %v6078 = vmax.f32 %v5990, 0.0
        %v6079 = vmax.f32 %v5995, 0.0
        %v6080 = vmax.f32 %v5998, 0.0
        %v6081 = vmax.f32 %v6003, 0.0
        %v6082 = vmax.f32 %v6006, 0.0
        %v6083 = vmax.f32 %v6011, 0.0
        %v6084 = vmax.f32 %v6014, 0.0
        %v6085 = vmax.f32 %v6019, 0.0
        %v6086 = vmax.f32 %v6022, 0.0
        %v6087 = vmax.f32 %v6027, 0.0
        %v6088 = vmax.f32 %v6030, 0.0
        %v6089 = vmax.f32 %v6035, 0.0
        %v6090 = vmax.f32 %v6038, 0.0
        %v6091 = vmax.f32 %v6043, 0.0
        %v6092 = vmax.f32 %v6046, 0.0
        %v6093 = vmax.f32 %v6051, 0.0
        %v6094 = vmax.f32 %v6054, 0.0
        %v6095 = vmax.f32 %v6059, 0.0
        %v6096 = vmax.f32 %v6062, 0.0
        %v6097 = vpack.c.bf16 %v6066, %v6065
        %v6098 = vpack.c.bf16 %v6068, %v6067
        %v6099 = vpack.c.bf16 %v6070, %v6069
        %v6100 = vpack.c.bf16 %v6072, %v6071
        %v6101 = vpack.c.bf16 %v6074, %v6073
        %v6102 = vpack.c.bf16 %v6076, %v6075
        %v6103 = vpack.c.bf16 %v6078, %v6077
        %v6104 = vpack.c.bf16 %v6080, %v6079
        %v6105 = vpack.c.bf16 %v6082, %v6081
        %v6106 = vpack.c.bf16 %v6084, %v6083
        %v6107 = vpack.c.bf16 %v6086, %v6085
        %v6108 = vpack.c.bf16 %v6088, %v6087
        %v6109 = vpack.c.bf16 %v6090, %v6089
        %v6110 = vpack.c.bf16 %v6092, %v6091
        %v6111 = vpack.c.bf16 %v6094, %v6093
        %v6112 = vpack.c.bf16 %v6096, %v6095
        %v6129 = vunpack.c.l.b16 %v6097
        %v6130 = vunpack.c.h.b16 %v6097
        %v6131 = vunpack.c.l.b16 %v6098
        %v6132 = vunpack.c.h.b16 %v6098
        %v6133 = vunpack.c.l.b16 %v6099
        %v6134 = vunpack.c.h.b16 %v6099
        %v6135 = vunpack.c.l.b16 %v6100
        %v6136 = vunpack.c.h.b16 %v6100
        %v6137 = vunpack.c.l.b16 %v6101
        %v6138 = vunpack.c.h.b16 %v6101
        %v6139 = vunpack.c.l.b16 %v6102
        %v6140 = vunpack.c.h.b16 %v6102
        %v6141 = vunpack.c.l.b16 %v6103
        %v6142 = vunpack.c.h.b16 %v6103
        %v6143 = vunpack.c.l.b16 %v6104
        %v6144 = vunpack.c.h.b16 %v6104
        %v6145 = vunpack.c.l.b16 %v6105
        %v6146 = vunpack.c.h.b16 %v6105
        %v6147 = vunpack.c.l.b16 %v6106
        %v6148 = vunpack.c.h.b16 %v6106
        %v6149 = vunpack.c.l.b16 %v6107
        %v6150 = vunpack.c.h.b16 %v6107
        %v6151 = vunpack.c.l.b16 %v6108
        %v6152 = vunpack.c.h.b16 %v6108
        %v6153 = vunpack.c.l.b16 %v6109
        %v6154 = vunpack.c.h.b16 %v6109
        %v6155 = vunpack.c.l.b16 %v6110
        %v6156 = vunpack.c.h.b16 %v6110
        %v6157 = vunpack.c.l.b16 %v6111
        %v6158 = vunpack.c.h.b16 %v6111
        %v6159 = vunpack.c.l.b16 %v6112
        %v6160 = vunpack.c.h.b16 %v6112
        %v6161 = vpack.c.b16 %v6129, %v6129
        %v6162 = vpack.c.b16 %v6130, %v6130
        %v6163 = vpack.c.b16 %v6131, %v6131
        %v6164 = vpack.c.b16 %v6132, %v6132
        %v6165 = vpack.c.b16 %v6133, %v6133
        %v6166 = vpack.c.b16 %v6134, %v6134
        %v6167 = vpack.c.b16 %v6135, %v6135
        %v6168 = vpack.c.b16 %v6136, %v6136
        %v6169 = vpack.c.b16 %v6137, %v6137
        %v6170 = vpack.c.b16 %v6138, %v6138
        %v6171 = vpack.c.b16 %v6139, %v6139
        %v6172 = vpack.c.b16 %v6140, %v6140
        %v6173 = vpack.c.b16 %v6141, %v6141
        %v6174 = vpack.c.b16 %v6142, %v6142
        %v6175 = vpack.c.b16 %v6143, %v6143
        %v6176 = vpack.c.b16 %v6144, %v6144
        %v6177 = vpack.c.b16 %v6145, %v6145
        %v6178 = vpack.c.b16 %v6146, %v6146
        %v6179 = vpack.c.b16 %v6147, %v6147
        %v6180 = vpack.c.b16 %v6148, %v6148
        %v6181 = vpack.c.b16 %v6149, %v6149
        %v6182 = vpack.c.b16 %v6150, %v6150
        %v6183 = vpack.c.b16 %v6151, %v6151
        %v6184 = vpack.c.b16 %v6152, %v6152
        %v6185 = vpack.c.b16 %v6153, %v6153
        %v6186 = vpack.c.b16 %v6154, %v6154
        %v6187 = vpack.c.b16 %v6155, %v6155
        %v6188 = vpack.c.b16 %v6156, %v6156
        %v6189 = vpack.c.b16 %v6157, %v6157
        %v6190 = vpack.c.b16 %v6158, %v6158
        %v6191 = vpack.c.b16 %v6159, %v6159
        %v6192 = vpack.c.b16 %v6160, %v6160
        %6225 = vst.msk [vmem:[%s500 + $0x80] sm:$0xf] %vm3349, %v6161
        %6226 = vst.msk [vmem:[%s500 + $0x84] sm:$0xf] %vm3349, %v6162
        %6227 = vst.msk [vmem:[%s500 + $0x88] sm:$0xf] %vm3349, %v6163
        %6228 = vst.msk [vmem:[%s500 + $0x8c] sm:$0xf] %vm3349, %v6164
        %6229 = vst.msk [vmem:[%s500 + $0x90] sm:$0xf] %vm3349, %v6165
        %6230 = vst.msk [vmem:[%s500 + $0x94] sm:$0xf] %vm3349, %v6166
        %6231 = vst.msk [vmem:[%s500 + $0x98] sm:$0xf] %vm3349, %v6167
        %6232 = vst.msk [vmem:[%s500 + $0x9c] sm:$0xf] %vm3349, %v6168
        %6233 = vst.msk [vmem:[%s500 + $0xa0] sm:$0xf] %vm3349, %v6169
        %6234 = vst.msk [vmem:[%s500 + $0xa4] sm:$0xf] %vm3349, %v6170
        %6235 = vst.msk [vmem:[%s500 + $0xa8] sm:$0xf] %vm3349, %v6171
        %6236 = vst.msk [vmem:[%s500 + $0xac] sm:$0xf] %vm3349, %v6172
        %6237 = vst.msk [vmem:[%s500 + $0xb0] sm:$0xf] %vm3349, %v6173
        %6238 = vst.msk [vmem:[%s500 + $0xb4] sm:$0xf] %vm3349, %v6174
        %6239 = vst.msk [vmem:[%s500 + $0xb8] sm:$0xf] %vm3349, %v6175
        %6240 = vst.msk [vmem:[%s500 + $0xbc] sm:$0xf] %vm3349, %v6176
        %6241 = vst.msk [vmem:[%s500 + $0xc0] sm:$0xf] %vm3349, %v6177
        %6242 = vst.msk [vmem:[%s500 + $0xc4] sm:$0xf] %vm3349, %v6178
        %6243 = vst.msk [vmem:[%s500 + $0xc8] sm:$0xf] %vm3349, %v6179
        %6244 = vst.msk [vmem:[%s500 + $0xcc] sm:$0xf] %vm3349, %v6180
        %6245 = vst.msk [vmem:[%s500 + $0xd0] sm:$0xf] %vm3349, %v6181
        %6246 = vst.msk [vmem:[%s500 + $0xd4] sm:$0xf] %vm3349, %v6182
        %6247 = vst.msk [vmem:[%s500 + $0xd8] sm:$0xf] %vm3349, %v6183
        %6248 = vst.msk [vmem:[%s500 + $0xdc] sm:$0xf] %vm3349, %v6184
        %6249 = vst.msk [vmem:[%s500 + $0xe0] sm:$0xf] %vm3349, %v6185
        %6250 = vst.msk [vmem:[%s500 + $0xe4] sm:$0xf] %vm3349, %v6186
        %6251 = vst.msk [vmem:[%s500 + $0xe8] sm:$0xf] %vm3349, %v6187
        %6252 = vst.msk [vmem:[%s500 + $0xec] sm:$0xf] %vm3349, %v6188
        %6253 = vst.msk [vmem:[%s500 + $0xf0] sm:$0xf] %vm3349, %v6189
        %6254 = vst.msk [vmem:[%s500 + $0xf4] sm:$0xf] %vm3349, %v6190
        %6255 = vst.msk [vmem:[%s500 + $0xf8] sm:$0xf] %vm3349, %v6191
        %6256 = vst.msk [vmem:[%s500 + $0xfc] sm:$0xf] %vm3349, %v6192
        %v6257 = vld [vmem:[%s491 + $0x200] sm:$0xff]
        %v6258 = vld [vmem:[%s491 + $0x208] sm:$0xff]
        %v6259 = vld [vmem:[%s491 + $0x210] sm:$0xff]
        %v6260 = vld [vmem:[%s491 + $0x218] sm:$0xff]
        %v6261 = vld [vmem:[%s491 + $0x220] sm:$0xff]
        %v6262 = vld [vmem:[%s491 + $0x228] sm:$0xff]
        %v6263 = vld [vmem:[%s491 + $0x230] sm:$0xff]
        %v6264 = vld [vmem:[%s491 + $0x238] sm:$0xff]
        %v6265 = vld [vmem:[%s491 + $0x240] sm:$0xff]
        %v6266 = vld [vmem:[%s491 + $0x248] sm:$0xff]
        %v6267 = vld [vmem:[%s491 + $0x250] sm:$0xff]
        %v6268 = vld [vmem:[%s491 + $0x258] sm:$0xff]
        %v6269 = vld [vmem:[%s491 + $0x260] sm:$0xff]
        %v6270 = vld [vmem:[%s491 + $0x268] sm:$0xff]
        %v6271 = vld [vmem:[%s491 + $0x270] sm:$0xff]
        %v6272 = vld [vmem:[%s491 + $0x278] sm:$0xff]
        %v6273 = vld [vmem:[%s491 + $0x280] sm:$0xff]
        %v6274 = vld [vmem:[%s491 + $0x288] sm:$0xff]
        %v6275 = vld [vmem:[%s491 + $0x290] sm:$0xff]
        %v6276 = vld [vmem:[%s491 + $0x298] sm:$0xff]
        %v6277 = vld [vmem:[%s491 + $0x2a0] sm:$0xff]
        %v6278 = vld [vmem:[%s491 + $0x2a8] sm:$0xff]
        %v6279 = vld [vmem:[%s491 + $0x2b0] sm:$0xff]
        %v6280 = vld [vmem:[%s491 + $0x2b8] sm:$0xff]
        %v6281 = vld [vmem:[%s491 + $0x2c0] sm:$0xff]
        %v6282 = vld [vmem:[%s491 + $0x2c8] sm:$0xff]
        %v6283 = vld [vmem:[%s491 + $0x2d0] sm:$0xff]
        %v6284 = vld [vmem:[%s491 + $0x2d8] sm:$0xff]
        %v6285 = vld [vmem:[%s491 + $0x2e0] sm:$0xff]
        %v6286 = vld [vmem:[%s491 + $0x2e8] sm:$0xff]
        %v6287 = vld [vmem:[%s491 + $0x2f0] sm:$0xff]
        %v6288 = vld [vmem:[%s491 + $0x2f8] sm:$0xff]
        %v6289 = vld [vmem:[%s1] sm:$0x1]
        %6291 = vset.pattern.permute.xlu0 0
        %6292 = vperm.xlu0 %6291, %v6257
        %v6293 = vpop.permute.xlu0 %6292
        %6296 = vset.pattern.permute.xlu0 0
        %6297 = vperm.xlu0 %6296, %v6258
        %v6298 = vpop.permute.xlu0 %6297
        %6301 = vset.pattern.permute.xlu0 0
        %6302 = vperm.xlu0 %6301, %v6259
        %v6303 = vpop.permute.xlu0 %6302
        %6306 = vset.pattern.permute.xlu0 0
        %6307 = vperm.xlu0 %6306, %v6260
        %v6308 = vpop.permute.xlu0 %6307
        %6311 = vset.pattern.permute.xlu0 0
        %6312 = vperm.xlu0 %6311, %v6261
        %v6313 = vpop.permute.xlu0 %6312
        %6316 = vset.pattern.permute.xlu0 0
        %6317 = vperm.xlu0 %6316, %v6262
        %v6318 = vpop.permute.xlu0 %6317
        %6321 = vset.pattern.permute.xlu0 0
        %6322 = vperm.xlu0 %6321, %v6263
        %v6323 = vpop.permute.xlu0 %6322
        %6326 = vset.pattern.permute.xlu0 0
        %6327 = vperm.xlu0 %6326, %v6264
        %v6328 = vpop.permute.xlu0 %6327
        %6331 = vset.pattern.permute.xlu0 0
        %6332 = vperm.xlu0 %6331, %v6265
        %v6333 = vpop.permute.xlu0 %6332
        %6336 = vset.pattern.permute.xlu0 0
        %6337 = vperm.xlu0 %6336, %v6266
        %v6338 = vpop.permute.xlu0 %6337
        %6341 = vset.pattern.permute.xlu0 0
        %6342 = vperm.xlu0 %6341, %v6267
        %v6343 = vpop.permute.xlu0 %6342
        %6346 = vset.pattern.permute.xlu0 0
        %6347 = vperm.xlu0 %6346, %v6268
        %v6348 = vpop.permute.xlu0 %6347
        %6351 = vset.pattern.permute.xlu0 0
        %6352 = vperm.xlu0 %6351, %v6269
        %v6353 = vpop.permute.xlu0 %6352
        %6356 = vset.pattern.permute.xlu0 0
        %6357 = vperm.xlu0 %6356, %v6270
        %v6358 = vpop.permute.xlu0 %6357
        %6361 = vset.pattern.permute.xlu0 0
        %6362 = vperm.xlu0 %6361, %v6271
        %v6363 = vpop.permute.xlu0 %6362
        %6366 = vset.pattern.permute.xlu0 0
        %6367 = vperm.xlu0 %6366, %v6272
        %v6368 = vpop.permute.xlu0 %6367
        %6371 = vset.pattern.permute.xlu0 0
        %6372 = vperm.xlu0 %6371, %v6273
        %v6373 = vpop.permute.xlu0 %6372
        %6376 = vset.pattern.permute.xlu0 0
        %6377 = vperm.xlu0 %6376, %v6274
        %v6378 = vpop.permute.xlu0 %6377
        %6381 = vset.pattern.permute.xlu0 0
        %6382 = vperm.xlu0 %6381, %v6275
        %v6383 = vpop.permute.xlu0 %6382
        %6386 = vset.pattern.permute.xlu0 0
        %6387 = vperm.xlu0 %6386, %v6276
        %v6388 = vpop.permute.xlu0 %6387
        %6391 = vset.pattern.permute.xlu0 0
        %6392 = vperm.xlu0 %6391, %v6277
        %v6393 = vpop.permute.xlu0 %6392
        %6396 = vset.pattern.permute.xlu0 0
        %6397 = vperm.xlu0 %6396, %v6278
        %v6398 = vpop.permute.xlu0 %6397
        %6401 = vset.pattern.permute.xlu0 0
        %6402 = vperm.xlu0 %6401, %v6279
        %v6403 = vpop.permute.xlu0 %6402
        %6406 = vset.pattern.permute.xlu0 0
        %6407 = vperm.xlu0 %6406, %v6280
        %v6408 = vpop.permute.xlu0 %6407
        %6411 = vset.pattern.permute.xlu0 0
        %6412 = vperm.xlu0 %6411, %v6281
        %v6413 = vpop.permute.xlu0 %6412
        %6416 = vset.pattern.permute.xlu0 0
        %6417 = vperm.xlu0 %6416, %v6282
        %v6418 = vpop.permute.xlu0 %6417
        %6421 = vset.pattern.permute.xlu0 0
        %6422 = vperm.xlu0 %6421, %v6283
        %v6423 = vpop.permute.xlu0 %6422
        %6426 = vset.pattern.permute.xlu0 0
        %6427 = vperm.xlu0 %6426, %v6284
        %v6428 = vpop.permute.xlu0 %6427
        %6431 = vset.pattern.permute.xlu0 0
        %6432 = vperm.xlu0 %6431, %v6285
        %v6433 = vpop.permute.xlu0 %6432
        %6436 = vset.pattern.permute.xlu0 0
        %6437 = vperm.xlu0 %6436, %v6286
        %v6438 = vpop.permute.xlu0 %6437
        %6441 = vset.pattern.permute.xlu0 0
        %6442 = vperm.xlu0 %6441, %v6287
        %v6443 = vpop.permute.xlu0 %6442
        %6446 = vset.pattern.permute.xlu0 0
        %6447 = vperm.xlu0 %6446, %v6288
        %v6448 = vpop.permute.xlu0 %6447
        %v6450 = vlaneseq
        %v6451 = vshrl.u32 %v6450, 7
        %v6452 = vsub.s32 0, %v6451
        %v6453 = vrot.slane %v6289, %v6452
        %v6454 = vmul.f32 %v6293, %v6453
        %v6455 = vmul.f32 %v6298, %v6453
        %v6456 = vmul.f32 %v6303, %v6453
        %v6457 = vmul.f32 %v6308, %v6453
        %v6458 = vmul.f32 %v6313, %v6453
        %v6459 = vmul.f32 %v6318, %v6453
        %v6460 = vmul.f32 %v6323, %v6453
        %v6461 = vmul.f32 %v6328, %v6453
        %v6462 = vmul.f32 %v6333, %v6453
        %v6463 = vmul.f32 %v6338, %v6453
        %v6464 = vmul.f32 %v6343, %v6453
        %v6465 = vmul.f32 %v6348, %v6453
        %v6466 = vmul.f32 %v6353, %v6453
        %v6467 = vmul.f32 %v6358, %v6453
        %v6468 = vmul.f32 %v6363, %v6453
        %v6469 = vmul.f32 %v6368, %v6453
        %v6470 = vmul.f32 %v6373, %v6453
        %v6471 = vmul.f32 %v6378, %v6453
        %v6472 = vmul.f32 %v6383, %v6453
        %v6473 = vmul.f32 %v6388, %v6453
        %v6474 = vmul.f32 %v6393, %v6453
        %v6475 = vmul.f32 %v6398, %v6453
        %v6476 = vmul.f32 %v6403, %v6453
        %v6477 = vmul.f32 %v6408, %v6453
        %v6478 = vmul.f32 %v6413, %v6453
        %v6479 = vmul.f32 %v6418, %v6453
        %v6480 = vmul.f32 %v6423, %v6453
        %v6481 = vmul.f32 %v6428, %v6453
        %v6482 = vmul.f32 %v6433, %v6453
        %v6483 = vmul.f32 %v6438, %v6453
        %v6484 = vmul.f32 %v6443, %v6453
        %v6485 = vmul.f32 %v6448, %v6453
        %v6486 = vld [vmem:[%s1 + $0x1] sm:$0x1]
        %6487 = vset.pattern.permute.xlu0 1
        %6488 = vperm.xlu0 %6487, %v6257
        %v6489 = vpop.permute.xlu0 %6488
        %6491 = vset.pattern.permute.xlu0 1
        %6492 = vperm.xlu0 %6491, %v6258
        %v6493 = vpop.permute.xlu0 %6492
        %6495 = vset.pattern.permute.xlu0 1
        %6496 = vperm.xlu0 %6495, %v6259
        %v6497 = vpop.permute.xlu0 %6496
        %6499 = vset.pattern.permute.xlu0 1
        %6500 = vperm.xlu0 %6499, %v6260
        %v6501 = vpop.permute.xlu0 %6500
        %6503 = vset.pattern.permute.xlu0 1
        %6504 = vperm.xlu0 %6503, %v6261
        %v6505 = vpop.permute.xlu0 %6504
        %6507 = vset.pattern.permute.xlu0 1
        %6508 = vperm.xlu0 %6507, %v6262
        %v6509 = vpop.permute.xlu0 %6508
        %6511 = vset.pattern.permute.xlu0 1
        %6512 = vperm.xlu0 %6511, %v6263
        %v6513 = vpop.permute.xlu0 %6512
        %6515 = vset.pattern.permute.xlu0 1
        %6516 = vperm.xlu0 %6515, %v6264
        %v6517 = vpop.permute.xlu0 %6516
        %6519 = vset.pattern.permute.xlu0 1
        %6520 = vperm.xlu0 %6519, %v6265
        %v6521 = vpop.permute.xlu0 %6520
        %6523 = vset.pattern.permute.xlu0 1
        %6524 = vperm.xlu0 %6523, %v6266
        %v6525 = vpop.permute.xlu0 %6524
        %6527 = vset.pattern.permute.xlu0 1
        %6528 = vperm.xlu0 %6527, %v6267
        %v6529 = vpop.permute.xlu0 %6528
        %6531 = vset.pattern.permute.xlu0 1
        %6532 = vperm.xlu0 %6531, %v6268
        %v6533 = vpop.permute.xlu0 %6532
        %6535 = vset.pattern.permute.xlu0 1
        %6536 = vperm.xlu0 %6535, %v6269
        %v6537 = vpop.permute.xlu0 %6536
        %6539 = vset.pattern.permute.xlu0 1
        %6540 = vperm.xlu0 %6539, %v6270
        %v6541 = vpop.permute.xlu0 %6540
        %6543 = vset.pattern.permute.xlu0 1
        %6544 = vperm.xlu0 %6543, %v6271
        %v6545 = vpop.permute.xlu0 %6544
        %6547 = vset.pattern.permute.xlu0 1
        %6548 = vperm.xlu0 %6547, %v6272
        %v6549 = vpop.permute.xlu0 %6548
        %6551 = vset.pattern.permute.xlu0 1
        %6552 = vperm.xlu0 %6551, %v6273
        %v6553 = vpop.permute.xlu0 %6552
        %6555 = vset.pattern.permute.xlu0 1
        %6556 = vperm.xlu0 %6555, %v6274
        %v6557 = vpop.permute.xlu0 %6556
        %6559 = vset.pattern.permute.xlu0 1
        %6560 = vperm.xlu0 %6559, %v6275
        %v6561 = vpop.permute.xlu0 %6560
        %6563 = vset.pattern.permute.xlu0 1
        %6564 = vperm.xlu0 %6563, %v6276
        %v6565 = vpop.permute.xlu0 %6564
        %6567 = vset.pattern.permute.xlu0 1
        %6568 = vperm.xlu0 %6567, %v6277
        %v6569 = vpop.permute.xlu0 %6568
        %6571 = vset.pattern.permute.xlu0 1
        %6572 = vperm.xlu0 %6571, %v6278
        %v6573 = vpop.permute.xlu0 %6572
        %6575 = vset.pattern.permute.xlu0 1
        %6576 = vperm.xlu0 %6575, %v6279
        %v6577 = vpop.permute.xlu0 %6576
        %6579 = vset.pattern.permute.xlu0 1
        %6580 = vperm.xlu0 %6579, %v6280
        %v6581 = vpop.permute.xlu0 %6580
        %6583 = vset.pattern.permute.xlu0 1
        %6584 = vperm.xlu0 %6583, %v6281
        %v6585 = vpop.permute.xlu0 %6584
        %6587 = vset.pattern.permute.xlu0 1
        %6588 = vperm.xlu0 %6587, %v6282
        %v6589 = vpop.permute.xlu0 %6588
        %6591 = vset.pattern.permute.xlu0 1
        %6592 = vperm.xlu0 %6591, %v6283
        %v6593 = vpop.permute.xlu0 %6592
        %6595 = vset.pattern.permute.xlu0 1
        %6596 = vperm.xlu0 %6595, %v6284
        %v6597 = vpop.permute.xlu0 %6596
        %6599 = vset.pattern.permute.xlu0 1
        %6600 = vperm.xlu0 %6599, %v6285
        %v6601 = vpop.permute.xlu0 %6600
        %6603 = vset.pattern.permute.xlu0 1
        %6604 = vperm.xlu0 %6603, %v6286
        %v6605 = vpop.permute.xlu0 %6604
        %6607 = vset.pattern.permute.xlu0 1
        %6608 = vperm.xlu0 %6607, %v6287
        %v6609 = vpop.permute.xlu0 %6608
        %6611 = vset.pattern.permute.xlu0 1
        %6612 = vperm.xlu0 %6611, %v6288
        %v6613 = vpop.permute.xlu0 %6612
        %v6615 = vlaneseq
        %v6616 = vshrl.u32 %v6615, 7
        %v6617 = vsub.s32 0, %v6616
        %v6618 = vrot.slane %v6486, %v6617
        %v6619 = vmul.f32 %v6489, %v6618
        %v6620 = vmul.f32 %v6493, %v6618
        %v6621 = vmul.f32 %v6497, %v6618
        %v6622 = vmul.f32 %v6501, %v6618
        %v6623 = vmul.f32 %v6505, %v6618
        %v6624 = vmul.f32 %v6509, %v6618
        %v6625 = vmul.f32 %v6513, %v6618
        %v6626 = vmul.f32 %v6517, %v6618
        %v6627 = vmul.f32 %v6521, %v6618
        %v6628 = vmul.f32 %v6525, %v6618
        %v6629 = vmul.f32 %v6529, %v6618
        %v6630 = vmul.f32 %v6533, %v6618
        %v6631 = vmul.f32 %v6537, %v6618
        %v6632 = vmul.f32 %v6541, %v6618
        %v6633 = vmul.f32 %v6545, %v6618
        %v6634 = vmul.f32 %v6549, %v6618
        %v6635 = vmul.f32 %v6553, %v6618
        %v6636 = vmul.f32 %v6557, %v6618
        %v6637 = vmul.f32 %v6561, %v6618
        %v6638 = vmul.f32 %v6565, %v6618
        %v6639 = vmul.f32 %v6569, %v6618
        %v6640 = vmul.f32 %v6573, %v6618
        %v6641 = vmul.f32 %v6577, %v6618
        %v6642 = vmul.f32 %v6581, %v6618
        %v6643 = vmul.f32 %v6585, %v6618
        %v6644 = vmul.f32 %v6589, %v6618
        %v6645 = vmul.f32 %v6593, %v6618
        %v6646 = vmul.f32 %v6597, %v6618
        %v6647 = vmul.f32 %v6601, %v6618
        %v6648 = vmul.f32 %v6605, %v6618
        %v6649 = vmul.f32 %v6609, %v6618
        %v6650 = vmul.f32 %v6613, %v6618
        %v6651 = vadd.f32 %v6454, %v6619
        %v6652 = vadd.f32 %v6455, %v6620
        %v6653 = vadd.f32 %v6456, %v6621
        %v6654 = vadd.f32 %v6457, %v6622
        %v6655 = vadd.f32 %v6458, %v6623
        %v6656 = vadd.f32 %v6459, %v6624
        %v6657 = vadd.f32 %v6460, %v6625
        %v6658 = vadd.f32 %v6461, %v6626
        %v6659 = vadd.f32 %v6462, %v6627
        %v6660 = vadd.f32 %v6463, %v6628
        %v6661 = vadd.f32 %v6464, %v6629
        %v6662 = vadd.f32 %v6465, %v6630
        %v6663 = vadd.f32 %v6466, %v6631
        %v6664 = vadd.f32 %v6467, %v6632
        %v6665 = vadd.f32 %v6468, %v6633
        %v6666 = vadd.f32 %v6469, %v6634
        %v6667 = vadd.f32 %v6470, %v6635
        %v6668 = vadd.f32 %v6471, %v6636
        %v6669 = vadd.f32 %v6472, %v6637
        %v6670 = vadd.f32 %v6473, %v6638
        %v6671 = vadd.f32 %v6474, %v6639
        %v6672 = vadd.f32 %v6475, %v6640
        %v6673 = vadd.f32 %v6476, %v6641
        %v6674 = vadd.f32 %v6477, %v6642
        %v6675 = vadd.f32 %v6478, %v6643
        %v6676 = vadd.f32 %v6479, %v6644
        %v6677 = vadd.f32 %v6480, %v6645
        %v6678 = vadd.f32 %v6481, %v6646
        %v6679 = vadd.f32 %v6482, %v6647
        %v6680 = vadd.f32 %v6483, %v6648
        %v6681 = vadd.f32 %v6484, %v6649
        %v6682 = vadd.f32 %v6485, %v6650
        %v6683 = vld [vmem:[%s1 + $0x2] sm:$0x1]
        %6684 = vset.pattern.permute.xlu0 2
        %6685 = vperm.xlu0 %6684, %v6257
        %v6686 = vpop.permute.xlu0 %6685
        %6688 = vset.pattern.permute.xlu0 2
        %6689 = vperm.xlu0 %6688, %v6258
        %v6690 = vpop.permute.xlu0 %6689
        %6692 = vset.pattern.permute.xlu0 2
        %6693 = vperm.xlu0 %6692, %v6259
        %v6694 = vpop.permute.xlu0 %6693
        %6696 = vset.pattern.permute.xlu0 2
        %6697 = vperm.xlu0 %6696, %v6260
        %v6698 = vpop.permute.xlu0 %6697
        %6700 = vset.pattern.permute.xlu0 2
        %6701 = vperm.xlu0 %6700, %v6261
        %v6702 = vpop.permute.xlu0 %6701
        %6704 = vset.pattern.permute.xlu0 2
        %6705 = vperm.xlu0 %6704, %v6262
        %v6706 = vpop.permute.xlu0 %6705
        %6708 = vset.pattern.permute.xlu0 2
        %6709 = vperm.xlu0 %6708, %v6263
        %v6710 = vpop.permute.xlu0 %6709
        %6712 = vset.pattern.permute.xlu0 2
        %6713 = vperm.xlu0 %6712, %v6264
        %v6714 = vpop.permute.xlu0 %6713
        %6716 = vset.pattern.permute.xlu0 2
        %6717 = vperm.xlu0 %6716, %v6265
        %v6718 = vpop.permute.xlu0 %6717
        %6720 = vset.pattern.permute.xlu0 2
        %6721 = vperm.xlu0 %6720, %v6266
        %v6722 = vpop.permute.xlu0 %6721
        %6724 = vset.pattern.permute.xlu0 2
        %6725 = vperm.xlu0 %6724, %v6267
        %v6726 = vpop.permute.xlu0 %6725
        %6728 = vset.pattern.permute.xlu0 2
        %6729 = vperm.xlu0 %6728, %v6268
        %v6730 = vpop.permute.xlu0 %6729
        %6732 = vset.pattern.permute.xlu0 2
        %6733 = vperm.xlu0 %6732, %v6269
        %v6734 = vpop.permute.xlu0 %6733
        %6736 = vset.pattern.permute.xlu0 2
        %6737 = vperm.xlu0 %6736, %v6270
        %v6738 = vpop.permute.xlu0 %6737
        %6740 = vset.pattern.permute.xlu0 2
        %6741 = vperm.xlu0 %6740, %v6271
        %v6742 = vpop.permute.xlu0 %6741
        %6744 = vset.pattern.permute.xlu0 2
        %6745 = vperm.xlu0 %6744, %v6272
        %v6746 = vpop.permute.xlu0 %6745
        %6748 = vset.pattern.permute.xlu0 2
        %6749 = vperm.xlu0 %6748, %v6273
        %v6750 = vpop.permute.xlu0 %6749
        %6752 = vset.pattern.permute.xlu0 2
        %6753 = vperm.xlu0 %6752, %v6274
        %v6754 = vpop.permute.xlu0 %6753
        %6756 = vset.pattern.permute.xlu0 2
        %6757 = vperm.xlu0 %6756, %v6275
        %v6758 = vpop.permute.xlu0 %6757
        %6760 = vset.pattern.permute.xlu0 2
        %6761 = vperm.xlu0 %6760, %v6276
        %v6762 = vpop.permute.xlu0 %6761
        %6764 = vset.pattern.permute.xlu0 2
        %6765 = vperm.xlu0 %6764, %v6277
        %v6766 = vpop.permute.xlu0 %6765
        %6768 = vset.pattern.permute.xlu0 2
        %6769 = vperm.xlu0 %6768, %v6278
        %v6770 = vpop.permute.xlu0 %6769
        %6772 = vset.pattern.permute.xlu0 2
        %6773 = vperm.xlu0 %6772, %v6279
        %v6774 = vpop.permute.xlu0 %6773
        %6776 = vset.pattern.permute.xlu0 2
        %6777 = vperm.xlu0 %6776, %v6280
        %v6778 = vpop.permute.xlu0 %6777
        %6780 = vset.pattern.permute.xlu0 2
        %6781 = vperm.xlu0 %6780, %v6281
        %v6782 = vpop.permute.xlu0 %6781
        %6784 = vset.pattern.permute.xlu0 2
        %6785 = vperm.xlu0 %6784, %v6282
        %v6786 = vpop.permute.xlu0 %6785
        %6788 = vset.pattern.permute.xlu0 2
        %6789 = vperm.xlu0 %6788, %v6283
        %v6790 = vpop.permute.xlu0 %6789
        %6792 = vset.pattern.permute.xlu0 2
        %6793 = vperm.xlu0 %6792, %v6284
        %v6794 = vpop.permute.xlu0 %6793
        %6796 = vset.pattern.permute.xlu0 2
        %6797 = vperm.xlu0 %6796, %v6285
        %v6798 = vpop.permute.xlu0 %6797
        %6800 = vset.pattern.permute.xlu0 2
        %6801 = vperm.xlu0 %6800, %v6286
        %v6802 = vpop.permute.xlu0 %6801
        %6804 = vset.pattern.permute.xlu0 2
        %6805 = vperm.xlu0 %6804, %v6287
        %v6806 = vpop.permute.xlu0 %6805
        %6808 = vset.pattern.permute.xlu0 2
        %6809 = vperm.xlu0 %6808, %v6288
        %v6810 = vpop.permute.xlu0 %6809
        %v6812 = vlaneseq
        %v6813 = vshrl.u32 %v6812, 7
        %v6814 = vsub.s32 0, %v6813
        %v6815 = vrot.slane %v6683, %v6814
        %v6816 = vmul.f32 %v6686, %v6815
        %v6817 = vmul.f32 %v6690, %v6815
        %v6818 = vmul.f32 %v6694, %v6815
        %v6819 = vmul.f32 %v6698, %v6815
        %v6820 = vmul.f32 %v6702, %v6815
        %v6821 = vmul.f32 %v6706, %v6815
        %v6822 = vmul.f32 %v6710, %v6815
        %v6823 = vmul.f32 %v6714, %v6815
        %v6824 = vmul.f32 %v6718, %v6815
        %v6825 = vmul.f32 %v6722, %v6815
        %v6826 = vmul.f32 %v6726, %v6815
        %v6827 = vmul.f32 %v6730, %v6815
        %v6828 = vmul.f32 %v6734, %v6815
        %v6829 = vmul.f32 %v6738, %v6815
        %v6830 = vmul.f32 %v6742, %v6815
        %v6831 = vmul.f32 %v6746, %v6815
        %v6832 = vmul.f32 %v6750, %v6815
        %v6833 = vmul.f32 %v6754, %v6815
        %v6834 = vmul.f32 %v6758, %v6815
        %v6835 = vmul.f32 %v6762, %v6815
        %v6836 = vmul.f32 %v6766, %v6815
        %v6837 = vmul.f32 %v6770, %v6815
        %v6838 = vmul.f32 %v6774, %v6815
        %v6839 = vmul.f32 %v6778, %v6815
        %v6840 = vmul.f32 %v6782, %v6815
        %v6841 = vmul.f32 %v6786, %v6815
        %v6842 = vmul.f32 %v6790, %v6815
        %v6843 = vmul.f32 %v6794, %v6815
        %v6844 = vmul.f32 %v6798, %v6815
        %v6845 = vmul.f32 %v6802, %v6815
        %v6846 = vmul.f32 %v6806, %v6815
        %v6847 = vmul.f32 %v6810, %v6815
        %v6848 = vadd.f32 %v6651, %v6816
        %v6849 = vadd.f32 %v6652, %v6817
        %v6850 = vadd.f32 %v6653, %v6818
        %v6851 = vadd.f32 %v6654, %v6819
        %v6852 = vadd.f32 %v6655, %v6820
        %v6853 = vadd.f32 %v6656, %v6821
        %v6854 = vadd.f32 %v6657, %v6822
        %v6855 = vadd.f32 %v6658, %v6823
        %v6856 = vadd.f32 %v6659, %v6824
        %v6857 = vadd.f32 %v6660, %v6825
        %v6858 = vadd.f32 %v6661, %v6826
        %v6859 = vadd.f32 %v6662, %v6827
        %v6860 = vadd.f32 %v6663, %v6828
        %v6861 = vadd.f32 %v6664, %v6829
        %v6862 = vadd.f32 %v6665, %v6830
        %v6863 = vadd.f32 %v6666, %v6831
        %v6864 = vadd.f32 %v6667, %v6832
        %v6865 = vadd.f32 %v6668, %v6833
        %v6866 = vadd.f32 %v6669, %v6834
        %v6867 = vadd.f32 %v6670, %v6835
        %v6868 = vadd.f32 %v6671, %v6836
        %v6869 = vadd.f32 %v6672, %v6837
        %v6870 = vadd.f32 %v6673, %v6838
        %v6871 = vadd.f32 %v6674, %v6839
        %v6872 = vadd.f32 %v6675, %v6840
        %v6873 = vadd.f32 %v6676, %v6841
        %v6874 = vadd.f32 %v6677, %v6842
        %v6875 = vadd.f32 %v6678, %v6843
        %v6876 = vadd.f32 %v6679, %v6844
        %v6877 = vadd.f32 %v6680, %v6845
        %v6878 = vadd.f32 %v6681, %v6846
        %v6879 = vadd.f32 %v6682, %v6847
        %v6880 = vld [vmem:[%s2] sm:$0x1]
        %v6882 = vlaneseq
        %v6883 = vshrl.u32 %v6882, 7
        %v6884 = vsub.s32 0, %v6883
        %v6885 = vrot.slane %v6880, %v6884
        %v6887 = vadd.f32 %v6848, %v6885
        %v6888 = vadd.f32 %v6849, %v6885
        %v6889 = vadd.f32 %v6850, %v6885
        %v6890 = vadd.f32 %v6851, %v6885
        %v6891 = vadd.f32 %v6852, %v6885
        %v6892 = vadd.f32 %v6853, %v6885
        %v6893 = vadd.f32 %v6854, %v6885
        %v6894 = vadd.f32 %v6855, %v6885
        %v6895 = vadd.f32 %v6856, %v6885
        %v6896 = vadd.f32 %v6857, %v6885
        %v6897 = vadd.f32 %v6858, %v6885
        %v6898 = vadd.f32 %v6859, %v6885
        %v6899 = vadd.f32 %v6860, %v6885
        %v6900 = vadd.f32 %v6861, %v6885
        %v6901 = vadd.f32 %v6862, %v6885
        %v6902 = vadd.f32 %v6863, %v6885
        %v6903 = vadd.f32 %v6864, %v6885
        %v6904 = vadd.f32 %v6865, %v6885
        %v6905 = vadd.f32 %v6866, %v6885
        %v6906 = vadd.f32 %v6867, %v6885
        %v6907 = vadd.f32 %v6868, %v6885
        %v6908 = vadd.f32 %v6869, %v6885
        %v6909 = vadd.f32 %v6870, %v6885
        %v6910 = vadd.f32 %v6871, %v6885
        %v6911 = vadd.f32 %v6872, %v6885
        %v6912 = vadd.f32 %v6873, %v6885
        %v6913 = vadd.f32 %v6874, %v6885
        %v6914 = vadd.f32 %v6875, %v6885
        %v6915 = vadd.f32 %v6876, %v6885
        %v6916 = vadd.f32 %v6877, %v6885
        %v6917 = vadd.f32 %v6878, %v6885
        %v6918 = vadd.f32 %v6879, %v6885
        %v6919 = vmax.f32 %v6887, 0.0
        %v6920 = vmax.f32 %v6888, 0.0
        %v6921 = vmax.f32 %v6889, 0.0
        %v6922 = vmax.f32 %v6890, 0.0
        %v6923 = vmax.f32 %v6891, 0.0
        %v6924 = vmax.f32 %v6892, 0.0
        %v6925 = vmax.f32 %v6893, 0.0
        %v6926 = vmax.f32 %v6894, 0.0
        %v6927 = vmax.f32 %v6895, 0.0
        %v6928 = vmax.f32 %v6896, 0.0
        %v6929 = vmax.f32 %v6897, 0.0
        %v6930 = vmax.f32 %v6898, 0.0
        %v6931 = vmax.f32 %v6899, 0.0
        %v6932 = vmax.f32 %v6900, 0.0
        %v6933 = vmax.f32 %v6901, 0.0
        %v6934 = vmax.f32 %v6902, 0.0
        %v6935 = vmax.f32 %v6903, 0.0
        %v6936 = vmax.f32 %v6904, 0.0
        %v6937 = vmax.f32 %v6905, 0.0
        %v6938 = vmax.f32 %v6906, 0.0
        %v6939 = vmax.f32 %v6907, 0.0
        %v6940 = vmax.f32 %v6908, 0.0
        %v6941 = vmax.f32 %v6909, 0.0
        %v6942 = vmax.f32 %v6910, 0.0
        %v6943 = vmax.f32 %v6911, 0.0
        %v6944 = vmax.f32 %v6912, 0.0
        %v6945 = vmax.f32 %v6913, 0.0
        %v6946 = vmax.f32 %v6914, 0.0
        %v6947 = vmax.f32 %v6915, 0.0
        %v6948 = vmax.f32 %v6916, 0.0
        %v6949 = vmax.f32 %v6917, 0.0
        %v6950 = vmax.f32 %v6918, 0.0
        %v6951 = vpack.c.bf16 %v6920, %v6919
        %v6952 = vpack.c.bf16 %v6922, %v6921
        %v6953 = vpack.c.bf16 %v6924, %v6923
        %v6954 = vpack.c.bf16 %v6926, %v6925
        %v6955 = vpack.c.bf16 %v6928, %v6927
        %v6956 = vpack.c.bf16 %v6930, %v6929
        %v6957 = vpack.c.bf16 %v6932, %v6931
        %v6958 = vpack.c.bf16 %v6934, %v6933
        %v6959 = vpack.c.bf16 %v6936, %v6935
        %v6960 = vpack.c.bf16 %v6938, %v6937
        %v6961 = vpack.c.bf16 %v6940, %v6939
        %v6962 = vpack.c.bf16 %v6942, %v6941
        %v6963 = vpack.c.bf16 %v6944, %v6943
        %v6964 = vpack.c.bf16 %v6946, %v6945
        %v6965 = vpack.c.bf16 %v6948, %v6947
        %v6966 = vpack.c.bf16 %v6950, %v6949
        %v6983 = vunpack.c.l.b16 %v6951
        %v6984 = vunpack.c.h.b16 %v6951
        %v6985 = vunpack.c.l.b16 %v6952
        %v6986 = vunpack.c.h.b16 %v6952
        %v6987 = vunpack.c.l.b16 %v6953
        %v6988 = vunpack.c.h.b16 %v6953
        %v6989 = vunpack.c.l.b16 %v6954
        %v6990 = vunpack.c.h.b16 %v6954
        %v6991 = vunpack.c.l.b16 %v6955
        %v6992 = vunpack.c.h.b16 %v6955
        %v6993 = vunpack.c.l.b16 %v6956
        %v6994 = vunpack.c.h.b16 %v6956
        %v6995 = vunpack.c.l.b16 %v6957
        %v6996 = vunpack.c.h.b16 %v6957
        %v6997 = vunpack.c.l.b16 %v6958
        %v6998 = vunpack.c.h.b16 %v6958
        %v6999 = vunpack.c.l.b16 %v6959
        %v7000 = vunpack.c.h.b16 %v6959
        %v7001 = vunpack.c.l.b16 %v6960
        %v7002 = vunpack.c.h.b16 %v6960
        %v7003 = vunpack.c.l.b16 %v6961
        %v7004 = vunpack.c.h.b16 %v6961
        %v7005 = vunpack.c.l.b16 %v6962
        %v7006 = vunpack.c.h.b16 %v6962
        %v7007 = vunpack.c.l.b16 %v6963
        %v7008 = vunpack.c.h.b16 %v6963
        %v7009 = vunpack.c.l.b16 %v6964
        %v7010 = vunpack.c.h.b16 %v6964
        %v7011 = vunpack.c.l.b16 %v6965
        %v7012 = vunpack.c.h.b16 %v6965
        %v7013 = vunpack.c.l.b16 %v6966
        %v7014 = vunpack.c.h.b16 %v6966
        %v7015 = vpack.c.b16 %v6983, %v6983
        %v7016 = vpack.c.b16 %v6984, %v6984
        %v7017 = vpack.c.b16 %v6985, %v6985
        %v7018 = vpack.c.b16 %v6986, %v6986
        %v7019 = vpack.c.b16 %v6987, %v6987
        %v7020 = vpack.c.b16 %v6988, %v6988
        %v7021 = vpack.c.b16 %v6989, %v6989
        %v7022 = vpack.c.b16 %v6990, %v6990
        %v7023 = vpack.c.b16 %v6991, %v6991
        %v7024 = vpack.c.b16 %v6992, %v6992
        %v7025 = vpack.c.b16 %v6993, %v6993
        %v7026 = vpack.c.b16 %v6994, %v6994
        %v7027 = vpack.c.b16 %v6995, %v6995
        %v7028 = vpack.c.b16 %v6996, %v6996
        %v7029 = vpack.c.b16 %v6997, %v6997
        %v7030 = vpack.c.b16 %v6998, %v6998
        %v7031 = vpack.c.b16 %v6999, %v6999
        %v7032 = vpack.c.b16 %v7000, %v7000
        %v7033 = vpack.c.b16 %v7001, %v7001
        %v7034 = vpack.c.b16 %v7002, %v7002
        %v7035 = vpack.c.b16 %v7003, %v7003
        %v7036 = vpack.c.b16 %v7004, %v7004
        %v7037 = vpack.c.b16 %v7005, %v7005
        %v7038 = vpack.c.b16 %v7006, %v7006
        %v7039 = vpack.c.b16 %v7007, %v7007
        %v7040 = vpack.c.b16 %v7008, %v7008
        %v7041 = vpack.c.b16 %v7009, %v7009
        %v7042 = vpack.c.b16 %v7010, %v7010
        %v7043 = vpack.c.b16 %v7011, %v7011
        %v7044 = vpack.c.b16 %v7012, %v7012
        %v7045 = vpack.c.b16 %v7013, %v7013
        %v7046 = vpack.c.b16 %v7014, %v7014
        %7079 = vst.msk [vmem:[%s465 + $0x100] sm:$0xf] %vm1325, %v7015
        %7080 = vst.msk [vmem:[%s465 + $0x104] sm:$0xf] %vm1325, %v7016
        %7081 = vst.msk [vmem:[%s465 + $0x108] sm:$0xf] %vm1325, %v7017
        %7082 = vst.msk [vmem:[%s465 + $0x10c] sm:$0xf] %vm1325, %v7018
        %7083 = vst.msk [vmem:[%s465 + $0x110] sm:$0xf] %vm1325, %v7019
        %7084 = vst.msk [vmem:[%s465 + $0x114] sm:$0xf] %vm1325, %v7020
        %7085 = vst.msk [vmem:[%s465 + $0x118] sm:$0xf] %vm1325, %v7021
        %7086 = vst.msk [vmem:[%s465 + $0x11c] sm:$0xf] %vm1325, %v7022
        %7087 = vst.msk [vmem:[%s465 + $0x120] sm:$0xf] %vm1325, %v7023
        %7088 = vst.msk [vmem:[%s465 + $0x124] sm:$0xf] %vm1325, %v7024
        %7089 = vst.msk [vmem:[%s465 + $0x128] sm:$0xf] %vm1325, %v7025
        %7090 = vst.msk [vmem:[%s465 + $0x12c] sm:$0xf] %vm1325, %v7026
        %7091 = vst.msk [vmem:[%s465 + $0x130] sm:$0xf] %vm1325, %v7027
        %7092 = vst.msk [vmem:[%s465 + $0x134] sm:$0xf] %vm1325, %v7028
        %7093 = vst.msk [vmem:[%s465 + $0x138] sm:$0xf] %vm1325, %v7029
        %7094 = vst.msk [vmem:[%s465 + $0x13c] sm:$0xf] %vm1325, %v7030
        %7095 = vst.msk [vmem:[%s465 + $0x140] sm:$0xf] %vm1325, %v7031
        %7096 = vst.msk [vmem:[%s465 + $0x144] sm:$0xf] %vm1325, %v7032
        %7097 = vst.msk [vmem:[%s465 + $0x148] sm:$0xf] %vm1325, %v7033
        %7098 = vst.msk [vmem:[%s465 + $0x14c] sm:$0xf] %vm1325, %v7034
        %7099 = vst.msk [vmem:[%s465 + $0x150] sm:$0xf] %vm1325, %v7035
        %7100 = vst.msk [vmem:[%s465 + $0x154] sm:$0xf] %vm1325, %v7036
        %7101 = vst.msk [vmem:[%s465 + $0x158] sm:$0xf] %vm1325, %v7037
        %7102 = vst.msk [vmem:[%s465 + $0x15c] sm:$0xf] %vm1325, %v7038
        %7103 = vst.msk [vmem:[%s465 + $0x160] sm:$0xf] %vm1325, %v7039
        %7104 = vst.msk [vmem:[%s465 + $0x164] sm:$0xf] %vm1325, %v7040
        %7105 = vst.msk [vmem:[%s465 + $0x168] sm:$0xf] %vm1325, %v7041
        %7106 = vst.msk [vmem:[%s465 + $0x16c] sm:$0xf] %vm1325, %v7042
        %7107 = vst.msk [vmem:[%s465 + $0x170] sm:$0xf] %vm1325, %v7043
        %7108 = vst.msk [vmem:[%s465 + $0x174] sm:$0xf] %vm1325, %v7044
        %7109 = vst.msk [vmem:[%s465 + $0x178] sm:$0xf] %vm1325, %v7045
        %7110 = vst.msk [vmem:[%s465 + $0x17c] sm:$0xf] %vm1325, %v7046
        %v7111 = vld [vmem:[%s3] sm:$0xf]
        %v7112 = vld [vmem:[%s3 + $0x4] sm:$0xf]
        %v7113 = vld [vmem:[%s3 + $0x8] sm:$0xf]
        %v7114 = vld [vmem:[%s3 + $0xc] sm:$0xf]
        %v7115 = vld [vmem:[%s3 + $0x10] sm:$0xf]
        %v7116 = vld [vmem:[%s3 + $0x14] sm:$0xf]
        %v7117 = vld [vmem:[%s3 + $0x18] sm:$0xf]
        %v7118 = vld [vmem:[%s3 + $0x1c] sm:$0xf]
        %v7119 = vld [vmem:[%s4] sm:$0x1]
        %v7121 = vlaneseq
        %v7122 = vshrl.u32 %v7121, 7
        %v7123 = vsub.s32 0, %v7122
        %v7124 = vrot.slane %v7119, %v7123
        %v7134 = vunpack.c.l.b16 %v7111
        %v7135 = vunpack.c.l.b16 %v7112
        %v7136 = vunpack.c.l.b16 %v7113
        %v7137 = vunpack.c.l.b16 %v7114
        %v7138 = vunpack.c.l.b16 %v7115
        %v7139 = vunpack.c.l.b16 %v7116
        %v7140 = vunpack.c.l.b16 %v7117
        %v7141 = vunpack.c.l.b16 %v7118
        %v7142 = vpack.c.b16 %v7135, %v7134
        %v7143 = vpack.c.b16 %v7137, %v7136
        %v7144 = vpack.c.b16 %v7139, %v7138
        %v7145 = vpack.c.b16 %v7141, %v7140
        %v7151 = vsel %vm1397, %v6951, 0
        %v7154 = vsel %vm1397, %v6952, 0
        %v7157 = vsel %vm1397, %v6953, 0
        %v7160 = vsel %vm1397, %v6954, 0
        %v7163 = vsel %vm1397, %v6955, 0
        %v7166 = vsel %vm1397, %v6956, 0
        %v7169 = vsel %vm1397, %v6957, 0
        %v7172 = vsel %vm1397, %v6958, 0
        %v7175 = vsel %vm1397, %v6959, 0
        %v7178 = vsel %vm1397, %v6960, 0
        %v7181 = vsel %vm1397, %v6961, 0
        %v7184 = vsel %vm1397, %v6962, 0
        %v7187 = vsel %vm1397, %v6963, 0
        %v7190 = vsel %vm1397, %v6964, 0
        %v7193 = vsel %vm1397, %v6965, 0
        %v7196 = vsel %vm1397, %v6966, 0
        %7198 = vmatprep.subr.bf16.mxu0 0
        %7199 = vmatpush1.bf16.msra.mxu0 %v7142
        %7200 = vmatprep.subr.bf16.mxu0 0
        %7201 = vmatpush1.bf16.msra.mxu0 %v7143
        %7202 = vmatprep.subr.bf16.mxu0 0
        %7203 = vmatpush1.bf16.msra.mxu0 %v7144
        %7204 = vmatprep.subr.bf16.mxu0 0
        %7205 = vmatpush1.bf16.msra.mxu0 %v7145
        %7206 = vmatprep.subr.bf16.mxu0 0
        %7207 = vmatpush1.bf16.msra.mxu0 0
        %7208 = vmatprep.subr.bf16.mxu0 0
        %7209 = vmatpush1.bf16.msra.mxu0 0
        %7210 = vmatprep.subr.bf16.mxu0 0
        %7211 = vmatpush1.bf16.msra.mxu0 0
        %7212 = vmatprep.subr.bf16.mxu0 0
        %7213 = vmatpush1.bf16.msra.mxu0 0
        %7214 = vmatprep.subr.bf16.mxu0 0
        %7215 = vmatpush1.bf16.msra.mxu0 0
        %7216 = vmatprep.subr.bf16.mxu0 0
        %7217 = vmatpush1.bf16.msra.mxu0 0
        %7218 = vmatprep.subr.bf16.mxu0 0
        %7219 = vmatpush1.bf16.msra.mxu0 0
        %7220 = vmatprep.subr.bf16.mxu0 0
        %7221 = vmatpush1.bf16.msra.mxu0 0
        %7222 = vmatprep.subr.bf16.mxu0 0
        %7223 = vmatpush1.bf16.msra.mxu0 0
        %7224 = vmatprep.subr.bf16.mxu0 0
        %7225 = vmatpush1.bf16.msra.mxu0 0
        %7226 = vmatprep.subr.bf16.mxu0 0
        %7227 = vmatpush1.bf16.msra.mxu0 0
        %7228 = vmatprep.subr.bf16.mxu0 0
        %7229 = vmatpush1.bf16.msra.mxu0 0
        %7230 = vmatprep.mubr.bf16.mxu0 0
        %7231 = vmatmul.mubr.bf16.gmra.mrb[0].mxu0 %v7151
        %v7232 = vpop.f32.mrb[0].mxu0
        %v7233 = vadd.f32 %v7124, %v7232
        %v7234 = vpop.f32.mrb[0].mxu0
        %v7235 = vpop.f32.mrb[0].mxu0
        %v7236 = vadd.f32 %v7124, %v7235
        %v7237 = vpop.f32.mrb[0].mxu0
        %7238 = vmatprep.mubr.bf16.mxu0 0
        %7239 = vmatmul.mubr.bf16.gmra.mrb[0].mxu0 %v7154
        %v7240 = vpop.f32.mrb[0].mxu0
        %v7241 = vadd.f32 %v7124, %v7240
        %v7242 = vpop.f32.mrb[0].mxu0
        %v7243 = vpop.f32.mrb[0].mxu0
        %v7244 = vadd.f32 %v7124, %v7243
        %v7245 = vpop.f32.mrb[0].mxu0
        %7246 = vmatprep.mubr.bf16.mxu0 0
        %7247 = vmatmul.mubr.bf16.gmra.mrb[0].mxu0 %v7157
        %v7248 = vpop.f32.mrb[0].mxu0
        %v7249 = vadd.f32 %v7124, %v7248
        %v7250 = vpop.f32.mrb[0].mxu0
        %v7251 = vpop.f32.mrb[0].mxu0
        %v7252 = vadd.f32 %v7124, %v7251
        %v7253 = vpop.f32.mrb[0].mxu0
        %7254 = vmatprep.mubr.bf16.mxu0 0
        %7255 = vmatmul.mubr.bf16.gmra.mrb[0].mxu0 %v7160
        %v7256 = vpop.f32.mrb[0].mxu0
        %v7257 = vadd.f32 %v7124, %v7256
        %v7258 = vpop.f32.mrb[0].mxu0
        %v7259 = vpop.f32.mrb[0].mxu0
        %v7260 = vadd.f32 %v7124, %v7259
        %v7261 = vpop.f32.mrb[0].mxu0
        %7262 = vmatprep.mubr.bf16.mxu0 0
        %7263 = vmatmul.mubr.bf16.gmra.mrb[0].mxu0 %v7163
        %v7264 = vpop.f32.mrb[0].mxu0
        %v7265 = vadd.f32 %v7124, %v7264
        %v7266 = vpop.f32.mrb[0].mxu0
        %v7267 = vpop.f32.mrb[0].mxu0
        %v7268 = vadd.f32 %v7124, %v7267
        %v7269 = vpop.f32.mrb[0].mxu0
        %7270 = vmatprep.mubr.bf16.mxu0 0
        %7271 = vmatmul.mubr.bf16.gmra.mrb[0].mxu0 %v7166
        %v7272 = vpop.f32.mrb[0].mxu0
        %v7273 = vadd.f32 %v7124, %v7272
        %v7274 = vpop.f32.mrb[0].mxu0
        %v7275 = vpop.f32.mrb[0].mxu0
        %v7276 = vadd.f32 %v7124, %v7275
        %v7277 = vpop.f32.mrb[0].mxu0
        %7278 = vmatprep.mubr.bf16.mxu0 0
        %7279 = vmatmul.mubr.bf16.gmra.mrb[0].mxu0 %v7169
        %v7280 = vpop.f32.mrb[0].mxu0
        %v7281 = vadd.f32 %v7124, %v7280
        %v7282 = vpop.f32.mrb[0].mxu0
        %v7283 = vpop.f32.mrb[0].mxu0
        %v7284 = vadd.f32 %v7124, %v7283
        %v7285 = vpop.f32.mrb[0].mxu0
        %7286 = vmatprep.mubr.bf16.mxu0 0
        %7287 = vmatmul.mubr.bf16.gmra.mrb[0].mxu0 %v7172
        %v7288 = vpop.f32.mrb[0].mxu0
        %v7289 = vadd.f32 %v7124, %v7288
        %v7290 = vpop.f32.mrb[0].mxu0
        %v7291 = vpop.f32.mrb[0].mxu0
        %v7292 = vadd.f32 %v7124, %v7291
        %v7293 = vpop.f32.mrb[0].mxu0
        %7294 = vmatprep.mubr.bf16.mxu0 0
        %7295 = vmatmul.mubr.bf16.gmra.mrb[0].mxu0 %v7175
        %v7296 = vpop.f32.mrb[0].mxu0
        %v7297 = vadd.f32 %v7124, %v7296
        %v7298 = vpop.f32.mrb[0].mxu0
        %v7299 = vpop.f32.mrb[0].mxu0
        %v7300 = vadd.f32 %v7124, %v7299
        %v7301 = vpop.f32.mrb[0].mxu0
        %7302 = vmatprep.mubr.bf16.mxu0 0
        %7303 = vmatmul.mubr.bf16.gmra.mrb[0].mxu0 %v7178
        %v7304 = vpop.f32.mrb[0].mxu0
        %v7305 = vadd.f32 %v7124, %v7304
        %v7306 = vpop.f32.mrb[0].mxu0
        %v7307 = vpop.f32.mrb[0].mxu0
        %v7308 = vadd.f32 %v7124, %v7307
        %v7309 = vpop.f32.mrb[0].mxu0
        %7310 = vmatprep.mubr.bf16.mxu0 0
        %7311 = vmatmul.mubr.bf16.gmra.mrb[0].mxu0 %v7181
        %v7312 = vpop.f32.mrb[0].mxu0
        %v7313 = vadd.f32 %v7124, %v7312
        %v7314 = vpop.f32.mrb[0].mxu0
        %v7315 = vpop.f32.mrb[0].mxu0
        %v7316 = vadd.f32 %v7124, %v7315
        %v7317 = vpop.f32.mrb[0].mxu0
        %7318 = vmatprep.mubr.bf16.mxu0 0
        %7319 = vmatmul.mubr.bf16.gmra.mrb[0].mxu0 %v7184
        %v7320 = vpop.f32.mrb[0].mxu0
        %v7321 = vadd.f32 %v7124, %v7320
        %v7322 = vpop.f32.mrb[0].mxu0
        %v7323 = vpop.f32.mrb[0].mxu0
        %v7324 = vadd.f32 %v7124, %v7323
        %v7325 = vpop.f32.mrb[0].mxu0
        %7326 = vmatprep.mubr.bf16.mxu0 0
        %7327 = vmatmul.mubr.bf16.gmra.mrb[0].mxu0 %v7187
        %v7328 = vpop.f32.mrb[0].mxu0
        %v7329 = vadd.f32 %v7124, %v7328
        %v7330 = vpop.f32.mrb[0].mxu0
        %v7331 = vpop.f32.mrb[0].mxu0
        %v7332 = vadd.f32 %v7124, %v7331
        %v7333 = vpop.f32.mrb[0].mxu0
        %7334 = vmatprep.mubr.bf16.mxu0 0
        %7335 = vmatmul.mubr.bf16.gmra.mrb[0].mxu0 %v7190
        %v7336 = vpop.f32.mrb[0].mxu0
        %v7337 = vadd.f32 %v7124, %v7336
        %v7338 = vpop.f32.mrb[0].mxu0
        %v7339 = vpop.f32.mrb[0].mxu0
        %v7340 = vadd.f32 %v7124, %v7339
        %v7341 = vpop.f32.mrb[0].mxu0
        %7342 = vmatprep.mubr.bf16.mxu0 0
        %7343 = vmatmul.mubr.bf16.gmra.mrb[0].mxu0 %v7193
        %v7344 = vpop.f32.mrb[0].mxu0
        %v7345 = vadd.f32 %v7124, %v7344
        %v7346 = vpop.f32.mrb[0].mxu0
        %v7347 = vpop.f32.mrb[0].mxu0
        %v7348 = vadd.f32 %v7124, %v7347
        %v7349 = vpop.f32.mrb[0].mxu0
        %7350 = vmatprep.mubr.bf16.mxu0 0
        %7351 = vmatmul.mubr.bf16.gmra.mrb[0].mxu0 %v7196
        %v7352 = vpop.f32.mrb[0].mxu0
        %v7353 = vadd.f32 %v7124, %v7352
        %v7354 = vpop.f32.mrb[0].mxu0
        %v7355 = vpop.f32.mrb[0].mxu0
        %v7356 = vadd.f32 %v7124, %v7355
        %v7357 = vpop.f32.mrb[0].mxu0
        %7358 = vdwg.mxu0
        %v7359 = vmax.f32 %v7233, 0.0
        %v7360 = vmax.f32 %v7236, 0.0
        %v7361 = vmax.f32 %v7241, 0.0
        %v7362 = vmax.f32 %v7244, 0.0
        %v7363 = vmax.f32 %v7249, 0.0
        %v7364 = vmax.f32 %v7252, 0.0
        %v7365 = vmax.f32 %v7257, 0.0
        %v7366 = vmax.f32 %v7260, 0.0
        %v7367 = vmax.f32 %v7265, 0.0
        %v7368 = vmax.f32 %v7268, 0.0
        %v7369 = vmax.f32 %v7273, 0.0
        %v7370 = vmax.f32 %v7276, 0.0
        %v7371 = vmax.f32 %v7281, 0.0
        %v7372 = vmax.f32 %v7284, 0.0
        %v7373 = vmax.f32 %v7289, 0.0
        %v7374 = vmax.f32 %v7292, 0.0
        %v7375 = vmax.f32 %v7297, 0.0
        %v7376 = vmax.f32 %v7300, 0.0
        %v7377 = vmax.f32 %v7305, 0.0
        %v7378 = vmax.f32 %v7308, 0.0
        %v7379 = vmax.f32 %v7313, 0.0
        %v7380 = vmax.f32 %v7316, 0.0
        %v7381 = vmax.f32 %v7321, 0.0
        %v7382 = vmax.f32 %v7324, 0.0
        %v7383 = vmax.f32 %v7329, 0.0
        %v7384 = vmax.f32 %v7332, 0.0
        %v7385 = vmax.f32 %v7337, 0.0
        %v7386 = vmax.f32 %v7340, 0.0
        %v7387 = vmax.f32 %v7345, 0.0
        %v7388 = vmax.f32 %v7348, 0.0
        %v7389 = vmax.f32 %v7353, 0.0
        %v7390 = vmax.f32 %v7356, 0.0
        %v7391 = vpack.c.bf16 %v7360, %v7359
        %v7392 = vpack.c.bf16 %v7362, %v7361
        %v7393 = vpack.c.bf16 %v7364, %v7363
        %v7394 = vpack.c.bf16 %v7366, %v7365
        %v7395 = vpack.c.bf16 %v7368, %v7367
        %v7396 = vpack.c.bf16 %v7370, %v7369
        %v7397 = vpack.c.bf16 %v7372, %v7371
        %v7398 = vpack.c.bf16 %v7374, %v7373
        %v7399 = vpack.c.bf16 %v7376, %v7375
        %v7400 = vpack.c.bf16 %v7378, %v7377
        %v7401 = vpack.c.bf16 %v7380, %v7379
        %v7402 = vpack.c.bf16 %v7382, %v7381
        %v7403 = vpack.c.bf16 %v7384, %v7383
        %v7404 = vpack.c.bf16 %v7386, %v7385
        %v7405 = vpack.c.bf16 %v7388, %v7387
        %v7406 = vpack.c.bf16 %v7390, %v7389
        %v7423 = vunpack.c.l.b16 %v7391
        %v7424 = vunpack.c.h.b16 %v7391
        %v7425 = vunpack.c.l.b16 %v7392
        %v7426 = vunpack.c.h.b16 %v7392
        %v7427 = vunpack.c.l.b16 %v7393
        %v7428 = vunpack.c.h.b16 %v7393
        %v7429 = vunpack.c.l.b16 %v7394
        %v7430 = vunpack.c.h.b16 %v7394
        %v7431 = vunpack.c.l.b16 %v7395
        %v7432 = vunpack.c.h.b16 %v7395
        %v7433 = vunpack.c.l.b16 %v7396
        %v7434 = vunpack.c.h.b16 %v7396
        %v7435 = vunpack.c.l.b16 %v7397
        %v7436 = vunpack.c.h.b16 %v7397
        %v7437 = vunpack.c.l.b16 %v7398
        %v7438 = vunpack.c.h.b16 %v7398
        %v7439 = vunpack.c.l.b16 %v7399
        %v7440 = vunpack.c.h.b16 %v7399
        %v7441 = vunpack.c.l.b16 %v7400
        %v7442 = vunpack.c.h.b16 %v7400
        %v7443 = vunpack.c.l.b16 %v7401
        %v7444 = vunpack.c.h.b16 %v7401
        %v7445 = vunpack.c.l.b16 %v7402
        %v7446 = vunpack.c.h.b16 %v7402
        %v7447 = vunpack.c.l.b16 %v7403
        %v7448 = vunpack.c.h.b16 %v7403
        %v7449 = vunpack.c.l.b16 %v7404
        %v7450 = vunpack.c.h.b16 %v7404
        %v7451 = vunpack.c.l.b16 %v7405
        %v7452 = vunpack.c.h.b16 %v7405
        %v7453 = vunpack.c.l.b16 %v7406
        %v7454 = vunpack.c.h.b16 %v7406
        %v7455 = vpack.c.b16 %v7423, %v7423
        %v7456 = vpack.c.b16 %v7424, %v7424
        %v7457 = vpack.c.b16 %v7425, %v7425
        %v7458 = vpack.c.b16 %v7426, %v7426
        %v7459 = vpack.c.b16 %v7427, %v7427
        %v7460 = vpack.c.b16 %v7428, %v7428
        %v7461 = vpack.c.b16 %v7429, %v7429
        %v7462 = vpack.c.b16 %v7430, %v7430
        %v7463 = vpack.c.b16 %v7431, %v7431
        %v7464 = vpack.c.b16 %v7432, %v7432
        %v7465 = vpack.c.b16 %v7433, %v7433
        %v7466 = vpack.c.b16 %v7434, %v7434
        %v7467 = vpack.c.b16 %v7435, %v7435
        %v7468 = vpack.c.b16 %v7436, %v7436
        %v7469 = vpack.c.b16 %v7437, %v7437
        %v7470 = vpack.c.b16 %v7438, %v7438
        %v7471 = vpack.c.b16 %v7439, %v7439
        %v7472 = vpack.c.b16 %v7440, %v7440
        %v7473 = vpack.c.b16 %v7441, %v7441
        %v7474 = vpack.c.b16 %v7442, %v7442
        %v7475 = vpack.c.b16 %v7443, %v7443
        %v7476 = vpack.c.b16 %v7444, %v7444
        %v7477 = vpack.c.b16 %v7445, %v7445
        %v7478 = vpack.c.b16 %v7446, %v7446
        %v7479 = vpack.c.b16 %v7447, %v7447
        %v7480 = vpack.c.b16 %v7448, %v7448
        %v7481 = vpack.c.b16 %v7449, %v7449
        %v7482 = vpack.c.b16 %v7450, %v7450
        %v7483 = vpack.c.b16 %v7451, %v7451
        %v7484 = vpack.c.b16 %v7452, %v7452
        %v7485 = vpack.c.b16 %v7453, %v7453
        %v7486 = vpack.c.b16 %v7454, %v7454
        %7519 = vst [vmem:[%s472 + $0x100] sm:$0xf] %v7455
        %7520 = vst [vmem:[%s472 + $0x104] sm:$0xf] %v7456
        %7521 = vst [vmem:[%s472 + $0x108] sm:$0xf] %v7457
        %7522 = vst [vmem:[%s472 + $0x10c] sm:$0xf] %v7458
        %7523 = vst [vmem:[%s472 + $0x110] sm:$0xf] %v7459
        %7524 = vst [vmem:[%s472 + $0x114] sm:$0xf] %v7460
        %7525 = vst [vmem:[%s472 + $0x118] sm:$0xf] %v7461
        %7526 = vst [vmem:[%s472 + $0x11c] sm:$0xf] %v7462
        %7527 = vst [vmem:[%s472 + $0x120] sm:$0xf] %v7463
        %7528 = vst [vmem:[%s472 + $0x124] sm:$0xf] %v7464
        %7529 = vst [vmem:[%s472 + $0x128] sm:$0xf] %v7465
        %7530 = vst [vmem:[%s472 + $0x12c] sm:$0xf] %v7466
        %7531 = vst [vmem:[%s472 + $0x130] sm:$0xf] %v7467
        %7532 = vst [vmem:[%s472 + $0x134] sm:$0xf] %v7468
        %7533 = vst [vmem:[%s472 + $0x138] sm:$0xf] %v7469
        %7534 = vst [vmem:[%s472 + $0x13c] sm:$0xf] %v7470
        %7535 = vst [vmem:[%s472 + $0x140] sm:$0xf] %v7471
        %7536 = vst [vmem:[%s472 + $0x144] sm:$0xf] %v7472
        %7537 = vst [vmem:[%s472 + $0x148] sm:$0xf] %v7473
        %7538 = vst [vmem:[%s472 + $0x14c] sm:$0xf] %v7474
        %7539 = vst [vmem:[%s472 + $0x150] sm:$0xf] %v7475
        %7540 = vst [vmem:[%s472 + $0x154] sm:$0xf] %v7476
        %7541 = vst [vmem:[%s472 + $0x158] sm:$0xf] %v7477
        %7542 = vst [vmem:[%s472 + $0x15c] sm:$0xf] %v7478
        %7543 = vst [vmem:[%s472 + $0x160] sm:$0xf] %v7479
        %7544 = vst [vmem:[%s472 + $0x164] sm:$0xf] %v7480
        %7545 = vst [vmem:[%s472 + $0x168] sm:$0xf] %v7481
        %7546 = vst [vmem:[%s472 + $0x16c] sm:$0xf] %v7482
        %7547 = vst [vmem:[%s472 + $0x170] sm:$0xf] %v7483
        %7548 = vst [vmem:[%s472 + $0x174] sm:$0xf] %v7484
        %7549 = vst [vmem:[%s472 + $0x178] sm:$0xf] %v7485
        %7550 = vst [vmem:[%s472 + $0x17c] sm:$0xf] %v7486
        %v7551 = vld [vmem:[%s5] sm:$0xff]
        %v7552 = vld [vmem:[%s5 + $0x8] sm:$0xff]
        %v7553 = vld [vmem:[%s5 + $0x10] sm:$0xff]
        %v7554 = vld [vmem:[%s5 + $0x18] sm:$0xff]
        %v7555 = vld [vmem:[%s5 + $0x20] sm:$0xff]
        %v7556 = vld [vmem:[%s5 + $0x28] sm:$0xff]
        %v7557 = vld [vmem:[%s5 + $0x30] sm:$0xff]
        %v7558 = vld [vmem:[%s5 + $0x38] sm:$0xff]
        %v7559 = vld [vmem:[%s5 + $0x40] sm:$0xff]
        %v7560 = vld [vmem:[%s5 + $0x48] sm:$0xff]
        %v7561 = vld [vmem:[%s5 + $0x50] sm:$0xff]
        %v7562 = vld [vmem:[%s5 + $0x58] sm:$0xff]
        %v7563 = vld [vmem:[%s5 + $0x60] sm:$0xff]
        %v7564 = vld [vmem:[%s5 + $0x68] sm:$0xff]
        %v7565 = vld [vmem:[%s5 + $0x70] sm:$0xff]
        %v7566 = vld [vmem:[%s5 + $0x78] sm:$0xff]
        %v7567 = vld [vmem:[%s6] sm:$0x3]
        %v7569 = vlaneseq
        %v7570 = vshrl.u32 %v7569, 7
        %v7571 = vsub.s32 0, %v7570
        %v7572 = vrot.slane %v7567, %v7571
        %v7573 = vlaneseq
        %v7574 = vshrl.u32 %v7573, 7
        %v7575 = vsub.s32 1, %v7574
        %v7576 = vrot.slane %v7567, %v7575
        %v7595 = vunpack.c.l.b16 %v7551
        %v7596 = vunpack.c.h.b16 %v7551
        %v7597 = vunpack.c.l.b16 %v7552
        %v7598 = vunpack.c.h.b16 %v7552
        %v7599 = vunpack.c.l.b16 %v7553
        %v7600 = vunpack.c.h.b16 %v7553
        %v7601 = vunpack.c.l.b16 %v7554
        %v7602 = vunpack.c.h.b16 %v7554
        %v7603 = vunpack.c.l.b16 %v7555
        %v7604 = vunpack.c.h.b16 %v7555
        %v7605 = vunpack.c.l.b16 %v7556
        %v7606 = vunpack.c.h.b16 %v7556
        %v7607 = vunpack.c.l.b16 %v7557
        %v7608 = vunpack.c.h.b16 %v7557
        %v7609 = vunpack.c.l.b16 %v7558
        %v7610 = vunpack.c.h.b16 %v7558
        %v7611 = vunpack.c.l.b16 %v7559
        %v7612 = vunpack.c.h.b16 %v7559
        %v7613 = vunpack.c.l.b16 %v7560
        %v7614 = vunpack.c.h.b16 %v7560
        %v7615 = vunpack.c.l.b16 %v7561
        %v7616 = vunpack.c.h.b16 %v7561
        %v7617 = vunpack.c.l.b16 %v7562
        %v7618 = vunpack.c.h.b16 %v7562
        %v7619 = vunpack.c.l.b16 %v7563
        %v7620 = vunpack.c.h.b16 %v7563
        %v7621 = vunpack.c.l.b16 %v7564
        %v7622 = vunpack.c.h.b16 %v7564
        %v7623 = vunpack.c.l.b16 %v7565
        %v7624 = vunpack.c.h.b16 %v7565
        %v7625 = vunpack.c.l.b16 %v7566
        %v7626 = vunpack.c.h.b16 %v7566
        %v7627 = vpack.c.b16 %v7597, %v7595
        %v7628 = vpack.c.b16 %v7598, %v7596
        %v7629 = vpack.c.b16 %v7601, %v7599
        %v7630 = vpack.c.b16 %v7602, %v7600
        %v7631 = vpack.c.b16 %v7605, %v7603
        %v7632 = vpack.c.b16 %v7606, %v7604
        %v7633 = vpack.c.b16 %v7609, %v7607
        %v7634 = vpack.c.b16 %v7610, %v7608
        %v7635 = vpack.c.b16 %v7613, %v7611
        %v7636 = vpack.c.b16 %v7614, %v7612
        %v7637 = vpack.c.b16 %v7617, %v7615
        %v7638 = vpack.c.b16 %v7618, %v7616
        %v7639 = vpack.c.b16 %v7621, %v7619
        %v7640 = vpack.c.b16 %v7622, %v7620
        %v7641 = vpack.c.b16 %v7625, %v7623
        %v7642 = vpack.c.b16 %v7626, %v7624
        %7659 = vmatprep.subr.bf16.mxu0 %v7628
        %7660 = vmatpush1.bf16.msra.mxu0 %v7627
        %7661 = vmatprep.subr.bf16.mxu0 %v7630
        %7662 = vmatpush1.bf16.msra.mxu0 %v7629
        %7663 = vmatprep.subr.bf16.mxu0 %v7632
        %7664 = vmatpush1.bf16.msra.mxu0 %v7631
        %7665 = vmatprep.subr.bf16.mxu0 %v7634
        %7666 = vmatpush1.bf16.msra.mxu0 %v7633
        %7667 = vmatprep.subr.bf16.mxu0 %v7636
        %7668 = vmatpush1.bf16.msra.mxu0 %v7635
        %7669 = vmatprep.subr.bf16.mxu0 %v7638
        %7670 = vmatpush1.bf16.msra.mxu0 %v7637
        %7671 = vmatprep.subr.bf16.mxu0 %v7640
        %7672 = vmatpush1.bf16.msra.mxu0 %v7639
        %7673 = vmatprep.subr.bf16.mxu0 %v7642
        %7674 = vmatpush1.bf16.msra.mxu0 %v7641
        %7675 = vmatprep.subr.bf16.mxu0 0
        %7676 = vmatpush1.bf16.msra.mxu0 0
        %7677 = vmatprep.subr.bf16.mxu0 0
        %7678 = vmatpush1.bf16.msra.mxu0 0
        %7679 = vmatprep.subr.bf16.mxu0 0
        %7680 = vmatpush1.bf16.msra.mxu0 0
        %7681 = vmatprep.subr.bf16.mxu0 0
        %7682 = vmatpush1.bf16.msra.mxu0 0
        %7683 = vmatprep.subr.bf16.mxu0 0
        %7684 = vmatpush1.bf16.msra.mxu0 0
        %7685 = vmatprep.subr.bf16.mxu0 0
        %7686 = vmatpush1.bf16.msra.mxu0 0
        %7687 = vmatprep.subr.bf16.mxu0 0
        %7688 = vmatpush1.bf16.msra.mxu0 0
        %7689 = vmatprep.subr.bf16.mxu0 0
        %7690 = vmatpush1.bf16.msra.mxu0 0
        %7691 = vmatprep.mubr.bf16.mxu0 0
        %7692 = vmatmul.mubr.bf16.gmra.mrb[0].mxu0 %v7391
        %v7693 = vpop.f32.mrb[0].mxu0
        %v7694 = vadd.f32 %v7572, %v7693
        %v7695 = vpop.f32.mrb[0].mxu0
        %v7696 = vadd.f32 %v7576, %v7695
        %v7697 = vpop.f32.mrb[0].mxu0
        %v7698 = vadd.f32 %v7572, %v7697
        %v7699 = vpop.f32.mrb[0].mxu0
        %v7700 = vadd.f32 %v7576, %v7699
        %7701 = vmatprep.mubr.bf16.mxu0 0
        %7702 = vmatmul.mubr.bf16.gmra.mrb[0].mxu0 %v7392
        %v7703 = vpop.f32.mrb[0].mxu0
        %v7704 = vadd.f32 %v7572, %v7703
        %v7705 = vpop.f32.mrb[0].mxu0
        %v7706 = vadd.f32 %v7576, %v7705
        %v7707 = vpop.f32.mrb[0].mxu0
        %v7708 = vadd.f32 %v7572, %v7707
        %v7709 = vpop.f32.mrb[0].mxu0
        %v7710 = vadd.f32 %v7576, %v7709
        %7711 = vmatprep.mubr.bf16.mxu0 0
        %7712 = vmatmul.mubr.bf16.gmra.mrb[0].mxu0 %v7393
        %v7713 = vpop.f32.mrb[0].mxu0
        %v7714 = vadd.f32 %v7572, %v7713
        %v7715 = vpop.f32.mrb[0].mxu0
        %v7716 = vadd.f32 %v7576, %v7715
        %v7717 = vpop.f32.mrb[0].mxu0
        %v7718 = vadd.f32 %v7572, %v7717
        %v7719 = vpop.f32.mrb[0].mxu0
        %v7720 = vadd.f32 %v7576, %v7719
        %7721 = vmatprep.mubr.bf16.mxu0 0
        %7722 = vmatmul.mubr.bf16.gmra.mrb[0].mxu0 %v7394
        %v7723 = vpop.f32.mrb[0].mxu0
        %v7724 = vadd.f32 %v7572, %v7723
        %v7725 = vpop.f32.mrb[0].mxu0
        %v7726 = vadd.f32 %v7576, %v7725
        %v7727 = vpop.f32.mrb[0].mxu0
        %v7728 = vadd.f32 %v7572, %v7727
        %v7729 = vpop.f32.mrb[0].mxu0
        %v7730 = vadd.f32 %v7576, %v7729
        %7731 = vmatprep.mubr.bf16.mxu0 0
        %7732 = vmatmul.mubr.bf16.gmra.mrb[0].mxu0 %v7395
        %v7733 = vpop.f32.mrb[0].mxu0
        %v7734 = vadd.f32 %v7572, %v7733
        %v7735 = vpop.f32.mrb[0].mxu0
        %v7736 = vadd.f32 %v7576, %v7735
        %v7737 = vpop.f32.mrb[0].mxu0
        %v7738 = vadd.f32 %v7572, %v7737
        %v7739 = vpop.f32.mrb[0].mxu0
        %v7740 = vadd.f32 %v7576, %v7739
        %7741 = vmatprep.mubr.bf16.mxu0 0
        %7742 = vmatmul.mubr.bf16.gmra.mrb[0].mxu0 %v7396
        %v7743 = vpop.f32.mrb[0].mxu0
        %v7744 = vadd.f32 %v7572, %v7743
        %v7745 = vpop.f32.mrb[0].mxu0
        %v7746 = vadd.f32 %v7576, %v7745
        %v7747 = vpop.f32.mrb[0].mxu0
        %v7748 = vadd.f32 %v7572, %v7747
        %v7749 = vpop.f32.mrb[0].mxu0
        %v7750 = vadd.f32 %v7576, %v7749
        %7751 = vmatprep.mubr.bf16.mxu0 0
        %7752 = vmatmul.mubr.bf16.gmra.mrb[0].mxu0 %v7397
        %v7753 = vpop.f32.mrb[0].mxu0
        %v7754 = vadd.f32 %v7572, %v7753
        %v7755 = vpop.f32.mrb[0].mxu0
        %v7756 = vadd.f32 %v7576, %v7755
        %v7757 = vpop.f32.mrb[0].mxu0
        %v7758 = vadd.f32 %v7572, %v7757
        %v7759 = vpop.f32.mrb[0].mxu0
        %v7760 = vadd.f32 %v7576, %v7759
        %7761 = vmatprep.mubr.bf16.mxu0 0
        %7762 = vmatmul.mubr.bf16.gmra.mrb[0].mxu0 %v7398
        %v7763 = vpop.f32.mrb[0].mxu0
        %v7764 = vadd.f32 %v7572, %v7763
        %v7765 = vpop.f32.mrb[0].mxu0
        %v7766 = vadd.f32 %v7576, %v7765
        %v7767 = vpop.f32.mrb[0].mxu0
        %v7768 = vadd.f32 %v7572, %v7767
        %v7769 = vpop.f32.mrb[0].mxu0
        %v7770 = vadd.f32 %v7576, %v7769
        %7771 = vmatprep.mubr.bf16.mxu0 0
        %7772 = vmatmul.mubr.bf16.gmra.mrb[0].mxu0 %v7399
        %v7773 = vpop.f32.mrb[0].mxu0
        %v7774 = vadd.f32 %v7572, %v7773
        %v7775 = vpop.f32.mrb[0].mxu0
        %v7776 = vadd.f32 %v7576, %v7775
        %v7777 = vpop.f32.mrb[0].mxu0
        %v7778 = vadd.f32 %v7572, %v7777
        %v7779 = vpop.f32.mrb[0].mxu0
        %v7780 = vadd.f32 %v7576, %v7779
        %7781 = vmatprep.mubr.bf16.mxu0 0
        %7782 = vmatmul.mubr.bf16.gmra.mrb[0].mxu0 %v7400
        %v7783 = vpop.f32.mrb[0].mxu0
        %v7784 = vadd.f32 %v7572, %v7783
        %v7785 = vpop.f32.mrb[0].mxu0
        %v7786 = vadd.f32 %v7576, %v7785
        %v7787 = vpop.f32.mrb[0].mxu0
        %v7788 = vadd.f32 %v7572, %v7787
        %v7789 = vpop.f32.mrb[0].mxu0
        %v7790 = vadd.f32 %v7576, %v7789
        %7791 = vmatprep.mubr.bf16.mxu0 0
        %7792 = vmatmul.mubr.bf16.gmra.mrb[0].mxu0 %v7401
        %v7793 = vpop.f32.mrb[0].mxu0
        %v7794 = vadd.f32 %v7572, %v7793
        %v7795 = vpop.f32.mrb[0].mxu0
        %v7796 = vadd.f32 %v7576, %v7795
        %v7797 = vpop.f32.mrb[0].mxu0
        %v7798 = vadd.f32 %v7572, %v7797
        %v7799 = vpop.f32.mrb[0].mxu0
        %v7800 = vadd.f32 %v7576, %v7799
        %7801 = vmatprep.mubr.bf16.mxu0 0
        %7802 = vmatmul.mubr.bf16.gmra.mrb[0].mxu0 %v7402
        %v7803 = vpop.f32.mrb[0].mxu0
        %v7804 = vadd.f32 %v7572, %v7803
        %v7805 = vpop.f32.mrb[0].mxu0
        %v7806 = vadd.f32 %v7576, %v7805
        %v7807 = vpop.f32.mrb[0].mxu0
        %v7808 = vadd.f32 %v7572, %v7807
        %v7809 = vpop.f32.mrb[0].mxu0
        %v7810 = vadd.f32 %v7576, %v7809
        %7811 = vmatprep.mubr.bf16.mxu0 0
        %7812 = vmatmul.mubr.bf16.gmra.mrb[0].mxu0 %v7403
        %v7813 = vpop.f32.mrb[0].mxu0
        %v7814 = vadd.f32 %v7572, %v7813
        %v7815 = vpop.f32.mrb[0].mxu0
        %v7816 = vadd.f32 %v7576, %v7815
        %v7817 = vpop.f32.mrb[0].mxu0
        %v7818 = vadd.f32 %v7572, %v7817
        %v7819 = vpop.f32.mrb[0].mxu0
        %v7820 = vadd.f32 %v7576, %v7819
        %7821 = vmatprep.mubr.bf16.mxu0 0
        %7822 = vmatmul.mubr.bf16.gmra.mrb[0].mxu0 %v7404
        %v7823 = vpop.f32.mrb[0].mxu0
        %v7824 = vadd.f32 %v7572, %v7823
        %v7825 = vpop.f32.mrb[0].mxu0
        %v7826 = vadd.f32 %v7576, %v7825
        %v7827 = vpop.f32.mrb[0].mxu0
        %v7828 = vadd.f32 %v7572, %v7827
        %v7829 = vpop.f32.mrb[0].mxu0
        %v7830 = vadd.f32 %v7576, %v7829
        %7831 = vmatprep.mubr.bf16.mxu0 0
        %7832 = vmatmul.mubr.bf16.gmra.mrb[0].mxu0 %v7405
        %v7833 = vpop.f32.mrb[0].mxu0
        %v7834 = vadd.f32 %v7572, %v7833
        %v7835 = vpop.f32.mrb[0].mxu0
        %v7836 = vadd.f32 %v7576, %v7835
        %v7837 = vpop.f32.mrb[0].mxu0
        %v7838 = vadd.f32 %v7572, %v7837
        %v7839 = vpop.f32.mrb[0].mxu0
        %v7840 = vadd.f32 %v7576, %v7839
        %7841 = vmatprep.mubr.bf16.mxu0 0
        %7842 = vmatmul.mubr.bf16.gmra.mrb[0].mxu0 %v7406
        %v7843 = vpop.f32.mrb[0].mxu0
        %v7844 = vadd.f32 %v7572, %v7843
        %v7845 = vpop.f32.mrb[0].mxu0
        %v7846 = vadd.f32 %v7576, %v7845
        %v7847 = vpop.f32.mrb[0].mxu0
        %v7848 = vadd.f32 %v7572, %v7847
        %v7849 = vpop.f32.mrb[0].mxu0
        %v7850 = vadd.f32 %v7576, %v7849
        %7851 = vdwg.mxu0
        %v7852 = vmax.f32 %v7694, 0.0
        %v7853 = vmax.f32 %v7696, 0.0
        %v7854 = vmax.f32 %v7698, 0.0
        %v7855 = vmax.f32 %v7700, 0.0
        %v7856 = vmax.f32 %v7704, 0.0
        %v7857 = vmax.f32 %v7706, 0.0
        %v7858 = vmax.f32 %v7708, 0.0
        %v7859 = vmax.f32 %v7710, 0.0
        %v7860 = vmax.f32 %v7714, 0.0
        %v7861 = vmax.f32 %v7716, 0.0
        %v7862 = vmax.f32 %v7718, 0.0
        %v7863 = vmax.f32 %v7720, 0.0
        %v7864 = vmax.f32 %v7724, 0.0
        %v7865 = vmax.f32 %v7726, 0.0
        %v7866 = vmax.f32 %v7728, 0.0
        %v7867 = vmax.f32 %v7730, 0.0
        %v7868 = vmax.f32 %v7734, 0.0
        %v7869 = vmax.f32 %v7736, 0.0
        %v7870 = vmax.f32 %v7738, 0.0
        %v7871 = vmax.f32 %v7740, 0.0
        %v7872 = vmax.f32 %v7744, 0.0
        %v7873 = vmax.f32 %v7746, 0.0
        %v7874 = vmax.f32 %v7748, 0.0
        %v7875 = vmax.f32 %v7750, 0.0
        %v7876 = vmax.f32 %v7754, 0.0
        %v7877 = vmax.f32 %v7756, 0.0
        %v7878 = vmax.f32 %v7758, 0.0
        %v7879 = vmax.f32 %v7760, 0.0
        %v7880 = vmax.f32 %v7764, 0.0
        %v7881 = vmax.f32 %v7766, 0.0
        %v7882 = vmax.f32 %v7768, 0.0
        %v7883 = vmax.f32 %v7770, 0.0
        %v7884 = vmax.f32 %v7774, 0.0
        %v7885 = vmax.f32 %v7776, 0.0
        %v7886 = vmax.f32 %v7778, 0.0
        %v7887 = vmax.f32 %v7780, 0.0
        %v7888 = vmax.f32 %v7784, 0.0
        %v7889 = vmax.f32 %v7786, 0.0
        %v7890 = vmax.f32 %v7788, 0.0
        %v7891 = vmax.f32 %v7790, 0.0
        %v7892 = vmax.f32 %v7794, 0.0
        %v7893 = vmax.f32 %v7796, 0.0
        %v7894 = vmax.f32 %v7798, 0.0
        %v7895 = vmax.f32 %v7800, 0.0
        %v7896 = vmax.f32 %v7804, 0.0
        %v7897 = vmax.f32 %v7806, 0.0
        %v7898 = vmax.f32 %v7808, 0.0
        %v7899 = vmax.f32 %v7810, 0.0
        %v7900 = vmax.f32 %v7814, 0.0
        %v7901 = vmax.f32 %v7816, 0.0
        %v7902 = vmax.f32 %v7818, 0.0
        %v7903 = vmax.f32 %v7820, 0.0
        %v7904 = vmax.f32 %v7824, 0.0
        %v7905 = vmax.f32 %v7826, 0.0
        %v7906 = vmax.f32 %v7828, 0.0
        %v7907 = vmax.f32 %v7830, 0.0
        %v7908 = vmax.f32 %v7834, 0.0
        %v7909 = vmax.f32 %v7836, 0.0
        %v7910 = vmax.f32 %v7838, 0.0
        %v7911 = vmax.f32 %v7840, 0.0
        %v7912 = vmax.f32 %v7844, 0.0
        %v7913 = vmax.f32 %v7846, 0.0
        %v7914 = vmax.f32 %v7848, 0.0
        %v7915 = vmax.f32 %v7850, 0.0
        %v7916 = vpack.c.bf16 %v7854, %v7852
        %v7917 = vpack.c.bf16 %v7855, %v7853
        %v7918 = vpack.c.bf16 %v7858, %v7856
        %v7919 = vpack.c.bf16 %v7859, %v7857
        %v7920 = vpack.c.bf16 %v7862, %v7860
        %v7921 = vpack.c.bf16 %v7863, %v7861
        %v7922 = vpack.c.bf16 %v7866, %v7864
        %v7923 = vpack.c.bf16 %v7867, %v7865
        %v7924 = vpack.c.bf16 %v7870, %v7868
        %v7925 = vpack.c.bf16 %v7871, %v7869
        %v7926 = vpack.c.bf16 %v7874, %v7872
        %v7927 = vpack.c.bf16 %v7875, %v7873
        %v7928 = vpack.c.bf16 %v7878, %v7876
        %v7929 = vpack.c.bf16 %v7879, %v7877
        %v7930 = vpack.c.bf16 %v7882, %v7880
        %v7931 = vpack.c.bf16 %v7883, %v7881
        %v7932 = vpack.c.bf16 %v7886, %v7884
        %v7933 = vpack.c.bf16 %v7887, %v7885
        %v7934 = vpack.c.bf16 %v7890, %v7888
        %v7935 = vpack.c.bf16 %v7891, %v7889
        %v7936 = vpack.c.bf16 %v7894, %v7892
        %v7937 = vpack.c.bf16 %v7895, %v7893
        %v7938 = vpack.c.bf16 %v7898, %v7896
        %v7939 = vpack.c.bf16 %v7899, %v7897
        %v7940 = vpack.c.bf16 %v7902, %v7900
        %v7941 = vpack.c.bf16 %v7903, %v7901
        %v7942 = vpack.c.bf16 %v7906, %v7904
        %v7943 = vpack.c.bf16 %v7907, %v7905
        %v7944 = vpack.c.bf16 %v7910, %v7908
        %v7945 = vpack.c.bf16 %v7911, %v7909
        %v7946 = vpack.c.bf16 %v7914, %v7912
        %v7947 = vpack.c.bf16 %v7915, %v7913
        %v7980 = vunpack.c.l.b16 %v7916
        %v7981 = vunpack.c.l.b16 %v7917
        %v7982 = vunpack.c.h.b16 %v7916
        %v7983 = vunpack.c.h.b16 %v7917
        %v7984 = vunpack.c.l.b16 %v7918
        %v7985 = vunpack.c.l.b16 %v7919
        %v7986 = vunpack.c.h.b16 %v7918
        %v7987 = vunpack.c.h.b16 %v7919
        %v7988 = vunpack.c.l.b16 %v7920
        %v7989 = vunpack.c.l.b16 %v7921
        %v7990 = vunpack.c.h.b16 %v7920
        %v7991 = vunpack.c.h.b16 %v7921
        %v7992 = vunpack.c.l.b16 %v7922
        %v7993 = vunpack.c.l.b16 %v7923
        %v7994 = vunpack.c.h.b16 %v7922
        %v7995 = vunpack.c.h.b16 %v7923
        %v7996 = vunpack.c.l.b16 %v7924
        %v7997 = vunpack.c.l.b16 %v7925
        %v7998 = vunpack.c.h.b16 %v7924
        %v7999 = vunpack.c.h.b16 %v7925
        %v8000 = vunpack.c.l.b16 %v7926
        %v8001 = vunpack.c.l.b16 %v7927
        %v8002 = vunpack.c.h.b16 %v7926
        %v8003 = vunpack.c.h.b16 %v7927
        %v8004 = vunpack.c.l.b16 %v7928
        %v8005 = vunpack.c.l.b16 %v7929
        %v8006 = vunpack.c.h.b16 %v7928
        %v8007 = vunpack.c.h.b16 %v7929
        %v8008 = vunpack.c.l.b16 %v7930
        %v8009 = vunpack.c.l.b16 %v7931
        %v8010 = vunpack.c.h.b16 %v7930
        %v8011 = vunpack.c.h.b16 %v7931
        %v8012 = vunpack.c.l.b16 %v7932
        %v8013 = vunpack.c.l.b16 %v7933
        %v8014 = vunpack.c.h.b16 %v7932
        %v8015 = vunpack.c.h.b16 %v7933
        %v8016 = vunpack.c.l.b16 %v7934
        %v8017 = vunpack.c.l.b16 %v7935
        %v8018 = vunpack.c.h.b16 %v7934
        %v8019 = vunpack.c.h.b16 %v7935
        %v8020 = vunpack.c.l.b16 %v7936
        %v8021 = vunpack.c.l.b16 %v7937
        %v8022 = vunpack.c.h.b16 %v7936
        %v8023 = vunpack.c.h.b16 %v7937
        %v8024 = vunpack.c.l.b16 %v7938
        %v8025 = vunpack.c.l.b16 %v7939
        %v8026 = vunpack.c.h.b16 %v7938
        %v8027 = vunpack.c.h.b16 %v7939
        %v8028 = vunpack.c.l.b16 %v7940
        %v8029 = vunpack.c.l.b16 %v7941
        %v8030 = vunpack.c.h.b16 %v7940
        %v8031 = vunpack.c.h.b16 %v7941
        %v8032 = vunpack.c.l.b16 %v7942
        %v8033 = vunpack.c.l.b16 %v7943
        %v8034 = vunpack.c.h.b16 %v7942
        %v8035 = vunpack.c.h.b16 %v7943
        %v8036 = vunpack.c.l.b16 %v7944
        %v8037 = vunpack.c.l.b16 %v7945
        %v8038 = vunpack.c.h.b16 %v7944
        %v8039 = vunpack.c.h.b16 %v7945
        %v8040 = vunpack.c.l.b16 %v7946
        %v8041 = vunpack.c.l.b16 %v7947
        %v8042 = vunpack.c.h.b16 %v7946
        %v8043 = vunpack.c.h.b16 %v7947
        %v8044 = vpack.c.b16 %v7981, %v7980
        %v8045 = vpack.c.b16 %v7983, %v7982
        %v8046 = vpack.c.b16 %v7985, %v7984
        %v8047 = vpack.c.b16 %v7987, %v7986
        %v8048 = vpack.c.b16 %v7989, %v7988
        %v8049 = vpack.c.b16 %v7991, %v7990
        %v8050 = vpack.c.b16 %v7993, %v7992
        %v8051 = vpack.c.b16 %v7995, %v7994
        %v8052 = vpack.c.b16 %v7997, %v7996
        %v8053 = vpack.c.b16 %v7999, %v7998
        %v8054 = vpack.c.b16 %v8001, %v8000
        %v8055 = vpack.c.b16 %v8003, %v8002
        %v8056 = vpack.c.b16 %v8005, %v8004
        %v8057 = vpack.c.b16 %v8007, %v8006
        %v8058 = vpack.c.b16 %v8009, %v8008
        %v8059 = vpack.c.b16 %v8011, %v8010
        %v8060 = vpack.c.b16 %v8013, %v8012
        %v8061 = vpack.c.b16 %v8015, %v8014
        %v8062 = vpack.c.b16 %v8017, %v8016
        %v8063 = vpack.c.b16 %v8019, %v8018
        %v8064 = vpack.c.b16 %v8021, %v8020
        %v8065 = vpack.c.b16 %v8023, %v8022
        %v8066 = vpack.c.b16 %v8025, %v8024
        %v8067 = vpack.c.b16 %v8027, %v8026
        %v8068 = vpack.c.b16 %v8029, %v8028
        %v8069 = vpack.c.b16 %v8031, %v8030
        %v8070 = vpack.c.b16 %v8033, %v8032
        %v8071 = vpack.c.b16 %v8035, %v8034
        %v8072 = vpack.c.b16 %v8037, %v8036
        %v8073 = vpack.c.b16 %v8039, %v8038
        %v8074 = vpack.c.b16 %v8041, %v8040
        %v8075 = vpack.c.b16 %v8043, %v8042
        %8108 = vst [vmem:[%s479 + $0x200] sm:$0xff] %v8044
        %8109 = vst [vmem:[%s479 + $0x208] sm:$0xff] %v8045
        %8110 = vst [vmem:[%s479 + $0x210] sm:$0xff] %v8046
        %8111 = vst [vmem:[%s479 + $0x218] sm:$0xff] %v8047
        %8112 = vst [vmem:[%s479 + $0x220] sm:$0xff] %v8048
        %8113 = vst [vmem:[%s479 + $0x228] sm:$0xff] %v8049
        %8114 = vst [vmem:[%s479 + $0x230] sm:$0xff] %v8050
        %8115 = vst [vmem:[%s479 + $0x238] sm:$0xff] %v8051
        %8116 = vst [vmem:[%s479 + $0x240] sm:$0xff] %v8052
        %8117 = vst [vmem:[%s479 + $0x248] sm:$0xff] %v8053
        %8118 = vst [vmem:[%s479 + $0x250] sm:$0xff] %v8054
        %8119 = vst [vmem:[%s479 + $0x258] sm:$0xff] %v8055
        %8120 = vst [vmem:[%s479 + $0x260] sm:$0xff] %v8056
        %8121 = vst [vmem:[%s479 + $0x268] sm:$0xff] %v8057
        %8122 = vst [vmem:[%s479 + $0x270] sm:$0xff] %v8058
        %8123 = vst [vmem:[%s479 + $0x278] sm:$0xff] %v8059
        %8124 = vst [vmem:[%s479 + $0x280] sm:$0xff] %v8060
        %8125 = vst [vmem:[%s479 + $0x288] sm:$0xff] %v8061
        %8126 = vst [vmem:[%s479 + $0x290] sm:$0xff] %v8062
        %8127 = vst [vmem:[%s479 + $0x298] sm:$0xff] %v8063
        %8128 = vst [vmem:[%s479 + $0x2a0] sm:$0xff] %v8064
        %8129 = vst [vmem:[%s479 + $0x2a8] sm:$0xff] %v8065
        %8130 = vst [vmem:[%s479 + $0x2b0] sm:$0xff] %v8066
        %8131 = vst [vmem:[%s479 + $0x2b8] sm:$0xff] %v8067
        %8132 = vst [vmem:[%s479 + $0x2c0] sm:$0xff] %v8068
        %8133 = vst [vmem:[%s479 + $0x2c8] sm:$0xff] %v8069
        %8134 = vst [vmem:[%s479 + $0x2d0] sm:$0xff] %v8070
        %8135 = vst [vmem:[%s479 + $0x2d8] sm:$0xff] %v8071
        %8136 = vst [vmem:[%s479 + $0x2e0] sm:$0xff] %v8072
        %8137 = vst [vmem:[%s479 + $0x2e8] sm:$0xff] %v8073
        %8138 = vst [vmem:[%s479 + $0x2f0] sm:$0xff] %v8074
        %8139 = vst [vmem:[%s479 + $0x2f8] sm:$0xff] %v8075
        %v8140 = vld [vmem:[%s7] sm:$0xf]
        %v8141 = vld [vmem:[%s7 + $0x4] sm:$0xf]
        %v8142 = vld [vmem:[%s7 + $0x8] sm:$0xf]
        %v8143 = vld [vmem:[%s7 + $0xc] sm:$0xf]
        %v8144 = vld [vmem:[%s7 + $0x10] sm:$0xf]
        %v8145 = vld [vmem:[%s7 + $0x14] sm:$0xf]
        %v8146 = vld [vmem:[%s7 + $0x18] sm:$0xf]
        %v8147 = vld [vmem:[%s7 + $0x1c] sm:$0xf]
        %v8148 = vld [vmem:[%s7 + $0x20] sm:$0xf]
        %v8149 = vld [vmem:[%s7 + $0x24] sm:$0xf]
        %v8150 = vld [vmem:[%s7 + $0x28] sm:$0xf]
        %v8151 = vld [vmem:[%s7 + $0x2c] sm:$0xf]
        %v8152 = vld [vmem:[%s7 + $0x30] sm:$0xf]
        %v8153 = vld [vmem:[%s7 + $0x34] sm:$0xf]
        %v8154 = vld [vmem:[%s7 + $0x38] sm:$0xf]
        %v8155 = vld [vmem:[%s7 + $0x3c] sm:$0xf]
        %v8156 = vld [vmem:[%s7 + $0x40] sm:$0xf]
        %v8157 = vld [vmem:[%s7 + $0x44] sm:$0xf]
        %v8158 = vld [vmem:[%s7 + $0x48] sm:$0xf]
        %v8159 = vld [vmem:[%s7 + $0x4c] sm:$0xf]
        %v8160 = vld [vmem:[%s7 + $0x50] sm:$0xf]
        %v8161 = vld [vmem:[%s7 + $0x54] sm:$0xf]
        %v8162 = vld [vmem:[%s7 + $0x58] sm:$0xf]
        %v8163 = vld [vmem:[%s7 + $0x5c] sm:$0xf]
        %v8164 = vld [vmem:[%s7 + $0x60] sm:$0xf]
        %v8165 = vld [vmem:[%s7 + $0x64] sm:$0xf]
        %v8166 = vld [vmem:[%s7 + $0x68] sm:$0xf]
        %v8167 = vld [vmem:[%s7 + $0x6c] sm:$0xf]
        %v8168 = vld [vmem:[%s7 + $0x70] sm:$0xf]
        %v8169 = vld [vmem:[%s7 + $0x74] sm:$0xf]
        %v8170 = vld [vmem:[%s7 + $0x78] sm:$0xf]
        %v8171 = vld [vmem:[%s7 + $0x7c] sm:$0xf]
        %v8172 = vld [vmem:[%s8] sm:$0x1]
        %v8174 = vlaneseq
        %v8175 = vshrl.u32 %v8174, 7
        %v8176 = vsub.s32 0, %v8175
        %v8177 = vrot.slane %v8172, %v8176
        %v8211 = vunpack.c.l.b16 %v8140
        %v8212 = vunpack.c.l.b16 %v8141
        %v8213 = vunpack.c.l.b16 %v8142
        %v8214 = vunpack.c.l.b16 %v8143
        %v8215 = vunpack.c.l.b16 %v8144
        %v8216 = vunpack.c.l.b16 %v8145
        %v8217 = vunpack.c.l.b16 %v8146
        %v8218 = vunpack.c.l.b16 %v8147
        %v8219 = vunpack.c.l.b16 %v8148
        %v8220 = vunpack.c.l.b16 %v8149
        %v8221 = vunpack.c.l.b16 %v8150
        %v8222 = vunpack.c.l.b16 %v8151
        %v8223 = vunpack.c.l.b16 %v8152
        %v8224 = vunpack.c.l.b16 %v8153
        %v8225 = vunpack.c.l.b16 %v8154
        %v8226 = vunpack.c.l.b16 %v8155
        %v8227 = vunpack.c.l.b16 %v8156
        %v8228 = vunpack.c.l.b16 %v8157
        %v8229 = vunpack.c.l.b16 %v8158
        %v8230 = vunpack.c.l.b16 %v8159
        %v8231 = vunpack.c.l.b16 %v8160
        %v8232 = vunpack.c.l.b16 %v8161
        %v8233 = vunpack.c.l.b16 %v8162
        %v8234 = vunpack.c.l.b16 %v8163
        %v8235 = vunpack.c.l.b16 %v8164
        %v8236 = vunpack.c.l.b16 %v8165
        %v8237 = vunpack.c.l.b16 %v8166
        %v8238 = vunpack.c.l.b16 %v8167
        %v8239 = vunpack.c.l.b16 %v8168
        %v8240 = vunpack.c.l.b16 %v8169
        %v8241 = vunpack.c.l.b16 %v8170
        %v8242 = vunpack.c.l.b16 %v8171
        %v8243 = vpack.c.b16 %v8212, %v8211
        %v8244 = vpack.c.b16 %v8214, %v8213
        %v8245 = vpack.c.b16 %v8216, %v8215
        %v8246 = vpack.c.b16 %v8218, %v8217
        %v8247 = vpack.c.b16 %v8220, %v8219
        %v8248 = vpack.c.b16 %v8222, %v8221
        %v8249 = vpack.c.b16 %v8224, %v8223
        %v8250 = vpack.c.b16 %v8226, %v8225
        %v8251 = vpack.c.b16 %v8228, %v8227
        %v8252 = vpack.c.b16 %v8230, %v8229
        %v8253 = vpack.c.b16 %v8232, %v8231
        %v8254 = vpack.c.b16 %v8234, %v8233
        %v8255 = vpack.c.b16 %v8236, %v8235
        %v8256 = vpack.c.b16 %v8238, %v8237
        %v8257 = vpack.c.b16 %v8240, %v8239
        %v8258 = vpack.c.b16 %v8242, %v8241
        %8275 = vmatprep.subr.bf16.mxu0 0
        %8276 = vmatpush1.bf16.msra.mxu0 %v8243
        %8277 = vmatprep.subr.bf16.mxu0 0
        %8278 = vmatpush1.bf16.msra.mxu0 %v8244
        %8279 = vmatprep.subr.bf16.mxu0 0
        %8280 = vmatpush1.bf16.msra.mxu0 %v8245
        %8281 = vmatprep.subr.bf16.mxu0 0
        %8282 = vmatpush1.bf16.msra.mxu0 %v8246
        %8283 = vmatprep.subr.bf16.mxu0 0
        %8284 = vmatpush1.bf16.msra.mxu0 %v8247
        %8285 = vmatprep.subr.bf16.mxu0 0
        %8286 = vmatpush1.bf16.msra.mxu0 %v8248
        %8287 = vmatprep.subr.bf16.mxu0 0
        %8288 = vmatpush1.bf16.msra.mxu0 %v8249
        %8289 = vmatprep.subr.bf16.mxu0 0
        %8290 = vmatpush1.bf16.msra.mxu0 %v8250
        %8291 = vmatprep.subr.bf16.mxu0 0
        %8292 = vmatpush1.bf16.msra.mxu0 %v8251
        %8293 = vmatprep.subr.bf16.mxu0 0
        %8294 = vmatpush1.bf16.msra.mxu0 %v8252
        %8295 = vmatprep.subr.bf16.mxu0 0
        %8296 = vmatpush1.bf16.msra.mxu0 %v8253
        %8297 = vmatprep.subr.bf16.mxu0 0
        %8298 = vmatpush1.bf16.msra.mxu0 %v8254
        %8299 = vmatprep.subr.bf16.mxu0 0
        %8300 = vmatpush1.bf16.msra.mxu0 %v8255
        %8301 = vmatprep.subr.bf16.mxu0 0
        %8302 = vmatpush1.bf16.msra.mxu0 %v8256
        %8303 = vmatprep.subr.bf16.mxu0 0
        %8304 = vmatpush1.bf16.msra.mxu0 %v8257
        %8305 = vmatprep.subr.bf16.mxu0 0
        %8306 = vmatpush1.bf16.msra.mxu0 %v8258
        %8307 = vmatprep.mubr.bf16.mxu0 %v7917
        %8308 = vmatmul.mubr.bf16.gmra.mrb[0].mxu0 %v7916
        %v8309 = vpop.f32.mrb[0].mxu0
        %v8310 = vadd.f32 %v8177, %v8309
        %v8311 = vpop.f32.mrb[0].mxu0
        %v8312 = vpop.f32.mrb[0].mxu0
        %v8313 = vadd.f32 %v8177, %v8312
        %v8314 = vpop.f32.mrb[0].mxu0
        %8315 = vmatprep.mubr.bf16.mxu0 %v7919
        %8316 = vmatmul.mubr.bf16.gmra.mrb[0].mxu0 %v7918
        %v8317 = vpop.f32.mrb[0].mxu0
        %v8318 = vadd.f32 %v8177, %v8317
        %v8319 = vpop.f32.mrb[0].mxu0
        %v8320 = vpop.f32.mrb[0].mxu0
        %v8321 = vadd.f32 %v8177, %v8320
        %v8322 = vpop.f32.mrb[0].mxu0
        %8323 = vmatprep.mubr.bf16.mxu0 %v7921
        %8324 = vmatmul.mubr.bf16.gmra.mrb[0].mxu0 %v7920
        %v8325 = vpop.f32.mrb[0].mxu0
        %v8326 = vadd.f32 %v8177, %v8325
        %v8327 = vpop.f32.mrb[0].mxu0
        %v8328 = vpop.f32.mrb[0].mxu0
        %v8329 = vadd.f32 %v8177, %v8328
        %v8330 = vpop.f32.mrb[0].mxu0
        %8331 = vmatprep.mubr.bf16.mxu0 %v7923
        %8332 = vmatmul.mubr.bf16.gmra.mrb[0].mxu0 %v7922
        %v8333 = vpop.f32.mrb[0].mxu0
        %v8334 = vadd.f32 %v8177, %v8333
        %v8335 = vpop.f32.mrb[0].mxu0
        %v8336 = vpop.f32.mrb[0].mxu0
        %v8337 = vadd.f32 %v8177, %v8336
        %v8338 = vpop.f32.mrb[0].mxu0
        %8339 = vmatprep.mubr.bf16.mxu0 %v7925
        %8340 = vmatmul.mubr.bf16.gmra.mrb[0].mxu0 %v7924
        %v8341 = vpop.f32.mrb[0].mxu0
        %v8342 = vadd.f32 %v8177, %v8341
        %v8343 = vpop.f32.mrb[0].mxu0
        %v8344 = vpop.f32.mrb[0].mxu0
        %v8345 = vadd.f32 %v8177, %v8344
        %v8346 = vpop.f32.mrb[0].mxu0
        %8347 = vmatprep.mubr.bf16.mxu0 %v7927
        %8348 = vmatmul.mubr.bf16.gmra.mrb[0].mxu0 %v7926
        %v8349 = vpop.f32.mrb[0].mxu0
        %v8350 = vadd.f32 %v8177, %v8349
        %v8351 = vpop.f32.mrb[0].mxu0
        %v8352 = vpop.f32.mrb[0].mxu0
        %v8353 = vadd.f32 %v8177, %v8352
        %v8354 = vpop.f32.mrb[0].mxu0
        %8355 = vmatprep.mubr.bf16.mxu0 %v7929
        %8356 = vmatmul.mubr.bf16.gmra.mrb[0].mxu0 %v7928
        %v8357 = vpop.f32.mrb[0].mxu0
        %v8358 = vadd.f32 %v8177, %v8357
        %v8359 = vpop.f32.mrb[0].mxu0
        %v8360 = vpop.f32.mrb[0].mxu0
        %v8361 = vadd.f32 %v8177, %v8360
        %v8362 = vpop.f32.mrb[0].mxu0
        %8363 = vmatprep.mubr.bf16.mxu0 %v7931
        %8364 = vmatmul.mubr.bf16.gmra.mrb[0].mxu0 %v7930
        %v8365 = vpop.f32.mrb[0].mxu0
        %v8366 = vadd.f32 %v8177, %v8365
        %v8367 = vpop.f32.mrb[0].mxu0
        %v8368 = vpop.f32.mrb[0].mxu0
        %v8369 = vadd.f32 %v8177, %v8368
        %v8370 = vpop.f32.mrb[0].mxu0
        %8371 = vmatprep.mubr.bf16.mxu0 %v7933
        %8372 = vmatmul.mubr.bf16.gmra.mrb[0].mxu0 %v7932
        %v8373 = vpop.f32.mrb[0].mxu0
        %v8374 = vadd.f32 %v8177, %v8373
        %v8375 = vpop.f32.mrb[0].mxu0
        %v8376 = vpop.f32.mrb[0].mxu0
        %v8377 = vadd.f32 %v8177, %v8376
        %v8378 = vpop.f32.mrb[0].mxu0
        %8379 = vmatprep.mubr.bf16.mxu0 %v7935
        %8380 = vmatmul.mubr.bf16.gmra.mrb[0].mxu0 %v7934
        %v8381 = vpop.f32.mrb[0].mxu0
        %v8382 = vadd.f32 %v8177, %v8381
        %v8383 = vpop.f32.mrb[0].mxu0
        %v8384 = vpop.f32.mrb[0].mxu0
        %v8385 = vadd.f32 %v8177, %v8384
        %v8386 = vpop.f32.mrb[0].mxu0
        %8387 = vmatprep.mubr.bf16.mxu0 %v7937
        %8388 = vmatmul.mubr.bf16.gmra.mrb[0].mxu0 %v7936
        %v8389 = vpop.f32.mrb[0].mxu0
        %v8390 = vadd.f32 %v8177, %v8389
        %v8391 = vpop.f32.mrb[0].mxu0
        %v8392 = vpop.f32.mrb[0].mxu0
        %v8393 = vadd.f32 %v8177, %v8392
        %v8394 = vpop.f32.mrb[0].mxu0
        %8395 = vmatprep.mubr.bf16.mxu0 %v7939
        %8396 = vmatmul.mubr.bf16.gmra.mrb[0].mxu0 %v7938
        %v8397 = vpop.f32.mrb[0].mxu0
        %v8398 = vadd.f32 %v8177, %v8397
        %v8399 = vpop.f32.mrb[0].mxu0
        %v8400 = vpop.f32.mrb[0].mxu0
        %v8401 = vadd.f32 %v8177, %v8400
        %v8402 = vpop.f32.mrb[0].mxu0
        %8403 = vmatprep.mubr.bf16.mxu0 %v7941
        %8404 = vmatmul.mubr.bf16.gmra.mrb[0].mxu0 %v7940
        %v8405 = vpop.f32.mrb[0].mxu0
        %v8406 = vadd.f32 %v8177, %v8405
        %v8407 = vpop.f32.mrb[0].mxu0
        %v8408 = vpop.f32.mrb[0].mxu0
        %v8409 = vadd.f32 %v8177, %v8408
        %v8410 = vpop.f32.mrb[0].mxu0
        %8411 = vmatprep.mubr.bf16.mxu0 %v7943
        %8412 = vmatmul.mubr.bf16.gmra.mrb[0].mxu0 %v7942
        %v8413 = vpop.f32.mrb[0].mxu0
        %v8414 = vadd.f32 %v8177, %v8413
        %v8415 = vpop.f32.mrb[0].mxu0
        %v8416 = vpop.f32.mrb[0].mxu0
        %v8417 = vadd.f32 %v8177, %v8416
        %v8418 = vpop.f32.mrb[0].mxu0
        %8419 = vmatprep.mubr.bf16.mxu0 %v7945
        %8420 = vmatmul.mubr.bf16.gmra.mrb[0].mxu0 %v7944
        %v8421 = vpop.f32.mrb[0].mxu0
        %v8422 = vadd.f32 %v8177, %v8421
        %v8423 = vpop.f32.mrb[0].mxu0
        %v8424 = vpop.f32.mrb[0].mxu0
        %v8425 = vadd.f32 %v8177, %v8424
        %v8426 = vpop.f32.mrb[0].mxu0
        %8427 = vmatprep.mubr.bf16.mxu0 %v7947
        %8428 = vmatmul.mubr.bf16.gmra.mrb[0].mxu0 %v7946
        %v8429 = vpop.f32.mrb[0].mxu0
        %v8430 = vadd.f32 %v8177, %v8429
        %v8431 = vpop.f32.mrb[0].mxu0
        %v8432 = vpop.f32.mrb[0].mxu0
        %v8433 = vadd.f32 %v8177, %v8432
        %v8434 = vpop.f32.mrb[0].mxu0
        %8435 = vdwg.mxu0
        %v8436 = vmax.f32 %v8310, 0.0
        %v8437 = vmax.f32 %v8313, 0.0
        %v8438 = vmax.f32 %v8318, 0.0
        %v8439 = vmax.f32 %v8321, 0.0
        %v8440 = vmax.f32 %v8326, 0.0
        %v8441 = vmax.f32 %v8329, 0.0
        %v8442 = vmax.f32 %v8334, 0.0
        %v8443 = vmax.f32 %v8337, 0.0
        %v8444 = vmax.f32 %v8342, 0.0
        %v8445 = vmax.f32 %v8345, 0.0
        %v8446 = vmax.f32 %v8350, 0.0
        %v8447 = vmax.f32 %v8353, 0.0
        %v8448 = vmax.f32 %v8358, 0.0
        %v8449 = vmax.f32 %v8361, 0.0
        %v8450 = vmax.f32 %v8366, 0.0
        %v8451 = vmax.f32 %v8369, 0.0
        %v8452 = vmax.f32 %v8374, 0.0
        %v8453 = vmax.f32 %v8377, 0.0
        %v8454 = vmax.f32 %v8382, 0.0
        %v8455 = vmax.f32 %v8385, 0.0
        %v8456 = vmax.f32 %v8390, 0.0
        %v8457 = vmax.f32 %v8393, 0.0
        %v8458 = vmax.f32 %v8398, 0.0
        %v8459 = vmax.f32 %v8401, 0.0
        %v8460 = vmax.f32 %v8406, 0.0
        %v8461 = vmax.f32 %v8409, 0.0
        %v8462 = vmax.f32 %v8414, 0.0
        %v8463 = vmax.f32 %v8417, 0.0
        %v8464 = vmax.f32 %v8422, 0.0
        %v8465 = vmax.f32 %v8425, 0.0
        %v8466 = vmax.f32 %v8430, 0.0
        %v8467 = vmax.f32 %v8433, 0.0
        %v8468 = vpack.c.bf16 %v8437, %v8436
        %v8469 = vpack.c.bf16 %v8439, %v8438
        %v8470 = vpack.c.bf16 %v8441, %v8440
        %v8471 = vpack.c.bf16 %v8443, %v8442
        %v8472 = vpack.c.bf16 %v8445, %v8444
        %v8473 = vpack.c.bf16 %v8447, %v8446
        %v8474 = vpack.c.bf16 %v8449, %v8448
        %v8475 = vpack.c.bf16 %v8451, %v8450
        %v8476 = vpack.c.bf16 %v8453, %v8452
        %v8477 = vpack.c.bf16 %v8455, %v8454
        %v8478 = vpack.c.bf16 %v8457, %v8456
        %v8479 = vpack.c.bf16 %v8459, %v8458
        %v8480 = vpack.c.bf16 %v8461, %v8460
        %v8481 = vpack.c.bf16 %v8463, %v8462
        %v8482 = vpack.c.bf16 %v8465, %v8464
        %v8483 = vpack.c.bf16 %v8467, %v8466
        %v8500 = vunpack.c.l.b16 %v8468
        %v8501 = vunpack.c.h.b16 %v8468
        %v8502 = vunpack.c.l.b16 %v8469
        %v8503 = vunpack.c.h.b16 %v8469
        %v8504 = vunpack.c.l.b16 %v8470
        %v8505 = vunpack.c.h.b16 %v8470
        %v8506 = vunpack.c.l.b16 %v8471
        %v8507 = vunpack.c.h.b16 %v8471
        %v8508 = vunpack.c.l.b16 %v8472
        %v8509 = vunpack.c.h.b16 %v8472
        %v8510 = vunpack.c.l.b16 %v8473
        %v8511 = vunpack.c.h.b16 %v8473
        %v8512 = vunpack.c.l.b16 %v8474
        %v8513 = vunpack.c.h.b16 %v8474
        %v8514 = vunpack.c.l.b16 %v8475
        %v8515 = vunpack.c.h.b16 %v8475
        %v8516 = vunpack.c.l.b16 %v8476
        %v8517 = vunpack.c.h.b16 %v8476
        %v8518 = vunpack.c.l.b16 %v8477
        %v8519 = vunpack.c.h.b16 %v8477
        %v8520 = vunpack.c.l.b16 %v8478
        %v8521 = vunpack.c.h.b16 %v8478
        %v8522 = vunpack.c.l.b16 %v8479
        %v8523 = vunpack.c.h.b16 %v8479
        %v8524 = vunpack.c.l.b16 %v8480
        %v8525 = vunpack.c.h.b16 %v8480
        %v8526 = vunpack.c.l.b16 %v8481
        %v8527 = vunpack.c.h.b16 %v8481
        %v8528 = vunpack.c.l.b16 %v8482
        %v8529 = vunpack.c.h.b16 %v8482
        %v8530 = vunpack.c.l.b16 %v8483
        %v8531 = vunpack.c.h.b16 %v8483
        %v8532 = vpack.c.b16 %v8500, %v8500
        %v8533 = vpack.c.b16 %v8501, %v8501
        %v8534 = vpack.c.b16 %v8502, %v8502
        %v8535 = vpack.c.b16 %v8503, %v8503
        %v8536 = vpack.c.b16 %v8504, %v8504
        %v8537 = vpack.c.b16 %v8505, %v8505
        %v8538 = vpack.c.b16 %v8506, %v8506
        %v8539 = vpack.c.b16 %v8507, %v8507
        %v8540 = vpack.c.b16 %v8508, %v8508
        %v8541 = vpack.c.b16 %v8509, %v8509
        %v8542 = vpack.c.b16 %v8510, %v8510
        %v8543 = vpack.c.b16 %v8511, %v8511
        %v8544 = vpack.c.b16 %v8512, %v8512
        %v8545 = vpack.c.b16 %v8513, %v8513
        %v8546 = vpack.c.b16 %v8514, %v8514
        %v8547 = vpack.c.b16 %v8515, %v8515
        %v8548 = vpack.c.b16 %v8516, %v8516
        %v8549 = vpack.c.b16 %v8517, %v8517
        %v8550 = vpack.c.b16 %v8518, %v8518
        %v8551 = vpack.c.b16 %v8519, %v8519
        %v8552 = vpack.c.b16 %v8520, %v8520
        %v8553 = vpack.c.b16 %v8521, %v8521
        %v8554 = vpack.c.b16 %v8522, %v8522
        %v8555 = vpack.c.b16 %v8523, %v8523
        %v8556 = vpack.c.b16 %v8524, %v8524
        %v8557 = vpack.c.b16 %v8525, %v8525
        %v8558 = vpack.c.b16 %v8526, %v8526
        %v8559 = vpack.c.b16 %v8527, %v8527
        %v8560 = vpack.c.b16 %v8528, %v8528
        %v8561 = vpack.c.b16 %v8529, %v8529
        %v8562 = vpack.c.b16 %v8530, %v8530
        %v8563 = vpack.c.b16 %v8531, %v8531
        %8564 = vrot.lane.b32.xlu0 %v8532, 64
        %v8565 = vpop.permute.xlu0 %8564
        %8566 = vrot.lane.b32.xlu0 %v8533, 64
        %v8567 = vpop.permute.xlu0 %8566
        %8568 = vrot.lane.b32.xlu0 %v8534, 64
        %v8569 = vpop.permute.xlu0 %8568
        %8570 = vrot.lane.b32.xlu0 %v8535, 64
        %v8571 = vpop.permute.xlu0 %8570
        %8572 = vrot.lane.b32.xlu0 %v8536, 64
        %v8573 = vpop.permute.xlu0 %8572
        %8574 = vrot.lane.b32.xlu0 %v8537, 64
        %v8575 = vpop.permute.xlu0 %8574
        %8576 = vrot.lane.b32.xlu0 %v8538, 64
        %v8577 = vpop.permute.xlu0 %8576
        %8578 = vrot.lane.b32.xlu0 %v8539, 64
        %v8579 = vpop.permute.xlu0 %8578
        %8580 = vrot.lane.b32.xlu0 %v8540, 64
        %v8581 = vpop.permute.xlu0 %8580
        %8582 = vrot.lane.b32.xlu0 %v8541, 64
        %v8583 = vpop.permute.xlu0 %8582
        %8584 = vrot.lane.b32.xlu0 %v8542, 64
        %v8585 = vpop.permute.xlu0 %8584
        %8586 = vrot.lane.b32.xlu0 %v8543, 64
        %v8587 = vpop.permute.xlu0 %8586
        %8588 = vrot.lane.b32.xlu0 %v8544, 64
        %v8589 = vpop.permute.xlu0 %8588
        %8590 = vrot.lane.b32.xlu0 %v8545, 64
        %v8591 = vpop.permute.xlu0 %8590
        %8592 = vrot.lane.b32.xlu0 %v8546, 64
        %v8593 = vpop.permute.xlu0 %8592
        %8594 = vrot.lane.b32.xlu0 %v8547, 64
        %v8595 = vpop.permute.xlu0 %8594
        %8596 = vrot.lane.b32.xlu0 %v8548, 64
        %v8597 = vpop.permute.xlu0 %8596
        %8598 = vrot.lane.b32.xlu0 %v8549, 64
        %v8599 = vpop.permute.xlu0 %8598
        %8600 = vrot.lane.b32.xlu0 %v8550, 64
        %v8601 = vpop.permute.xlu0 %8600
        %8602 = vrot.lane.b32.xlu0 %v8551, 64
        %v8603 = vpop.permute.xlu0 %8602
        %8604 = vrot.lane.b32.xlu0 %v8552, 64
        %v8605 = vpop.permute.xlu0 %8604
        %8606 = vrot.lane.b32.xlu0 %v8553, 64
        %v8607 = vpop.permute.xlu0 %8606
        %8608 = vrot.lane.b32.xlu0 %v8554, 64
        %v8609 = vpop.permute.xlu0 %8608
        %8610 = vrot.lane.b32.xlu0 %v8555, 64
        %v8611 = vpop.permute.xlu0 %8610
        %8612 = vrot.lane.b32.xlu0 %v8556, 64
        %v8613 = vpop.permute.xlu0 %8612
        %8614 = vrot.lane.b32.xlu0 %v8557, 64
        %v8615 = vpop.permute.xlu0 %8614
        %8616 = vrot.lane.b32.xlu0 %v8558, 64
        %v8617 = vpop.permute.xlu0 %8616
        %8618 = vrot.lane.b32.xlu0 %v8559, 64
        %v8619 = vpop.permute.xlu0 %8618
        %8620 = vrot.lane.b32.xlu0 %v8560, 64
        %v8621 = vpop.permute.xlu0 %8620
        %8622 = vrot.lane.b32.xlu0 %v8561, 64
        %v8623 = vpop.permute.xlu0 %8622
        %8624 = vrot.lane.b32.xlu0 %v8562, 64
        %v8625 = vpop.permute.xlu0 %8624
        %8626 = vrot.lane.b32.xlu0 %v8563, 64
        %v8627 = vpop.permute.xlu0 %8626
        %8660 = vst.msk [vmem:[%s465 + $0x100] sm:$0xf] %vm2908, %v8565
        %8661 = vst.msk [vmem:[%s465 + $0x104] sm:$0xf] %vm2908, %v8567
        %8662 = vst.msk [vmem:[%s465 + $0x108] sm:$0xf] %vm2908, %v8569
        %8663 = vst.msk [vmem:[%s465 + $0x10c] sm:$0xf] %vm2908, %v8571
        %8664 = vst.msk [vmem:[%s465 + $0x110] sm:$0xf] %vm2908, %v8573
        %8665 = vst.msk [vmem:[%s465 + $0x114] sm:$0xf] %vm2908, %v8575
        %8666 = vst.msk [vmem:[%s465 + $0x118] sm:$0xf] %vm2908, %v8577
        %8667 = vst.msk [vmem:[%s465 + $0x11c] sm:$0xf] %vm2908, %v8579
        %8668 = vst.msk [vmem:[%s465 + $0x120] sm:$0xf] %vm2908, %v8581
        %8669 = vst.msk [vmem:[%s465 + $0x124] sm:$0xf] %vm2908, %v8583
        %8670 = vst.msk [vmem:[%s465 + $0x128] sm:$0xf] %vm2908, %v8585
        %8671 = vst.msk [vmem:[%s465 + $0x12c] sm:$0xf] %vm2908, %v8587
        %8672 = vst.msk [vmem:[%s465 + $0x130] sm:$0xf] %vm2908, %v8589
        %8673 = vst.msk [vmem:[%s465 + $0x134] sm:$0xf] %vm2908, %v8591
        %8674 = vst.msk [vmem:[%s465 + $0x138] sm:$0xf] %vm2908, %v8593
        %8675 = vst.msk [vmem:[%s465 + $0x13c] sm:$0xf] %vm2908, %v8595
        %8676 = vst.msk [vmem:[%s465 + $0x140] sm:$0xf] %vm2908, %v8597
        %8677 = vst.msk [vmem:[%s465 + $0x144] sm:$0xf] %vm2908, %v8599
        %8678 = vst.msk [vmem:[%s465 + $0x148] sm:$0xf] %vm2908, %v8601
        %8679 = vst.msk [vmem:[%s465 + $0x14c] sm:$0xf] %vm2908, %v8603
        %8680 = vst.msk [vmem:[%s465 + $0x150] sm:$0xf] %vm2908, %v8605
        %8681 = vst.msk [vmem:[%s465 + $0x154] sm:$0xf] %vm2908, %v8607
        %8682 = vst.msk [vmem:[%s465 + $0x158] sm:$0xf] %vm2908, %v8609
        %8683 = vst.msk [vmem:[%s465 + $0x15c] sm:$0xf] %vm2908, %v8611
        %8684 = vst.msk [vmem:[%s465 + $0x160] sm:$0xf] %vm2908, %v8613
        %8685 = vst.msk [vmem:[%s465 + $0x164] sm:$0xf] %vm2908, %v8615
        %8686 = vst.msk [vmem:[%s465 + $0x168] sm:$0xf] %vm2908, %v8617
        %8687 = vst.msk [vmem:[%s465 + $0x16c] sm:$0xf] %vm2908, %v8619
        %8688 = vst.msk [vmem:[%s465 + $0x170] sm:$0xf] %vm2908, %v8621
        %8689 = vst.msk [vmem:[%s465 + $0x174] sm:$0xf] %vm2908, %v8623
        %8690 = vst.msk [vmem:[%s465 + $0x178] sm:$0xf] %vm2908, %v8625
        %8691 = vst.msk [vmem:[%s465 + $0x17c] sm:$0xf] %vm2908, %v8627
        %v8692 = vld [vmem:[%s9] sm:$0xf]
        %v8693 = vld [vmem:[%s9 + $0x4] sm:$0xf]
        %v8694 = vld [vmem:[%s9 + $0x8] sm:$0xf]
        %v8695 = vld [vmem:[%s9 + $0xc] sm:$0xf]
        %v8696 = vld [vmem:[%s9 + $0x10] sm:$0xf]
        %v8697 = vld [vmem:[%s9 + $0x14] sm:$0xf]
        %v8698 = vld [vmem:[%s9 + $0x18] sm:$0xf]
        %v8699 = vld [vmem:[%s9 + $0x1c] sm:$0xf]
        %v8700 = vld [vmem:[%s10] sm:$0x1]
        %v8702 = vlaneseq
        %v8703 = vshrl.u32 %v8702, 7
        %v8704 = vsub.s32 0, %v8703
        %v8705 = vrot.slane %v8700, %v8704
        %v8715 = vunpack.c.l.b16 %v8692
        %v8716 = vunpack.c.l.b16 %v8693
        %v8717 = vunpack.c.l.b16 %v8694
        %v8718 = vunpack.c.l.b16 %v8695
        %v8719 = vunpack.c.l.b16 %v8696
        %v8720 = vunpack.c.l.b16 %v8697
        %v8721 = vunpack.c.l.b16 %v8698
        %v8722 = vunpack.c.l.b16 %v8699
        %v8723 = vpack.c.b16 %v8716, %v8715
        %v8724 = vpack.c.b16 %v8718, %v8717
        %v8725 = vpack.c.b16 %v8720, %v8719
        %v8726 = vpack.c.b16 %v8722, %v8721
        %v8732 = vsel %vm1397, %v8468, 0
        %v8735 = vsel %vm1397, %v8469, 0
        %v8738 = vsel %vm1397, %v8470, 0
        %v8741 = vsel %vm1397, %v8471, 0
        %v8744 = vsel %vm1397, %v8472, 0
        %v8747 = vsel %vm1397, %v8473, 0
        %v8750 = vsel %vm1397, %v8474, 0
        %v8753 = vsel %vm1397, %v8475, 0
        %v8756 = vsel %vm1397, %v8476, 0
        %v8759 = vsel %vm1397, %v8477, 0
        %v8762 = vsel %vm1397, %v8478, 0
        %v8765 = vsel %vm1397, %v8479, 0
        %v8768 = vsel %vm1397, %v8480, 0
        %v8771 = vsel %vm1397, %v8481, 0
        %v8774 = vsel %vm1397, %v8482, 0
        %v8777 = vsel %vm1397, %v8483, 0
        %8779 = vmatprep.subr.bf16.mxu0 0
        %8780 = vmatpush1.bf16.msra.mxu0 %v8723
        %8781 = vmatprep.subr.bf16.mxu0 0
        %8782 = vmatpush1.bf16.msra.mxu0 %v8724
        %8783 = vmatprep.subr.bf16.mxu0 0
        %8784 = vmatpush1.bf16.msra.mxu0 %v8725
        %8785 = vmatprep.subr.bf16.mxu0 0
        %8786 = vmatpush1.bf16.msra.mxu0 %v8726
        %8787 = vmatprep.subr.bf16.mxu0 0
        %8788 = vmatpush1.bf16.msra.mxu0 0
        %8789 = vmatprep.subr.bf16.mxu0 0
        %8790 = vmatpush1.bf16.msra.mxu0 0
        %8791 = vmatprep.subr.bf16.mxu0 0
        %8792 = vmatpush1.bf16.msra.mxu0 0
        %8793 = vmatprep.subr.bf16.mxu0 0
        %8794 = vmatpush1.bf16.msra.mxu0 0
        %8795 = vmatprep.subr.bf16.mxu0 0
        %8796 = vmatpush1.bf16.msra.mxu0 0
        %8797 = vmatprep.subr.bf16.mxu0 0
        %8798 = vmatpush1.bf16.msra.mxu0 0
        %8799 = vmatprep.subr.bf16.mxu0 0
        %8800 = vmatpush1.bf16.msra.mxu0 0
        %8801 = vmatprep.subr.bf16.mxu0 0
        %8802 = vmatpush1.bf16.msra.mxu0 0
        %8803 = vmatprep.subr.bf16.mxu0 0
        %8804 = vmatpush1.bf16.msra.mxu0 0
        %8805 = vmatprep.subr.bf16.mxu0 0
        %8806 = vmatpush1.bf16.msra.mxu0 0
        %8807 = vmatprep.subr.bf16.mxu0 0
        %8808 = vmatpush1.bf16.msra.mxu0 0
        %8809 = vmatprep.subr.bf16.mxu0 0
        %8810 = vmatpush1.bf16.msra.mxu0 0
        %8811 = vmatprep.mubr.bf16.mxu0 0
        %8812 = vmatmul.mubr.bf16.gmra.mrb[0].mxu0 %v8732
        %v8813 = vpop.f32.mrb[0].mxu0
        %v8814 = vadd.f32 %v8705, %v8813
        %v8815 = vpop.f32.mrb[0].mxu0
        %v8816 = vpop.f32.mrb[0].mxu0
        %v8817 = vadd.f32 %v8705, %v8816
        %v8818 = vpop.f32.mrb[0].mxu0
        %8819 = vmatprep.mubr.bf16.mxu0 0
        %8820 = vmatmul.mubr.bf16.gmra.mrb[0].mxu0 %v8735
        %v8821 = vpop.f32.mrb[0].mxu0
        %v8822 = vadd.f32 %v8705, %v8821
        %v8823 = vpop.f32.mrb[0].mxu0
        %v8824 = vpop.f32.mrb[0].mxu0
        %v8825 = vadd.f32 %v8705, %v8824
        %v8826 = vpop.f32.mrb[0].mxu0
        %8827 = vmatprep.mubr.bf16.mxu0 0
        %8828 = vmatmul.mubr.bf16.gmra.mrb[0].mxu0 %v8738
        %v8829 = vpop.f32.mrb[0].mxu0
        %v8830 = vadd.f32 %v8705, %v8829
        %v8831 = vpop.f32.mrb[0].mxu0
        %v8832 = vpop.f32.mrb[0].mxu0
        %v8833 = vadd.f32 %v8705, %v8832
        %v8834 = vpop.f32.mrb[0].mxu0
        %8835 = vmatprep.mubr.bf16.mxu0 0
        %8836 = vmatmul.mubr.bf16.gmra.mrb[0].mxu0 %v8741
        %v8837 = vpop.f32.mrb[0].mxu0
        %v8838 = vadd.f32 %v8705, %v8837
        %v8839 = vpop.f32.mrb[0].mxu0
        %v8840 = vpop.f32.mrb[0].mxu0
        %v8841 = vadd.f32 %v8705, %v8840
        %v8842 = vpop.f32.mrb[0].mxu0
        %8843 = vmatprep.mubr.bf16.mxu0 0
        %8844 = vmatmul.mubr.bf16.gmra.mrb[0].mxu0 %v8744
        %v8845 = vpop.f32.mrb[0].mxu0
        %v8846 = vadd.f32 %v8705, %v8845
        %v8847 = vpop.f32.mrb[0].mxu0
        %v8848 = vpop.f32.mrb[0].mxu0
        %v8849 = vadd.f32 %v8705, %v8848
        %v8850 = vpop.f32.mrb[0].mxu0
        %8851 = vmatprep.mubr.bf16.mxu0 0
        %8852 = vmatmul.mubr.bf16.gmra.mrb[0].mxu0 %v8747
        %v8853 = vpop.f32.mrb[0].mxu0
        %v8854 = vadd.f32 %v8705, %v8853
        %v8855 = vpop.f32.mrb[0].mxu0
        %v8856 = vpop.f32.mrb[0].mxu0
        %v8857 = vadd.f32 %v8705, %v8856
        %v8858 = vpop.f32.mrb[0].mxu0
        %8859 = vmatprep.mubr.bf16.mxu0 0
        %8860 = vmatmul.mubr.bf16.gmra.mrb[0].mxu0 %v8750
        %v8861 = vpop.f32.mrb[0].mxu0
        %v8862 = vadd.f32 %v8705, %v8861
        %v8863 = vpop.f32.mrb[0].mxu0
        %v8864 = vpop.f32.mrb[0].mxu0
        %v8865 = vadd.f32 %v8705, %v8864
        %v8866 = vpop.f32.mrb[0].mxu0
        %8867 = vmatprep.mubr.bf16.mxu0 0
        %8868 = vmatmul.mubr.bf16.gmra.mrb[0].mxu0 %v8753
        %v8869 = vpop.f32.mrb[0].mxu0
        %v8870 = vadd.f32 %v8705, %v8869
        %v8871 = vpop.f32.mrb[0].mxu0
        %v8872 = vpop.f32.mrb[0].mxu0
        %v8873 = vadd.f32 %v8705, %v8872
        %v8874 = vpop.f32.mrb[0].mxu0
        %8875 = vmatprep.mubr.bf16.mxu0 0
        %8876 = vmatmul.mubr.bf16.gmra.mrb[0].mxu0 %v8756
        %v8877 = vpop.f32.mrb[0].mxu0
        %v8878 = vadd.f32 %v8705, %v8877
        %v8879 = vpop.f32.mrb[0].mxu0
        %v8880 = vpop.f32.mrb[0].mxu0
        %v8881 = vadd.f32 %v8705, %v8880
        %v8882 = vpop.f32.mrb[0].mxu0
        %8883 = vmatprep.mubr.bf16.mxu0 0
        %8884 = vmatmul.mubr.bf16.gmra.mrb[0].mxu0 %v8759
        %v8885 = vpop.f32.mrb[0].mxu0
        %v8886 = vadd.f32 %v8705, %v8885
        %v8887 = vpop.f32.mrb[0].mxu0
        %v8888 = vpop.f32.mrb[0].mxu0
        %v8889 = vadd.f32 %v8705, %v8888
        %v8890 = vpop.f32.mrb[0].mxu0
        %8891 = vmatprep.mubr.bf16.mxu0 0
        %8892 = vmatmul.mubr.bf16.gmra.mrb[0].mxu0 %v8762
        %v8893 = vpop.f32.mrb[0].mxu0
        %v8894 = vadd.f32 %v8705, %v8893
        %v8895 = vpop.f32.mrb[0].mxu0
        %v8896 = vpop.f32.mrb[0].mxu0
        %v8897 = vadd.f32 %v8705, %v8896
        %v8898 = vpop.f32.mrb[0].mxu0
        %8899 = vmatprep.mubr.bf16.mxu0 0
        %8900 = vmatmul.mubr.bf16.gmra.mrb[0].mxu0 %v8765
        %v8901 = vpop.f32.mrb[0].mxu0
        %v8902 = vadd.f32 %v8705, %v8901
        %v8903 = vpop.f32.mrb[0].mxu0
        %v8904 = vpop.f32.mrb[0].mxu0
        %v8905 = vadd.f32 %v8705, %v8904
        %v8906 = vpop.f32.mrb[0].mxu0
        %8907 = vmatprep.mubr.bf16.mxu0 0
        %8908 = vmatmul.mubr.bf16.gmra.mrb[0].mxu0 %v8768
        %v8909 = vpop.f32.mrb[0].mxu0
        %v8910 = vadd.f32 %v8705, %v8909
        %v8911 = vpop.f32.mrb[0].mxu0
        %v8912 = vpop.f32.mrb[0].mxu0
        %v8913 = vadd.f32 %v8705, %v8912
        %v8914 = vpop.f32.mrb[0].mxu0
        %8915 = vmatprep.mubr.bf16.mxu0 0
        %8916 = vmatmul.mubr.bf16.gmra.mrb[0].mxu0 %v8771
        %v8917 = vpop.f32.mrb[0].mxu0
        %v8918 = vadd.f32 %v8705, %v8917
        %v8919 = vpop.f32.mrb[0].mxu0
        %v8920 = vpop.f32.mrb[0].mxu0
        %v8921 = vadd.f32 %v8705, %v8920
        %v8922 = vpop.f32.mrb[0].mxu0
        %8923 = vmatprep.mubr.bf16.mxu0 0
        %8924 = vmatmul.mubr.bf16.gmra.mrb[0].mxu0 %v8774
        %v8925 = vpop.f32.mrb[0].mxu0
        %v8926 = vadd.f32 %v8705, %v8925
        %v8927 = vpop.f32.mrb[0].mxu0
        %v8928 = vpop.f32.mrb[0].mxu0
        %v8929 = vadd.f32 %v8705, %v8928
        %v8930 = vpop.f32.mrb[0].mxu0
        %8931 = vmatprep.mubr.bf16.mxu0 0
        %8932 = vmatmul.mubr.bf16.gmra.mrb[0].mxu0 %v8777
        %v8933 = vpop.f32.mrb[0].mxu0
        %v8934 = vadd.f32 %v8705, %v8933
        %v8935 = vpop.f32.mrb[0].mxu0
        %v8936 = vpop.f32.mrb[0].mxu0
        %v8937 = vadd.f32 %v8705, %v8936
        %v8938 = vpop.f32.mrb[0].mxu0
        %8939 = vdwg.mxu0
        %v8940 = vmax.f32 %v8814, 0.0
        %v8941 = vmax.f32 %v8817, 0.0
        %v8942 = vmax.f32 %v8822, 0.0
        %v8943 = vmax.f32 %v8825, 0.0
        %v8944 = vmax.f32 %v8830, 0.0
        %v8945 = vmax.f32 %v8833, 0.0
        %v8946 = vmax.f32 %v8838, 0.0
        %v8947 = vmax.f32 %v8841, 0.0
        %v8948 = vmax.f32 %v8846, 0.0
        %v8949 = vmax.f32 %v8849, 0.0
        %v8950 = vmax.f32 %v8854, 0.0
        %v8951 = vmax.f32 %v8857, 0.0
        %v8952 = vmax.f32 %v8862, 0.0
        %v8953 = vmax.f32 %v8865, 0.0
        %v8954 = vmax.f32 %v8870, 0.0
        %v8955 = vmax.f32 %v8873, 0.0
        %v8956 = vmax.f32 %v8878, 0.0
        %v8957 = vmax.f32 %v8881, 0.0
        %v8958 = vmax.f32 %v8886, 0.0
        %v8959 = vmax.f32 %v8889, 0.0
        %v8960 = vmax.f32 %v8894, 0.0
        %v8961 = vmax.f32 %v8897, 0.0
        %v8962 = vmax.f32 %v8902, 0.0
        %v8963 = vmax.f32 %v8905, 0.0
        %v8964 = vmax.f32 %v8910, 0.0
        %v8965 = vmax.f32 %v8913, 0.0
        %v8966 = vmax.f32 %v8918, 0.0
        %v8967 = vmax.f32 %v8921, 0.0
        %v8968 = vmax.f32 %v8926, 0.0
        %v8969 = vmax.f32 %v8929, 0.0
        %v8970 = vmax.f32 %v8934, 0.0
        %v8971 = vmax.f32 %v8937, 0.0
        %v8972 = vpack.c.bf16 %v8941, %v8940
        %v8973 = vpack.c.bf16 %v8943, %v8942
        %v8974 = vpack.c.bf16 %v8945, %v8944
        %v8975 = vpack.c.bf16 %v8947, %v8946
        %v8976 = vpack.c.bf16 %v8949, %v8948
        %v8977 = vpack.c.bf16 %v8951, %v8950
        %v8978 = vpack.c.bf16 %v8953, %v8952
        %v8979 = vpack.c.bf16 %v8955, %v8954
        %v8980 = vpack.c.bf16 %v8957, %v8956
        %v8981 = vpack.c.bf16 %v8959, %v8958
        %v8982 = vpack.c.bf16 %v8961, %v8960
        %v8983 = vpack.c.bf16 %v8963, %v8962
        %v8984 = vpack.c.bf16 %v8965, %v8964
        %v8985 = vpack.c.bf16 %v8967, %v8966
        %v8986 = vpack.c.bf16 %v8969, %v8968
        %v8987 = vpack.c.bf16 %v8971, %v8970
        %v9004 = vunpack.c.l.b16 %v8972
        %v9005 = vunpack.c.h.b16 %v8972
        %v9006 = vunpack.c.l.b16 %v8973
        %v9007 = vunpack.c.h.b16 %v8973
        %v9008 = vunpack.c.l.b16 %v8974
        %v9009 = vunpack.c.h.b16 %v8974
        %v9010 = vunpack.c.l.b16 %v8975
        %v9011 = vunpack.c.h.b16 %v8975
        %v9012 = vunpack.c.l.b16 %v8976
        %v9013 = vunpack.c.h.b16 %v8976
        %v9014 = vunpack.c.l.b16 %v8977
        %v9015 = vunpack.c.h.b16 %v8977
        %v9016 = vunpack.c.l.b16 %v8978
        %v9017 = vunpack.c.h.b16 %v8978
        %v9018 = vunpack.c.l.b16 %v8979
        %v9019 = vunpack.c.h.b16 %v8979
        %v9020 = vunpack.c.l.b16 %v8980
        %v9021 = vunpack.c.h.b16 %v8980
        %v9022 = vunpack.c.l.b16 %v8981
        %v9023 = vunpack.c.h.b16 %v8981
        %v9024 = vunpack.c.l.b16 %v8982
        %v9025 = vunpack.c.h.b16 %v8982
        %v9026 = vunpack.c.l.b16 %v8983
        %v9027 = vunpack.c.h.b16 %v8983
        %v9028 = vunpack.c.l.b16 %v8984
        %v9029 = vunpack.c.h.b16 %v8984
        %v9030 = vunpack.c.l.b16 %v8985
        %v9031 = vunpack.c.h.b16 %v8985
        %v9032 = vunpack.c.l.b16 %v8986
        %v9033 = vunpack.c.h.b16 %v8986
        %v9034 = vunpack.c.l.b16 %v8987
        %v9035 = vunpack.c.h.b16 %v8987
        %v9036 = vpack.c.b16 %v9004, %v9004
        %v9037 = vpack.c.b16 %v9005, %v9005
        %v9038 = vpack.c.b16 %v9006, %v9006
        %v9039 = vpack.c.b16 %v9007, %v9007
        %v9040 = vpack.c.b16 %v9008, %v9008
        %v9041 = vpack.c.b16 %v9009, %v9009
        %v9042 = vpack.c.b16 %v9010, %v9010
        %v9043 = vpack.c.b16 %v9011, %v9011
        %v9044 = vpack.c.b16 %v9012, %v9012
        %v9045 = vpack.c.b16 %v9013, %v9013
        %v9046 = vpack.c.b16 %v9014, %v9014
        %v9047 = vpack.c.b16 %v9015, %v9015
        %v9048 = vpack.c.b16 %v9016, %v9016
        %v9049 = vpack.c.b16 %v9017, %v9017
        %v9050 = vpack.c.b16 %v9018, %v9018
        %v9051 = vpack.c.b16 %v9019, %v9019
        %v9052 = vpack.c.b16 %v9020, %v9020
        %v9053 = vpack.c.b16 %v9021, %v9021
        %v9054 = vpack.c.b16 %v9022, %v9022
        %v9055 = vpack.c.b16 %v9023, %v9023
        %v9056 = vpack.c.b16 %v9024, %v9024
        %v9057 = vpack.c.b16 %v9025, %v9025
        %v9058 = vpack.c.b16 %v9026, %v9026
        %v9059 = vpack.c.b16 %v9027, %v9027
        %v9060 = vpack.c.b16 %v9028, %v9028
        %v9061 = vpack.c.b16 %v9029, %v9029
        %v9062 = vpack.c.b16 %v9030, %v9030
        %v9063 = vpack.c.b16 %v9031, %v9031
        %v9064 = vpack.c.b16 %v9032, %v9032
        %v9065 = vpack.c.b16 %v9033, %v9033
        %v9066 = vpack.c.b16 %v9034, %v9034
        %v9067 = vpack.c.b16 %v9035, %v9035
        %9100 = vst.msk [vmem:[%s500 + $0x100] sm:$0xf] %vm3349, %v9036
        %9101 = vst.msk [vmem:[%s500 + $0x104] sm:$0xf] %vm3349, %v9037
        %9102 = vst.msk [vmem:[%s500 + $0x108] sm:$0xf] %vm3349, %v9038
        %9103 = vst.msk [vmem:[%s500 + $0x10c] sm:$0xf] %vm3349, %v9039
        %9104 = vst.msk [vmem:[%s500 + $0x110] sm:$0xf] %vm3349, %v9040
        %9105 = vst.msk [vmem:[%s500 + $0x114] sm:$0xf] %vm3349, %v9041
        %9106 = vst.msk [vmem:[%s500 + $0x118] sm:$0xf] %vm3349, %v9042
        %9107 = vst.msk [vmem:[%s500 + $0x11c] sm:$0xf] %vm3349, %v9043
        %9108 = vst.msk [vmem:[%s500 + $0x120] sm:$0xf] %vm3349, %v9044
        %9109 = vst.msk [vmem:[%s500 + $0x124] sm:$0xf] %vm3349, %v9045
        %9110 = vst.msk [vmem:[%s500 + $0x128] sm:$0xf] %vm3349, %v9046
        %9111 = vst.msk [vmem:[%s500 + $0x12c] sm:$0xf] %vm3349, %v9047
        %9112 = vst.msk [vmem:[%s500 + $0x130] sm:$0xf] %vm3349, %v9048
        %9113 = vst.msk [vmem:[%s500 + $0x134] sm:$0xf] %vm3349, %v9049
        %9114 = vst.msk [vmem:[%s500 + $0x138] sm:$0xf] %vm3349, %v9050
        %9115 = vst.msk [vmem:[%s500 + $0x13c] sm:$0xf] %vm3349, %v9051
        %9116 = vst.msk [vmem:[%s500 + $0x140] sm:$0xf] %vm3349, %v9052
        %9117 = vst.msk [vmem:[%s500 + $0x144] sm:$0xf] %vm3349, %v9053
        %9118 = vst.msk [vmem:[%s500 + $0x148] sm:$0xf] %vm3349, %v9054
        %9119 = vst.msk [vmem:[%s500 + $0x14c] sm:$0xf] %vm3349, %v9055
        %9120 = vst.msk [vmem:[%s500 + $0x150] sm:$0xf] %vm3349, %v9056
        %9121 = vst.msk [vmem:[%s500 + $0x154] sm:$0xf] %vm3349, %v9057
        %9122 = vst.msk [vmem:[%s500 + $0x158] sm:$0xf] %vm3349, %v9058
        %9123 = vst.msk [vmem:[%s500 + $0x15c] sm:$0xf] %vm3349, %v9059
        %9124 = vst.msk [vmem:[%s500 + $0x160] sm:$0xf] %vm3349, %v9060
        %9125 = vst.msk [vmem:[%s500 + $0x164] sm:$0xf] %vm3349, %v9061
        %9126 = vst.msk [vmem:[%s500 + $0x168] sm:$0xf] %vm3349, %v9062
        %9127 = vst.msk [vmem:[%s500 + $0x16c] sm:$0xf] %vm3349, %v9063
        %9128 = vst.msk [vmem:[%s500 + $0x170] sm:$0xf] %vm3349, %v9064
        %9129 = vst.msk [vmem:[%s500 + $0x174] sm:$0xf] %vm3349, %v9065
        %9130 = vst.msk [vmem:[%s500 + $0x178] sm:$0xf] %vm3349, %v9066
        %9131 = vst.msk [vmem:[%s500 + $0x17c] sm:$0xf] %vm3349, %v9067
        %v9132 = vld [vmem:[%s491 + $0x300] sm:$0xff]
        %v9133 = vld [vmem:[%s491 + $0x308] sm:$0xff]
        %v9134 = vld [vmem:[%s491 + $0x310] sm:$0xff]
        %v9135 = vld [vmem:[%s491 + $0x318] sm:$0xff]
        %v9136 = vld [vmem:[%s491 + $0x320] sm:$0xff]
        %v9137 = vld [vmem:[%s491 + $0x328] sm:$0xff]
        %v9138 = vld [vmem:[%s491 + $0x330] sm:$0xff]
        %v9139 = vld [vmem:[%s491 + $0x338] sm:$0xff]
        %v9140 = vld [vmem:[%s491 + $0x340] sm:$0xff]
        %v9141 = vld [vmem:[%s491 + $0x348] sm:$0xff]
        %v9142 = vld [vmem:[%s491 + $0x350] sm:$0xff]
        %v9143 = vld [vmem:[%s491 + $0x358] sm:$0xff]
        %v9144 = vld [vmem:[%s491 + $0x360] sm:$0xff]
        %v9145 = vld [vmem:[%s491 + $0x368] sm:$0xff]
        %v9146 = vld [vmem:[%s491 + $0x370] sm:$0xff]
        %v9147 = vld [vmem:[%s491 + $0x378] sm:$0xff]
        %v9148 = vld [vmem:[%s491 + $0x380] sm:$0xff]
        %v9149 = vld [vmem:[%s491 + $0x388] sm:$0xff]
        %v9150 = vld [vmem:[%s491 + $0x390] sm:$0xff]
        %v9151 = vld [vmem:[%s491 + $0x398] sm:$0xff]
        %v9152 = vld [vmem:[%s491 + $0x3a0] sm:$0xff]
        %v9153 = vld [vmem:[%s491 + $0x3a8] sm:$0xff]
        %v9154 = vld [vmem:[%s491 + $0x3b0] sm:$0xff]
        %v9155 = vld [vmem:[%s491 + $0x3b8] sm:$0xff]
        %v9156 = vld [vmem:[%s491 + $0x3c0] sm:$0xff]
        %v9157 = vld [vmem:[%s491 + $0x3c8] sm:$0xff]
        %v9158 = vld [vmem:[%s491 + $0x3d0] sm:$0xff]
        %v9159 = vld [vmem:[%s491 + $0x3d8] sm:$0xff]
        %v9160 = vld [vmem:[%s491 + $0x3e0] sm:$0xff]
        %v9161 = vld [vmem:[%s491 + $0x3e8] sm:$0xff]
        %v9162 = vld [vmem:[%s491 + $0x3f0] sm:$0xff]
        %v9163 = vld [vmem:[%s491 + $0x3f8] sm:$0xff]
        %v9164 = vld [vmem:[%s1] sm:$0x1]
        %9166 = vset.pattern.permute.xlu0 0
        %9167 = vperm.xlu0 %9166, %v9132
        %v9168 = vpop.permute.xlu0 %9167
        %9171 = vset.pattern.permute.xlu0 0
        %9172 = vperm.xlu0 %9171, %v9133
        %v9173 = vpop.permute.xlu0 %9172
        %9176 = vset.pattern.permute.xlu0 0
        %9177 = vperm.xlu0 %9176, %v9134
        %v9178 = vpop.permute.xlu0 %9177
        %9181 = vset.pattern.permute.xlu0 0
        %9182 = vperm.xlu0 %9181, %v9135
        %v9183 = vpop.permute.xlu0 %9182
        %9186 = vset.pattern.permute.xlu0 0
        %9187 = vperm.xlu0 %9186, %v9136
        %v9188 = vpop.permute.xlu0 %9187
        %9191 = vset.pattern.permute.xlu0 0
        %9192 = vperm.xlu0 %9191, %v9137
        %v9193 = vpop.permute.xlu0 %9192
        %9196 = vset.pattern.permute.xlu0 0
        %9197 = vperm.xlu0 %9196, %v9138
        %v9198 = vpop.permute.xlu0 %9197
        %9201 = vset.pattern.permute.xlu0 0
        %9202 = vperm.xlu0 %9201, %v9139
        %v9203 = vpop.permute.xlu0 %9202
        %9206 = vset.pattern.permute.xlu0 0
        %9207 = vperm.xlu0 %9206, %v9140
        %v9208 = vpop.permute.xlu0 %9207
        %9211 = vset.pattern.permute.xlu0 0
        %9212 = vperm.xlu0 %9211, %v9141
        %v9213 = vpop.permute.xlu0 %9212
        %9216 = vset.pattern.permute.xlu0 0
        %9217 = vperm.xlu0 %9216, %v9142
        %v9218 = vpop.permute.xlu0 %9217
        %9221 = vset.pattern.permute.xlu0 0
        %9222 = vperm.xlu0 %9221, %v9143
        %v9223 = vpop.permute.xlu0 %9222
        %9226 = vset.pattern.permute.xlu0 0
        %9227 = vperm.xlu0 %9226, %v9144
        %v9228 = vpop.permute.xlu0 %9227
        %9231 = vset.pattern.permute.xlu0 0
        %9232 = vperm.xlu0 %9231, %v9145
        %v9233 = vpop.permute.xlu0 %9232
        %9236 = vset.pattern.permute.xlu0 0
        %9237 = vperm.xlu0 %9236, %v9146
        %v9238 = vpop.permute.xlu0 %9237
        %9241 = vset.pattern.permute.xlu0 0
        %9242 = vperm.xlu0 %9241, %v9147
        %v9243 = vpop.permute.xlu0 %9242
        %9246 = vset.pattern.permute.xlu0 0
        %9247 = vperm.xlu0 %9246, %v9148
        %v9248 = vpop.permute.xlu0 %9247
        %9251 = vset.pattern.permute.xlu0 0
        %9252 = vperm.xlu0 %9251, %v9149
        %v9253 = vpop.permute.xlu0 %9252
        %9256 = vset.pattern.permute.xlu0 0
        %9257 = vperm.xlu0 %9256, %v9150
        %v9258 = vpop.permute.xlu0 %9257
        %9261 = vset.pattern.permute.xlu0 0
        %9262 = vperm.xlu0 %9261, %v9151
        %v9263 = vpop.permute.xlu0 %9262
        %9266 = vset.pattern.permute.xlu0 0
        %9267 = vperm.xlu0 %9266, %v9152
        %v9268 = vpop.permute.xlu0 %9267
        %9271 = vset.pattern.permute.xlu0 0
        %9272 = vperm.xlu0 %9271, %v9153
        %v9273 = vpop.permute.xlu0 %9272
        %9276 = vset.pattern.permute.xlu0 0
        %9277 = vperm.xlu0 %9276, %v9154
        %v9278 = vpop.permute.xlu0 %9277
        %9281 = vset.pattern.permute.xlu0 0
        %9282 = vperm.xlu0 %9281, %v9155
        %v9283 = vpop.permute.xlu0 %9282
        %9286 = vset.pattern.permute.xlu0 0
        %9287 = vperm.xlu0 %9286, %v9156
        %v9288 = vpop.permute.xlu0 %9287
        %9291 = vset.pattern.permute.xlu0 0
        %9292 = vperm.xlu0 %9291, %v9157
        %v9293 = vpop.permute.xlu0 %9292
        %9296 = vset.pattern.permute.xlu0 0
        %9297 = vperm.xlu0 %9296, %v9158
        %v9298 = vpop.permute.xlu0 %9297
        %9301 = vset.pattern.permute.xlu0 0
        %9302 = vperm.xlu0 %9301, %v9159
        %v9303 = vpop.permute.xlu0 %9302
        %9306 = vset.pattern.permute.xlu0 0
        %9307 = vperm.xlu0 %9306, %v9160
        %v9308 = vpop.permute.xlu0 %9307
        %9311 = vset.pattern.permute.xlu0 0
        %9312 = vperm.xlu0 %9311, %v9161
        %v9313 = vpop.permute.xlu0 %9312
        %9316 = vset.pattern.permute.xlu0 0
        %9317 = vperm.xlu0 %9316, %v9162
        %v9318 = vpop.permute.xlu0 %9317
        %9321 = vset.pattern.permute.xlu0 0
        %9322 = vperm.xlu0 %9321, %v9163
        %v9323 = vpop.permute.xlu0 %9322
        %v9325 = vlaneseq
        %v9326 = vshrl.u32 %v9325, 7
        %v9327 = vsub.s32 0, %v9326
        %v9328 = vrot.slane %v9164, %v9327
        %v9329 = vmul.f32 %v9168, %v9328
        %v9330 = vmul.f32 %v9173, %v9328
        %v9331 = vmul.f32 %v9178, %v9328
        %v9332 = vmul.f32 %v9183, %v9328
        %v9333 = vmul.f32 %v9188, %v9328
        %v9334 = vmul.f32 %v9193, %v9328
        %v9335 = vmul.f32 %v9198, %v9328
        %v9336 = vmul.f32 %v9203, %v9328
        %v9337 = vmul.f32 %v9208, %v9328
        %v9338 = vmul.f32 %v9213, %v9328
        %v9339 = vmul.f32 %v9218, %v9328
        %v9340 = vmul.f32 %v9223, %v9328
        %v9341 = vmul.f32 %v9228, %v9328
        %v9342 = vmul.f32 %v9233, %v9328
        %v9343 = vmul.f32 %v9238, %v9328
        %v9344 = vmul.f32 %v9243, %v9328
        %v9345 = vmul.f32 %v9248, %v9328
        %v9346 = vmul.f32 %v9253, %v9328
        %v9347 = vmul.f32 %v9258, %v9328
        %v9348 = vmul.f32 %v9263, %v9328
        %v9349 = vmul.f32 %v9268, %v9328
        %v9350 = vmul.f32 %v9273, %v9328
        %v9351 = vmul.f32 %v9278, %v9328
        %v9352 = vmul.f32 %v9283, %v9328
        %v9353 = vmul.f32 %v9288, %v9328
        %v9354 = vmul.f32 %v9293, %v9328
        %v9355 = vmul.f32 %v9298, %v9328
        %v9356 = vmul.f32 %v9303, %v9328
        %v9357 = vmul.f32 %v9308, %v9328
        %v9358 = vmul.f32 %v9313, %v9328
        %v9359 = vmul.f32 %v9318, %v9328
        %v9360 = vmul.f32 %v9323, %v9328
        %v9361 = vld [vmem:[%s1 + $0x1] sm:$0x1]
        %9362 = vset.pattern.permute.xlu0 1
        %9363 = vperm.xlu0 %9362, %v9132
        %v9364 = vpop.permute.xlu0 %9363
        %9366 = vset.pattern.permute.xlu0 1
        %9367 = vperm.xlu0 %9366, %v9133
        %v9368 = vpop.permute.xlu0 %9367
        %9370 = vset.pattern.permute.xlu0 1
        %9371 = vperm.xlu0 %9370, %v9134
        %v9372 = vpop.permute.xlu0 %9371
        %9374 = vset.pattern.permute.xlu0 1
        %9375 = vperm.xlu0 %9374, %v9135
        %v9376 = vpop.permute.xlu0 %9375
        %9378 = vset.pattern.permute.xlu0 1
        %9379 = vperm.xlu0 %9378, %v9136
        %v9380 = vpop.permute.xlu0 %9379
        %9382 = vset.pattern.permute.xlu0 1
        %9383 = vperm.xlu0 %9382, %v9137
        %v9384 = vpop.permute.xlu0 %9383
        %9386 = vset.pattern.permute.xlu0 1
        %9387 = vperm.xlu0 %9386, %v9138
        %v9388 = vpop.permute.xlu0 %9387
        %9390 = vset.pattern.permute.xlu0 1
        %9391 = vperm.xlu0 %9390, %v9139
        %v9392 = vpop.permute.xlu0 %9391
        %9394 = vset.pattern.permute.xlu0 1
        %9395 = vperm.xlu0 %9394, %v9140
        %v9396 = vpop.permute.xlu0 %9395
        %9398 = vset.pattern.permute.xlu0 1
        %9399 = vperm.xlu0 %9398, %v9141
        %v9400 = vpop.permute.xlu0 %9399
        %9402 = vset.pattern.permute.xlu0 1
        %9403 = vperm.xlu0 %9402, %v9142
        %v9404 = vpop.permute.xlu0 %9403
        %9406 = vset.pattern.permute.xlu0 1
        %9407 = vperm.xlu0 %9406, %v9143
        %v9408 = vpop.permute.xlu0 %9407
        %9410 = vset.pattern.permute.xlu0 1
        %9411 = vperm.xlu0 %9410, %v9144
        %v9412 = vpop.permute.xlu0 %9411
        %9414 = vset.pattern.permute.xlu0 1
        %9415 = vperm.xlu0 %9414, %v9145
        %v9416 = vpop.permute.xlu0 %9415
        %9418 = vset.pattern.permute.xlu0 1
        %9419 = vperm.xlu0 %9418, %v9146
        %v9420 = vpop.permute.xlu0 %9419
        %9422 = vset.pattern.permute.xlu0 1
        %9423 = vperm.xlu0 %9422, %v9147
        %v9424 = vpop.permute.xlu0 %9423
        %9426 = vset.pattern.permute.xlu0 1
        %9427 = vperm.xlu0 %9426, %v9148
        %v9428 = vpop.permute.xlu0 %9427
        %9430 = vset.pattern.permute.xlu0 1
        %9431 = vperm.xlu0 %9430, %v9149
        %v9432 = vpop.permute.xlu0 %9431
        %9434 = vset.pattern.permute.xlu0 1
        %9435 = vperm.xlu0 %9434, %v9150
        %v9436 = vpop.permute.xlu0 %9435
        %9438 = vset.pattern.permute.xlu0 1
        %9439 = vperm.xlu0 %9438, %v9151
        %v9440 = vpop.permute.xlu0 %9439
        %9442 = vset.pattern.permute.xlu0 1
        %9443 = vperm.xlu0 %9442, %v9152
        %v9444 = vpop.permute.xlu0 %9443
        %9446 = vset.pattern.permute.xlu0 1
        %9447 = vperm.xlu0 %9446, %v9153
        %v9448 = vpop.permute.xlu0 %9447
        %9450 = vset.pattern.permute.xlu0 1
        %9451 = vperm.xlu0 %9450, %v9154
        %v9452 = vpop.permute.xlu0 %9451
        %9454 = vset.pattern.permute.xlu0 1
        %9455 = vperm.xlu0 %9454, %v9155
        %v9456 = vpop.permute.xlu0 %9455
        %9458 = vset.pattern.permute.xlu0 1
        %9459 = vperm.xlu0 %9458, %v9156
        %v9460 = vpop.permute.xlu0 %9459
        %9462 = vset.pattern.permute.xlu0 1
        %9463 = vperm.xlu0 %9462, %v9157
        %v9464 = vpop.permute.xlu0 %9463
        %9466 = vset.pattern.permute.xlu0 1
        %9467 = vperm.xlu0 %9466, %v9158
        %v9468 = vpop.permute.xlu0 %9467
        %9470 = vset.pattern.permute.xlu0 1
        %9471 = vperm.xlu0 %9470, %v9159
        %v9472 = vpop.permute.xlu0 %9471
        %9474 = vset.pattern.permute.xlu0 1
        %9475 = vperm.xlu0 %9474, %v9160
        %v9476 = vpop.permute.xlu0 %9475
        %9478 = vset.pattern.permute.xlu0 1
        %9479 = vperm.xlu0 %9478, %v9161
        %v9480 = vpop.permute.xlu0 %9479
        %9482 = vset.pattern.permute.xlu0 1
        %9483 = vperm.xlu0 %9482, %v9162
        %v9484 = vpop.permute.xlu0 %9483
        %9486 = vset.pattern.permute.xlu0 1
        %9487 = vperm.xlu0 %9486, %v9163
        %v9488 = vpop.permute.xlu0 %9487
        %v9490 = vlaneseq
        %v9491 = vshrl.u32 %v9490, 7
        %v9492 = vsub.s32 0, %v9491
        %v9493 = vrot.slane %v9361, %v9492
        %v9494 = vmul.f32 %v9364, %v9493
        %v9495 = vmul.f32 %v9368, %v9493
        %v9496 = vmul.f32 %v9372, %v9493
        %v9497 = vmul.f32 %v9376, %v9493
        %v9498 = vmul.f32 %v9380, %v9493
        %v9499 = vmul.f32 %v9384, %v9493
        %v9500 = vmul.f32 %v9388, %v9493
        %v9501 = vmul.f32 %v9392, %v9493
        %v9502 = vmul.f32 %v9396, %v9493
        %v9503 = vmul.f32 %v9400, %v9493
        %v9504 = vmul.f32 %v9404, %v9493
        %v9505 = vmul.f32 %v9408, %v9493
        %v9506 = vmul.f32 %v9412, %v9493
        %v9507 = vmul.f32 %v9416, %v9493
        %v9508 = vmul.f32 %v9420, %v9493
        %v9509 = vmul.f32 %v9424, %v9493
        %v9510 = vmul.f32 %v9428, %v9493
        %v9511 = vmul.f32 %v9432, %v9493
        %v9512 = vmul.f32 %v9436, %v9493
        %v9513 = vmul.f32 %v9440, %v9493
        %v9514 = vmul.f32 %v9444, %v9493
        %v9515 = vmul.f32 %v9448, %v9493
        %v9516 = vmul.f32 %v9452, %v9493
        %v9517 = vmul.f32 %v9456, %v9493
        %v9518 = vmul.f32 %v9460, %v9493
        %v9519 = vmul.f32 %v9464, %v9493
        %v9520 = vmul.f32 %v9468, %v9493
        %v9521 = vmul.f32 %v9472, %v9493
        %v9522 = vmul.f32 %v9476, %v9493
        %v9523 = vmul.f32 %v9480, %v9493
        %v9524 = vmul.f32 %v9484, %v9493
        %v9525 = vmul.f32 %v9488, %v9493
        %v9526 = vadd.f32 %v9329, %v9494
        %v9527 = vadd.f32 %v9330, %v9495
        %v9528 = vadd.f32 %v9331, %v9496
        %v9529 = vadd.f32 %v9332, %v9497
        %v9530 = vadd.f32 %v9333, %v9498
        %v9531 = vadd.f32 %v9334, %v9499
        %v9532 = vadd.f32 %v9335, %v9500
        %v9533 = vadd.f32 %v9336, %v9501
        %v9534 = vadd.f32 %v9337, %v9502
        %v9535 = vadd.f32 %v9338, %v9503
        %v9536 = vadd.f32 %v9339, %v9504
        %v9537 = vadd.f32 %v9340, %v9505
        %v9538 = vadd.f32 %v9341, %v9506
        %v9539 = vadd.f32 %v9342, %v9507
        %v9540 = vadd.f32 %v9343, %v9508
        %v9541 = vadd.f32 %v9344, %v9509
        %v9542 = vadd.f32 %v9345, %v9510
        %v9543 = vadd.f32 %v9346, %v9511
        %v9544 = vadd.f32 %v9347, %v9512
        %v9545 = vadd.f32 %v9348, %v9513
        %v9546 = vadd.f32 %v9349, %v9514
        %v9547 = vadd.f32 %v9350, %v9515
        %v9548 = vadd.f32 %v9351, %v9516
        %v9549 = vadd.f32 %v9352, %v9517
        %v9550 = vadd.f32 %v9353, %v9518
        %v9551 = vadd.f32 %v9354, %v9519
        %v9552 = vadd.f32 %v9355, %v9520
        %v9553 = vadd.f32 %v9356, %v9521
        %v9554 = vadd.f32 %v9357, %v9522
        %v9555 = vadd.f32 %v9358, %v9523
        %v9556 = vadd.f32 %v9359, %v9524
        %v9557 = vadd.f32 %v9360, %v9525
        %v9558 = vld [vmem:[%s1 + $0x2] sm:$0x1]
        %9559 = vset.pattern.permute.xlu0 2
        %9560 = vperm.xlu0 %9559, %v9132
        %v9561 = vpop.permute.xlu0 %9560
        %9563 = vset.pattern.permute.xlu0 2
        %9564 = vperm.xlu0 %9563, %v9133
        %v9565 = vpop.permute.xlu0 %9564
        %9567 = vset.pattern.permute.xlu0 2
        %9568 = vperm.xlu0 %9567, %v9134
        %v9569 = vpop.permute.xlu0 %9568
        %9571 = vset.pattern.permute.xlu0 2
        %9572 = vperm.xlu0 %9571, %v9135
        %v9573 = vpop.permute.xlu0 %9572
        %9575 = vset.pattern.permute.xlu0 2
        %9576 = vperm.xlu0 %9575, %v9136
        %v9577 = vpop.permute.xlu0 %9576
        %9579 = vset.pattern.permute.xlu0 2
        %9580 = vperm.xlu0 %9579, %v9137
        %v9581 = vpop.permute.xlu0 %9580
        %9583 = vset.pattern.permute.xlu0 2
        %9584 = vperm.xlu0 %9583, %v9138
        %v9585 = vpop.permute.xlu0 %9584
        %9587 = vset.pattern.permute.xlu0 2
        %9588 = vperm.xlu0 %9587, %v9139
        %v9589 = vpop.permute.xlu0 %9588
        %9591 = vset.pattern.permute.xlu0 2
        %9592 = vperm.xlu0 %9591, %v9140
        %v9593 = vpop.permute.xlu0 %9592
        %9595 = vset.pattern.permute.xlu0 2
        %9596 = vperm.xlu0 %9595, %v9141
        %v9597 = vpop.permute.xlu0 %9596
        %9599 = vset.pattern.permute.xlu0 2
        %9600 = vperm.xlu0 %9599, %v9142
        %v9601 = vpop.permute.xlu0 %9600
        %9603 = vset.pattern.permute.xlu0 2
        %9604 = vperm.xlu0 %9603, %v9143
        %v9605 = vpop.permute.xlu0 %9604
        %9607 = vset.pattern.permute.xlu0 2
        %9608 = vperm.xlu0 %9607, %v9144
        %v9609 = vpop.permute.xlu0 %9608
        %9611 = vset.pattern.permute.xlu0 2
        %9612 = vperm.xlu0 %9611, %v9145
        %v9613 = vpop.permute.xlu0 %9612
        %9615 = vset.pattern.permute.xlu0 2
        %9616 = vperm.xlu0 %9615, %v9146
        %v9617 = vpop.permute.xlu0 %9616
        %9619 = vset.pattern.permute.xlu0 2
        %9620 = vperm.xlu0 %9619, %v9147
        %v9621 = vpop.permute.xlu0 %9620
        %9623 = vset.pattern.permute.xlu0 2
        %9624 = vperm.xlu0 %9623, %v9148
        %v9625 = vpop.permute.xlu0 %9624
        %9627 = vset.pattern.permute.xlu0 2
        %9628 = vperm.xlu0 %9627, %v9149
        %v9629 = vpop.permute.xlu0 %9628
        %9631 = vset.pattern.permute.xlu0 2
        %9632 = vperm.xlu0 %9631, %v9150
        %v9633 = vpop.permute.xlu0 %9632
        %9635 = vset.pattern.permute.xlu0 2
        %9636 = vperm.xlu0 %9635, %v9151
        %v9637 = vpop.permute.xlu0 %9636
        %9639 = vset.pattern.permute.xlu0 2
        %9640 = vperm.xlu0 %9639, %v9152
        %v9641 = vpop.permute.xlu0 %9640
        %9643 = vset.pattern.permute.xlu0 2
        %9644 = vperm.xlu0 %9643, %v9153
        %v9645 = vpop.permute.xlu0 %9644
        %9647 = vset.pattern.permute.xlu0 2
        %9648 = vperm.xlu0 %9647, %v9154
        %v9649 = vpop.permute.xlu0 %9648
        %9651 = vset.pattern.permute.xlu0 2
        %9652 = vperm.xlu0 %9651, %v9155
        %v9653 = vpop.permute.xlu0 %9652
        %9655 = vset.pattern.permute.xlu0 2
        %9656 = vperm.xlu0 %9655, %v9156
        %v9657 = vpop.permute.xlu0 %9656
        %9659 = vset.pattern.permute.xlu0 2
        %9660 = vperm.xlu0 %9659, %v9157
        %v9661 = vpop.permute.xlu0 %9660
        %9663 = vset.pattern.permute.xlu0 2
        %9664 = vperm.xlu0 %9663, %v9158
        %v9665 = vpop.permute.xlu0 %9664
        %9667 = vset.pattern.permute.xlu0 2
        %9668 = vperm.xlu0 %9667, %v9159
        %v9669 = vpop.permute.xlu0 %9668
        %9671 = vset.pattern.permute.xlu0 2
        %9672 = vperm.xlu0 %9671, %v9160
        %v9673 = vpop.permute.xlu0 %9672
        %9675 = vset.pattern.permute.xlu0 2
        %9676 = vperm.xlu0 %9675, %v9161
        %v9677 = vpop.permute.xlu0 %9676
        %9679 = vset.pattern.permute.xlu0 2
        %9680 = vperm.xlu0 %9679, %v9162
        %v9681 = vpop.permute.xlu0 %9680
        %9683 = vset.pattern.permute.xlu0 2
        %9684 = vperm.xlu0 %9683, %v9163
        %v9685 = vpop.permute.xlu0 %9684
        %v9687 = vlaneseq
        %v9688 = vshrl.u32 %v9687, 7
        %v9689 = vsub.s32 0, %v9688
        %v9690 = vrot.slane %v9558, %v9689
        %v9691 = vmul.f32 %v9561, %v9690
        %v9692 = vmul.f32 %v9565, %v9690
        %v9693 = vmul.f32 %v9569, %v9690
        %v9694 = vmul.f32 %v9573, %v9690
        %v9695 = vmul.f32 %v9577, %v9690
        %v9696 = vmul.f32 %v9581, %v9690
        %v9697 = vmul.f32 %v9585, %v9690
        %v9698 = vmul.f32 %v9589, %v9690
        %v9699 = vmul.f32 %v9593, %v9690
        %v9700 = vmul.f32 %v9597, %v9690
        %v9701 = vmul.f32 %v9601, %v9690
        %v9702 = vmul.f32 %v9605, %v9690
        %v9703 = vmul.f32 %v9609, %v9690
        %v9704 = vmul.f32 %v9613, %v9690
        %v9705 = vmul.f32 %v9617, %v9690
        %v9706 = vmul.f32 %v9621, %v9690
        %v9707 = vmul.f32 %v9625, %v9690
        %v9708 = vmul.f32 %v9629, %v9690
        %v9709 = vmul.f32 %v9633, %v9690
        %v9710 = vmul.f32 %v9637, %v9690
        %v9711 = vmul.f32 %v9641, %v9690
        %v9712 = vmul.f32 %v9645, %v9690
        %v9713 = vmul.f32 %v9649, %v9690
        %v9714 = vmul.f32 %v9653, %v9690
        %v9715 = vmul.f32 %v9657, %v9690
        %v9716 = vmul.f32 %v9661, %v9690
        %v9717 = vmul.f32 %v9665, %v9690
        %v9718 = vmul.f32 %v9669, %v9690
        %v9719 = vmul.f32 %v9673, %v9690
        %v9720 = vmul.f32 %v9677, %v9690
        %v9721 = vmul.f32 %v9681, %v9690
        %v9722 = vmul.f32 %v9685, %v9690
        %v9723 = vadd.f32 %v9526, %v9691
        %v9724 = vadd.f32 %v9527, %v9692
        %v9725 = vadd.f32 %v9528, %v9693
        %v9726 = vadd.f32 %v9529, %v9694
        %v9727 = vadd.f32 %v9530, %v9695
        %v9728 = vadd.f32 %v9531, %v9696
        %v9729 = vadd.f32 %v9532, %v9697
        %v9730 = vadd.f32 %v9533, %v9698
        %v9731 = vadd.f32 %v9534, %v9699
        %v9732 = vadd.f32 %v9535, %v9700
        %v9733 = vadd.f32 %v9536, %v9701
        %v9734 = vadd.f32 %v9537, %v9702
        %v9735 = vadd.f32 %v9538, %v9703
        %v9736 = vadd.f32 %v9539, %v9704
        %v9737 = vadd.f32 %v9540, %v9705
        %v9738 = vadd.f32 %v9541, %v9706
        %v9739 = vadd.f32 %v9542, %v9707
        %v9740 = vadd.f32 %v9543, %v9708
        %v9741 = vadd.f32 %v9544, %v9709
        %v9742 = vadd.f32 %v9545, %v9710
        %v9743 = vadd.f32 %v9546, %v9711
        %v9744 = vadd.f32 %v9547, %v9712
        %v9745 = vadd.f32 %v9548, %v9713
        %v9746 = vadd.f32 %v9549, %v9714
        %v9747 = vadd.f32 %v9550, %v9715
        %v9748 = vadd.f32 %v9551, %v9716
        %v9749 = vadd.f32 %v9552, %v9717
        %v9750 = vadd.f32 %v9553, %v9718
        %v9751 = vadd.f32 %v9554, %v9719
        %v9752 = vadd.f32 %v9555, %v9720
        %v9753 = vadd.f32 %v9556, %v9721
        %v9754 = vadd.f32 %v9557, %v9722
        %v9755 = vld [vmem:[%s2] sm:$0x1]
        %v9757 = vlaneseq
        %v9758 = vshrl.u32 %v9757, 7
        %v9759 = vsub.s32 0, %v9758
        %v9760 = vrot.slane %v9755, %v9759
        %v9762 = vadd.f32 %v9723, %v9760
        %v9763 = vadd.f32 %v9724, %v9760
        %v9764 = vadd.f32 %v9725, %v9760
        %v9765 = vadd.f32 %v9726, %v9760
        %v9766 = vadd.f32 %v9727, %v9760
        %v9767 = vadd.f32 %v9728, %v9760
        %v9768 = vadd.f32 %v9729, %v9760
        %v9769 = vadd.f32 %v9730, %v9760
        %v9770 = vadd.f32 %v9731, %v9760
        %v9771 = vadd.f32 %v9732, %v9760
        %v9772 = vadd.f32 %v9733, %v9760
        %v9773 = vadd.f32 %v9734, %v9760
        %v9774 = vadd.f32 %v9735, %v9760
        %v9775 = vadd.f32 %v9736, %v9760
        %v9776 = vadd.f32 %v9737, %v9760
        %v9777 = vadd.f32 %v9738, %v9760
        %v9778 = vadd.f32 %v9739, %v9760
        %v9779 = vadd.f32 %v9740, %v9760
        %v9780 = vadd.f32 %v9741, %v9760
        %v9781 = vadd.f32 %v9742, %v9760
        %v9782 = vadd.f32 %v9743, %v9760
        %v9783 = vadd.f32 %v9744, %v9760
        %v9784 = vadd.f32 %v9745, %v9760
        %v9785 = vadd.f32 %v9746, %v9760
        %v9786 = vadd.f32 %v9747, %v9760
        %v9787 = vadd.f32 %v9748, %v9760
        %v9788 = vadd.f32 %v9749, %v9760
        %v9789 = vadd.f32 %v9750, %v9760
        %v9790 = vadd.f32 %v9751, %v9760
        %v9791 = vadd.f32 %v9752, %v9760
        %v9792 = vadd.f32 %v9753, %v9760
        %v9793 = vadd.f32 %v9754, %v9760
        %v9794 = vmax.f32 %v9762, 0.0
        %v9795 = vmax.f32 %v9763, 0.0
        %v9796 = vmax.f32 %v9764, 0.0
        %v9797 = vmax.f32 %v9765, 0.0
        %v9798 = vmax.f32 %v9766, 0.0
        %v9799 = vmax.f32 %v9767, 0.0
        %v9800 = vmax.f32 %v9768, 0.0
        %v9801 = vmax.f32 %v9769, 0.0
        %v9802 = vmax.f32 %v9770, 0.0
        %v9803 = vmax.f32 %v9771, 0.0
        %v9804 = vmax.f32 %v9772, 0.0
        %v9805 = vmax.f32 %v9773, 0.0
        %v9806 = vmax.f32 %v9774, 0.0
        %v9807 = vmax.f32 %v9775, 0.0
        %v9808 = vmax.f32 %v9776, 0.0
        %v9809 = vmax.f32 %v9777, 0.0
        %v9810 = vmax.f32 %v9778, 0.0
        %v9811 = vmax.f32 %v9779, 0.0
        %v9812 = vmax.f32 %v9780, 0.0
        %v9813 = vmax.f32 %v9781, 0.0
        %v9814 = vmax.f32 %v9782, 0.0
        %v9815 = vmax.f32 %v9783, 0.0
        %v9816 = vmax.f32 %v9784, 0.0
        %v9817 = vmax.f32 %v9785, 0.0
        %v9818 = vmax.f32 %v9786, 0.0
        %v9819 = vmax.f32 %v9787, 0.0
        %v9820 = vmax.f32 %v9788, 0.0
        %v9821 = vmax.f32 %v9789, 0.0
        %v9822 = vmax.f32 %v9790, 0.0
        %v9823 = vmax.f32 %v9791, 0.0
        %v9824 = vmax.f32 %v9792, 0.0
        %v9825 = vmax.f32 %v9793, 0.0
        %v9826 = vpack.c.bf16 %v9795, %v9794
        %v9827 = vpack.c.bf16 %v9797, %v9796
        %v9828 = vpack.c.bf16 %v9799, %v9798
        %v9829 = vpack.c.bf16 %v9801, %v9800
        %v9830 = vpack.c.bf16 %v9803, %v9802
        %v9831 = vpack.c.bf16 %v9805, %v9804
        %v9832 = vpack.c.bf16 %v9807, %v9806
        %v9833 = vpack.c.bf16 %v9809, %v9808
        %v9834 = vpack.c.bf16 %v9811, %v9810
        %v9835 = vpack.c.bf16 %v9813, %v9812
        %v9836 = vpack.c.bf16 %v9815, %v9814
        %v9837 = vpack.c.bf16 %v9817, %v9816
        %v9838 = vpack.c.bf16 %v9819, %v9818
        %v9839 = vpack.c.bf16 %v9821, %v9820
        %v9840 = vpack.c.bf16 %v9823, %v9822
        %v9841 = vpack.c.bf16 %v9825, %v9824
        %v9858 = vunpack.c.l.b16 %v9826
        %v9859 = vunpack.c.h.b16 %v9826
        %v9860 = vunpack.c.l.b16 %v9827
        %v9861 = vunpack.c.h.b16 %v9827
        %v9862 = vunpack.c.l.b16 %v9828
        %v9863 = vunpack.c.h.b16 %v9828
        %v9864 = vunpack.c.l.b16 %v9829
        %v9865 = vunpack.c.h.b16 %v9829
        %v9866 = vunpack.c.l.b16 %v9830
        %v9867 = vunpack.c.h.b16 %v9830
        %v9868 = vunpack.c.l.b16 %v9831
        %v9869 = vunpack.c.h.b16 %v9831
        %v9870 = vunpack.c.l.b16 %v9832
        %v9871 = vunpack.c.h.b16 %v9832
        %v9872 = vunpack.c.l.b16 %v9833
        %v9873 = vunpack.c.h.b16 %v9833
        %v9874 = vunpack.c.l.b16 %v9834
        %v9875 = vunpack.c.h.b16 %v9834
        %v9876 = vunpack.c.l.b16 %v9835
        %v9877 = vunpack.c.h.b16 %v9835
        %v9878 = vunpack.c.l.b16 %v9836
        %v9879 = vunpack.c.h.b16 %v9836
        %v9880 = vunpack.c.l.b16 %v9837
        %v9881 = vunpack.c.h.b16 %v9837
        %v9882 = vunpack.c.l.b16 %v9838
        %v9883 = vunpack.c.h.b16 %v9838
        %v9884 = vunpack.c.l.b16 %v9839
        %v9885 = vunpack.c.h.b16 %v9839
        %v9886 = vunpack.c.l.b16 %v9840
        %v9887 = vunpack.c.h.b16 %v9840
        %v9888 = vunpack.c.l.b16 %v9841
        %v9889 = vunpack.c.h.b16 %v9841
        %v9890 = vpack.c.b16 %v9858, %v9858
        %v9891 = vpack.c.b16 %v9859, %v9859
        %v9892 = vpack.c.b16 %v9860, %v9860
        %v9893 = vpack.c.b16 %v9861, %v9861
        %v9894 = vpack.c.b16 %v9862, %v9862
        %v9895 = vpack.c.b16 %v9863, %v9863
        %v9896 = vpack.c.b16 %v9864, %v9864
        %v9897 = vpack.c.b16 %v9865, %v9865
        %v9898 = vpack.c.b16 %v9866, %v9866
        %v9899 = vpack.c.b16 %v9867, %v9867
        %v9900 = vpack.c.b16 %v9868, %v9868
        %v9901 = vpack.c.b16 %v9869, %v9869
        %v9902 = vpack.c.b16 %v9870, %v9870
        %v9903 = vpack.c.b16 %v9871, %v9871
        %v9904 = vpack.c.b16 %v9872, %v9872
        %v9905 = vpack.c.b16 %v9873, %v9873
        %v9906 = vpack.c.b16 %v9874, %v9874
        %v9907 = vpack.c.b16 %v9875, %v9875
        %v9908 = vpack.c.b16 %v9876, %v9876
        %v9909 = vpack.c.b16 %v9877, %v9877
        %v9910 = vpack.c.b16 %v9878, %v9878
        %v9911 = vpack.c.b16 %v9879, %v9879
        %v9912 = vpack.c.b16 %v9880, %v9880
        %v9913 = vpack.c.b16 %v9881, %v9881
        %v9914 = vpack.c.b16 %v9882, %v9882
        %v9915 = vpack.c.b16 %v9883, %v9883
        %v9916 = vpack.c.b16 %v9884, %v9884
        %v9917 = vpack.c.b16 %v9885, %v9885
        %v9918 = vpack.c.b16 %v9886, %v9886
        %v9919 = vpack.c.b16 %v9887, %v9887
        %v9920 = vpack.c.b16 %v9888, %v9888
        %v9921 = vpack.c.b16 %v9889, %v9889
        %9954 = vst.msk [vmem:[%s465 + $0x180] sm:$0xf] %vm1325, %v9890
        %9955 = vst.msk [vmem:[%s465 + $0x184] sm:$0xf] %vm1325, %v9891
        %9956 = vst.msk [vmem:[%s465 + $0x188] sm:$0xf] %vm1325, %v9892
        %9957 = vst.msk [vmem:[%s465 + $0x18c] sm:$0xf] %vm1325, %v9893
        %9958 = vst.msk [vmem:[%s465 + $0x190] sm:$0xf] %vm1325, %v9894
        %9959 = vst.msk [vmem:[%s465 + $0x194] sm:$0xf] %vm1325, %v9895
        %9960 = vst.msk [vmem:[%s465 + $0x198] sm:$0xf] %vm1325, %v9896
        %9961 = vst.msk [vmem:[%s465 + $0x19c] sm:$0xf] %vm1325, %v9897
        %9962 = vst.msk [vmem:[%s465 + $0x1a0] sm:$0xf] %vm1325, %v9898
        %9963 = vst.msk [vmem:[%s465 + $0x1a4] sm:$0xf] %vm1325, %v9899
        %9964 = vst.msk [vmem:[%s465 + $0x1a8] sm:$0xf] %vm1325, %v9900
        %9965 = vst.msk [vmem:[%s465 + $0x1ac] sm:$0xf] %vm1325, %v9901
        %9966 = vst.msk [vmem:[%s465 + $0x1b0] sm:$0xf] %vm1325, %v9902
        %9967 = vst.msk [vmem:[%s465 + $0x1b4] sm:$0xf] %vm1325, %v9903
        %9968 = vst.msk [vmem:[%s465 + $0x1b8] sm:$0xf] %vm1325, %v9904
        %9969 = vst.msk [vmem:[%s465 + $0x1bc] sm:$0xf] %vm1325, %v9905
        %9970 = vst.msk [vmem:[%s465 + $0x1c0] sm:$0xf] %vm1325, %v9906
        %9971 = vst.msk [vmem:[%s465 + $0x1c4] sm:$0xf] %vm1325, %v9907
        %9972 = vst.msk [vmem:[%s465 + $0x1c8] sm:$0xf] %vm1325, %v9908
        %9973 = vst.msk [vmem:[%s465 + $0x1cc] sm:$0xf] %vm1325, %v9909
        %9974 = vst.msk [vmem:[%s465 + $0x1d0] sm:$0xf] %vm1325, %v9910
        %9975 = vst.msk [vmem:[%s465 + $0x1d4] sm:$0xf] %vm1325, %v9911
        %9976 = vst.msk [vmem:[%s465 + $0x1d8] sm:$0xf] %vm1325, %v9912
        %9977 = vst.msk [vmem:[%s465 + $0x1dc] sm:$0xf] %vm1325, %v9913
        %9978 = vst.msk [vmem:[%s465 + $0x1e0] sm:$0xf] %vm1325, %v9914
        %9979 = vst.msk [vmem:[%s465 + $0x1e4] sm:$0xf] %vm1325, %v9915
        %9980 = vst.msk [vmem:[%s465 + $0x1e8] sm:$0xf] %vm1325, %v9916
        %9981 = vst.msk [vmem:[%s465 + $0x1ec] sm:$0xf] %vm1325, %v9917
        %9982 = vst.msk [vmem:[%s465 + $0x1f0] sm:$0xf] %vm1325, %v9918
        %9983 = vst.msk [vmem:[%s465 + $0x1f4] sm:$0xf] %vm1325, %v9919
        %9984 = vst.msk [vmem:[%s465 + $0x1f8] sm:$0xf] %vm1325, %v9920
        %9985 = vst.msk [vmem:[%s465 + $0x1fc] sm:$0xf] %vm1325, %v9921
        %v9986 = vld [vmem:[%s3] sm:$0xf]
        %v9987 = vld [vmem:[%s3 + $0x4] sm:$0xf]
        %v9988 = vld [vmem:[%s3 + $0x8] sm:$0xf]
        %v9989 = vld [vmem:[%s3 + $0xc] sm:$0xf]
        %v9990 = vld [vmem:[%s3 + $0x10] sm:$0xf]
        %v9991 = vld [vmem:[%s3 + $0x14] sm:$0xf]
        %v9992 = vld [vmem:[%s3 + $0x18] sm:$0xf]
        %v9993 = vld [vmem:[%s3 + $0x1c] sm:$0xf]
        %v9994 = vld [vmem:[%s4] sm:$0x1]
        %v9996 = vlaneseq
        %v9997 = vshrl.u32 %v9996, 7
        %v9998 = vsub.s32 0, %v9997
        %v9999 = vrot.slane %v9994, %v9998
        %v10009 = vunpack.c.l.b16 %v9986
        %v10010 = vunpack.c.l.b16 %v9987
        %v10011 = vunpack.c.l.b16 %v9988
        %v10012 = vunpack.c.l.b16 %v9989
        %v10013 = vunpack.c.l.b16 %v9990
        %v10014 = vunpack.c.l.b16 %v9991
        %v10015 = vunpack.c.l.b16 %v9992
        %v10016 = vunpack.c.l.b16 %v9993
        %v10017 = vpack.c.b16 %v10010, %v10009
        %v10018 = vpack.c.b16 %v10012, %v10011
        %v10019 = vpack.c.b16 %v10014, %v10013
        %v10020 = vpack.c.b16 %v10016, %v10015
        %v10026 = vsel %vm1397, %v9826, 0
        %v10029 = vsel %vm1397, %v9827, 0
        %v10032 = vsel %vm1397, %v9828, 0
        %v10035 = vsel %vm1397, %v9829, 0
        %v10038 = vsel %vm1397, %v9830, 0
        %v10041 = vsel %vm1397, %v9831, 0
        %v10044 = vsel %vm1397, %v9832, 0
        %v10047 = vsel %vm1397, %v9833, 0
        %v10050 = vsel %vm1397, %v9834, 0
        %v10053 = vsel %vm1397, %v9835, 0
        %v10056 = vsel %vm1397, %v9836, 0
        %v10059 = vsel %vm1397, %v9837, 0
        %v10062 = vsel %vm1397, %v9838, 0
        %v10065 = vsel %vm1397, %v9839, 0
        %v10068 = vsel %vm1397, %v9840, 0
        %v10071 = vsel %vm1397, %v9841, 0
        %10073 = vmatprep.subr.bf16.mxu0 0
        %10074 = vmatpush1.bf16.msra.mxu0 %v10017
        %10075 = vmatprep.subr.bf16.mxu0 0
        %10076 = vmatpush1.bf16.msra.mxu0 %v10018
        %10077 = vmatprep.subr.bf16.mxu0 0
        %10078 = vmatpush1.bf16.msra.mxu0 %v10019
        %10079 = vmatprep.subr.bf16.mxu0 0
        %10080 = vmatpush1.bf16.msra.mxu0 %v10020
        %10081 = vmatprep.subr.bf16.mxu0 0
        %10082 = vmatpush1.bf16.msra.mxu0 0
        %10083 = vmatprep.subr.bf16.mxu0 0
        %10084 = vmatpush1.bf16.msra.mxu0 0
        %10085 = vmatprep.subr.bf16.mxu0 0
        %10086 = vmatpush1.bf16.msra.mxu0 0
        %10087 = vmatprep.subr.bf16.mxu0 0
        %10088 = vmatpush1.bf16.msra.mxu0 0
        %10089 = vmatprep.subr.bf16.mxu0 0
        %10090 = vmatpush1.bf16.msra.mxu0 0
        %10091 = vmatprep.subr.bf16.mxu0 0
        %10092 = vmatpush1.bf16.msra.mxu0 0
        %10093 = vmatprep.subr.bf16.mxu0 0
        %10094 = vmatpush1.bf16.msra.mxu0 0
        %10095 = vmatprep.subr.bf16.mxu0 0
        %10096 = vmatpush1.bf16.msra.mxu0 0
        %10097 = vmatprep.subr.bf16.mxu0 0
        %10098 = vmatpush1.bf16.msra.mxu0 0
        %10099 = vmatprep.subr.bf16.mxu0 0
        %10100 = vmatpush1.bf16.msra.mxu0 0
        %10101 = vmatprep.subr.bf16.mxu0 0
        %10102 = vmatpush1.bf16.msra.mxu0 0
        %10103 = vmatprep.subr.bf16.mxu0 0
        %10104 = vmatpush1.bf16.msra.mxu0 0
        %10105 = vmatprep.mubr.bf16.mxu0 0
        %10106 = vmatmul.mubr.bf16.gmra.mrb[0].mxu0 %v10026
        %v10107 = vpop.f32.mrb[0].mxu0
        %v10108 = vadd.f32 %v9999, %v10107
        %v10109 = vpop.f32.mrb[0].mxu0
        %v10110 = vpop.f32.mrb[0].mxu0
        %v10111 = vadd.f32 %v9999, %v10110
        %v10112 = vpop.f32.mrb[0].mxu0
        %10113 = vmatprep.mubr.bf16.mxu0 0
        %10114 = vmatmul.mubr.bf16.gmra.mrb[0].mxu0 %v10029
        %v10115 = vpop.f32.mrb[0].mxu0
        %v10116 = vadd.f32 %v9999, %v10115
        %v10117 = vpop.f32.mrb[0].mxu0
        %v10118 = vpop.f32.mrb[0].mxu0
        %v10119 = vadd.f32 %v9999, %v10118
        %v10120 = vpop.f32.mrb[0].mxu0
        %10121 = vmatprep.mubr.bf16.mxu0 0
        %10122 = vmatmul.mubr.bf16.gmra.mrb[0].mxu0 %v10032
        %v10123 = vpop.f32.mrb[0].mxu0
        %v10124 = vadd.f32 %v9999, %v10123
        %v10125 = vpop.f32.mrb[0].mxu0
        %v10126 = vpop.f32.mrb[0].mxu0
        %v10127 = vadd.f32 %v9999, %v10126
        %v10128 = vpop.f32.mrb[0].mxu0
        %10129 = vmatprep.mubr.bf16.mxu0 0
        %10130 = vmatmul.mubr.bf16.gmra.mrb[0].mxu0 %v10035
        %v10131 = vpop.f32.mrb[0].mxu0
        %v10132 = vadd.f32 %v9999, %v10131
        %v10133 = vpop.f32.mrb[0].mxu0
        %v10134 = vpop.f32.mrb[0].mxu0
        %v10135 = vadd.f32 %v9999, %v10134
        %v10136 = vpop.f32.mrb[0].mxu0
        %10137 = vmatprep.mubr.bf16.mxu0 0
        %10138 = vmatmul.mubr.bf16.gmra.mrb[0].mxu0 %v10038
        %v10139 = vpop.f32.mrb[0].mxu0
        %v10140 = vadd.f32 %v9999, %v10139
        %v10141 = vpop.f32.mrb[0].mxu0
        %v10142 = vpop.f32.mrb[0].mxu0
        %v10143 = vadd.f32 %v9999, %v10142
        %v10144 = vpop.f32.mrb[0].mxu0
        %10145 = vmatprep.mubr.bf16.mxu0 0
        %10146 = vmatmul.mubr.bf16.gmra.mrb[0].mxu0 %v10041
        %v10147 = vpop.f32.mrb[0].mxu0
        %v10148 = vadd.f32 %v9999, %v10147
        %v10149 = vpop.f32.mrb[0].mxu0
        %v10150 = vpop.f32.mrb[0].mxu0
        %v10151 = vadd.f32 %v9999, %v10150
        %v10152 = vpop.f32.mrb[0].mxu0
        %10153 = vmatprep.mubr.bf16.mxu0 0
        %10154 = vmatmul.mubr.bf16.gmra.mrb[0].mxu0 %v10044
        %v10155 = vpop.f32.mrb[0].mxu0
        %v10156 = vadd.f32 %v9999, %v10155
        %v10157 = vpop.f32.mrb[0].mxu0
        %v10158 = vpop.f32.mrb[0].mxu0
        %v10159 = vadd.f32 %v9999, %v10158
        %v10160 = vpop.f32.mrb[0].mxu0
        %10161 = vmatprep.mubr.bf16.mxu0 0
        %10162 = vmatmul.mubr.bf16.gmra.mrb[0].mxu0 %v10047
        %v10163 = vpop.f32.mrb[0].mxu0
        %v10164 = vadd.f32 %v9999, %v10163
        %v10165 = vpop.f32.mrb[0].mxu0
        %v10166 = vpop.f32.mrb[0].mxu0
        %v10167 = vadd.f32 %v9999, %v10166
        %v10168 = vpop.f32.mrb[0].mxu0
        %10169 = vmatprep.mubr.bf16.mxu0 0
        %10170 = vmatmul.mubr.bf16.gmra.mrb[0].mxu0 %v10050
        %v10171 = vpop.f32.mrb[0].mxu0
        %v10172 = vadd.f32 %v9999, %v10171
        %v10173 = vpop.f32.mrb[0].mxu0
        %v10174 = vpop.f32.mrb[0].mxu0
        %v10175 = vadd.f32 %v9999, %v10174
        %v10176 = vpop.f32.mrb[0].mxu0
        %10177 = vmatprep.mubr.bf16.mxu0 0
        %10178 = vmatmul.mubr.bf16.gmra.mrb[0].mxu0 %v10053
        %v10179 = vpop.f32.mrb[0].mxu0
        %v10180 = vadd.f32 %v9999, %v10179
        %v10181 = vpop.f32.mrb[0].mxu0
        %v10182 = vpop.f32.mrb[0].mxu0
        %v10183 = vadd.f32 %v9999, %v10182
        %v10184 = vpop.f32.mrb[0].mxu0
        %10185 = vmatprep.mubr.bf16.mxu0 0
        %10186 = vmatmul.mubr.bf16.gmra.mrb[0].mxu0 %v10056
        %v10187 = vpop.f32.mrb[0].mxu0
        %v10188 = vadd.f32 %v9999, %v10187
        %v10189 = vpop.f32.mrb[0].mxu0
        %v10190 = vpop.f32.mrb[0].mxu0
        %v10191 = vadd.f32 %v9999, %v10190
        %v10192 = vpop.f32.mrb[0].mxu0
        %10193 = vmatprep.mubr.bf16.mxu0 0
        %10194 = vmatmul.mubr.bf16.gmra.mrb[0].mxu0 %v10059
        %v10195 = vpop.f32.mrb[0].mxu0
        %v10196 = vadd.f32 %v9999, %v10195
        %v10197 = vpop.f32.mrb[0].mxu0
        %v10198 = vpop.f32.mrb[0].mxu0
        %v10199 = vadd.f32 %v9999, %v10198
        %v10200 = vpop.f32.mrb[0].mxu0
        %10201 = vmatprep.mubr.bf16.mxu0 0
        %10202 = vmatmul.mubr.bf16.gmra.mrb[0].mxu0 %v10062
        %v10203 = vpop.f32.mrb[0].mxu0
        %v10204 = vadd.f32 %v9999, %v10203
        %v10205 = vpop.f32.mrb[0].mxu0
        %v10206 = vpop.f32.mrb[0].mxu0
        %v10207 = vadd.f32 %v9999, %v10206
        %v10208 = vpop.f32.mrb[0].mxu0
        %10209 = vmatprep.mubr.bf16.mxu0 0
        %10210 = vmatmul.mubr.bf16.gmra.mrb[0].mxu0 %v10065
        %v10211 = vpop.f32.mrb[0].mxu0
        %v10212 = vadd.f32 %v9999, %v10211
        %v10213 = vpop.f32.mrb[0].mxu0
        %v10214 = vpop.f32.mrb[0].mxu0
        %v10215 = vadd.f32 %v9999, %v10214
        %v10216 = vpop.f32.mrb[0].mxu0
        %10217 = vmatprep.mubr.bf16.mxu0 0
        %10218 = vmatmul.mubr.bf16.gmra.mrb[0].mxu0 %v10068
        %v10219 = vpop.f32.mrb[0].mxu0
        %v10220 = vadd.f32 %v9999, %v10219
        %v10221 = vpop.f32.mrb[0].mxu0
        %v10222 = vpop.f32.mrb[0].mxu0
        %v10223 = vadd.f32 %v9999, %v10222
        %v10224 = vpop.f32.mrb[0].mxu0
        %10225 = vmatprep.mubr.bf16.mxu0 0
        %10226 = vmatmul.mubr.bf16.gmra.mrb[0].mxu0 %v10071
        %v10227 = vpop.f32.mrb[0].mxu0
        %v10228 = vadd.f32 %v9999, %v10227
        %v10229 = vpop.f32.mrb[0].mxu0
        %v10230 = vpop.f32.mrb[0].mxu0
        %v10231 = vadd.f32 %v9999, %v10230
        %v10232 = vpop.f32.mrb[0].mxu0
        %10233 = vdwg.mxu0
        %v10234 = vmax.f32 %v10108, 0.0
        %v10235 = vmax.f32 %v10111, 0.0
        %v10236 = vmax.f32 %v10116, 0.0
        %v10237 = vmax.f32 %v10119, 0.0
        %v10238 = vmax.f32 %v10124, 0.0
        %v10239 = vmax.f32 %v10127, 0.0
        %v10240 = vmax.f32 %v10132, 0.0
        %v10241 = vmax.f32 %v10135, 0.0
        %v10242 = vmax.f32 %v10140, 0.0
        %v10243 = vmax.f32 %v10143, 0.0
        %v10244 = vmax.f32 %v10148, 0.0
        %v10245 = vmax.f32 %v10151, 0.0
        %v10246 = vmax.f32 %v10156, 0.0
        %v10247 = vmax.f32 %v10159, 0.0
        %v10248 = vmax.f32 %v10164, 0.0
        %v10249 = vmax.f32 %v10167, 0.0
        %v10250 = vmax.f32 %v10172, 0.0
        %v10251 = vmax.f32 %v10175, 0.0
        %v10252 = vmax.f32 %v10180, 0.0
        %v10253 = vmax.f32 %v10183, 0.0
        %v10254 = vmax.f32 %v10188, 0.0
        %v10255 = vmax.f32 %v10191, 0.0
        %v10256 = vmax.f32 %v10196, 0.0
        %v10257 = vmax.f32 %v10199, 0.0
        %v10258 = vmax.f32 %v10204, 0.0
        %v10259 = vmax.f32 %v10207, 0.0
        %v10260 = vmax.f32 %v10212, 0.0
        %v10261 = vmax.f32 %v10215, 0.0
        %v10262 = vmax.f32 %v10220, 0.0
        %v10263 = vmax.f32 %v10223, 0.0
        %v10264 = vmax.f32 %v10228, 0.0
        %v10265 = vmax.f32 %v10231, 0.0
        %v10266 = vpack.c.bf16 %v10235, %v10234
        %v10267 = vpack.c.bf16 %v10237, %v10236
        %v10268 = vpack.c.bf16 %v10239, %v10238
        %v10269 = vpack.c.bf16 %v10241, %v10240
        %v10270 = vpack.c.bf16 %v10243, %v10242
        %v10271 = vpack.c.bf16 %v10245, %v10244
        %v10272 = vpack.c.bf16 %v10247, %v10246
        %v10273 = vpack.c.bf16 %v10249, %v10248
        %v10274 = vpack.c.bf16 %v10251, %v10250
        %v10275 = vpack.c.bf16 %v10253, %v10252
        %v10276 = vpack.c.bf16 %v10255, %v10254
        %v10277 = vpack.c.bf16 %v10257, %v10256
        %v10278 = vpack.c.bf16 %v10259, %v10258
        %v10279 = vpack.c.bf16 %v10261, %v10260
        %v10280 = vpack.c.bf16 %v10263, %v10262
        %v10281 = vpack.c.bf16 %v10265, %v10264
        %v10298 = vunpack.c.l.b16 %v10266
        %v10299 = vunpack.c.h.b16 %v10266
        %v10300 = vunpack.c.l.b16 %v10267
        %v10301 = vunpack.c.h.b16 %v10267
        %v10302 = vunpack.c.l.b16 %v10268
        %v10303 = vunpack.c.h.b16 %v10268
        %v10304 = vunpack.c.l.b16 %v10269
        %v10305 = vunpack.c.h.b16 %v10269
        %v10306 = vunpack.c.l.b16 %v10270
        %v10307 = vunpack.c.h.b16 %v10270
        %v10308 = vunpack.c.l.b16 %v10271
        %v10309 = vunpack.c.h.b16 %v10271
        %v10310 = vunpack.c.l.b16 %v10272
        %v10311 = vunpack.c.h.b16 %v10272
        %v10312 = vunpack.c.l.b16 %v10273
        %v10313 = vunpack.c.h.b16 %v10273
        %v10314 = vunpack.c.l.b16 %v10274
        %v10315 = vunpack.c.h.b16 %v10274
        %v10316 = vunpack.c.l.b16 %v10275
        %v10317 = vunpack.c.h.b16 %v10275
        %v10318 = vunpack.c.l.b16 %v10276
        %v10319 = vunpack.c.h.b16 %v10276
        %v10320 = vunpack.c.l.b16 %v10277
        %v10321 = vunpack.c.h.b16 %v10277
        %v10322 = vunpack.c.l.b16 %v10278
        %v10323 = vunpack.c.h.b16 %v10278
        %v10324 = vunpack.c.l.b16 %v10279
        %v10325 = vunpack.c.h.b16 %v10279
        %v10326 = vunpack.c.l.b16 %v10280
        %v10327 = vunpack.c.h.b16 %v10280
        %v10328 = vunpack.c.l.b16 %v10281
        %v10329 = vunpack.c.h.b16 %v10281
        %v10330 = vpack.c.b16 %v10298, %v10298
        %v10331 = vpack.c.b16 %v10299, %v10299
        %v10332 = vpack.c.b16 %v10300, %v10300
        %v10333 = vpack.c.b16 %v10301, %v10301
        %v10334 = vpack.c.b16 %v10302, %v10302
        %v10335 = vpack.c.b16 %v10303, %v10303
        %v10336 = vpack.c.b16 %v10304, %v10304
        %v10337 = vpack.c.b16 %v10305, %v10305
        %v10338 = vpack.c.b16 %v10306, %v10306
        %v10339 = vpack.c.b16 %v10307, %v10307
        %v10340 = vpack.c.b16 %v10308, %v10308
        %v10341 = vpack.c.b16 %v10309, %v10309
        %v10342 = vpack.c.b16 %v10310, %v10310
        %v10343 = vpack.c.b16 %v10311, %v10311
        %v10344 = vpack.c.b16 %v10312, %v10312
        %v10345 = vpack.c.b16 %v10313, %v10313
        %v10346 = vpack.c.b16 %v10314, %v10314
        %v10347 = vpack.c.b16 %v10315, %v10315
        %v10348 = vpack.c.b16 %v10316, %v10316
        %v10349 = vpack.c.b16 %v10317, %v10317
        %v10350 = vpack.c.b16 %v10318, %v10318
        %v10351 = vpack.c.b16 %v10319, %v10319
        %v10352 = vpack.c.b16 %v10320, %v10320
        %v10353 = vpack.c.b16 %v10321, %v10321
        %v10354 = vpack.c.b16 %v10322, %v10322
        %v10355 = vpack.c.b16 %v10323, %v10323
        %v10356 = vpack.c.b16 %v10324, %v10324
        %v10357 = vpack.c.b16 %v10325, %v10325
        %v10358 = vpack.c.b16 %v10326, %v10326
        %v10359 = vpack.c.b16 %v10327, %v10327
        %v10360 = vpack.c.b16 %v10328, %v10328
        %v10361 = vpack.c.b16 %v10329, %v10329
        %10394 = vst [vmem:[%s472 + $0x180] sm:$0xf] %v10330
        %10395 = vst [vmem:[%s472 + $0x184] sm:$0xf] %v10331
        %10396 = vst [vmem:[%s472 + $0x188] sm:$0xf] %v10332
        %10397 = vst [vmem:[%s472 + $0x18c] sm:$0xf] %v10333
        %10398 = vst [vmem:[%s472 + $0x190] sm:$0xf] %v10334
        %10399 = vst [vmem:[%s472 + $0x194] sm:$0xf] %v10335
        %10400 = vst [vmem:[%s472 + $0x198] sm:$0xf] %v10336
        %10401 = vst [vmem:[%s472 + $0x19c] sm:$0xf] %v10337
        %10402 = vst [vmem:[%s472 + $0x1a0] sm:$0xf] %v10338
        %10403 = vst [vmem:[%s472 + $0x1a4] sm:$0xf] %v10339
        %10404 = vst [vmem:[%s472 + $0x1a8] sm:$0xf] %v10340
        %10405 = vst [vmem:[%s472 + $0x1ac] sm:$0xf] %v10341
        %10406 = vst [vmem:[%s472 + $0x1b0] sm:$0xf] %v10342
        %10407 = vst [vmem:[%s472 + $0x1b4] sm:$0xf] %v10343
        %10408 = vst [vmem:[%s472 + $0x1b8] sm:$0xf] %v10344
        %10409 = vst [vmem:[%s472 + $0x1bc] sm:$0xf] %v10345
        %10410 = vst [vmem:[%s472 + $0x1c0] sm:$0xf] %v10346
        %10411 = vst [vmem:[%s472 + $0x1c4] sm:$0xf] %v10347
        %10412 = vst [vmem:[%s472 + $0x1c8] sm:$0xf] %v10348
        %10413 = vst [vmem:[%s472 + $0x1cc] sm:$0xf] %v10349
        %10414 = vst [vmem:[%s472 + $0x1d0] sm:$0xf] %v10350
        %10415 = vst [vmem:[%s472 + $0x1d4] sm:$0xf] %v10351
        %10416 = vst [vmem:[%s472 + $0x1d8] sm:$0xf] %v10352
        %10417 = vst [vmem:[%s472 + $0x1dc] sm:$0xf] %v10353
        %10418 = vst [vmem:[%s472 + $0x1e0] sm:$0xf] %v10354
        %10419 = vst [vmem:[%s472 + $0x1e4] sm:$0xf] %v10355
        %10420 = vst [vmem:[%s472 + $0x1e8] sm:$0xf] %v10356
        %10421 = vst [vmem:[%s472 + $0x1ec] sm:$0xf] %v10357
        %10422 = vst [vmem:[%s472 + $0x1f0] sm:$0xf] %v10358
        %10423 = vst [vmem:[%s472 + $0x1f4] sm:$0xf] %v10359
        %10424 = vst [vmem:[%s472 + $0x1f8] sm:$0xf] %v10360
        %10425 = vst [vmem:[%s472 + $0x1fc] sm:$0xf] %v10361
        %v10426 = vld [vmem:[%s5] sm:$0xff]
        %v10427 = vld [vmem:[%s5 + $0x8] sm:$0xff]
        %v10428 = vld [vmem:[%s5 + $0x10] sm:$0xff]
        %v10429 = vld [vmem:[%s5 + $0x18] sm:$0xff]
        %v10430 = vld [vmem:[%s5 + $0x20] sm:$0xff]
        %v10431 = vld [vmem:[%s5 + $0x28] sm:$0xff]
        %v10432 = vld [vmem:[%s5 + $0x30] sm:$0xff]
        %v10433 = vld [vmem:[%s5 + $0x38] sm:$0xff]
        %v10434 = vld [vmem:[%s5 + $0x40] sm:$0xff]
        %v10435 = vld [vmem:[%s5 + $0x48] sm:$0xff]
        %v10436 = vld [vmem:[%s5 + $0x50] sm:$0xff]
        %v10437 = vld [vmem:[%s5 + $0x58] sm:$0xff]
        %v10438 = vld [vmem:[%s5 + $0x60] sm:$0xff]
        %v10439 = vld [vmem:[%s5 + $0x68] sm:$0xff]
        %v10440 = vld [vmem:[%s5 + $0x70] sm:$0xff]
        %v10441 = vld [vmem:[%s5 + $0x78] sm:$0xff]
        %v10442 = vld [vmem:[%s6] sm:$0x3]
        %v10444 = vlaneseq
        %v10445 = vshrl.u32 %v10444, 7
        %v10446 = vsub.s32 0, %v10445
        %v10447 = vrot.slane %v10442, %v10446
        %v10448 = vlaneseq
        %v10449 = vshrl.u32 %v10448, 7
        %v10450 = vsub.s32 1, %v10449
        %v10451 = vrot.slane %v10442, %v10450
        %v10470 = vunpack.c.l.b16 %v10426
        %v10471 = vunpack.c.h.b16 %v10426
        %v10472 = vunpack.c.l.b16 %v10427
        %v10473 = vunpack.c.h.b16 %v10427
        %v10474 = vunpack.c.l.b16 %v10428
        %v10475 = vunpack.c.h.b16 %v10428
        %v10476 = vunpack.c.l.b16 %v10429
        %v10477 = vunpack.c.h.b16 %v10429
        %v10478 = vunpack.c.l.b16 %v10430
        %v10479 = vunpack.c.h.b16 %v10430
        %v10480 = vunpack.c.l.b16 %v10431
        %v10481 = vunpack.c.h.b16 %v10431
        %v10482 = vunpack.c.l.b16 %v10432
        %v10483 = vunpack.c.h.b16 %v10432
        %v10484 = vunpack.c.l.b16 %v10433
        %v10485 = vunpack.c.h.b16 %v10433
        %v10486 = vunpack.c.l.b16 %v10434
        %v10487 = vunpack.c.h.b16 %v10434
        %v10488 = vunpack.c.l.b16 %v10435
        %v10489 = vunpack.c.h.b16 %v10435
        %v10490 = vunpack.c.l.b16 %v10436
        %v10491 = vunpack.c.h.b16 %v10436
        %v10492 = vunpack.c.l.b16 %v10437
        %v10493 = vunpack.c.h.b16 %v10437
        %v10494 = vunpack.c.l.b16 %v10438
        %v10495 = vunpack.c.h.b16 %v10438
        %v10496 = vunpack.c.l.b16 %v10439
        %v10497 = vunpack.c.h.b16 %v10439
        %v10498 = vunpack.c.l.b16 %v10440
        %v10499 = vunpack.c.h.b16 %v10440
        %v10500 = vunpack.c.l.b16 %v10441
        %v10501 = vunpack.c.h.b16 %v10441
        %v10502 = vpack.c.b16 %v10472, %v10470
        %v10503 = vpack.c.b16 %v10473, %v10471
        %v10504 = vpack.c.b16 %v10476, %v10474
        %v10505 = vpack.c.b16 %v10477, %v10475
        %v10506 = vpack.c.b16 %v10480, %v10478
        %v10507 = vpack.c.b16 %v10481, %v10479
        %v10508 = vpack.c.b16 %v10484, %v10482
        %v10509 = vpack.c.b16 %v10485, %v10483
        %v10510 = vpack.c.b16 %v10488, %v10486
        %v10511 = vpack.c.b16 %v10489, %v10487
        %v10512 = vpack.c.b16 %v10492, %v10490
        %v10513 = vpack.c.b16 %v10493, %v10491
        %v10514 = vpack.c.b16 %v10496, %v10494
        %v10515 = vpack.c.b16 %v10497, %v10495
        %v10516 = vpack.c.b16 %v10500, %v10498
        %v10517 = vpack.c.b16 %v10501, %v10499
        %10534 = vmatprep.subr.bf16.mxu0 %v10503
        %10535 = vmatpush1.bf16.msra.mxu0 %v10502
        %10536 = vmatprep.subr.bf16.mxu0 %v10505
        %10537 = vmatpush1.bf16.msra.mxu0 %v10504
        %10538 = vmatprep.subr.bf16.mxu0 %v10507
        %10539 = vmatpush1.bf16.msra.mxu0 %v10506
        %10540 = vmatprep.subr.bf16.mxu0 %v10509
        %10541 = vmatpush1.bf16.msra.mxu0 %v10508
        %10542 = vmatprep.subr.bf16.mxu0 %v10511
        %10543 = vmatpush1.bf16.msra.mxu0 %v10510
        %10544 = vmatprep.subr.bf16.mxu0 %v10513
        %10545 = vmatpush1.bf16.msra.mxu0 %v10512
        %10546 = vmatprep.subr.bf16.mxu0 %v10515
        %10547 = vmatpush1.bf16.msra.mxu0 %v10514
        %10548 = vmatprep.subr.bf16.mxu0 %v10517
        %10549 = vmatpush1.bf16.msra.mxu0 %v10516
        %10550 = vmatprep.subr.bf16.mxu0 0
        %10551 = vmatpush1.bf16.msra.mxu0 0
        %10552 = vmatprep.subr.bf16.mxu0 0
        %10553 = vmatpush1.bf16.msra.mxu0 0
        %10554 = vmatprep.subr.bf16.mxu0 0
        %10555 = vmatpush1.bf16.msra.mxu0 0
        %10556 = vmatprep.subr.bf16.mxu0 0
        %10557 = vmatpush1.bf16.msra.mxu0 0
        %10558 = vmatprep.subr.bf16.mxu0 0
        %10559 = vmatpush1.bf16.msra.mxu0 0
        %10560 = vmatprep.subr.bf16.mxu0 0
        %10561 = vmatpush1.bf16.msra.mxu0 0
        %10562 = vmatprep.subr.bf16.mxu0 0
        %10563 = vmatpush1.bf16.msra.mxu0 0
        %10564 = vmatprep.subr.bf16.mxu0 0
        %10565 = vmatpush1.bf16.msra.mxu0 0
        %10566 = vmatprep.mubr.bf16.mxu0 0
        %10567 = vmatmul.mubr.bf16.gmra.mrb[0].mxu0 %v10266
        %v10568 = vpop.f32.mrb[0].mxu0
        %v10569 = vadd.f32 %v10447, %v10568
        %v10570 = vpop.f32.mrb[0].mxu0
        %v10571 = vadd.f32 %v10451, %v10570
        %v10572 = vpop.f32.mrb[0].mxu0
        %v10573 = vadd.f32 %v10447, %v10572
        %v10574 = vpop.f32.mrb[0].mxu0
        %v10575 = vadd.f32 %v10451, %v10574
        %10576 = vmatprep.mubr.bf16.mxu0 0
        %10577 = vmatmul.mubr.bf16.gmra.mrb[0].mxu0 %v10267
        %v10578 = vpop.f32.mrb[0].mxu0
        %v10579 = vadd.f32 %v10447, %v10578
        %v10580 = vpop.f32.mrb[0].mxu0
        %v10581 = vadd.f32 %v10451, %v10580
        %v10582 = vpop.f32.mrb[0].mxu0
        %v10583 = vadd.f32 %v10447, %v10582
        %v10584 = vpop.f32.mrb[0].mxu0
        %v10585 = vadd.f32 %v10451, %v10584
        %10586 = vmatprep.mubr.bf16.mxu0 0
        %10587 = vmatmul.mubr.bf16.gmra.mrb[0].mxu0 %v10268
        %v10588 = vpop.f32.mrb[0].mxu0
        %v10589 = vadd.f32 %v10447, %v10588
        %v10590 = vpop.f32.mrb[0].mxu0
        %v10591 = vadd.f32 %v10451, %v10590
        %v10592 = vpop.f32.mrb[0].mxu0
        %v10593 = vadd.f32 %v10447, %v10592
        %v10594 = vpop.f32.mrb[0].mxu0
        %v10595 = vadd.f32 %v10451, %v10594
        %10596 = vmatprep.mubr.bf16.mxu0 0
        %10597 = vmatmul.mubr.bf16.gmra.mrb[0].mxu0 %v10269
        %v10598 = vpop.f32.mrb[0].mxu0
        %v10599 = vadd.f32 %v10447, %v10598
        %v10600 = vpop.f32.mrb[0].mxu0
        %v10601 = vadd.f32 %v10451, %v10600
        %v10602 = vpop.f32.mrb[0].mxu0
        %v10603 = vadd.f32 %v10447, %v10602
        %v10604 = vpop.f32.mrb[0].mxu0
        %v10605 = vadd.f32 %v10451, %v10604
        %10606 = vmatprep.mubr.bf16.mxu0 0
        %10607 = vmatmul.mubr.bf16.gmra.mrb[0].mxu0 %v10270
        %v10608 = vpop.f32.mrb[0].mxu0
        %v10609 = vadd.f32 %v10447, %v10608
        %v10610 = vpop.f32.mrb[0].mxu0
        %v10611 = vadd.f32 %v10451, %v10610
        %v10612 = vpop.f32.mrb[0].mxu0
        %v10613 = vadd.f32 %v10447, %v10612
        %v10614 = vpop.f32.mrb[0].mxu0
        %v10615 = vadd.f32 %v10451, %v10614
        %10616 = vmatprep.mubr.bf16.mxu0 0
        %10617 = vmatmul.mubr.bf16.gmra.mrb[0].mxu0 %v10271
        %v10618 = vpop.f32.mrb[0].mxu0
        %v10619 = vadd.f32 %v10447, %v10618
        %v10620 = vpop.f32.mrb[0].mxu0
        %v10621 = vadd.f32 %v10451, %v10620
        %v10622 = vpop.f32.mrb[0].mxu0
        %v10623 = vadd.f32 %v10447, %v10622
        %v10624 = vpop.f32.mrb[0].mxu0
        %v10625 = vadd.f32 %v10451, %v10624
        %10626 = vmatprep.mubr.bf16.mxu0 0
        %10627 = vmatmul.mubr.bf16.gmra.mrb[0].mxu0 %v10272
        %v10628 = vpop.f32.mrb[0].mxu0
        %v10629 = vadd.f32 %v10447, %v10628
        %v10630 = vpop.f32.mrb[0].mxu0
        %v10631 = vadd.f32 %v10451, %v10630
        %v10632 = vpop.f32.mrb[0].mxu0
        %v10633 = vadd.f32 %v10447, %v10632
        %v10634 = vpop.f32.mrb[0].mxu0
        %v10635 = vadd.f32 %v10451, %v10634
        %10636 = vmatprep.mubr.bf16.mxu0 0
        %10637 = vmatmul.mubr.bf16.gmra.mrb[0].mxu0 %v10273
        %v10638 = vpop.f32.mrb[0].mxu0
        %v10639 = vadd.f32 %v10447, %v10638
        %v10640 = vpop.f32.mrb[0].mxu0
        %v10641 = vadd.f32 %v10451, %v10640
        %v10642 = vpop.f32.mrb[0].mxu0
        %v10643 = vadd.f32 %v10447, %v10642
        %v10644 = vpop.f32.mrb[0].mxu0
        %v10645 = vadd.f32 %v10451, %v10644
        %10646 = vmatprep.mubr.bf16.mxu0 0
        %10647 = vmatmul.mubr.bf16.gmra.mrb[0].mxu0 %v10274
        %v10648 = vpop.f32.mrb[0].mxu0
        %v10649 = vadd.f32 %v10447, %v10648
        %v10650 = vpop.f32.mrb[0].mxu0
        %v10651 = vadd.f32 %v10451, %v10650
        %v10652 = vpop.f32.mrb[0].mxu0
        %v10653 = vadd.f32 %v10447, %v10652
        %v10654 = vpop.f32.mrb[0].mxu0
        %v10655 = vadd.f32 %v10451, %v10654
        %10656 = vmatprep.mubr.bf16.mxu0 0
        %10657 = vmatmul.mubr.bf16.gmra.mrb[0].mxu0 %v10275
        %v10658 = vpop.f32.mrb[0].mxu0
        %v10659 = vadd.f32 %v10447, %v10658
        %v10660 = vpop.f32.mrb[0].mxu0
        %v10661 = vadd.f32 %v10451, %v10660
        %v10662 = vpop.f32.mrb[0].mxu0
        %v10663 = vadd.f32 %v10447, %v10662
        %v10664 = vpop.f32.mrb[0].mxu0
        %v10665 = vadd.f32 %v10451, %v10664
        %10666 = vmatprep.mubr.bf16.mxu0 0
        %10667 = vmatmul.mubr.bf16.gmra.mrb[0].mxu0 %v10276
        %v10668 = vpop.f32.mrb[0].mxu0
        %v10669 = vadd.f32 %v10447, %v10668
        %v10670 = vpop.f32.mrb[0].mxu0
        %v10671 = vadd.f32 %v10451, %v10670
        %v10672 = vpop.f32.mrb[0].mxu0
        %v10673 = vadd.f32 %v10447, %v10672
        %v10674 = vpop.f32.mrb[0].mxu0
        %v10675 = vadd.f32 %v10451, %v10674
        %10676 = vmatprep.mubr.bf16.mxu0 0
        %10677 = vmatmul.mubr.bf16.gmra.mrb[0].mxu0 %v10277
        %v10678 = vpop.f32.mrb[0].mxu0
        %v10679 = vadd.f32 %v10447, %v10678
        %v10680 = vpop.f32.mrb[0].mxu0
        %v10681 = vadd.f32 %v10451, %v10680
        %v10682 = vpop.f32.mrb[0].mxu0
        %v10683 = vadd.f32 %v10447, %v10682
        %v10684 = vpop.f32.mrb[0].mxu0
        %v10685 = vadd.f32 %v10451, %v10684
        %10686 = vmatprep.mubr.bf16.mxu0 0
        %10687 = vmatmul.mubr.bf16.gmra.mrb[0].mxu0 %v10278
        %v10688 = vpop.f32.mrb[0].mxu0
        %v10689 = vadd.f32 %v10447, %v10688
        %v10690 = vpop.f32.mrb[0].mxu0
        %v10691 = vadd.f32 %v10451, %v10690
        %v10692 = vpop.f32.mrb[0].mxu0
        %v10693 = vadd.f32 %v10447, %v10692
        %v10694 = vpop.f32.mrb[0].mxu0
        %v10695 = vadd.f32 %v10451, %v10694
        %10696 = vmatprep.mubr.bf16.mxu0 0
        %10697 = vmatmul.mubr.bf16.gmra.mrb[0].mxu0 %v10279
        %v10698 = vpop.f32.mrb[0].mxu0
        %v10699 = vadd.f32 %v10447, %v10698
        %v10700 = vpop.f32.mrb[0].mxu0
        %v10701 = vadd.f32 %v10451, %v10700
        %v10702 = vpop.f32.mrb[0].mxu0
        %v10703 = vadd.f32 %v10447, %v10702
        %v10704 = vpop.f32.mrb[0].mxu0
        %v10705 = vadd.f32 %v10451, %v10704
        %10706 = vmatprep.mubr.bf16.mxu0 0
        %10707 = vmatmul.mubr.bf16.gmra.mrb[0].mxu0 %v10280
        %v10708 = vpop.f32.mrb[0].mxu0
        %v10709 = vadd.f32 %v10447, %v10708
        %v10710 = vpop.f32.mrb[0].mxu0
        %v10711 = vadd.f32 %v10451, %v10710
        %v10712 = vpop.f32.mrb[0].mxu0
        %v10713 = vadd.f32 %v10447, %v10712
        %v10714 = vpop.f32.mrb[0].mxu0
        %v10715 = vadd.f32 %v10451, %v10714
        %10716 = vmatprep.mubr.bf16.mxu0 0
        %10717 = vmatmul.mubr.bf16.gmra.mrb[0].mxu0 %v10281
        %v10718 = vpop.f32.mrb[0].mxu0
        %v10719 = vadd.f32 %v10447, %v10718
        %v10720 = vpop.f32.mrb[0].mxu0
        %v10721 = vadd.f32 %v10451, %v10720
        %v10722 = vpop.f32.mrb[0].mxu0
        %v10723 = vadd.f32 %v10447, %v10722
        %v10724 = vpop.f32.mrb[0].mxu0
        %v10725 = vadd.f32 %v10451, %v10724
        %10726 = vdwg.mxu0
        %v10727 = vmax.f32 %v10569, 0.0
        %v10728 = vmax.f32 %v10571, 0.0
        %v10729 = vmax.f32 %v10573, 0.0
        %v10730 = vmax.f32 %v10575, 0.0
        %v10731 = vmax.f32 %v10579, 0.0
        %v10732 = vmax.f32 %v10581, 0.0
        %v10733 = vmax.f32 %v10583, 0.0
        %v10734 = vmax.f32 %v10585, 0.0
        %v10735 = vmax.f32 %v10589, 0.0
        %v10736 = vmax.f32 %v10591, 0.0
        %v10737 = vmax.f32 %v10593, 0.0
        %v10738 = vmax.f32 %v10595, 0.0
        %v10739 = vmax.f32 %v10599, 0.0
        %v10740 = vmax.f32 %v10601, 0.0
        %v10741 = vmax.f32 %v10603, 0.0
        %v10742 = vmax.f32 %v10605, 0.0
        %v10743 = vmax.f32 %v10609, 0.0
        %v10744 = vmax.f32 %v10611, 0.0
        %v10745 = vmax.f32 %v10613, 0.0
        %v10746 = vmax.f32 %v10615, 0.0
        %v10747 = vmax.f32 %v10619, 0.0
        %v10748 = vmax.f32 %v10621, 0.0
        %v10749 = vmax.f32 %v10623, 0.0
        %v10750 = vmax.f32 %v10625, 0.0
        %v10751 = vmax.f32 %v10629, 0.0
        %v10752 = vmax.f32 %v10631, 0.0
        %v10753 = vmax.f32 %v10633, 0.0
        %v10754 = vmax.f32 %v10635, 0.0
        %v10755 = vmax.f32 %v10639, 0.0
        %v10756 = vmax.f32 %v10641, 0.0
        %v10757 = vmax.f32 %v10643, 0.0
        %v10758 = vmax.f32 %v10645, 0.0
        %v10759 = vmax.f32 %v10649, 0.0
        %v10760 = vmax.f32 %v10651, 0.0
        %v10761 = vmax.f32 %v10653, 0.0
        %v10762 = vmax.f32 %v10655, 0.0
        %v10763 = vmax.f32 %v10659, 0.0
        %v10764 = vmax.f32 %v10661, 0.0
        %v10765 = vmax.f32 %v10663, 0.0
        %v10766 = vmax.f32 %v10665, 0.0
        %v10767 = vmax.f32 %v10669, 0.0
        %v10768 = vmax.f32 %v10671, 0.0
        %v10769 = vmax.f32 %v10673, 0.0
        %v10770 = vmax.f32 %v10675, 0.0
        %v10771 = vmax.f32 %v10679, 0.0
        %v10772 = vmax.f32 %v10681, 0.0
        %v10773 = vmax.f32 %v10683, 0.0
        %v10774 = vmax.f32 %v10685, 0.0
        %v10775 = vmax.f32 %v10689, 0.0
        %v10776 = vmax.f32 %v10691, 0.0
        %v10777 = vmax.f32 %v10693, 0.0
        %v10778 = vmax.f32 %v10695, 0.0
        %v10779 = vmax.f32 %v10699, 0.0
        %v10780 = vmax.f32 %v10701, 0.0
        %v10781 = vmax.f32 %v10703, 0.0
        %v10782 = vmax.f32 %v10705, 0.0
        %v10783 = vmax.f32 %v10709, 0.0
        %v10784 = vmax.f32 %v10711, 0.0
        %v10785 = vmax.f32 %v10713, 0.0
        %v10786 = vmax.f32 %v10715, 0.0
        %v10787 = vmax.f32 %v10719, 0.0
        %v10788 = vmax.f32 %v10721, 0.0
        %v10789 = vmax.f32 %v10723, 0.0
        %v10790 = vmax.f32 %v10725, 0.0
        %v10791 = vpack.c.bf16 %v10729, %v10727
        %v10792 = vpack.c.bf16 %v10730, %v10728
        %v10793 = vpack.c.bf16 %v10733, %v10731
        %v10794 = vpack.c.bf16 %v10734, %v10732
        %v10795 = vpack.c.bf16 %v10737, %v10735
        %v10796 = vpack.c.bf16 %v10738, %v10736
        %v10797 = vpack.c.bf16 %v10741, %v10739
        %v10798 = vpack.c.bf16 %v10742, %v10740
        %v10799 = vpack.c.bf16 %v10745, %v10743
        %v10800 = vpack.c.bf16 %v10746, %v10744
        %v10801 = vpack.c.bf16 %v10749, %v10747
        %v10802 = vpack.c.bf16 %v10750, %v10748
        %v10803 = vpack.c.bf16 %v10753, %v10751
        %v10804 = vpack.c.bf16 %v10754, %v10752
        %v10805 = vpack.c.bf16 %v10757, %v10755
        %v10806 = vpack.c.bf16 %v10758, %v10756
        %v10807 = vpack.c.bf16 %v10761, %v10759
        %v10808 = vpack.c.bf16 %v10762, %v10760
        %v10809 = vpack.c.bf16 %v10765, %v10763
        %v10810 = vpack.c.bf16 %v10766, %v10764
        %v10811 = vpack.c.bf16 %v10769, %v10767
        %v10812 = vpack.c.bf16 %v10770, %v10768
        %v10813 = vpack.c.bf16 %v10773, %v10771
        %v10814 = vpack.c.bf16 %v10774, %v10772
        %v10815 = vpack.c.bf16 %v10777, %v10775
        %v10816 = vpack.c.bf16 %v10778, %v10776
        %v10817 = vpack.c.bf16 %v10781, %v10779
        %v10818 = vpack.c.bf16 %v10782, %v10780
        %v10819 = vpack.c.bf16 %v10785, %v10783
        %v10820 = vpack.c.bf16 %v10786, %v10784
        %v10821 = vpack.c.bf16 %v10789, %v10787
        %v10822 = vpack.c.bf16 %v10790, %v10788
        %v10855 = vunpack.c.l.b16 %v10791
        %v10856 = vunpack.c.l.b16 %v10792
        %v10857 = vunpack.c.h.b16 %v10791
        %v10858 = vunpack.c.h.b16 %v10792
        %v10859 = vunpack.c.l.b16 %v10793
        %v10860 = vunpack.c.l.b16 %v10794
        %v10861 = vunpack.c.h.b16 %v10793
        %v10862 = vunpack.c.h.b16 %v10794
        %v10863 = vunpack.c.l.b16 %v10795
        %v10864 = vunpack.c.l.b16 %v10796
        %v10865 = vunpack.c.h.b16 %v10795
        %v10866 = vunpack.c.h.b16 %v10796
        %v10867 = vunpack.c.l.b16 %v10797
        %v10868 = vunpack.c.l.b16 %v10798
        %v10869 = vunpack.c.h.b16 %v10797
        %v10870 = vunpack.c.h.b16 %v10798
        %v10871 = vunpack.c.l.b16 %v10799
        %v10872 = vunpack.c.l.b16 %v10800
        %v10873 = vunpack.c.h.b16 %v10799
        %v10874 = vunpack.c.h.b16 %v10800
        %v10875 = vunpack.c.l.b16 %v10801
        %v10876 = vunpack.c.l.b16 %v10802
        %v10877 = vunpack.c.h.b16 %v10801
        %v10878 = vunpack.c.h.b16 %v10802
        %v10879 = vunpack.c.l.b16 %v10803
        %v10880 = vunpack.c.l.b16 %v10804
        %v10881 = vunpack.c.h.b16 %v10803
        %v10882 = vunpack.c.h.b16 %v10804
        %v10883 = vunpack.c.l.b16 %v10805
        %v10884 = vunpack.c.l.b16 %v10806
        %v10885 = vunpack.c.h.b16 %v10805
        %v10886 = vunpack.c.h.b16 %v10806
        %v10887 = vunpack.c.l.b16 %v10807
        %v10888 = vunpack.c.l.b16 %v10808
        %v10889 = vunpack.c.h.b16 %v10807
        %v10890 = vunpack.c.h.b16 %v10808
        %v10891 = vunpack.c.l.b16 %v10809
        %v10892 = vunpack.c.l.b16 %v10810
        %v10893 = vunpack.c.h.b16 %v10809
        %v10894 = vunpack.c.h.b16 %v10810
        %v10895 = vunpack.c.l.b16 %v10811
        %v10896 = vunpack.c.l.b16 %v10812
        %v10897 = vunpack.c.h.b16 %v10811
        %v10898 = vunpack.c.h.b16 %v10812
        %v10899 = vunpack.c.l.b16 %v10813
        %v10900 = vunpack.c.l.b16 %v10814
        %v10901 = vunpack.c.h.b16 %v10813
        %v10902 = vunpack.c.h.b16 %v10814
        %v10903 = vunpack.c.l.b16 %v10815
        %v10904 = vunpack.c.l.b16 %v10816
        %v10905 = vunpack.c.h.b16 %v10815
        %v10906 = vunpack.c.h.b16 %v10816
        %v10907 = vunpack.c.l.b16 %v10817
        %v10908 = vunpack.c.l.b16 %v10818
        %v10909 = vunpack.c.h.b16 %v10817
        %v10910 = vunpack.c.h.b16 %v10818
        %v10911 = vunpack.c.l.b16 %v10819
        %v10912 = vunpack.c.l.b16 %v10820
        %v10913 = vunpack.c.h.b16 %v10819
        %v10914 = vunpack.c.h.b16 %v10820
        %v10915 = vunpack.c.l.b16 %v10821
        %v10916 = vunpack.c.l.b16 %v10822
        %v10917 = vunpack.c.h.b16 %v10821
        %v10918 = vunpack.c.h.b16 %v10822
        %v10919 = vpack.c.b16 %v10856, %v10855
        %v10920 = vpack.c.b16 %v10858, %v10857
        %v10921 = vpack.c.b16 %v10860, %v10859
        %v10922 = vpack.c.b16 %v10862, %v10861
        %v10923 = vpack.c.b16 %v10864, %v10863
        %v10924 = vpack.c.b16 %v10866, %v10865
        %v10925 = vpack.c.b16 %v10868, %v10867
        %v10926 = vpack.c.b16 %v10870, %v10869
        %v10927 = vpack.c.b16 %v10872, %v10871
        %v10928 = vpack.c.b16 %v10874, %v10873
        %v10929 = vpack.c.b16 %v10876, %v10875
        %v10930 = vpack.c.b16 %v10878, %v10877
        %v10931 = vpack.c.b16 %v10880, %v10879
        %v10932 = vpack.c.b16 %v10882, %v10881
        %v10933 = vpack.c.b16 %v10884, %v10883
        %v10934 = vpack.c.b16 %v10886, %v10885
        %v10935 = vpack.c.b16 %v10888, %v10887
        %v10936 = vpack.c.b16 %v10890, %v10889
        %v10937 = vpack.c.b16 %v10892, %v10891
        %v10938 = vpack.c.b16 %v10894, %v10893
        %v10939 = vpack.c.b16 %v10896, %v10895
        %v10940 = vpack.c.b16 %v10898, %v10897
        %v10941 = vpack.c.b16 %v10900, %v10899
        %v10942 = vpack.c.b16 %v10902, %v10901
        %v10943 = vpack.c.b16 %v10904, %v10903
        %v10944 = vpack.c.b16 %v10906, %v10905
        %v10945 = vpack.c.b16 %v10908, %v10907
        %v10946 = vpack.c.b16 %v10910, %v10909
        %v10947 = vpack.c.b16 %v10912, %v10911
        %v10948 = vpack.c.b16 %v10914, %v10913
        %v10949 = vpack.c.b16 %v10916, %v10915
        %v10950 = vpack.c.b16 %v10918, %v10917
        %10983 = vst [vmem:[%s479 + $0x300] sm:$0xff] %v10919
        %10984 = vst [vmem:[%s479 + $0x308] sm:$0xff] %v10920
        %10985 = vst [vmem:[%s479 + $0x310] sm:$0xff] %v10921
        %10986 = vst [vmem:[%s479 + $0x318] sm:$0xff] %v10922
        %10987 = vst [vmem:[%s479 + $0x320] sm:$0xff] %v10923
        %10988 = vst [vmem:[%s479 + $0x328] sm:$0xff] %v10924
        %10989 = vst [vmem:[%s479 + $0x330] sm:$0xff] %v10925
        %10990 = vst [vmem:[%s479 + $0x338] sm:$0xff] %v10926
        %10991 = vst [vmem:[%s479 + $0x340] sm:$0xff] %v10927
        %10992 = vst [vmem:[%s479 + $0x348] sm:$0xff] %v10928
        %10993 = vst [vmem:[%s479 + $0x350] sm:$0xff] %v10929
        %10994 = vst [vmem:[%s479 + $0x358] sm:$0xff] %v10930
        %10995 = vst [vmem:[%s479 + $0x360] sm:$0xff] %v10931
        %10996 = vst [vmem:[%s479 + $0x368] sm:$0xff] %v10932
        %10997 = vst [vmem:[%s479 + $0x370] sm:$0xff] %v10933
        %10998 = vst [vmem:[%s479 + $0x378] sm:$0xff] %v10934
        %10999 = vst [vmem:[%s479 + $0x380] sm:$0xff] %v10935
        %11000 = vst [vmem:[%s479 + $0x388] sm:$0xff] %v10936
        %11001 = vst [vmem:[%s479 + $0x390] sm:$0xff] %v10937
        %11002 = vst [vmem:[%s479 + $0x398] sm:$0xff] %v10938
        %11003 = vst [vmem:[%s479 + $0x3a0] sm:$0xff] %v10939
        %11004 = vst [vmem:[%s479 + $0x3a8] sm:$0xff] %v10940
        %11005 = vst [vmem:[%s479 + $0x3b0] sm:$0xff] %v10941
        %11006 = vst [vmem:[%s479 + $0x3b8] sm:$0xff] %v10942
        %11007 = vst [vmem:[%s479 + $0x3c0] sm:$0xff] %v10943
        %11008 = vst [vmem:[%s479 + $0x3c8] sm:$0xff] %v10944
        %11009 = vst [vmem:[%s479 + $0x3d0] sm:$0xff] %v10945
        %11010 = vst [vmem:[%s479 + $0x3d8] sm:$0xff] %v10946
        %11011 = vst [vmem:[%s479 + $0x3e0] sm:$0xff] %v10947
        %11012 = vst [vmem:[%s479 + $0x3e8] sm:$0xff] %v10948
        %11013 = vst [vmem:[%s479 + $0x3f0] sm:$0xff] %v10949
        %11014 = vst [vmem:[%s479 + $0x3f8] sm:$0xff] %v10950
        %v11015 = vld [vmem:[%s7] sm:$0xf]
        %v11016 = vld [vmem:[%s7 + $0x4] sm:$0xf]
        %v11017 = vld [vmem:[%s7 + $0x8] sm:$0xf]
        %v11018 = vld [vmem:[%s7 + $0xc] sm:$0xf]
        %v11019 = vld [vmem:[%s7 + $0x10] sm:$0xf]
        %v11020 = vld [vmem:[%s7 + $0x14] sm:$0xf]
        %v11021 = vld [vmem:[%s7 + $0x18] sm:$0xf]
        %v11022 = vld [vmem:[%s7 + $0x1c] sm:$0xf]
        %v11023 = vld [vmem:[%s7 + $0x20] sm:$0xf]
        %v11024 = vld [vmem:[%s7 + $0x24] sm:$0xf]
        %v11025 = vld [vmem:[%s7 + $0x28] sm:$0xf]
        %v11026 = vld [vmem:[%s7 + $0x2c] sm:$0xf]
        %v11027 = vld [vmem:[%s7 + $0x30] sm:$0xf]
        %v11028 = vld [vmem:[%s7 + $0x34] sm:$0xf]
        %v11029 = vld [vmem:[%s7 + $0x38] sm:$0xf]
        %v11030 = vld [vmem:[%s7 + $0x3c] sm:$0xf]
        %v11031 = vld [vmem:[%s7 + $0x40] sm:$0xf]
        %v11032 = vld [vmem:[%s7 + $0x44] sm:$0xf]
        %v11033 = vld [vmem:[%s7 + $0x48] sm:$0xf]
        %v11034 = vld [vmem:[%s7 + $0x4c] sm:$0xf]
        %v11035 = vld [vmem:[%s7 + $0x50] sm:$0xf]
        %v11036 = vld [vmem:[%s7 + $0x54] sm:$0xf]
        %v11037 = vld [vmem:[%s7 + $0x58] sm:$0xf]
        %v11038 = vld [vmem:[%s7 + $0x5c] sm:$0xf]
        %v11039 = vld [vmem:[%s7 + $0x60] sm:$0xf]
        %v11040 = vld [vmem:[%s7 + $0x64] sm:$0xf]
        %v11041 = vld [vmem:[%s7 + $0x68] sm:$0xf]
        %v11042 = vld [vmem:[%s7 + $0x6c] sm:$0xf]
        %v11043 = vld [vmem:[%s7 + $0x70] sm:$0xf]
        %v11044 = vld [vmem:[%s7 + $0x74] sm:$0xf]
        %v11045 = vld [vmem:[%s7 + $0x78] sm:$0xf]
        %v11046 = vld [vmem:[%s7 + $0x7c] sm:$0xf]
        %v11047 = vld [vmem:[%s8] sm:$0x1]
        %v11049 = vlaneseq
        %v11050 = vshrl.u32 %v11049, 7
        %v11051 = vsub.s32 0, %v11050
        %v11052 = vrot.slane %v11047, %v11051
        %v11086 = vunpack.c.l.b16 %v11015
        %v11087 = vunpack.c.l.b16 %v11016
        %v11088 = vunpack.c.l.b16 %v11017
        %v11089 = vunpack.c.l.b16 %v11018
        %v11090 = vunpack.c.l.b16 %v11019
        %v11091 = vunpack.c.l.b16 %v11020
        %v11092 = vunpack.c.l.b16 %v11021
        %v11093 = vunpack.c.l.b16 %v11022
        %v11094 = vunpack.c.l.b16 %v11023
        %v11095 = vunpack.c.l.b16 %v11024
        %v11096 = vunpack.c.l.b16 %v11025
        %v11097 = vunpack.c.l.b16 %v11026
        %v11098 = vunpack.c.l.b16 %v11027
        %v11099 = vunpack.c.l.b16 %v11028
        %v11100 = vunpack.c.l.b16 %v11029
        %v11101 = vunpack.c.l.b16 %v11030
        %v11102 = vunpack.c.l.b16 %v11031
        %v11103 = vunpack.c.l.b16 %v11032
        %v11104 = vunpack.c.l.b16 %v11033
        %v11105 = vunpack.c.l.b16 %v11034
        %v11106 = vunpack.c.l.b16 %v11035
        %v11107 = vunpack.c.l.b16 %v11036
        %v11108 = vunpack.c.l.b16 %v11037
        %v11109 = vunpack.c.l.b16 %v11038
        %v11110 = vunpack.c.l.b16 %v11039
        %v11111 = vunpack.c.l.b16 %v11040
        %v11112 = vunpack.c.l.b16 %v11041
        %v11113 = vunpack.c.l.b16 %v11042
        %v11114 = vunpack.c.l.b16 %v11043
        %v11115 = vunpack.c.l.b16 %v11044
        %v11116 = vunpack.c.l.b16 %v11045
        %v11117 = vunpack.c.l.b16 %v11046
        %v11118 = vpack.c.b16 %v11087, %v11086
        %v11119 = vpack.c.b16 %v11089, %v11088
        %v11120 = vpack.c.b16 %v11091, %v11090
        %v11121 = vpack.c.b16 %v11093, %v11092
        %v11122 = vpack.c.b16 %v11095, %v11094
        %v11123 = vpack.c.b16 %v11097, %v11096
        %v11124 = vpack.c.b16 %v11099, %v11098
        %v11125 = vpack.c.b16 %v11101, %v11100
        %v11126 = vpack.c.b16 %v11103, %v11102
        %v11127 = vpack.c.b16 %v11105, %v11104
        %v11128 = vpack.c.b16 %v11107, %v11106
        %v11129 = vpack.c.b16 %v11109, %v11108
        %v11130 = vpack.c.b16 %v11111, %v11110
        %v11131 = vpack.c.b16 %v11113, %v11112
        %v11132 = vpack.c.b16 %v11115, %v11114
        %v11133 = vpack.c.b16 %v11117, %v11116
        %11150 = vmatprep.subr.bf16.mxu0 0
        %11151 = vmatpush1.bf16.msra.mxu0 %v11118
        %11152 = vmatprep.subr.bf16.mxu0 0
        %11153 = vmatpush1.bf16.msra.mxu0 %v11119
        %11154 = vmatprep.subr.bf16.mxu0 0
        %11155 = vmatpush1.bf16.msra.mxu0 %v11120
        %11156 = vmatprep.subr.bf16.mxu0 0
        %11157 = vmatpush1.bf16.msra.mxu0 %v11121
        %11158 = vmatprep.subr.bf16.mxu0 0
        %11159 = vmatpush1.bf16.msra.mxu0 %v11122
        %11160 = vmatprep.subr.bf16.mxu0 0
        %11161 = vmatpush1.bf16.msra.mxu0 %v11123
        %11162 = vmatprep.subr.bf16.mxu0 0
        %11163 = vmatpush1.bf16.msra.mxu0 %v11124
        %11164 = vmatprep.subr.bf16.mxu0 0
        %11165 = vmatpush1.bf16.msra.mxu0 %v11125
        %11166 = vmatprep.subr.bf16.mxu0 0
        %11167 = vmatpush1.bf16.msra.mxu0 %v11126
        %11168 = vmatprep.subr.bf16.mxu0 0
        %11169 = vmatpush1.bf16.msra.mxu0 %v11127
        %11170 = vmatprep.subr.bf16.mxu0 0
        %11171 = vmatpush1.bf16.msra.mxu0 %v11128
        %11172 = vmatprep.subr.bf16.mxu0 0
        %11173 = vmatpush1.bf16.msra.mxu0 %v11129
        %11174 = vmatprep.subr.bf16.mxu0 0
        %11175 = vmatpush1.bf16.msra.mxu0 %v11130
        %11176 = vmatprep.subr.bf16.mxu0 0
        %11177 = vmatpush1.bf16.msra.mxu0 %v11131
        %11178 = vmatprep.subr.bf16.mxu0 0
        %11179 = vmatpush1.bf16.msra.mxu0 %v11132
        %11180 = vmatprep.subr.bf16.mxu0 0
        %11181 = vmatpush1.bf16.msra.mxu0 %v11133
        %11182 = vmatprep.mubr.bf16.mxu0 %v10792
        %11183 = vmatmul.mubr.bf16.gmra.mrb[0].mxu0 %v10791
        %v11184 = vpop.f32.mrb[0].mxu0
        %v11185 = vadd.f32 %v11052, %v11184
        %v11186 = vpop.f32.mrb[0].mxu0
        %v11187 = vpop.f32.mrb[0].mxu0
        %v11188 = vadd.f32 %v11052, %v11187
        %v11189 = vpop.f32.mrb[0].mxu0
        %11190 = vmatprep.mubr.bf16.mxu0 %v10794
        %11191 = vmatmul.mubr.bf16.gmra.mrb[0].mxu0 %v10793
        %v11192 = vpop.f32.mrb[0].mxu0
        %v11193 = vadd.f32 %v11052, %v11192
        %v11194 = vpop.f32.mrb[0].mxu0
        %v11195 = vpop.f32.mrb[0].mxu0
        %v11196 = vadd.f32 %v11052, %v11195
        %v11197 = vpop.f32.mrb[0].mxu0
        %11198 = vmatprep.mubr.bf16.mxu0 %v10796
        %11199 = vmatmul.mubr.bf16.gmra.mrb[0].mxu0 %v10795
        %v11200 = vpop.f32.mrb[0].mxu0
        %v11201 = vadd.f32 %v11052, %v11200
        %v11202 = vpop.f32.mrb[0].mxu0
        %v11203 = vpop.f32.mrb[0].mxu0
        %v11204 = vadd.f32 %v11052, %v11203
        %v11205 = vpop.f32.mrb[0].mxu0
        %11206 = vmatprep.mubr.bf16.mxu0 %v10798
        %11207 = vmatmul.mubr.bf16.gmra.mrb[0].mxu0 %v10797
        %v11208 = vpop.f32.mrb[0].mxu0
        %v11209 = vadd.f32 %v11052, %v11208
        %v11210 = vpop.f32.mrb[0].mxu0
        %v11211 = vpop.f32.mrb[0].mxu0
        %v11212 = vadd.f32 %v11052, %v11211
        %v11213 = vpop.f32.mrb[0].mxu0
        %11214 = vmatprep.mubr.bf16.mxu0 %v10800
        %11215 = vmatmul.mubr.bf16.gmra.mrb[0].mxu0 %v10799
        %v11216 = vpop.f32.mrb[0].mxu0
        %v11217 = vadd.f32 %v11052, %v11216
        %v11218 = vpop.f32.mrb[0].mxu0
        %v11219 = vpop.f32.mrb[0].mxu0
        %v11220 = vadd.f32 %v11052, %v11219
        %v11221 = vpop.f32.mrb[0].mxu0
        %11222 = vmatprep.mubr.bf16.mxu0 %v10802
        %11223 = vmatmul.mubr.bf16.gmra.mrb[0].mxu0 %v10801
        %v11224 = vpop.f32.mrb[0].mxu0
        %v11225 = vadd.f32 %v11052, %v11224
        %v11226 = vpop.f32.mrb[0].mxu0
        %v11227 = vpop.f32.mrb[0].mxu0
        %v11228 = vadd.f32 %v11052, %v11227
        %v11229 = vpop.f32.mrb[0].mxu0
        %11230 = vmatprep.mubr.bf16.mxu0 %v10804
        %11231 = vmatmul.mubr.bf16.gmra.mrb[0].mxu0 %v10803
        %v11232 = vpop.f32.mrb[0].mxu0
        %v11233 = vadd.f32 %v11052, %v11232
        %v11234 = vpop.f32.mrb[0].mxu0
        %v11235 = vpop.f32.mrb[0].mxu0
        %v11236 = vadd.f32 %v11052, %v11235
        %v11237 = vpop.f32.mrb[0].mxu0
        %11238 = vmatprep.mubr.bf16.mxu0 %v10806
        %11239 = vmatmul.mubr.bf16.gmra.mrb[0].mxu0 %v10805
        %v11240 = vpop.f32.mrb[0].mxu0
        %v11241 = vadd.f32 %v11052, %v11240
        %v11242 = vpop.f32.mrb[0].mxu0
        %v11243 = vpop.f32.mrb[0].mxu0
        %v11244 = vadd.f32 %v11052, %v11243
        %v11245 = vpop.f32.mrb[0].mxu0
        %11246 = vmatprep.mubr.bf16.mxu0 %v10808
        %11247 = vmatmul.mubr.bf16.gmra.mrb[0].mxu0 %v10807
        %v11248 = vpop.f32.mrb[0].mxu0
        %v11249 = vadd.f32 %v11052, %v11248
        %v11250 = vpop.f32.mrb[0].mxu0
        %v11251 = vpop.f32.mrb[0].mxu0
        %v11252 = vadd.f32 %v11052, %v11251
        %v11253 = vpop.f32.mrb[0].mxu0
        %11254 = vmatprep.mubr.bf16.mxu0 %v10810
        %11255 = vmatmul.mubr.bf16.gmra.mrb[0].mxu0 %v10809
        %v11256 = vpop.f32.mrb[0].mxu0
        %v11257 = vadd.f32 %v11052, %v11256
        %v11258 = vpop.f32.mrb[0].mxu0
        %v11259 = vpop.f32.mrb[0].mxu0
        %v11260 = vadd.f32 %v11052, %v11259
        %v11261 = vpop.f32.mrb[0].mxu0
        %11262 = vmatprep.mubr.bf16.mxu0 %v10812
        %11263 = vmatmul.mubr.bf16.gmra.mrb[0].mxu0 %v10811
        %v11264 = vpop.f32.mrb[0].mxu0
        %v11265 = vadd.f32 %v11052, %v11264
        %v11266 = vpop.f32.mrb[0].mxu0
        %v11267 = vpop.f32.mrb[0].mxu0
        %v11268 = vadd.f32 %v11052, %v11267
        %v11269 = vpop.f32.mrb[0].mxu0
        %11270 = vmatprep.mubr.bf16.mxu0 %v10814
        %11271 = vmatmul.mubr.bf16.gmra.mrb[0].mxu0 %v10813
        %v11272 = vpop.f32.mrb[0].mxu0
        %v11273 = vadd.f32 %v11052, %v11272
        %v11274 = vpop.f32.mrb[0].mxu0
        %v11275 = vpop.f32.mrb[0].mxu0
        %v11276 = vadd.f32 %v11052, %v11275
        %v11277 = vpop.f32.mrb[0].mxu0
        %11278 = vmatprep.mubr.bf16.mxu0 %v10816
        %11279 = vmatmul.mubr.bf16.gmra.mrb[0].mxu0 %v10815
        %v11280 = vpop.f32.mrb[0].mxu0
        %v11281 = vadd.f32 %v11052, %v11280
        %v11282 = vpop.f32.mrb[0].mxu0
        %v11283 = vpop.f32.mrb[0].mxu0
        %v11284 = vadd.f32 %v11052, %v11283
        %v11285 = vpop.f32.mrb[0].mxu0
        %11286 = vmatprep.mubr.bf16.mxu0 %v10818
        %11287 = vmatmul.mubr.bf16.gmra.mrb[0].mxu0 %v10817
        %v11288 = vpop.f32.mrb[0].mxu0
        %v11289 = vadd.f32 %v11052, %v11288
        %v11290 = vpop.f32.mrb[0].mxu0
        %v11291 = vpop.f32.mrb[0].mxu0
        %v11292 = vadd.f32 %v11052, %v11291
        %v11293 = vpop.f32.mrb[0].mxu0
        %11294 = vmatprep.mubr.bf16.mxu0 %v10820
        %11295 = vmatmul.mubr.bf16.gmra.mrb[0].mxu0 %v10819
        %v11296 = vpop.f32.mrb[0].mxu0
        %v11297 = vadd.f32 %v11052, %v11296
        %v11298 = vpop.f32.mrb[0].mxu0
        %v11299 = vpop.f32.mrb[0].mxu0
        %v11300 = vadd.f32 %v11052, %v11299
        %v11301 = vpop.f32.mrb[0].mxu0
        %11302 = vmatprep.mubr.bf16.mxu0 %v10822
        %11303 = vmatmul.mubr.bf16.gmra.mrb[0].mxu0 %v10821
        %v11304 = vpop.f32.mrb[0].mxu0
        %v11305 = vadd.f32 %v11052, %v11304
        %v11306 = vpop.f32.mrb[0].mxu0
        %v11307 = vpop.f32.mrb[0].mxu0
        %v11308 = vadd.f32 %v11052, %v11307
        %v11309 = vpop.f32.mrb[0].mxu0
        %11310 = vdwg.mxu0
        %v11311 = vmax.f32 %v11185, 0.0
        %v11312 = vmax.f32 %v11188, 0.0
        %v11313 = vmax.f32 %v11193, 0.0
        %v11314 = vmax.f32 %v11196, 0.0
        %v11315 = vmax.f32 %v11201, 0.0
        %v11316 = vmax.f32 %v11204, 0.0
        %v11317 = vmax.f32 %v11209, 0.0
        %v11318 = vmax.f32 %v11212, 0.0
        %v11319 = vmax.f32 %v11217, 0.0
        %v11320 = vmax.f32 %v11220, 0.0
        %v11321 = vmax.f32 %v11225, 0.0
        %v11322 = vmax.f32 %v11228, 0.0
        %v11323 = vmax.f32 %v11233, 0.0
        %v11324 = vmax.f32 %v11236, 0.0
        %v11325 = vmax.f32 %v11241, 0.0
        %v11326 = vmax.f32 %v11244, 0.0
        %v11327 = vmax.f32 %v11249, 0.0
        %v11328 = vmax.f32 %v11252, 0.0
        %v11329 = vmax.f32 %v11257, 0.0
        %v11330 = vmax.f32 %v11260, 0.0
        %v11331 = vmax.f32 %v11265, 0.0
        %v11332 = vmax.f32 %v11268, 0.0
        %v11333 = vmax.f32 %v11273, 0.0
        %v11334 = vmax.f32 %v11276, 0.0
        %v11335 = vmax.f32 %v11281, 0.0
        %v11336 = vmax.f32 %v11284, 0.0
        %v11337 = vmax.f32 %v11289, 0.0
        %v11338 = vmax.f32 %v11292, 0.0
        %v11339 = vmax.f32 %v11297, 0.0
        %v11340 = vmax.f32 %v11300, 0.0
        %v11341 = vmax.f32 %v11305, 0.0
        %v11342 = vmax.f32 %v11308, 0.0
        %v11343 = vpack.c.bf16 %v11312, %v11311
        %v11344 = vpack.c.bf16 %v11314, %v11313
        %v11345 = vpack.c.bf16 %v11316, %v11315
        %v11346 = vpack.c.bf16 %v11318, %v11317
        %v11347 = vpack.c.bf16 %v11320, %v11319
        %v11348 = vpack.c.bf16 %v11322, %v11321
        %v11349 = vpack.c.bf16 %v11324, %v11323
        %v11350 = vpack.c.bf16 %v11326, %v11325
        %v11351 = vpack.c.bf16 %v11328, %v11327
        %v11352 = vpack.c.bf16 %v11330, %v11329
        %v11353 = vpack.c.bf16 %v11332, %v11331
        %v11354 = vpack.c.bf16 %v11334, %v11333
        %v11355 = vpack.c.bf16 %v11336, %v11335
        %v11356 = vpack.c.bf16 %v11338, %v11337
        %v11357 = vpack.c.bf16 %v11340, %v11339
        %v11358 = vpack.c.bf16 %v11342, %v11341
        %v11375 = vunpack.c.l.b16 %v11343
        %v11376 = vunpack.c.h.b16 %v11343
        %v11377 = vunpack.c.l.b16 %v11344
        %v11378 = vunpack.c.h.b16 %v11344
        %v11379 = vunpack.c.l.b16 %v11345
        %v11380 = vunpack.c.h.b16 %v11345
        %v11381 = vunpack.c.l.b16 %v11346
        %v11382 = vunpack.c.h.b16 %v11346
        %v11383 = vunpack.c.l.b16 %v11347
        %v11384 = vunpack.c.h.b16 %v11347
        %v11385 = vunpack.c.l.b16 %v11348
        %v11386 = vunpack.c.h.b16 %v11348
        %v11387 = vunpack.c.l.b16 %v11349
        %v11388 = vunpack.c.h.b16 %v11349
        %v11389 = vunpack.c.l.b16 %v11350
        %v11390 = vunpack.c.h.b16 %v11350
        %v11391 = vunpack.c.l.b16 %v11351
        %v11392 = vunpack.c.h.b16 %v11351
        %v11393 = vunpack.c.l.b16 %v11352
        %v11394 = vunpack.c.h.b16 %v11352
        %v11395 = vunpack.c.l.b16 %v11353
        %v11396 = vunpack.c.h.b16 %v11353
        %v11397 = vunpack.c.l.b16 %v11354
        %v11398 = vunpack.c.h.b16 %v11354
        %v11399 = vunpack.c.l.b16 %v11355
        %v11400 = vunpack.c.h.b16 %v11355
        %v11401 = vunpack.c.l.b16 %v11356
        %v11402 = vunpack.c.h.b16 %v11356
        %v11403 = vunpack.c.l.b16 %v11357
        %v11404 = vunpack.c.h.b16 %v11357
        %v11405 = vunpack.c.l.b16 %v11358
        %v11406 = vunpack.c.h.b16 %v11358
        %v11407 = vpack.c.b16 %v11375, %v11375
        %v11408 = vpack.c.b16 %v11376, %v11376
        %v11409 = vpack.c.b16 %v11377, %v11377
        %v11410 = vpack.c.b16 %v11378, %v11378
        %v11411 = vpack.c.b16 %v11379, %v11379
        %v11412 = vpack.c.b16 %v11380, %v11380
        %v11413 = vpack.c.b16 %v11381, %v11381
        %v11414 = vpack.c.b16 %v11382, %v11382
        %v11415 = vpack.c.b16 %v11383, %v11383
        %v11416 = vpack.c.b16 %v11384, %v11384
        %v11417 = vpack.c.b16 %v11385, %v11385
        %v11418 = vpack.c.b16 %v11386, %v11386
        %v11419 = vpack.c.b16 %v11387, %v11387
        %v11420 = vpack.c.b16 %v11388, %v11388
        %v11421 = vpack.c.b16 %v11389, %v11389
        %v11422 = vpack.c.b16 %v11390, %v11390
        %v11423 = vpack.c.b16 %v11391, %v11391
        %v11424 = vpack.c.b16 %v11392, %v11392
        %v11425 = vpack.c.b16 %v11393, %v11393
        %v11426 = vpack.c.b16 %v11394, %v11394
        %v11427 = vpack.c.b16 %v11395, %v11395
        %v11428 = vpack.c.b16 %v11396, %v11396
        %v11429 = vpack.c.b16 %v11397, %v11397
        %v11430 = vpack.c.b16 %v11398, %v11398
        %v11431 = vpack.c.b16 %v11399, %v11399
        %v11432 = vpack.c.b16 %v11400, %v11400
        %v11433 = vpack.c.b16 %v11401, %v11401
        %v11434 = vpack.c.b16 %v11402, %v11402
        %v11435 = vpack.c.b16 %v11403, %v11403
        %v11436 = vpack.c.b16 %v11404, %v11404
        %v11437 = vpack.c.b16 %v11405, %v11405
        %v11438 = vpack.c.b16 %v11406, %v11406
        %11439 = vrot.lane.b32.xlu0 %v11407, 64
        %v11440 = vpop.permute.xlu0 %11439
        %11441 = vrot.lane.b32.xlu0 %v11408, 64
        %v11442 = vpop.permute.xlu0 %11441
        %11443 = vrot.lane.b32.xlu0 %v11409, 64
        %v11444 = vpop.permute.xlu0 %11443
        %11445 = vrot.lane.b32.xlu0 %v11410, 64
        %v11446 = vpop.permute.xlu0 %11445
        %11447 = vrot.lane.b32.xlu0 %v11411, 64
        %v11448 = vpop.permute.xlu0 %11447
        %11449 = vrot.lane.b32.xlu0 %v11412, 64
        %v11450 = vpop.permute.xlu0 %11449
        %11451 = vrot.lane.b32.xlu0 %v11413, 64
        %v11452 = vpop.permute.xlu0 %11451
        %11453 = vrot.lane.b32.xlu0 %v11414, 64
        %v11454 = vpop.permute.xlu0 %11453
        %11455 = vrot.lane.b32.xlu0 %v11415, 64
        %v11456 = vpop.permute.xlu0 %11455
        %11457 = vrot.lane.b32.xlu0 %v11416, 64
        %v11458 = vpop.permute.xlu0 %11457
        %11459 = vrot.lane.b32.xlu0 %v11417, 64
        %v11460 = vpop.permute.xlu0 %11459
        %11461 = vrot.lane.b32.xlu0 %v11418, 64
        %v11462 = vpop.permute.xlu0 %11461
        %11463 = vrot.lane.b32.xlu0 %v11419, 64
        %v11464 = vpop.permute.xlu0 %11463
        %11465 = vrot.lane.b32.xlu0 %v11420, 64
        %v11466 = vpop.permute.xlu0 %11465
        %11467 = vrot.lane.b32.xlu0 %v11421, 64
        %v11468 = vpop.permute.xlu0 %11467
        %11469 = vrot.lane.b32.xlu0 %v11422, 64
        %v11470 = vpop.permute.xlu0 %11469
        %11471 = vrot.lane.b32.xlu0 %v11423, 64
        %v11472 = vpop.permute.xlu0 %11471
        %11473 = vrot.lane.b32.xlu0 %v11424, 64
        %v11474 = vpop.permute.xlu0 %11473
        %11475 = vrot.lane.b32.xlu0 %v11425, 64
        %v11476 = vpop.permute.xlu0 %11475
        %11477 = vrot.lane.b32.xlu0 %v11426, 64
        %v11478 = vpop.permute.xlu0 %11477
        %11479 = vrot.lane.b32.xlu0 %v11427, 64
        %v11480 = vpop.permute.xlu0 %11479
        %11481 = vrot.lane.b32.xlu0 %v11428, 64
        %v11482 = vpop.permute.xlu0 %11481
        %11483 = vrot.lane.b32.xlu0 %v11429, 64
        %v11484 = vpop.permute.xlu0 %11483
        %11485 = vrot.lane.b32.xlu0 %v11430, 64
        %v11486 = vpop.permute.xlu0 %11485
        %11487 = vrot.lane.b32.xlu0 %v11431, 64
        %v11488 = vpop.permute.xlu0 %11487
        %11489 = vrot.lane.b32.xlu0 %v11432, 64
        %v11490 = vpop.permute.xlu0 %11489
        %11491 = vrot.lane.b32.xlu0 %v11433, 64
        %v11492 = vpop.permute.xlu0 %11491
        %11493 = vrot.lane.b32.xlu0 %v11434, 64
        %v11494 = vpop.permute.xlu0 %11493
        %11495 = vrot.lane.b32.xlu0 %v11435, 64
        %v11496 = vpop.permute.xlu0 %11495
        %11497 = vrot.lane.b32.xlu0 %v11436, 64
        %v11498 = vpop.permute.xlu0 %11497
        %11499 = vrot.lane.b32.xlu0 %v11437, 64
        %v11500 = vpop.permute.xlu0 %11499
        %11501 = vrot.lane.b32.xlu0 %v11438, 64
        %v11502 = vpop.permute.xlu0 %11501
        %11535 = vst.msk [vmem:[%s465 + $0x180] sm:$0xf] %vm2908, %v11440
        %11536 = vst.msk [vmem:[%s465 + $0x184] sm:$0xf] %vm2908, %v11442
        %11537 = vst.msk [vmem:[%s465 + $0x188] sm:$0xf] %vm2908, %v11444
        %11538 = vst.msk [vmem:[%s465 + $0x18c] sm:$0xf] %vm2908, %v11446
        %11539 = vst.msk [vmem:[%s465 + $0x190] sm:$0xf] %vm2908, %v11448
        %11540 = vst.msk [vmem:[%s465 + $0x194] sm:$0xf] %vm2908, %v11450
        %11541 = vst.msk [vmem:[%s465 + $0x198] sm:$0xf] %vm2908, %v11452
        %11542 = vst.msk [vmem:[%s465 + $0x19c] sm:$0xf] %vm2908, %v11454
        %11543 = vst.msk [vmem:[%s465 + $0x1a0] sm:$0xf] %vm2908, %v11456
        %11544 = vst.msk [vmem:[%s465 + $0x1a4] sm:$0xf] %vm2908, %v11458
        %11545 = vst.msk [vmem:[%s465 + $0x1a8] sm:$0xf] %vm2908, %v11460
        %11546 = vst.msk [vmem:[%s465 + $0x1ac] sm:$0xf] %vm2908, %v11462
        %11547 = vst.msk [vmem:[%s465 + $0x1b0] sm:$0xf] %vm2908, %v11464
        %11548 = vst.msk [vmem:[%s465 + $0x1b4] sm:$0xf] %vm2908, %v11466
        %11549 = vst.msk [vmem:[%s465 + $0x1b8] sm:$0xf] %vm2908, %v11468
        %11550 = vst.msk [vmem:[%s465 + $0x1bc] sm:$0xf] %vm2908, %v11470
        %11551 = vst.msk [vmem:[%s465 + $0x1c0] sm:$0xf] %vm2908, %v11472
        %11552 = vst.msk [vmem:[%s465 + $0x1c4] sm:$0xf] %vm2908, %v11474
        %11553 = vst.msk [vmem:[%s465 + $0x1c8] sm:$0xf] %vm2908, %v11476
        %11554 = vst.msk [vmem:[%s465 + $0x1cc] sm:$0xf] %vm2908, %v11478
        %11555 = vst.msk [vmem:[%s465 + $0x1d0] sm:$0xf] %vm2908, %v11480
        %11556 = vst.msk [vmem:[%s465 + $0x1d4] sm:$0xf] %vm2908, %v11482
        %11557 = vst.msk [vmem:[%s465 + $0x1d8] sm:$0xf] %vm2908, %v11484
        %11558 = vst.msk [vmem:[%s465 + $0x1dc] sm:$0xf] %vm2908, %v11486
        %11559 = vst.msk [vmem:[%s465 + $0x1e0] sm:$0xf] %vm2908, %v11488
        %11560 = vst.msk [vmem:[%s465 + $0x1e4] sm:$0xf] %vm2908, %v11490
        %11561 = vst.msk [vmem:[%s465 + $0x1e8] sm:$0xf] %vm2908, %v11492
        %11562 = vst.msk [vmem:[%s465 + $0x1ec] sm:$0xf] %vm2908, %v11494
        %11563 = vst.msk [vmem:[%s465 + $0x1f0] sm:$0xf] %vm2908, %v11496
        %11564 = vst.msk [vmem:[%s465 + $0x1f4] sm:$0xf] %vm2908, %v11498
        %11565 = vst.msk [vmem:[%s465 + $0x1f8] sm:$0xf] %vm2908, %v11500
        %11566 = vst.msk [vmem:[%s465 + $0x1fc] sm:$0xf] %vm2908, %v11502
        %v11567 = vld [vmem:[%s9] sm:$0xf]
        %v11568 = vld [vmem:[%s9 + $0x4] sm:$0xf]
        %v11569 = vld [vmem:[%s9 + $0x8] sm:$0xf]
        %v11570 = vld [vmem:[%s9 + $0xc] sm:$0xf]
        %v11571 = vld [vmem:[%s9 + $0x10] sm:$0xf]
        %v11572 = vld [vmem:[%s9 + $0x14] sm:$0xf]
        %v11573 = vld [vmem:[%s9 + $0x18] sm:$0xf]
        %v11574 = vld [vmem:[%s9 + $0x1c] sm:$0xf]
        %v11575 = vld [vmem:[%s10] sm:$0x1]
        %v11577 = vlaneseq
        %v11578 = vshrl.u32 %v11577, 7
        %v11579 = vsub.s32 0, %v11578
        %v11580 = vrot.slane %v11575, %v11579
        %v11590 = vunpack.c.l.b16 %v11567
        %v11591 = vunpack.c.l.b16 %v11568
        %v11592 = vunpack.c.l.b16 %v11569
        %v11593 = vunpack.c.l.b16 %v11570
        %v11594 = vunpack.c.l.b16 %v11571
        %v11595 = vunpack.c.l.b16 %v11572
        %v11596 = vunpack.c.l.b16 %v11573
        %v11597 = vunpack.c.l.b16 %v11574
        %v11598 = vpack.c.b16 %v11591, %v11590
        %v11599 = vpack.c.b16 %v11593, %v11592
        %v11600 = vpack.c.b16 %v11595, %v11594
        %v11601 = vpack.c.b16 %v11597, %v11596
        %v11607 = vsel %vm1397, %v11343, 0
        %v11610 = vsel %vm1397, %v11344, 0
        %v11613 = vsel %vm1397, %v11345, 0
        %v11616 = vsel %vm1397, %v11346, 0
        %v11619 = vsel %vm1397, %v11347, 0
        %v11622 = vsel %vm1397, %v11348, 0
        %v11625 = vsel %vm1397, %v11349, 0
        %v11628 = vsel %vm1397, %v11350, 0
        %v11631 = vsel %vm1397, %v11351, 0
        %v11634 = vsel %vm1397, %v11352, 0
        %v11637 = vsel %vm1397, %v11353, 0
        %v11640 = vsel %vm1397, %v11354, 0
        %v11643 = vsel %vm1397, %v11355, 0
        %v11646 = vsel %vm1397, %v11356, 0
        %v11649 = vsel %vm1397, %v11357, 0
        %v11652 = vsel %vm1397, %v11358, 0
        %11654 = vmatprep.subr.bf16.mxu0 0
        %11655 = vmatpush1.bf16.msra.mxu0 %v11598
        %11656 = vmatprep.subr.bf16.mxu0 0
        %11657 = vmatpush1.bf16.msra.mxu0 %v11599
        %11658 = vmatprep.subr.bf16.mxu0 0
        %11659 = vmatpush1.bf16.msra.mxu0 %v11600
        %11660 = vmatprep.subr.bf16.mxu0 0
        %11661 = vmatpush1.bf16.msra.mxu0 %v11601
        %11662 = vmatprep.subr.bf16.mxu0 0
        %11663 = vmatpush1.bf16.msra.mxu0 0
        %11664 = vmatprep.subr.bf16.mxu0 0
        %11665 = vmatpush1.bf16.msra.mxu0 0
        %11666 = vmatprep.subr.bf16.mxu0 0
        %11667 = vmatpush1.bf16.msra.mxu0 0
        %11668 = vmatprep.subr.bf16.mxu0 0
        %11669 = vmatpush1.bf16.msra.mxu0 0
        %11670 = vmatprep.subr.bf16.mxu0 0
        %11671 = vmatpush1.bf16.msra.mxu0 0
        %11672 = vmatprep.subr.bf16.mxu0 0
        %11673 = vmatpush1.bf16.msra.mxu0 0
        %11674 = vmatprep.subr.bf16.mxu0 0
        %11675 = vmatpush1.bf16.msra.mxu0 0
        %11676 = vmatprep.subr.bf16.mxu0 0
        %11677 = vmatpush1.bf16.msra.mxu0 0
        %11678 = vmatprep.subr.bf16.mxu0 0
        %11679 = vmatpush1.bf16.msra.mxu0 0
        %11680 = vmatprep.subr.bf16.mxu0 0
        %11681 = vmatpush1.bf16.msra.mxu0 0
        %11682 = vmatprep.subr.bf16.mxu0 0
        %11683 = vmatpush1.bf16.msra.mxu0 0
        %11684 = vmatprep.subr.bf16.mxu0 0
        %11685 = vmatpush1.bf16.msra.mxu0 0
        %11686 = vmatprep.mubr.bf16.mxu0 0
        %11687 = vmatmul.mubr.bf16.gmra.mrb[0].mxu0 %v11607
        %v11688 = vpop.f32.mrb[0].mxu0
        %v11689 = vadd.f32 %v11580, %v11688
        %v11690 = vpop.f32.mrb[0].mxu0
        %v11691 = vpop.f32.mrb[0].mxu0
        %v11692 = vadd.f32 %v11580, %v11691
        %v11693 = vpop.f32.mrb[0].mxu0
        %11694 = vmatprep.mubr.bf16.mxu0 0
        %11695 = vmatmul.mubr.bf16.gmra.mrb[0].mxu0 %v11610
        %v11696 = vpop.f32.mrb[0].mxu0
        %v11697 = vadd.f32 %v11580, %v11696
        %v11698 = vpop.f32.mrb[0].mxu0
        %v11699 = vpop.f32.mrb[0].mxu0
        %v11700 = vadd.f32 %v11580, %v11699
        %v11701 = vpop.f32.mrb[0].mxu0
        %11702 = vmatprep.mubr.bf16.mxu0 0
        %11703 = vmatmul.mubr.bf16.gmra.mrb[0].mxu0 %v11613
        %v11704 = vpop.f32.mrb[0].mxu0
        %v11705 = vadd.f32 %v11580, %v11704
        %v11706 = vpop.f32.mrb[0].mxu0
        %v11707 = vpop.f32.mrb[0].mxu0
        %v11708 = vadd.f32 %v11580, %v11707
        %v11709 = vpop.f32.mrb[0].mxu0
        %11710 = vmatprep.mubr.bf16.mxu0 0
        %11711 = vmatmul.mubr.bf16.gmra.mrb[0].mxu0 %v11616
        %v11712 = vpop.f32.mrb[0].mxu0
        %v11713 = vadd.f32 %v11580, %v11712
        %v11714 = vpop.f32.mrb[0].mxu0
        %v11715 = vpop.f32.mrb[0].mxu0
        %v11716 = vadd.f32 %v11580, %v11715
        %v11717 = vpop.f32.mrb[0].mxu0
        %11718 = vmatprep.mubr.bf16.mxu0 0
        %11719 = vmatmul.mubr.bf16.gmra.mrb[0].mxu0 %v11619
        %v11720 = vpop.f32.mrb[0].mxu0
        %v11721 = vadd.f32 %v11580, %v11720
        %v11722 = vpop.f32.mrb[0].mxu0
        %v11723 = vpop.f32.mrb[0].mxu0
        %v11724 = vadd.f32 %v11580, %v11723
        %v11725 = vpop.f32.mrb[0].mxu0
        %11726 = vmatprep.mubr.bf16.mxu0 0
        %11727 = vmatmul.mubr.bf16.gmra.mrb[0].mxu0 %v11622
        %v11728 = vpop.f32.mrb[0].mxu0
        %v11729 = vadd.f32 %v11580, %v11728
        %v11730 = vpop.f32.mrb[0].mxu0
        %v11731 = vpop.f32.mrb[0].mxu0
        %v11732 = vadd.f32 %v11580, %v11731
        %v11733 = vpop.f32.mrb[0].mxu0
        %11734 = vmatprep.mubr.bf16.mxu0 0
        %11735 = vmatmul.mubr.bf16.gmra.mrb[0].mxu0 %v11625
        %v11736 = vpop.f32.mrb[0].mxu0
        %v11737 = vadd.f32 %v11580, %v11736
        %v11738 = vpop.f32.mrb[0].mxu0
        %v11739 = vpop.f32.mrb[0].mxu0
        %v11740 = vadd.f32 %v11580, %v11739
        %v11741 = vpop.f32.mrb[0].mxu0
        %11742 = vmatprep.mubr.bf16.mxu0 0
        %11743 = vmatmul.mubr.bf16.gmra.mrb[0].mxu0 %v11628
        %v11744 = vpop.f32.mrb[0].mxu0
        %v11745 = vadd.f32 %v11580, %v11744
        %v11746 = vpop.f32.mrb[0].mxu0
        %v11747 = vpop.f32.mrb[0].mxu0
        %v11748 = vadd.f32 %v11580, %v11747
        %v11749 = vpop.f32.mrb[0].mxu0
        %11750 = vmatprep.mubr.bf16.mxu0 0
        %11751 = vmatmul.mubr.bf16.gmra.mrb[0].mxu0 %v11631
        %v11752 = vpop.f32.mrb[0].mxu0
        %v11753 = vadd.f32 %v11580, %v11752
        %v11754 = vpop.f32.mrb[0].mxu0
        %v11755 = vpop.f32.mrb[0].mxu0
        %v11756 = vadd.f32 %v11580, %v11755
        %v11757 = vpop.f32.mrb[0].mxu0
        %11758 = vmatprep.mubr.bf16.mxu0 0
        %11759 = vmatmul.mubr.bf16.gmra.mrb[0].mxu0 %v11634
        %v11760 = vpop.f32.mrb[0].mxu0
        %v11761 = vadd.f32 %v11580, %v11760
        %v11762 = vpop.f32.mrb[0].mxu0
        %v11763 = vpop.f32.mrb[0].mxu0
        %v11764 = vadd.f32 %v11580, %v11763
        %v11765 = vpop.f32.mrb[0].mxu0
        %11766 = vmatprep.mubr.bf16.mxu0 0
        %11767 = vmatmul.mubr.bf16.gmra.mrb[0].mxu0 %v11637
        %v11768 = vpop.f32.mrb[0].mxu0
        %v11769 = vadd.f32 %v11580, %v11768
        %v11770 = vpop.f32.mrb[0].mxu0
        %v11771 = vpop.f32.mrb[0].mxu0
        %v11772 = vadd.f32 %v11580, %v11771
        %v11773 = vpop.f32.mrb[0].mxu0
        %11774 = vmatprep.mubr.bf16.mxu0 0
        %11775 = vmatmul.mubr.bf16.gmra.mrb[0].mxu0 %v11640
        %v11776 = vpop.f32.mrb[0].mxu0
        %v11777 = vadd.f32 %v11580, %v11776
        %v11778 = vpop.f32.mrb[0].mxu0
        %v11779 = vpop.f32.mrb[0].mxu0
        %v11780 = vadd.f32 %v11580, %v11779
        %v11781 = vpop.f32.mrb[0].mxu0
        %11782 = vmatprep.mubr.bf16.mxu0 0
        %11783 = vmatmul.mubr.bf16.gmra.mrb[0].mxu0 %v11643
        %v11784 = vpop.f32.mrb[0].mxu0
        %v11785 = vadd.f32 %v11580, %v11784
        %v11786 = vpop.f32.mrb[0].mxu0
        %v11787 = vpop.f32.mrb[0].mxu0
        %v11788 = vadd.f32 %v11580, %v11787
        %v11789 = vpop.f32.mrb[0].mxu0
        %11790 = vmatprep.mubr.bf16.mxu0 0
        %11791 = vmatmul.mubr.bf16.gmra.mrb[0].mxu0 %v11646
        %v11792 = vpop.f32.mrb[0].mxu0
        %v11793 = vadd.f32 %v11580, %v11792
        %v11794 = vpop.f32.mrb[0].mxu0
        %v11795 = vpop.f32.mrb[0].mxu0
        %v11796 = vadd.f32 %v11580, %v11795
        %v11797 = vpop.f32.mrb[0].mxu0
        %11798 = vmatprep.mubr.bf16.mxu0 0
        %11799 = vmatmul.mubr.bf16.gmra.mrb[0].mxu0 %v11649
        %v11800 = vpop.f32.mrb[0].mxu0
        %v11801 = vadd.f32 %v11580, %v11800
        %v11802 = vpop.f32.mrb[0].mxu0
        %v11803 = vpop.f32.mrb[0].mxu0
        %v11804 = vadd.f32 %v11580, %v11803
        %v11805 = vpop.f32.mrb[0].mxu0
        %11806 = vmatprep.mubr.bf16.mxu0 0
        %11807 = vmatmul.mubr.bf16.gmra.mrb[0].mxu0 %v11652
        %v11808 = vpop.f32.mrb[0].mxu0
        %v11809 = vadd.f32 %v11580, %v11808
        %v11810 = vpop.f32.mrb[0].mxu0
        %v11811 = vpop.f32.mrb[0].mxu0
        %v11812 = vadd.f32 %v11580, %v11811
        %v11813 = vpop.f32.mrb[0].mxu0
        %11814 = vdwg.mxu0
        %v11815 = vmax.f32 %v11689, 0.0
        %v11816 = vmax.f32 %v11692, 0.0
        %v11817 = vmax.f32 %v11697, 0.0
        %v11818 = vmax.f32 %v11700, 0.0
        %v11819 = vmax.f32 %v11705, 0.0
        %v11820 = vmax.f32 %v11708, 0.0
        %v11821 = vmax.f32 %v11713, 0.0
        %v11822 = vmax.f32 %v11716, 0.0
        %v11823 = vmax.f32 %v11721, 0.0
        %v11824 = vmax.f32 %v11724, 0.0
        %v11825 = vmax.f32 %v11729, 0.0
        %v11826 = vmax.f32 %v11732, 0.0
        %v11827 = vmax.f32 %v11737, 0.0
        %v11828 = vmax.f32 %v11740, 0.0
        %v11829 = vmax.f32 %v11745, 0.0
        %v11830 = vmax.f32 %v11748, 0.0
        %v11831 = vmax.f32 %v11753, 0.0
        %v11832 = vmax.f32 %v11756, 0.0
        %v11833 = vmax.f32 %v11761, 0.0
        %v11834 = vmax.f32 %v11764, 0.0
        %v11835 = vmax.f32 %v11769, 0.0
        %v11836 = vmax.f32 %v11772, 0.0
        %v11837 = vmax.f32 %v11777, 0.0
        %v11838 = vmax.f32 %v11780, 0.0
        %v11839 = vmax.f32 %v11785, 0.0
        %v11840 = vmax.f32 %v11788, 0.0
        %v11841 = vmax.f32 %v11793, 0.0
        %v11842 = vmax.f32 %v11796, 0.0
        %v11843 = vmax.f32 %v11801, 0.0
        %v11844 = vmax.f32 %v11804, 0.0
        %v11845 = vmax.f32 %v11809, 0.0
        %v11846 = vmax.f32 %v11812, 0.0
        %v11847 = vpack.c.bf16 %v11816, %v11815
        %v11848 = vpack.c.bf16 %v11818, %v11817
        %v11849 = vpack.c.bf16 %v11820, %v11819
        %v11850 = vpack.c.bf16 %v11822, %v11821
        %v11851 = vpack.c.bf16 %v11824, %v11823
        %v11852 = vpack.c.bf16 %v11826, %v11825
        %v11853 = vpack.c.bf16 %v11828, %v11827
        %v11854 = vpack.c.bf16 %v11830, %v11829
        %v11855 = vpack.c.bf16 %v11832, %v11831
        %v11856 = vpack.c.bf16 %v11834, %v11833
        %v11857 = vpack.c.bf16 %v11836, %v11835
        %v11858 = vpack.c.bf16 %v11838, %v11837
        %v11859 = vpack.c.bf16 %v11840, %v11839
        %v11860 = vpack.c.bf16 %v11842, %v11841
        %v11861 = vpack.c.bf16 %v11844, %v11843
        %v11862 = vpack.c.bf16 %v11846, %v11845
        %v11879 = vunpack.c.l.b16 %v11847
        %v11880 = vunpack.c.h.b16 %v11847
        %v11881 = vunpack.c.l.b16 %v11848
        %v11882 = vunpack.c.h.b16 %v11848
        %v11883 = vunpack.c.l.b16 %v11849
        %v11884 = vunpack.c.h.b16 %v11849
        %v11885 = vunpack.c.l.b16 %v11850
        %v11886 = vunpack.c.h.b16 %v11850
        %v11887 = vunpack.c.l.b16 %v11851
        %v11888 = vunpack.c.h.b16 %v11851
        %v11889 = vunpack.c.l.b16 %v11852
        %v11890 = vunpack.c.h.b16 %v11852
        %v11891 = vunpack.c.l.b16 %v11853
        %v11892 = vunpack.c.h.b16 %v11853
        %v11893 = vunpack.c.l.b16 %v11854
        %v11894 = vunpack.c.h.b16 %v11854
        %v11895 = vunpack.c.l.b16 %v11855
        %v11896 = vunpack.c.h.b16 %v11855
        %v11897 = vunpack.c.l.b16 %v11856
        %v11898 = vunpack.c.h.b16 %v11856
        %v11899 = vunpack.c.l.b16 %v11857
        %v11900 = vunpack.c.h.b16 %v11857
        %v11901 = vunpack.c.l.b16 %v11858
        %v11902 = vunpack.c.h.b16 %v11858
        %v11903 = vunpack.c.l.b16 %v11859
        %v11904 = vunpack.c.h.b16 %v11859
        %v11905 = vunpack.c.l.b16 %v11860
        %v11906 = vunpack.c.h.b16 %v11860
        %v11907 = vunpack.c.l.b16 %v11861
        %v11908 = vunpack.c.h.b16 %v11861
        %v11909 = vunpack.c.l.b16 %v11862
        %v11910 = vunpack.c.h.b16 %v11862
        %v11911 = vpack.c.b16 %v11879, %v11879
        %v11912 = vpack.c.b16 %v11880, %v11880
        %v11913 = vpack.c.b16 %v11881, %v11881
        %v11914 = vpack.c.b16 %v11882, %v11882
        %v11915 = vpack.c.b16 %v11883, %v11883
        %v11916 = vpack.c.b16 %v11884, %v11884
        %v11917 = vpack.c.b16 %v11885, %v11885
        %v11918 = vpack.c.b16 %v11886, %v11886
        %v11919 = vpack.c.b16 %v11887, %v11887
        %v11920 = vpack.c.b16 %v11888, %v11888
        %v11921 = vpack.c.b16 %v11889, %v11889
        %v11922 = vpack.c.b16 %v11890, %v11890
        %v11923 = vpack.c.b16 %v11891, %v11891
        %v11924 = vpack.c.b16 %v11892, %v11892
        %v11925 = vpack.c.b16 %v11893, %v11893
        %v11926 = vpack.c.b16 %v11894, %v11894
        %v11927 = vpack.c.b16 %v11895, %v11895
        %v11928 = vpack.c.b16 %v11896, %v11896
        %v11929 = vpack.c.b16 %v11897, %v11897
        %v11930 = vpack.c.b16 %v11898, %v11898
        %v11931 = vpack.c.b16 %v11899, %v11899
        %v11932 = vpack.c.b16 %v11900, %v11900
        %v11933 = vpack.c.b16 %v11901, %v11901
        %v11934 = vpack.c.b16 %v11902, %v11902
        %v11935 = vpack.c.b16 %v11903, %v11903
        %v11936 = vpack.c.b16 %v11904, %v11904
        %v11937 = vpack.c.b16 %v11905, %v11905
        %v11938 = vpack.c.b16 %v11906, %v11906
        %v11939 = vpack.c.b16 %v11907, %v11907
        %v11940 = vpack.c.b16 %v11908, %v11908
        %v11941 = vpack.c.b16 %v11909, %v11909
        %v11942 = vpack.c.b16 %v11910, %v11910
        %11975 = vst.msk [vmem:[%s500 + $0x180] sm:$0xf] %vm3349, %v11911
        %11976 = vst.msk [vmem:[%s500 + $0x184] sm:$0xf] %vm3349, %v11912
        %11977 = vst.msk [vmem:[%s500 + $0x188] sm:$0xf] %vm3349, %v11913
        %11978 = vst.msk [vmem:[%s500 + $0x18c] sm:$0xf] %vm3349, %v11914
        %11979 = vst.msk [vmem:[%s500 + $0x190] sm:$0xf] %vm3349, %v11915
        %11980 = vst.msk [vmem:[%s500 + $0x194] sm:$0xf] %vm3349, %v11916
        %11981 = vst.msk [vmem:[%s500 + $0x198] sm:$0xf] %vm3349, %v11917
        %11982 = vst.msk [vmem:[%s500 + $0x19c] sm:$0xf] %vm3349, %v11918
        %11983 = vst.msk [vmem:[%s500 + $0x1a0] sm:$0xf] %vm3349, %v11919
        %11984 = vst.msk [vmem:[%s500 + $0x1a4] sm:$0xf] %vm3349, %v11920
        %11985 = vst.msk [vmem:[%s500 + $0x1a8] sm:$0xf] %vm3349, %v11921
        %11986 = vst.msk [vmem:[%s500 + $0x1ac] sm:$0xf] %vm3349, %v11922
        %11987 = vst.msk [vmem:[%s500 + $0x1b0] sm:$0xf] %vm3349, %v11923
        %11988 = vst.msk [vmem:[%s500 + $0x1b4] sm:$0xf] %vm3349, %v11924
        %11989 = vst.msk [vmem:[%s500 + $0x1b8] sm:$0xf] %vm3349, %v11925
        %11990 = vst.msk [vmem:[%s500 + $0x1bc] sm:$0xf] %vm3349, %v11926
        %11991 = vst.msk [vmem:[%s500 + $0x1c0] sm:$0xf] %vm3349, %v11927
        %11992 = vst.msk [vmem:[%s500 + $0x1c4] sm:$0xf] %vm3349, %v11928
        %11993 = vst.msk [vmem:[%s500 + $0x1c8] sm:$0xf] %vm3349, %v11929
        %11994 = vst.msk [vmem:[%s500 + $0x1cc] sm:$0xf] %vm3349, %v11930
        %11995 = vst.msk [vmem:[%s500 + $0x1d0] sm:$0xf] %vm3349, %v11931
        %11996 = vst.msk [vmem:[%s500 + $0x1d4] sm:$0xf] %vm3349, %v11932
        %11997 = vst.msk [vmem:[%s500 + $0x1d8] sm:$0xf] %vm3349, %v11933
        %11998 = vst.msk [vmem:[%s500 + $0x1dc] sm:$0xf] %vm3349, %v11934
        %11999 = vst.msk [vmem:[%s500 + $0x1e0] sm:$0xf] %vm3349, %v11935
        %12000 = vst.msk [vmem:[%s500 + $0x1e4] sm:$0xf] %vm3349, %v11936
        %12001 = vst.msk [vmem:[%s500 + $0x1e8] sm:$0xf] %vm3349, %v11937
        %12002 = vst.msk [vmem:[%s500 + $0x1ec] sm:$0xf] %vm3349, %v11938
        %12003 = vst.msk [vmem:[%s500 + $0x1f0] sm:$0xf] %vm3349, %v11939
        %12004 = vst.msk [vmem:[%s500 + $0x1f4] sm:$0xf] %vm3349, %v11940
        %12005 = vst.msk [vmem:[%s500 + $0x1f8] sm:$0xf] %vm3349, %v11941
        %12006 = vst.msk [vmem:[%s500 + $0x1fc] sm:$0xf] %vm3349, %v11942
        %s12007 = sand.u32 %s276, 1
        %s12008 = scalar_lea.sflag [#allocation3], %s12007
        %s12009 = sand.u32 %s276, 1
        %s12010 = smul.addr %s12009, 512
        %s12011 = scalar_lea.vmem [#allocation2], %s12010
        %s12012 = sand.u32 %s32, 1
        %s12013 = scalar_lea.sflag [#allocation5], %s12012
        %s12014 = sand.u32 %s302, 1
        %s12015 = smul.addr %s12014, 512
        %s12016 = scalar_lea.vmem [#allocation4], %s12015
        %s12017 = sand.u32 %s32, 1
        %s12018 = scalar_lea.sflag [#allocation5], %s12017
        %s12019 = sand.u32 %s328, 1
        %s12020 = smul.addr %s12019, 1024
        %s12021 = scalar_lea.vmem [#allocation6], %s12020
        %s12022 = smul.u32 128, %s32
        %p12023 = scmp.lt.s32.totalorder %s12022, 255
        %s12024 = scalar_select %p12023, %s12022, 255
        %s12025 = smul.addr %s12024, 4
        %s12026 = scalar_lea.vmem %s14, %s12025
        // Predicated region
        $region65: #{tpu_custom_call.1} parent=63 // pred_check
          %p12027 = pneg %p286
        $region66: #{tpu_custom_call.1} parent=63 // pred_check_branch
          %12029 = sbr.rel (%p12027) target = $region68
        $region67: #{tpu_custom_call.1} parent=63 // pred_region
          %s12030 = smul.u32 128, %s32
          %s12032 = ssub.s32 8192, 8192
          %12033 = vsyncadd %s12008, %s12032
          %s12034 = smul.addr %s12030, 64
          %s12035 = scalar_lea.hbm %s11, %s12034
          %s12036 = sshll.u32 %s12011, 4
          %s12037 = int_to_ptr.vmem [resolvable:$true] %s12036
          %12042 = dma.vmem_to_hbm [thread:$0]  %s12037, 8192, %s12035, %s12008, 64, 64, 4
        $region68: #{tpu_custom_call.1} parent=63 // pred_fallthru
          _
        // Predicated region
        $region69: #{tpu_custom_call.1} parent=63 // pred_check
          %p12043 = pneg %p312
        $region70: #{tpu_custom_call.1} parent=63 // pred_check_branch
          %12045 = sbr.rel (%p12043) target = $region72
        $region71: #{tpu_custom_call.1} parent=63 // pred_region
          %s12046 = smul.u32 128, %s32
          %s12048 = ssub.s32 8192, 8192
          %12049 = vsyncadd %s12013, %s12048
          %s12050 = smul.addr %s12046, 64
          %s12051 = scalar_lea.hbm %s12, %s12050
          %s12052 = sshll.u32 %s12016, 4
          %s12053 = int_to_ptr.vmem [resolvable:$true] %s12052
          %12058 = dma.vmem_to_hbm [thread:$0]  %s12053, 8192, %s12051, %s12013, 64, 64, 4
        $region72: #{tpu_custom_call.1} parent=63 // pred_fallthru
          _
        // Predicated region
        $region73: #{tpu_custom_call.1} parent=63 // pred_check
          %p12059 = pneg %p338
        $region74: #{tpu_custom_call.1} parent=63 // pred_check_branch
          %12061 = sbr.rel (%p12059) target = $region76
        $region75: #{tpu_custom_call.1} parent=63 // pred_region
          %s12062 = smul.u32 128, %s32
          %s12064 = ssub.s32 16384, 16384
          %12065 = vsyncadd %s12018, %s12064
          %s12066 = smul.addr %s12062, 2
          %s12067 = smul.addr %s12066, 64
          %s12068 = scalar_lea.hbm %s13, %s12067
          %s12069 = sshll.u32 %s12021, 4
          %s12070 = int_to_ptr.vmem [resolvable:$true] %s12069
          %12075 = dma.vmem_to_hbm [thread:$0]  %s12070, 16384, %s12068, %s12018, 128, 128, 8
        $region76: #{tpu_custom_call.1} parent=63 // pred_fallthru
          _
        // Predicated region
        $region77: #{tpu_custom_call.1} parent=63 // pred_check
          %p12076 = pneg %p364
        $region78: #{tpu_custom_call.1} parent=63 // pred_check_branch
          %12078 = sbr.rel (%p12076) target = $region80
        $region79: #{tpu_custom_call.1} parent=63 // pred_region
          %s12079 = smul.u32 128, %s32
        $region80: #{tpu_custom_call.1} parent=63 // pred_fallthru
          _
      $region64: #{tpu_custom_call.1} parent=5 // pred_fallthru
        _
      %p12080 = scmp.le.s32.totalorder 2, %s27
      // Predicated region
      $region81: #{tpu_custom_call.1} parent=5 // pred_check
        %p12081 = pneg %p12080
      $region82: #{tpu_custom_call.1} parent=5 // pred_check_branch
        %12083 = sbr.rel (%p12081) target = $region84
      $region83: #{tpu_custom_call.1} parent=5 // pred_region
        %s12084 = ssub.s32 %s27, 2
        // Predicated region
        $region85: #{tpu_custom_call.1} parent=83 // pred_check
          %p12085 = pneg %p292
        $region86: #{tpu_custom_call.1} parent=83 // pred_check_branch
          %12087 = sbr.rel (%p12085) target = $region88
        $region87: #{tpu_custom_call.1} parent=83 // pred_region
          %s12088 = sand.u32 %s277, 1
          %s12089 = scalar_lea.sflag [#allocation3], %s12088
          %s12090 = sand.u32 %s277, 1
          %s12091 = smul.addr %s12090, 512
          %s12092 = scalar_lea.vmem [#allocation2], %s12091
          %12093 = dma.done %s12089, 8192
        $region88: #{tpu_custom_call.1} parent=83 // pred_fallthru
          _
        // Predicated region
        $region89: #{tpu_custom_call.1} parent=83 // pred_check
          %p12094 = pneg %p318
        $region90: #{tpu_custom_call.1} parent=83 // pred_check_branch
          %12096 = sbr.rel (%p12094) target = $region92
        $region91: #{tpu_custom_call.1} parent=83 // pred_region
          %s12097 = sand.u32 %s33, 1
          %s12098 = scalar_lea.sflag [#allocation5], %s12097
          %s12099 = sand.u32 %s303, 1
          %s12100 = smul.addr %s12099, 512
          %s12101 = scalar_lea.vmem [#allocation4], %s12100
          %12102 = dma.done %s12098, 8192
        $region92: #{tpu_custom_call.1} parent=83 // pred_fallthru
          _
        // Predicated region
        $region93: #{tpu_custom_call.1} parent=83 // pred_check
          %p12103 = pneg %p344
        $region94: #{tpu_custom_call.1} parent=83 // pred_check_branch
          %12105 = sbr.rel (%p12103) target = $region96
        $region95: #{tpu_custom_call.1} parent=83 // pred_region
          %s12106 = sand.u32 %s33, 1
          %s12107 = scalar_lea.sflag [#allocation5], %s12106
          %s12108 = sand.u32 %s329, 1
          %s12109 = smul.addr %s12108, 1024
          %s12110 = scalar_lea.vmem [#allocation6], %s12109
          %12111 = dma.done %s12107, 16384
        $region96: #{tpu_custom_call.1} parent=83 // pred_fallthru
          _
        // Predicated region
        $region97: #{tpu_custom_call.1} parent=83 // pred_check
          %p12112 = pneg %p370
        $region98: #{tpu_custom_call.1} parent=83 // pred_check_branch
          %12114 = sbr.rel (%p12112) target = $region100
        $region99: #{tpu_custom_call.1} parent=83 // pred_region
          %s12115 = smul.u32 128, %s33
          %p12116 = scmp.lt.s32.totalorder %s12115, 255
          %s12117 = scalar_select %p12116, %s12115, 255
          %s12118 = smul.addr %s12117, 4
          %s12119 = scalar_lea.vmem %s14, %s12118
        $region100: #{tpu_custom_call.1} parent=83 // pred_fallthru
          _
      $region84: #{tpu_custom_call.1} parent=5 // pred_fallthru
        _
    $region6: #{tpu_custom_call.1} parent=1 // loop_footer
      %s31 = sadd.s32 1, %s27
    $region7: #{tpu_custom_call.1} parent=1 // loop_footer_branch
      %26 = sbr.rel target = $region3
    $region8: #{tpu_custom_call.1} parent=1 // loop_exit
      _
    %12120 = vsyncpa [#allocation3], 1
    %s12121 = scalar_lea.sflag [#allocation3], 1
    %12122 = vsyncpa %s12121, 1
    %12123 = vsyncpa [#allocation5], 1
    %s12124 = scalar_lea.sflag [#allocation5], 1
    %12125 = vsyncpa %s12124, 1

</llo_original>
